<compile_context>
chip_gen: v6e
topology: v6e:2x2x1
jax: 0.10.0
libtpu: 0.0.40
codegen_flags: <defaults>
</compile_context>

<pallas_src>
import numpy as np
import jax
import jax.numpy as jnp
from jax.experimental import pallas as pl
from jax.experimental.pallas import tpu as pltpu


# ------------------------------------------------------------------ Morton ---
def _morton_index_64():
    """idx[y*64 + x] = bit-interleaved quadtree index emitted by the kernel."""
    ys, xs = np.meshgrid(np.arange(64), np.arange(64), indexing="ij")
    m = np.zeros((64, 64), dtype=np.int64)
    for level in range(6):
        m = m * 4 + ((ys >> (5 - level)) & 1) * 2 + ((xs >> (5 - level)) & 1)
    return m.reshape(-1).astype(np.int32)


_MORTON_IDX = _morton_index_64()


# ------------------------------------------------------------ Pallas kernel ---
def _decoder_kernel(x_ref, wl, bl, m1, c1, m2, c2, m3, c3, m4, c4,
                    m5, c5, m6, c6, o_ref):
    """Whole decoder for one frame's batch; all intermediates stay in VMEM.

    Column layout after layer i is (q_1..q_i, channel) where q = 2*dy + dx of
    that deconv level.  Each layer is a plain matmul with a block-diagonal
    weight (same 2x2 deconv applied to every spatial block); the static loops
    only slice 128-aligned column ranges, so no relayout is needed.
    """
    f32 = jnp.float32
    x = x_ref[...]                                                   # (B, 64)
    a = jnp.dot(x, wl[...], preferred_element_type=f32) + bl[...]    # Linear (no ReLU)
    a = jnp.dot(a, m1[...], preferred_element_type=f32) + c1[...]
    a = jnp.maximum(a, 0.0)                                          # (B, 256) (q1, c)
    a = jnp.dot(a, m2[...], preferred_element_type=f32) + c2[...]
    z2 = jnp.maximum(a, 0.0)                                         # (B, 512) (q1, q2, c)
    for q1 in range(4):
        t = z2[:, q1 * 128:(q1 + 1) * 128]                           # (B, 128) (q2, c)
        t = jnp.maximum(
            jnp.dot(t, m3[...], preferred_element_type=f32) + c3[...], 0.0)
        t = jnp.maximum(
            jnp.dot(t, m4[...], preferred_element_type=f32) + c4[...], 0.0)
        # t: (B, 512) cols (q2, q3, q4, c)
        for q2 in range(4):
            u = t[:, q2 * 128:(q2 + 1) * 128]                        # (B, 128) (q3, q4, c)
            u = jnp.maximum(
                jnp.dot(u, m5[...], preferred_element_type=f32) + c5[...], 0.0)
            u = jnp.maximum(
                jnp.dot(u, m6[...], preferred_element_type=f32) + c6[...], 0.0)
            j = q1 * 4 + q2
            o_ref[:, j * 256:(j + 1) * 256] = u                      # (B, 256) (q3..q6)


# ----------------------------------------------------------------- wrapper ---
def test_forward(states, prep):
    """Equivalent of Test.forward: states (N, B, 64) -> (N, B, 64, 64)."""
    n_frames, batch, feat = states.shape
    assert feat == 64
    weight_specs = [pl.BlockSpec(a.shape, lambda i: (0, 0)) for a in prep]
    out = pl.pallas_call(
        _decoder_kernel,
        out_shape=jax.ShapeDtypeStruct((n_frames, batch, 4096), jnp.float32),
        grid_spec=pltpu.PrefetchScalarGridSpec(
            num_scalar_prefetch=0,
            grid=(n_frames,),
            in_specs=[pl.BlockSpec((None, batch, 64), lambda i: (i, 0, 0))]
                     + weight_specs,
            out_specs=pl.BlockSpec((None, batch, 4096), lambda i: (i, 0, 0)),
        ),
        compiler_params=pltpu.CompilerParams(
            dimension_semantics=("parallel",)),
    )(states, *prep)
    # Un-scramble Morton column order into raster (64, 64) images.
    return jnp.take(out, _MORTON_IDX, axis=2).reshape(n_frames, batch, 64, 64)


# ----------------------------------------------------------------- params ----
_CHANNELS = [(128, 64), (64, 32), (32, 16), (16, 8), (8, 4), (4, 1)]


def init_params(key):
    """Raw params in PyTorch layout: Linear (128,64)+(128,), ConvT (Ci,Co,2,2)+(Co,)."""
    keys = jax.random.split(key, 2 + 2 * len(_CHANNELS))

    def u(k, shape, fan_in):
        b = 1.0 / np.sqrt(fan_in)
        return jax.random.uniform(k, shape, jnp.float32, -b, b)

    wfc = u(keys[0], (128, 64), 64)
    bfc = u(keys[1], (128,), 64)
    tconvs = []
    for idx, (ci, co) in enumerate(_CHANNELS):
        w = u(keys[2 + 2 * idx], (ci, co, 2, 2), ci * 4)
        b = u(keys[3 + 2 * idx], (co,), ci * 4)
        tconvs.append((w, b))
    return (wfc, bfc), tconvs


def prepare_params(raw):
    """Pack PyTorch-layout params into the matmul-chain form the kernel uses."""
    (wfc, bfc), tconvs = raw

    def wflat(w):      # (Ci, Co, 2, 2) -> (Ci, 4*Co), cols ordered (2*kh+kw, co)
        ci, co = w.shape[0], w.shape[1]
        return jnp.transpose(w, (0, 2, 3, 1)).reshape(ci, 4 * co)

    def bdiag(w, n):   # apply the same 2x2 deconv to n independent spatial blocks
        return jnp.kron(jnp.eye(n, dtype=w.dtype), w)

    def brow(b, n):
        return jnp.tile(b, n).reshape(1, -1)

    (w1, b1), (w2, b2), (w3, b3), (w4, b4), (w5, b5), (w6, b6) = tconvs
    return (
        wfc.T, bfc.reshape(1, -1),                    # Linear  (64, 128)
        wflat(w1),            brow(b1, 4),            # L1      (128, 256)
        bdiag(wflat(w2), 4),  brow(b2, 16),           # L2      (256, 512)
        bdiag(wflat(w3), 4),  brow(b3, 16),           # L3      (128, 256)
        bdiag(wflat(w4), 16), brow(b4, 64),           # L4      (256, 512)
        bdiag(wflat(w5), 16), brow(b5, 64),           # L5      (128, 256)
        bdiag(wflat(w6), 64), brow(b6, 256),          # L6      (256, 256)
    )


# ------------------------------------------------------- pure-JAX reference ---
def ref_forward(states, raw):
    """Reference following the PyTorch definition (NCHW, explicit 2x2 scatter)."""
    hi = jax.lax.Precision.HIGHEST
    (wfc, bfc), tconvs = raw
    n_frames, batch, feat = states.shape
    x = jnp.dot(states.reshape(n_frames * batch, feat), wfc.T, precision=hi) + bfc
    x = x.reshape(n_frames * batch, 128, 1, 1)
    for w, b in tconvs:
        nb, _, h, wd = x.shape
        co = w.shape[1]
        # out[n, co, 2h+dh, 2w+dw] = sum_ci x[n, ci, h, w] * W[ci, co, dh, dw] + b[co]
        y = jnp.einsum("nchw,code->nohdwe", x, w, precision=hi)
        y = y.reshape(nb, co, 2 * h, 2 * wd) + b[None, :, None, None]
        x = jnp.maximum(y, 0.0)
    return x.reshape(n_frames, batch, 64, 64)


# TODO(synk): Test.criterion (nn.MSELoss) is not part of forward(); not implemented here.

if __name__ == "__main__":
    key = jax.random.PRNGKey(0)
    k_params, k_x = jax.random.split(key)
    raw = init_params(k_params)
    prep = prepare_params(raw)

    n_frames, batch = 2, 8          # states[frame]: (batch, 64) feeds Linear(64, 128)
    states = jax.random.normal(k_x, (n_frames, batch, 64), dtype=jnp.float32)

    fwd = jax.jit(test_forward)
    out = jax.block_until_ready(fwd(states, prep))
    assert out.shape == (n_frames, batch, 64, 64), out.shape

    ref = jax.block_until_ready(ref_forward(states, raw))
    max_err = float(jnp.max(jnp.abs(out - ref)))
    assert jnp.allclose(out, ref, atol=5e-3, rtol=5e-3), max_err

    print("KERNEL_OK")
</pallas_src>

<mosaic_0001>
module attributes {stable_mosaic.version = 11 : i64} {
  func.func @_decoder_kernel(%arg0: i32, %arg1: memref<1x8x64xf32, #tpu.memory_space<vmem>>, %arg2: memref<64x128xf32, #tpu.memory_space<vmem>>, %arg3: memref<1x128xf32, #tpu.memory_space<vmem>>, %arg4: memref<128x256xf32, #tpu.memory_space<vmem>>, %arg5: memref<1x256xf32, #tpu.memory_space<vmem>>, %arg6: memref<256x512xf32, #tpu.memory_space<vmem>>, %arg7: memref<1x512xf32, #tpu.memory_space<vmem>>, %arg8: memref<128x256xf32, #tpu.memory_space<vmem>>, %arg9: memref<1x256xf32, #tpu.memory_space<vmem>>, %arg10: memref<256x512xf32, #tpu.memory_space<vmem>>, %arg11: memref<1x512xf32, #tpu.memory_space<vmem>>, %arg12: memref<128x256xf32, #tpu.memory_space<vmem>>, %arg13: memref<1x256xf32, #tpu.memory_space<vmem>>, %arg14: memref<256x256xf32, #tpu.memory_space<vmem>>, %arg15: memref<1x256xf32, #tpu.memory_space<vmem>>, %arg16: memref<1x8x4096xf32, #tpu.memory_space<vmem>>) attributes {dimension_semantics = [#tpu.dimension_semantics<parallel>], iteration_bounds = array<i64: 2>, scalar_prefetch = 0 : i64, scratch_operands = 0 : i64, tpu.core_type = #tpu.core_type<tc>, window_params = [{transform_indices = @transform_0, window_bounds = array<i64: 1, 8, 64>}, {pipeline_mode = #tpu.pipeline_mode<synchronous>, transform_indices = @transform_1, window_bounds = array<i64: 64, 128>}, {pipeline_mode = #tpu.pipeline_mode<synchronous>, transform_indices = @transform_2, window_bounds = array<i64: 1, 128>}, {pipeline_mode = #tpu.pipeline_mode<synchronous>, transform_indices = @transform_3, window_bounds = array<i64: 128, 256>}, {pipeline_mode = #tpu.pipeline_mode<synchronous>, transform_indices = @transform_4, window_bounds = array<i64: 1, 256>}, {pipeline_mode = #tpu.pipeline_mode<synchronous>, transform_indices = @transform_5, window_bounds = array<i64: 256, 512>}, {pipeline_mode = #tpu.pipeline_mode<synchronous>, transform_indices = @transform_6, window_bounds = array<i64: 1, 512>}, {pipeline_mode = #tpu.pipeline_mode<synchronous>, transform_indices = @transform_7, window_bounds = array<i64: 128, 256>}, {pipeline_mode = #tpu.pipeline_mode<synchronous>, transform_indices = @transform_8, window_bounds = array<i64: 1, 256>}, {pipeline_mode = #tpu.pipeline_mode<synchronous>, transform_indices = @transform_9, window_bounds = array<i64: 256, 512>}, {pipeline_mode = #tpu.pipeline_mode<synchronous>, transform_indices = @transform_10, window_bounds = array<i64: 1, 512>}, {pipeline_mode = #tpu.pipeline_mode<synchronous>, transform_indices = @transform_11, window_bounds = array<i64: 128, 256>}, {pipeline_mode = #tpu.pipeline_mode<synchronous>, transform_indices = @transform_12, window_bounds = array<i64: 1, 256>}, {pipeline_mode = #tpu.pipeline_mode<synchronous>, transform_indices = @transform_13, window_bounds = array<i64: 256, 256>}, {pipeline_mode = #tpu.pipeline_mode<synchronous>, transform_indices = @transform_14, window_bounds = array<i64: 1, 256>}, {transform_indices = @transform_15, window_bounds = array<i64: 1, 8, 4096>}]} {
    %c0 = arith.constant 0 : index
    %c0_0 = arith.constant 0 : index
    %c0_1 = arith.constant 0 : index
    %0 = vector.load %arg1[%c0, %c0_0, %c0_1] : memref<1x8x64xf32, #tpu.memory_space<vmem>>, vector<1x8x64xf32>
    %1 = vector.shape_cast %0 : vector<1x8x64xf32> to vector<8x64xf32>
    %c0_2 = arith.constant 0 : index
    %c0_3 = arith.constant 0 : index
    %2 = vector.load %arg2[%c0_2, %c0_3] : memref<64x128xf32, #tpu.memory_space<vmem>>, vector<64x128xf32>
    %cst = arith.constant dense<0.000000e+00> : vector<8x128xf32>
    %3 = tpu.matmul %1, %2, %cst {dimension_numbers = #tpu.dot_dimension_numbers<[1], [0], [0], [1], [0, 0, 1, 1], [], []>} : vector<8x64xf32>, vector<64x128xf32>, vector<8x128xf32> -> vector<8x128xf32>
    %c0_4 = arith.constant 0 : index
    %c0_5 = arith.constant 0 : index
    %4 = vector.load %arg3[%c0_4, %c0_5] : memref<1x128xf32, #tpu.memory_space<vmem>>, vector<1x128xf32>
    %5 = vector.broadcast %4 : vector<1x128xf32> to vector<8x128xf32>
    %6 = arith.addf %3, %5 : vector<8x128xf32>
    %c0_6 = arith.constant 0 : index
    %c0_7 = arith.constant 0 : index
    %7 = vector.load %arg4[%c0_6, %c0_7] : memref<128x256xf32, #tpu.memory_space<vmem>>, vector<128x256xf32>
    %cst_8 = arith.constant dense<0.000000e+00> : vector<8x256xf32>
    %8 = tpu.matmul %6, %7, %cst_8 {dimension_numbers = #tpu.dot_dimension_numbers<[1], [0], [0], [1], [0, 0, 1, 1], [], []>} : vector<8x128xf32>, vector<128x256xf32>, vector<8x256xf32> -> vector<8x256xf32>
    %c0_9 = arith.constant 0 : index
    %c0_10 = arith.constant 0 : index
    %9 = vector.load %arg5[%c0_9, %c0_10] : memref<1x256xf32, #tpu.memory_space<vmem>>, vector<1x256xf32>
    %10 = vector.broadcast %9 : vector<1x256xf32> to vector<8x256xf32>
    %11 = arith.addf %8, %10 : vector<8x256xf32>
    %cst_11 = arith.constant 0.000000e+00 : f32
    %12 = vector.broadcast %cst_11 : f32 to vector<8x256xf32>
    %13 = arith.maximumf %11, %12 : vector<8x256xf32>
    %c0_12 = arith.constant 0 : index
    %c0_13 = arith.constant 0 : index
    %14 = vector.load %arg6[%c0_12, %c0_13] : memref<256x512xf32, #tpu.memory_space<vmem>>, vector<256x512xf32>
    %cst_14 = arith.constant dense<0.000000e+00> : vector<8x512xf32>
    %15 = tpu.matmul %13, %14, %cst_14 {dimension_numbers = #tpu.dot_dimension_numbers<[1], [0], [0], [1], [0, 0, 1, 1], [], []>} : vector<8x256xf32>, vector<256x512xf32>, vector<8x512xf32> -> vector<8x512xf32>
    %c0_15 = arith.constant 0 : index
    %c0_16 = arith.constant 0 : index
    %16 = vector.load %arg7[%c0_15, %c0_16] : memref<1x512xf32, #tpu.memory_space<vmem>>, vector<1x512xf32>
    %17 = vector.broadcast %16 : vector<1x512xf32> to vector<8x512xf32>
    %18 = arith.addf %15, %17 : vector<8x512xf32>
    %cst_17 = arith.constant 0.000000e+00 : f32
    %19 = vector.broadcast %cst_17 : f32 to vector<8x512xf32>
    %20 = arith.maximumf %18, %19 : vector<8x512xf32>
    %21 = vector.extract_strided_slice %20 {offsets = [0, 0], sizes = [8, 128], strides = [1, 1]} : vector<8x512xf32> to vector<8x128xf32>
    %c0_18 = arith.constant 0 : index
    %c0_19 = arith.constant 0 : index
    %22 = vector.load %arg8[%c0_18, %c0_19] : memref<128x256xf32, #tpu.memory_space<vmem>>, vector<128x256xf32>
    %cst_20 = arith.constant dense<0.000000e+00> : vector<8x256xf32>
    %23 = tpu.matmul %21, %22, %cst_20 {dimension_numbers = #tpu.dot_dimension_numbers<[1], [0], [0], [1], [0, 0, 1, 1], [], []>} : vector<8x128xf32>, vector<128x256xf32>, vector<8x256xf32> -> vector<8x256xf32>
    %c0_21 = arith.constant 0 : index
    %c0_22 = arith.constant 0 : index
    %24 = vector.load %arg9[%c0_21, %c0_22] : memref<1x256xf32, #tpu.memory_space<vmem>>, vector<1x256xf32>
    %25 = vector.broadcast %24 : vector<1x256xf32> to vector<8x256xf32>
    %26 = arith.addf %23, %25 : vector<8x256xf32>
    %cst_23 = arith.constant 0.000000e+00 : f32
    %27 = vector.broadcast %cst_23 : f32 to vector<8x256xf32>
    %28 = arith.maximumf %26, %27 : vector<8x256xf32>
    %c0_24 = arith.constant 0 : index
    %c0_25 = arith.constant 0 : index
    %29 = vector.load %arg10[%c0_24, %c0_25] : memref<256x512xf32, #tpu.memory_space<vmem>>, vector<256x512xf32>
    %cst_26 = arith.constant dense<0.000000e+00> : vector<8x512xf32>
    %30 = tpu.matmul %28, %29, %cst_26 {dimension_numbers = #tpu.dot_dimension_numbers<[1], [0], [0], [1], [0, 0, 1, 1], [], []>} : vector<8x256xf32>, vector<256x512xf32>, vector<8x512xf32> -> vector<8x512xf32>
    %c0_27 = arith.constant 0 : index
    %c0_28 = arith.constant 0 : index
    %31 = vector.load %arg11[%c0_27, %c0_28] : memref<1x512xf32, #tpu.memory_space<vmem>>, vector<1x512xf32>
    %32 = vector.broadcast %31 : vector<1x512xf32> to vector<8x512xf32>
    %33 = arith.addf %30, %32 : vector<8x512xf32>
    %cst_29 = arith.constant 0.000000e+00 : f32
    %34 = vector.broadcast %cst_29 : f32 to vector<8x512xf32>
    %35 = arith.maximumf %33, %34 : vector<8x512xf32>
    %36 = vector.extract_strided_slice %35 {offsets = [0, 0], sizes = [8, 128], strides = [1, 1]} : vector<8x512xf32> to vector<8x128xf32>
    %c0_30 = arith.constant 0 : index
    %c0_31 = arith.constant 0 : index
    %37 = vector.load %arg12[%c0_30, %c0_31] : memref<128x256xf32, #tpu.memory_space<vmem>>, vector<128x256xf32>
    %cst_32 = arith.constant dense<0.000000e+00> : vector<8x256xf32>
    %38 = tpu.matmul %36, %37, %cst_32 {dimension_numbers = #tpu.dot_dimension_numbers<[1], [0], [0], [1], [0, 0, 1, 1], [], []>} : vector<8x128xf32>, vector<128x256xf32>, vector<8x256xf32> -> vector<8x256xf32>
    %c0_33 = arith.constant 0 : index
    %c0_34 = arith.constant 0 : index
    %39 = vector.load %arg13[%c0_33, %c0_34] : memref<1x256xf32, #tpu.memory_space<vmem>>, vector<1x256xf32>
    %40 = vector.broadcast %39 : vector<1x256xf32> to vector<8x256xf32>
    %41 = arith.addf %38, %40 : vector<8x256xf32>
    %cst_35 = arith.constant 0.000000e+00 : f32
    %42 = vector.broadcast %cst_35 : f32 to vector<8x256xf32>
    %43 = arith.maximumf %41, %42 : vector<8x256xf32>
    %c0_36 = arith.constant 0 : index
    %c0_37 = arith.constant 0 : index
    %44 = vector.load %arg14[%c0_36, %c0_37] : memref<256x256xf32, #tpu.memory_space<vmem>>, vector<256x256xf32>
    %cst_38 = arith.constant dense<0.000000e+00> : vector<8x256xf32>
    %45 = tpu.matmul %43, %44, %cst_38 {dimension_numbers = #tpu.dot_dimension_numbers<[1], [0], [0], [1], [0, 0, 1, 1], [], []>} : vector<8x256xf32>, vector<256x256xf32>, vector<8x256xf32> -> vector<8x256xf32>
    %c0_39 = arith.constant 0 : index
    %c0_40 = arith.constant 0 : index
    %46 = vector.load %arg15[%c0_39, %c0_40] : memref<1x256xf32, #tpu.memory_space<vmem>>, vector<1x256xf32>
    %47 = vector.broadcast %46 : vector<1x256xf32> to vector<8x256xf32>
    %48 = arith.addf %45, %47 : vector<8x256xf32>
    %cst_41 = arith.constant 0.000000e+00 : f32
    %49 = vector.broadcast %cst_41 : f32 to vector<8x256xf32>
    %50 = arith.maximumf %48, %49 : vector<8x256xf32>
    %c0_42 = arith.constant 0 : index
    %c0_43 = arith.constant 0 : index
    %c0_44 = arith.constant 0 : index
    %51 = vector.load %arg16[%c0_42, %c0_43, %c0_44] : memref<1x8x4096xf32, #tpu.memory_space<vmem>>, vector<1x8x256xf32>
    %52 = vector.shape_cast %51 : vector<1x8x256xf32> to vector<8x256xf32>
    %53 = vector.shape_cast %50 : vector<8x256xf32> to vector<1x8x256xf32>
    tpu.vector_store %arg16[%c0_42, %c0_43, %c0_44], %53 {strides = array<i32>} : memref<1x8x4096xf32, #tpu.memory_space<vmem>>, vector<1x8x256xf32>,
    %54 = vector.extract_strided_slice %35 {offsets = [0, 128], sizes = [8, 128], strides = [1, 1]} : vector<8x512xf32> to vector<8x128xf32>
    %c0_45 = arith.constant 0 : index
    %c0_46 = arith.constant 0 : index
    %55 = vector.load %arg12[%c0_45, %c0_46] : memref<128x256xf32, #tpu.memory_space<vmem>>, vector<128x256xf32>
    %cst_47 = arith.constant dense<0.000000e+00> : vector<8x256xf32>
    %56 = tpu.matmul %54, %55, %cst_47 {dimension_numbers = #tpu.dot_dimension_numbers<[1], [0], [0], [1], [0, 0, 1, 1], [], []>} : vector<8x128xf32>, vector<128x256xf32>, vector<8x256xf32> -> vector<8x256xf32>
    %c0_48 = arith.constant 0 : index
    %c0_49 = arith.constant 0 : index
    %57 = vector.load %arg13[%c0_48, %c0_49] : memref<1x256xf32, #tpu.memory_space<vmem>>, vector<1x256xf32>
    %58 = vector.broadcast %57 : vector<1x256xf32> to vector<8x256xf32>
    %59 = arith.addf %56, %58 : vector<8x256xf32>
    %cst_50 = arith.constant 0.000000e+00 : f32
    %60 = vector.broadcast %cst_50 : f32 to vector<8x256xf32>
    %61 = arith.maximumf %59, %60 : vector<8x256xf32>
    %c0_51 = arith.constant 0 : index
    %c0_52 = arith.constant 0 : index
    %62 = vector.load %arg14[%c0_51, %c0_52] : memref<256x256xf32, #tpu.memory_space<vmem>>, vector<256x256xf32>
    %cst_53 = arith.constant dense<0.000000e+00> : vector<8x256xf32>
    %63 = tpu.matmul %61, %62, %cst_53 {dimension_numbers = #tpu.dot_dimension_numbers<[1], [0], [0], [1], [0, 0, 1, 1], [], []>} : vector<8x256xf32>, vector<256x256xf32>, vector<8x256xf32> -> vector<8x256xf32>
    %c0_54 = arith.constant 0 : index
    %c0_55 = arith.constant 0 : index
    %64 = vector.load %arg15[%c0_54, %c0_55] : memref<1x256xf32, #tpu.memory_space<vmem>>, vector<1x256xf32>
    %65 = vector.broadcast %64 : vector<1x256xf32> to vector<8x256xf32>
    %66 = arith.addf %63, %65 : vector<8x256xf32>
    %cst_56 = arith.constant 0.000000e+00 : f32
    %67 = vector.broadcast %cst_56 : f32 to vector<8x256xf32>
    %68 = arith.maximumf %66, %67 : vector<8x256xf32>
    %c0_57 = arith.constant 0 : index
    %c0_58 = arith.constant 0 : index
    %c256 = arith.constant 256 : index
    %69 = vector.load %arg16[%c0_57, %c0_58, %c256] : memref<1x8x4096xf32, #tpu.memory_space<vmem>>, vector<1x8x256xf32>
    %70 = vector.shape_cast %69 : vector<1x8x256xf32> to vector<8x256xf32>
    %71 = vector.shape_cast %68 : vector<8x256xf32> to vector<1x8x256xf32>
    tpu.vector_store %arg16[%c0_57, %c0_58, %c256], %71 {strides = array<i32>} : memref<1x8x4096xf32, #tpu.memory_space<vmem>>, vector<1x8x256xf32>,
    %72 = vector.extract_strided_slice %35 {offsets = [0, 256], sizes = [8, 128], strides = [1, 1]} : vector<8x512xf32> to vector<8x128xf32>
    %c0_59 = arith.constant 0 : index
    %c0_60 = arith.constant 0 : index
    %73 = vector.load %arg12[%c0_59, %c0_60] : memref<128x256xf32, #tpu.memory_space<vmem>>, vector<128x256xf32>
    %cst_61 = arith.constant dense<0.000000e+00> : vector<8x256xf32>
    %74 = tpu.matmul %72, %73, %cst_61 {dimension_numbers = #tpu.dot_dimension_numbers<[1], [0], [0], [1], [0, 0, 1, 1], [], []>} : vector<8x128xf32>, vector<128x256xf32>, vector<8x256xf32> -> vector<8x256xf32>
    %c0_62 = arith.constant 0 : index
    %c0_63 = arith.constant 0 : index
    %75 = vector.load %arg13[%c0_62, %c0_63] : memref<1x256xf32, #tpu.memory_space<vmem>>, vector<1x256xf32>
    %76 = vector.broadcast %75 : vector<1x256xf32> to vector<8x256xf32>
    %77 = arith.addf %74, %76 : vector<8x256xf32>
    %cst_64 = arith.constant 0.000000e+00 : f32
    %78 = vector.broadcast %cst_64 : f32 to vector<8x256xf32>
    %79 = arith.maximumf %77, %78 : vector<8x256xf32>
    %c0_65 = arith.constant 0 : index
    %c0_66 = arith.constant 0 : index
    %80 = vector.load %arg14[%c0_65, %c0_66] : memref<256x256xf32, #tpu.memory_space<vmem>>, vector<256x256xf32>
    %cst_67 = arith.constant dense<0.000000e+00> : vector<8x256xf32>
    %81 = tpu.matmul %79, %80, %cst_67 {dimension_numbers = #tpu.dot_dimension_numbers<[1], [0], [0], [1], [0, 0, 1, 1], [], []>} : vector<8x256xf32>, vector<256x256xf32>, vector<8x256xf32> -> vector<8x256xf32>
    %c0_68 = arith.constant 0 : index
    %c0_69 = arith.constant 0 : index
    %82 = vector.load %arg15[%c0_68, %c0_69] : memref<1x256xf32, #tpu.memory_space<vmem>>, vector<1x256xf32>
    %83 = vector.broadcast %82 : vector<1x256xf32> to vector<8x256xf32>
    %84 = arith.addf %81, %83 : vector<8x256xf32>
    %cst_70 = arith.constant 0.000000e+00 : f32
    %85 = vector.broadcast %cst_70 : f32 to vector<8x256xf32>
    %86 = arith.maximumf %84, %85 : vector<8x256xf32>
    %c0_71 = arith.constant 0 : index
    %c0_72 = arith.constant 0 : index
    %c512 = arith.constant 512 : index
    %87 = vector.load %arg16[%c0_71, %c0_72, %c512] : memref<1x8x4096xf32, #tpu.memory_space<vmem>>, vector<1x8x256xf32>
    %88 = vector.shape_cast %87 : vector<1x8x256xf32> to vector<8x256xf32>
    %89 = vector.shape_cast %86 : vector<8x256xf32> to vector<1x8x256xf32>
    tpu.vector_store %arg16[%c0_71, %c0_72, %c512], %89 {strides = array<i32>} : memref<1x8x4096xf32, #tpu.memory_space<vmem>>, vector<1x8x256xf32>,
    %90 = vector.extract_strided_slice %35 {offsets = [0, 384], sizes = [8, 128], strides = [1, 1]} : vector<8x512xf32> to vector<8x128xf32>
    %c0_73 = arith.constant 0 : index
    %c0_74 = arith.constant 0 : index
    %91 = vector.load %arg12[%c0_73, %c0_74] : memref<128x256xf32, #tpu.memory_space<vmem>>, vector<128x256xf32>
    %cst_75 = arith.constant dense<0.000000e+00> : vector<8x256xf32>
    %92 = tpu.matmul %90, %91, %cst_75 {dimension_numbers = #tpu.dot_dimension_numbers<[1], [0], [0], [1], [0, 0, 1, 1], [], []>} : vector<8x128xf32>, vector<128x256xf32>, vector<8x256xf32> -> vector<8x256xf32>
    %c0_76 = arith.constant 0 : index
    %c0_77 = arith.constant 0 : index
    %93 = vector.load %arg13[%c0_76, %c0_77] : memref<1x256xf32, #tpu.memory_space<vmem>>, vector<1x256xf32>
    %94 = vector.broadcast %93 : vector<1x256xf32> to vector<8x256xf32>
    %95 = arith.addf %92, %94 : vector<8x256xf32>
    %cst_78 = arith.constant 0.000000e+00 : f32
    %96 = vector.broadcast %cst_78 : f32 to vector<8x256xf32>
    %97 = arith.maximumf %95, %96 : vector<8x256xf32>
    %c0_79 = arith.constant 0 : index
    %c0_80 = arith.constant 0 : index
    %98 = vector.load %arg14[%c0_79, %c0_80] : memref<256x256xf32, #tpu.memory_space<vmem>>, vector<256x256xf32>
    %cst_81 = arith.constant dense<0.000000e+00> : vector<8x256xf32>
    %99 = tpu.matmul %97, %98, %cst_81 {dimension_numbers = #tpu.dot_dimension_numbers<[1], [0], [0], [1], [0, 0, 1, 1], [], []>} : vector<8x256xf32>, vector<256x256xf32>, vector<8x256xf32> -> vector<8x256xf32>
    %c0_82 = arith.constant 0 : index
    %c0_83 = arith.constant 0 : index
    %100 = vector.load %arg15[%c0_82, %c0_83] : memref<1x256xf32, #tpu.memory_space<vmem>>, vector<1x256xf32>
    %101 = vector.broadcast %100 : vector<1x256xf32> to vector<8x256xf32>
    %102 = arith.addf %99, %101 : vector<8x256xf32>
    %cst_84 = arith.constant 0.000000e+00 : f32
    %103 = vector.broadcast %cst_84 : f32 to vector<8x256xf32>
    %104 = arith.maximumf %102, %103 : vector<8x256xf32>
    %c0_85 = arith.constant 0 : index
    %c0_86 = arith.constant 0 : index
    %c768 = arith.constant 768 : index
    %105 = vector.load %arg16[%c0_85, %c0_86, %c768] : memref<1x8x4096xf32, #tpu.memory_space<vmem>>, vector<1x8x256xf32>
    %106 = vector.shape_cast %105 : vector<1x8x256xf32> to vector<8x256xf32>
    %107 = vector.shape_cast %104 : vector<8x256xf32> to vector<1x8x256xf32>
    tpu.vector_store %arg16[%c0_85, %c0_86, %c768], %107 {strides = array<i32>} : memref<1x8x4096xf32, #tpu.memory_space<vmem>>, vector<1x8x256xf32>,
    %108 = vector.extract_strided_slice %20 {offsets = [0, 128], sizes = [8, 128], strides = [1, 1]} : vector<8x512xf32> to vector<8x128xf32>
    %c0_87 = arith.constant 0 : index
    %c0_88 = arith.constant 0 : index
    %109 = vector.load %arg8[%c0_87, %c0_88] : memref<128x256xf32, #tpu.memory_space<vmem>>, vector<128x256xf32>
    %cst_89 = arith.constant dense<0.000000e+00> : vector<8x256xf32>
    %110 = tpu.matmul %108, %109, %cst_89 {dimension_numbers = #tpu.dot_dimension_numbers<[1], [0], [0], [1], [0, 0, 1, 1], [], []>} : vector<8x128xf32>, vector<128x256xf32>, vector<8x256xf32> -> vector<8x256xf32>
    %c0_90 = arith.constant 0 : index
    %c0_91 = arith.constant 0 : index
    %111 = vector.load %arg9[%c0_90, %c0_91] : memref<1x256xf32, #tpu.memory_space<vmem>>, vector<1x256xf32>
    %112 = vector.broadcast %111 : vector<1x256xf32> to vector<8x256xf32>
    %113 = arith.addf %110, %112 : vector<8x256xf32>
    %cst_92 = arith.constant 0.000000e+00 : f32
    %114 = vector.broadcast %cst_92 : f32 to vector<8x256xf32>
    %115 = arith.maximumf %113, %114 : vector<8x256xf32>
    %c0_93 = arith.constant 0 : index
    %c0_94 = arith.constant 0 : index
    %116 = vector.load %arg10[%c0_93, %c0_94] : memref<256x512xf32, #tpu.memory_space<vmem>>, vector<256x512xf32>
    %cst_95 = arith.constant dense<0.000000e+00> : vector<8x512xf32>
    %117 = tpu.matmul %115, %116, %cst_95 {dimension_numbers = #tpu.dot_dimension_numbers<[1], [0], [0], [1], [0, 0, 1, 1], [], []>} : vector<8x256xf32>, vector<256x512xf32>, vector<8x512xf32> -> vector<8x512xf32>
    %c0_96 = arith.constant 0 : index
    %c0_97 = arith.constant 0 : index
    %118 = vector.load %arg11[%c0_96, %c0_97] : memref<1x512xf32, #tpu.memory_space<vmem>>, vector<1x512xf32>
    %119 = vector.broadcast %118 : vector<1x512xf32> to vector<8x512xf32>
    %120 = arith.addf %117, %119 : vector<8x512xf32>
    %cst_98 = arith.constant 0.000000e+00 : f32
    %121 = vector.broadcast %cst_98 : f32 to vector<8x512xf32>
    %122 = arith.maximumf %120, %121 : vector<8x512xf32>
    %123 = vector.extract_strided_slice %122 {offsets = [0, 0], sizes = [8, 128], strides = [1, 1]} : vector<8x512xf32> to vector<8x128xf32>
    %c0_99 = arith.constant 0 : index
    %c0_100 = arith.constant 0 : index
    %124 = vector.load %arg12[%c0_99, %c0_100] : memref<128x256xf32, #tpu.memory_space<vmem>>, vector<128x256xf32>
    %cst_101 = arith.constant dense<0.000000e+00> : vector<8x256xf32>
    %125 = tpu.matmul %123, %124, %cst_101 {dimension_numbers = #tpu.dot_dimension_numbers<[1], [0], [0], [1], [0, 0, 1, 1], [], []>} : vector<8x128xf32>, vector<128x256xf32>, vector<8x256xf32> -> vector<8x256xf32>
    %c0_102 = arith.constant 0 : index
    %c0_103 = arith.constant 0 : index
    %126 = vector.load %arg13[%c0_102, %c0_103] : memref<1x256xf32, #tpu.memory_space<vmem>>, vector<1x256xf32>
    %127 = vector.broadcast %126 : vector<1x256xf32> to vector<8x256xf32>
    %128 = arith.addf %125, %127 : vector<8x256xf32>
    %cst_104 = arith.constant 0.000000e+00 : f32
    %129 = vector.broadcast %cst_104 : f32 to vector<8x256xf32>
    %130 = arith.maximumf %128, %129 : vector<8x256xf32>
    %c0_105 = arith.constant 0 : index
    %c0_106 = arith.constant 0 : index
    %131 = vector.load %arg14[%c0_105, %c0_106] : memref<256x256xf32, #tpu.memory_space<vmem>>, vector<256x256xf32>
    %cst_107 = arith.constant dense<0.000000e+00> : vector<8x256xf32>
    %132 = tpu.matmul %130, %131, %cst_107 {dimension_numbers = #tpu.dot_dimension_numbers<[1], [0], [0], [1], [0, 0, 1, 1], [], []>} : vector<8x256xf32>, vector<256x256xf32>, vector<8x256xf32> -> vector<8x256xf32>
    %c0_108 = arith.constant 0 : index
    %c0_109 = arith.constant 0 : index
    %133 = vector.load %arg15[%c0_108, %c0_109] : memref<1x256xf32, #tpu.memory_space<vmem>>, vector<1x256xf32>
    %134 = vector.broadcast %133 : vector<1x256xf32> to vector<8x256xf32>
    %135 = arith.addf %132, %134 : vector<8x256xf32>
    %cst_110 = arith.constant 0.000000e+00 : f32
    %136 = vector.broadcast %cst_110 : f32 to vector<8x256xf32>
    %137 = arith.maximumf %135, %136 : vector<8x256xf32>
    %c0_111 = arith.constant 0 : index
    %c0_112 = arith.constant 0 : index
    %c1024 = arith.constant 1024 : index
    %138 = vector.load %arg16[%c0_111, %c0_112, %c1024] : memref<1x8x4096xf32, #tpu.memory_space<vmem>>, vector<1x8x256xf32>
    %139 = vector.shape_cast %138 : vector<1x8x256xf32> to vector<8x256xf32>
    %140 = vector.shape_cast %137 : vector<8x256xf32> to vector<1x8x256xf32>
    tpu.vector_store %arg16[%c0_111, %c0_112, %c1024], %140 {strides = array<i32>} : memref<1x8x4096xf32, #tpu.memory_space<vmem>>, vector<1x8x256xf32>,
    %141 = vector.extract_strided_slice %122 {offsets = [0, 128], sizes = [8, 128], strides = [1, 1]} : vector<8x512xf32> to vector<8x128xf32>
    %c0_113 = arith.constant 0 : index
    %c0_114 = arith.constant 0 : index
    %142 = vector.load %arg12[%c0_113, %c0_114] : memref<128x256xf32, #tpu.memory_space<vmem>>, vector<128x256xf32>
    %cst_115 = arith.constant dense<0.000000e+00> : vector<8x256xf32>
    %143 = tpu.matmul %141, %142, %cst_115 {dimension_numbers = #tpu.dot_dimension_numbers<[1], [0], [0], [1], [0, 0, 1, 1], [], []>} : vector<8x128xf32>, vector<128x256xf32>, vector<8x256xf32> -> vector<8x256xf32>
    %c0_116 = arith.constant 0 : index
    %c0_117 = arith.constant 0 : index
    %144 = vector.load %arg13[%c0_116, %c0_117] : memref<1x256xf32, #tpu.memory_space<vmem>>, vector<1x256xf32>
    %145 = vector.broadcast %144 : vector<1x256xf32> to vector<8x256xf32>
    %146 = arith.addf %143, %145 : vector<8x256xf32>
    %cst_118 = arith.constant 0.000000e+00 : f32
    %147 = vector.broadcast %cst_118 : f32 to vector<8x256xf32>
    %148 = arith.maximumf %146, %147 : vector<8x256xf32>
    %c0_119 = arith.constant 0 : index
    %c0_120 = arith.constant 0 : index
    %149 = vector.load %arg14[%c0_119, %c0_120] : memref<256x256xf32, #tpu.memory_space<vmem>>, vector<256x256xf32>
    %cst_121 = arith.constant dense<0.000000e+00> : vector<8x256xf32>
    %150 = tpu.matmul %148, %149, %cst_121 {dimension_numbers = #tpu.dot_dimension_numbers<[1], [0], [0], [1], [0, 0, 1, 1], [], []>} : vector<8x256xf32>, vector<256x256xf32>, vector<8x256xf32> -> vector<8x256xf32>
    %c0_122 = arith.constant 0 : index
    %c0_123 = arith.constant 0 : index
    %151 = vector.load %arg15[%c0_122, %c0_123] : memref<1x256xf32, #tpu.memory_space<vmem>>, vector<1x256xf32>
    %152 = vector.broadcast %151 : vector<1x256xf32> to vector<8x256xf32>
    %153 = arith.addf %150, %152 : vector<8x256xf32>
    %cst_124 = arith.constant 0.000000e+00 : f32
    %154 = vector.broadcast %cst_124 : f32 to vector<8x256xf32>
    %155 = arith.maximumf %153, %154 : vector<8x256xf32>
    %c0_125 = arith.constant 0 : index
    %c0_126 = arith.constant 0 : index
    %c1280 = arith.constant 1280 : index
    %156 = vector.load %arg16[%c0_125, %c0_126, %c1280] : memref<1x8x4096xf32, #tpu.memory_space<vmem>>, vector<1x8x256xf32>
    %157 = vector.shape_cast %156 : vector<1x8x256xf32> to vector<8x256xf32>
    %158 = vector.shape_cast %155 : vector<8x256xf32> to vector<1x8x256xf32>
    tpu.vector_store %arg16[%c0_125, %c0_126, %c1280], %158 {strides = array<i32>} : memref<1x8x4096xf32, #tpu.memory_space<vmem>>, vector<1x8x256xf32>,
    %159 = vector.extract_strided_slice %122 {offsets = [0, 256], sizes = [8, 128], strides = [1, 1]} : vector<8x512xf32> to vector<8x128xf32>
    %c0_127 = arith.constant 0 : index
    %c0_128 = arith.constant 0 : index
    %160 = vector.load %arg12[%c0_127, %c0_128] : memref<128x256xf32, #tpu.memory_space<vmem>>, vector<128x256xf32>
    %cst_129 = arith.constant dense<0.000000e+00> : vector<8x256xf32>
    %161 = tpu.matmul %159, %160, %cst_129 {dimension_numbers = #tpu.dot_dimension_numbers<[1], [0], [0], [1], [0, 0, 1, 1], [], []>} : vector<8x128xf32>, vector<128x256xf32>, vector<8x256xf32> -> vector<8x256xf32>
    %c0_130 = arith.constant 0 : index
    %c0_131 = arith.constant 0 : index
    %162 = vector.load %arg13[%c0_130, %c0_131] : memref<1x256xf32, #tpu.memory_space<vmem>>, vector<1x256xf32>
    %163 = vector.broadcast %162 : vector<1x256xf32> to vector<8x256xf32>
    %164 = arith.addf %161, %163 : vector<8x256xf32>
    %cst_132 = arith.constant 0.000000e+00 : f32
    %165 = vector.broadcast %cst_132 : f32 to vector<8x256xf32>
    %166 = arith.maximumf %164, %165 : vector<8x256xf32>
    %c0_133 = arith.constant 0 : index
    %c0_134 = arith.constant 0 : index
    %167 = vector.load %arg14[%c0_133, %c0_134] : memref<256x256xf32, #tpu.memory_space<vmem>>, vector<256x256xf32>
    %cst_135 = arith.constant dense<0.000000e+00> : vector<8x256xf32>
    %168 = tpu.matmul %166, %167, %cst_135 {dimension_numbers = #tpu.dot_dimension_numbers<[1], [0], [0], [1], [0, 0, 1, 1], [], []>} : vector<8x256xf32>, vector<256x256xf32>, vector<8x256xf32> -> vector<8x256xf32>
    %c0_136 = arith.constant 0 : index
    %c0_137 = arith.constant 0 : index
    %169 = vector.load %arg15[%c0_136, %c0_137] : memref<1x256xf32, #tpu.memory_space<vmem>>, vector<1x256xf32>
    %170 = vector.broadcast %169 : vector<1x256xf32> to vector<8x256xf32>
    %171 = arith.addf %168, %170 : vector<8x256xf32>
    %cst_138 = arith.constant 0.000000e+00 : f32
    %172 = vector.broadcast %cst_138 : f32 to vector<8x256xf32>
    %173 = arith.maximumf %171, %172 : vector<8x256xf32>
    %c0_139 = arith.constant 0 : index
    %c0_140 = arith.constant 0 : index
    %c1536 = arith.constant 1536 : index
    %174 = vector.load %arg16[%c0_139, %c0_140, %c1536] : memref<1x8x4096xf32, #tpu.memory_space<vmem>>, vector<1x8x256xf32>
    %175 = vector.shape_cast %174 : vector<1x8x256xf32> to vector<8x256xf32>
    %176 = vector.shape_cast %173 : vector<8x256xf32> to vector<1x8x256xf32>
    tpu.vector_store %arg16[%c0_139, %c0_140, %c1536], %176 {strides = array<i32>} : memref<1x8x4096xf32, #tpu.memory_space<vmem>>, vector<1x8x256xf32>,
    %177 = vector.extract_strided_slice %122 {offsets = [0, 384], sizes = [8, 128], strides = [1, 1]} : vector<8x512xf32> to vector<8x128xf32>
    %c0_141 = arith.constant 0 : index
    %c0_142 = arith.constant 0 : index
    %178 = vector.load %arg12[%c0_141, %c0_142] : memref<128x256xf32, #tpu.memory_space<vmem>>, vector<128x256xf32>
    %cst_143 = arith.constant dense<0.000000e+00> : vector<8x256xf32>
    %179 = tpu.matmul %177, %178, %cst_143 {dimension_numbers = #tpu.dot_dimension_numbers<[1], [0], [0], [1], [0, 0, 1, 1], [], []>} : vector<8x128xf32>, vector<128x256xf32>, vector<8x256xf32> -> vector<8x256xf32>
    %c0_144 = arith.constant 0 : index
    %c0_145 = arith.constant 0 : index
    %180 = vector.load %arg13[%c0_144, %c0_145] : memref<1x256xf32, #tpu.memory_space<vmem>>, vector<1x256xf32>
    %181 = vector.broadcast %180 : vector<1x256xf32> to vector<8x256xf32>
    %182 = arith.addf %179, %181 : vector<8x256xf32>
    %cst_146 = arith.constant 0.000000e+00 : f32
    %183 = vector.broadcast %cst_146 : f32 to vector<8x256xf32>
    %184 = arith.maximumf %182, %183 : vector<8x256xf32>
    %c0_147 = arith.constant 0 : index
    %c0_148 = arith.constant 0 : index
    %185 = vector.load %arg14[%c0_147, %c0_148] : memref<256x256xf32, #tpu.memory_space<vmem>>, vector<256x256xf32>
    %cst_149 = arith.constant dense<0.000000e+00> : vector<8x256xf32>
    %186 = tpu.matmul %184, %185, %cst_149 {dimension_numbers = #tpu.dot_dimension_numbers<[1], [0], [0], [1], [0, 0, 1, 1], [], []>} : vector<8x256xf32>, vector<256x256xf32>, vector<8x256xf32> -> vector<8x256xf32>
    %c0_150 = arith.constant 0 : index
    %c0_151 = arith.constant 0 : index
    %187 = vector.load %arg15[%c0_150, %c0_151] : memref<1x256xf32, #tpu.memory_space<vmem>>, vector<1x256xf32>
    %188 = vector.broadcast %187 : vector<1x256xf32> to vector<8x256xf32>
    %189 = arith.addf %186, %188 : vector<8x256xf32>
    %cst_152 = arith.constant 0.000000e+00 : f32
    %190 = vector.broadcast %cst_152 : f32 to vector<8x256xf32>
    %191 = arith.maximumf %189, %190 : vector<8x256xf32>
    %c0_153 = arith.constant 0 : index
    %c0_154 = arith.constant 0 : index
    %c1792 = arith.constant 1792 : index
    %192 = vector.load %arg16[%c0_153, %c0_154, %c1792] : memref<1x8x4096xf32, #tpu.memory_space<vmem>>, vector<1x8x256xf32>
    %193 = vector.shape_cast %192 : vector<1x8x256xf32> to vector<8x256xf32>
    %194 = vector.shape_cast %191 : vector<8x256xf32> to vector<1x8x256xf32>
    tpu.vector_store %arg16[%c0_153, %c0_154, %c1792], %194 {strides = array<i32>} : memref<1x8x4096xf32, #tpu.memory_space<vmem>>, vector<1x8x256xf32>,
    %195 = vector.extract_strided_slice %20 {offsets = [0, 256], sizes = [8, 128], strides = [1, 1]} : vector<8x512xf32> to vector<8x128xf32>
    %c0_155 = arith.constant 0 : index
    %c0_156 = arith.constant 0 : index
    %196 = vector.load %arg8[%c0_155, %c0_156] : memref<128x256xf32, #tpu.memory_space<vmem>>, vector<128x256xf32>
    %cst_157 = arith.constant dense<0.000000e+00> : vector<8x256xf32>
    %197 = tpu.matmul %195, %196, %cst_157 {dimension_numbers = #tpu.dot_dimension_numbers<[1], [0], [0], [1], [0, 0, 1, 1], [], []>} : vector<8x128xf32>, vector<128x256xf32>, vector<8x256xf32> -> vector<8x256xf32>
    %c0_158 = arith.constant 0 : index
    %c0_159 = arith.constant 0 : index
    %198 = vector.load %arg9[%c0_158, %c0_159] : memref<1x256xf32, #tpu.memory_space<vmem>>, vector<1x256xf32>
    %199 = vector.broadcast %198 : vector<1x256xf32> to vector<8x256xf32>
    %200 = arith.addf %197, %199 : vector<8x256xf32>
    %cst_160 = arith.constant 0.000000e+00 : f32
    %201 = vector.broadcast %cst_160 : f32 to vector<8x256xf32>
    %202 = arith.maximumf %200, %201 : vector<8x256xf32>
    %c0_161 = arith.constant 0 : index
    %c0_162 = arith.constant 0 : index
    %203 = vector.load %arg10[%c0_161, %c0_162] : memref<256x512xf32, #tpu.memory_space<vmem>>, vector<256x512xf32>
    %cst_163 = arith.constant dense<0.000000e+00> : vector<8x512xf32>
    %204 = tpu.matmul %202, %203, %cst_163 {dimension_numbers = #tpu.dot_dimension_numbers<[1], [0], [0], [1], [0, 0, 1, 1], [], []>} : vector<8x256xf32>, vector<256x512xf32>, vector<8x512xf32> -> vector<8x512xf32>
    %c0_164 = arith.constant 0 : index
    %c0_165 = arith.constant 0 : index
    %205 = vector.load %arg11[%c0_164, %c0_165] : memref<1x512xf32, #tpu.memory_space<vmem>>, vector<1x512xf32>
    %206 = vector.broadcast %205 : vector<1x512xf32> to vector<8x512xf32>
    %207 = arith.addf %204, %206 : vector<8x512xf32>
    %cst_166 = arith.constant 0.000000e+00 : f32
    %208 = vector.broadcast %cst_166 : f32 to vector<8x512xf32>
    %209 = arith.maximumf %207, %208 : vector<8x512xf32>
    %210 = vector.extract_strided_slice %209 {offsets = [0, 0], sizes = [8, 128], strides = [1, 1]} : vector<8x512xf32> to vector<8x128xf32>
    %c0_167 = arith.constant 0 : index
    %c0_168 = arith.constant 0 : index
    %211 = vector.load %arg12[%c0_167, %c0_168] : memref<128x256xf32, #tpu.memory_space<vmem>>, vector<128x256xf32>
    %cst_169 = arith.constant dense<0.000000e+00> : vector<8x256xf32>
    %212 = tpu.matmul %210, %211, %cst_169 {dimension_numbers = #tpu.dot_dimension_numbers<[1], [0], [0], [1], [0, 0, 1, 1], [], []>} : vector<8x128xf32>, vector<128x256xf32>, vector<8x256xf32> -> vector<8x256xf32>
    %c0_170 = arith.constant 0 : index
    %c0_171 = arith.constant 0 : index
    %213 = vector.load %arg13[%c0_170, %c0_171] : memref<1x256xf32, #tpu.memory_space<vmem>>, vector<1x256xf32>
    %214 = vector.broadcast %213 : vector<1x256xf32> to vector<8x256xf32>
    %215 = arith.addf %212, %214 : vector<8x256xf32>
    %cst_172 = arith.constant 0.000000e+00 : f32
    %216 = vector.broadcast %cst_172 : f32 to vector<8x256xf32>
    %217 = arith.maximumf %215, %216 : vector<8x256xf32>
    %c0_173 = arith.constant 0 : index
    %c0_174 = arith.constant 0 : index
    %218 = vector.load %arg14[%c0_173, %c0_174] : memref<256x256xf32, #tpu.memory_space<vmem>>, vector<256x256xf32>
    %cst_175 = arith.constant dense<0.000000e+00> : vector<8x256xf32>
    %219 = tpu.matmul %217, %218, %cst_175 {dimension_numbers = #tpu.dot_dimension_numbers<[1], [0], [0], [1], [0, 0, 1, 1], [], []>} : vector<8x256xf32>, vector<256x256xf32>, vector<8x256xf32> -> vector<8x256xf32>
    %c0_176 = arith.constant 0 : index
    %c0_177 = arith.constant 0 : index
    %220 = vector.load %arg15[%c0_176, %c0_177] : memref<1x256xf32, #tpu.memory_space<vmem>>, vector<1x256xf32>
    %221 = vector.broadcast %220 : vector<1x256xf32> to vector<8x256xf32>
    %222 = arith.addf %219, %221 : vector<8x256xf32>
    %cst_178 = arith.constant 0.000000e+00 : f32
    %223 = vector.broadcast %cst_178 : f32 to vector<8x256xf32>
    %224 = arith.maximumf %222, %223 : vector<8x256xf32>
    %c0_179 = arith.constant 0 : index
    %c0_180 = arith.constant 0 : index
    %c2048 = arith.constant 2048 : index
    %225 = vector.load %arg16[%c0_179, %c0_180, %c2048] : memref<1x8x4096xf32, #tpu.memory_space<vmem>>, vector<1x8x256xf32>
    %226 = vector.shape_cast %225 : vector<1x8x256xf32> to vector<8x256xf32>
    %227 = vector.shape_cast %224 : vector<8x256xf32> to vector<1x8x256xf32>
    tpu.vector_store %arg16[%c0_179, %c0_180, %c2048], %227 {strides = array<i32>} : memref<1x8x4096xf32, #tpu.memory_space<vmem>>, vector<1x8x256xf32>,
    %228 = vector.extract_strided_slice %209 {offsets = [0, 128], sizes = [8, 128], strides = [1, 1]} : vector<8x512xf32> to vector<8x128xf32>
    %c0_181 = arith.constant 0 : index
    %c0_182 = arith.constant 0 : index
    %229 = vector.load %arg12[%c0_181, %c0_182] : memref<128x256xf32, #tpu.memory_space<vmem>>, vector<128x256xf32>
    %cst_183 = arith.constant dense<0.000000e+00> : vector<8x256xf32>
    %230 = tpu.matmul %228, %229, %cst_183 {dimension_numbers = #tpu.dot_dimension_numbers<[1], [0], [0], [1], [0, 0, 1, 1], [], []>} : vector<8x128xf32>, vector<128x256xf32>, vector<8x256xf32> -> vector<8x256xf32>
    %c0_184 = arith.constant 0 : index
    %c0_185 = arith.constant 0 : index
    %231 = vector.load %arg13[%c0_184, %c0_185] : memref<1x256xf32, #tpu.memory_space<vmem>>, vector<1x256xf32>
    %232 = vector.broadcast %231 : vector<1x256xf32> to vector<8x256xf32>
    %233 = arith.addf %230, %232 : vector<8x256xf32>
    %cst_186 = arith.constant 0.000000e+00 : f32
    %234 = vector.broadcast %cst_186 : f32 to vector<8x256xf32>
    %235 = arith.maximumf %233, %234 : vector<8x256xf32>
    %c0_187 = arith.constant 0 : index
    %c0_188 = arith.constant 0 : index
    %236 = vector.load %arg14[%c0_187, %c0_188] : memref<256x256xf32, #tpu.memory_space<vmem>>, vector<256x256xf32>
    %cst_189 = arith.constant dense<0.000000e+00> : vector<8x256xf32>
    %237 = tpu.matmul %235, %236, %cst_189 {dimension_numbers = #tpu.dot_dimension_numbers<[1], [0], [0], [1], [0, 0, 1, 1], [], []>} : vector<8x256xf32>, vector<256x256xf32>, vector<8x256xf32> -> vector<8x256xf32>
    %c0_190 = arith.constant 0 : index
    %c0_191 = arith.constant 0 : index
    %238 = vector.load %arg15[%c0_190, %c0_191] : memref<1x256xf32, #tpu.memory_space<vmem>>, vector<1x256xf32>
    %239 = vector.broadcast %238 : vector<1x256xf32> to vector<8x256xf32>
    %240 = arith.addf %237, %239 : vector<8x256xf32>
    %cst_192 = arith.constant 0.000000e+00 : f32
    %241 = vector.broadcast %cst_192 : f32 to vector<8x256xf32>
    %242 = arith.maximumf %240, %241 : vector<8x256xf32>
    %c0_193 = arith.constant 0 : index
    %c0_194 = arith.constant 0 : index
    %c2304 = arith.constant 2304 : index
    %243 = vector.load %arg16[%c0_193, %c0_194, %c2304] : memref<1x8x4096xf32, #tpu.memory_space<vmem>>, vector<1x8x256xf32>
    %244 = vector.shape_cast %243 : vector<1x8x256xf32> to vector<8x256xf32>
    %245 = vector.shape_cast %242 : vector<8x256xf32> to vector<1x8x256xf32>
    tpu.vector_store %arg16[%c0_193, %c0_194, %c2304], %245 {strides = array<i32>} : memref<1x8x4096xf32, #tpu.memory_space<vmem>>, vector<1x8x256xf32>,
    %246 = vector.extract_strided_slice %209 {offsets = [0, 256], sizes = [8, 128], strides = [1, 1]} : vector<8x512xf32> to vector<8x128xf32>
    %c0_195 = arith.constant 0 : index
    %c0_196 = arith.constant 0 : index
    %247 = vector.load %arg12[%c0_195, %c0_196] : memref<128x256xf32, #tpu.memory_space<vmem>>, vector<128x256xf32>
    %cst_197 = arith.constant dense<0.000000e+00> : vector<8x256xf32>
    %248 = tpu.matmul %246, %247, %cst_197 {dimension_numbers = #tpu.dot_dimension_numbers<[1], [0], [0], [1], [0, 0, 1, 1], [], []>} : vector<8x128xf32>, vector<128x256xf32>, vector<8x256xf32> -> vector<8x256xf32>
    %c0_198 = arith.constant 0 : index
    %c0_199 = arith.constant 0 : index
    %249 = vector.load %arg13[%c0_198, %c0_199] : memref<1x256xf32, #tpu.memory_space<vmem>>, vector<1x256xf32>
    %250 = vector.broadcast %249 : vector<1x256xf32> to vector<8x256xf32>
    %251 = arith.addf %248, %250 : vector<8x256xf32>
    %cst_200 = arith.constant 0.000000e+00 : f32
    %252 = vector.broadcast %cst_200 : f32 to vector<8x256xf32>
    %253 = arith.maximumf %251, %252 : vector<8x256xf32>
    %c0_201 = arith.constant 0 : index
    %c0_202 = arith.constant 0 : index
    %254 = vector.load %arg14[%c0_201, %c0_202] : memref<256x256xf32, #tpu.memory_space<vmem>>, vector<256x256xf32>
    %cst_203 = arith.constant dense<0.000000e+00> : vector<8x256xf32>
    %255 = tpu.matmul %253, %254, %cst_203 {dimension_numbers = #tpu.dot_dimension_numbers<[1], [0], [0], [1], [0, 0, 1, 1], [], []>} : vector<8x256xf32>, vector<256x256xf32>, vector<8x256xf32> -> vector<8x256xf32>
    %c0_204 = arith.constant 0 : index
    %c0_205 = arith.constant 0 : index
    %256 = vector.load %arg15[%c0_204, %c0_205] : memref<1x256xf32, #tpu.memory_space<vmem>>, vector<1x256xf32>
    %257 = vector.broadcast %256 : vector<1x256xf32> to vector<8x256xf32>
    %258 = arith.addf %255, %257 : vector<8x256xf32>
    %cst_206 = arith.constant 0.000000e+00 : f32
    %259 = vector.broadcast %cst_206 : f32 to vector<8x256xf32>
    %260 = arith.maximumf %258, %259 : vector<8x256xf32>
    %c0_207 = arith.constant 0 : index
    %c0_208 = arith.constant 0 : index
    %c2560 = arith.constant 2560 : index
    %261 = vector.load %arg16[%c0_207, %c0_208, %c2560] : memref<1x8x4096xf32, #tpu.memory_space<vmem>>, vector<1x8x256xf32>
    %262 = vector.shape_cast %261 : vector<1x8x256xf32> to vector<8x256xf32>
    %263 = vector.shape_cast %260 : vector<8x256xf32> to vector<1x8x256xf32>
    tpu.vector_store %arg16[%c0_207, %c0_208, %c2560], %263 {strides = array<i32>} : memref<1x8x4096xf32, #tpu.memory_space<vmem>>, vector<1x8x256xf32>,
    %264 = vector.extract_strided_slice %209 {offsets = [0, 384], sizes = [8, 128], strides = [1, 1]} : vector<8x512xf32> to vector<8x128xf32>
    %c0_209 = arith.constant 0 : index
    %c0_210 = arith.constant 0 : index
    %265 = vector.load %arg12[%c0_209, %c0_210] : memref<128x256xf32, #tpu.memory_space<vmem>>, vector<128x256xf32>
    %cst_211 = arith.constant dense<0.000000e+00> : vector<8x256xf32>
    %266 = tpu.matmul %264, %265, %cst_211 {dimension_numbers = #tpu.dot_dimension_numbers<[1], [0], [0], [1], [0, 0, 1, 1], [], []>} : vector<8x128xf32>, vector<128x256xf32>, vector<8x256xf32> -> vector<8x256xf32>
    %c0_212 = arith.constant 0 : index
    %c0_213 = arith.constant 0 : index
    %267 = vector.load %arg13[%c0_212, %c0_213] : memref<1x256xf32, #tpu.memory_space<vmem>>, vector<1x256xf32>
    %268 = vector.broadcast %267 : vector<1x256xf32> to vector<8x256xf32>
    %269 = arith.addf %266, %268 : vector<8x256xf32>
    %cst_214 = arith.constant 0.000000e+00 : f32
    %270 = vector.broadcast %cst_214 : f32 to vector<8x256xf32>
    %271 = arith.maximumf %269, %270 : vector<8x256xf32>
    %c0_215 = arith.constant 0 : index
    %c0_216 = arith.constant 0 : index
    %272 = vector.load %arg14[%c0_215, %c0_216] : memref<256x256xf32, #tpu.memory_space<vmem>>, vector<256x256xf32>
    %cst_217 = arith.constant dense<0.000000e+00> : vector<8x256xf32>
    %273 = tpu.matmul %271, %272, %cst_217 {dimension_numbers = #tpu.dot_dimension_numbers<[1], [0], [0], [1], [0, 0, 1, 1], [], []>} : vector<8x256xf32>, vector<256x256xf32>, vector<8x256xf32> -> vector<8x256xf32>
    %c0_218 = arith.constant 0 : index
    %c0_219 = arith.constant 0 : index
    %274 = vector.load %arg15[%c0_218, %c0_219] : memref<1x256xf32, #tpu.memory_space<vmem>>, vector<1x256xf32>
    %275 = vector.broadcast %274 : vector<1x256xf32> to vector<8x256xf32>
    %276 = arith.addf %273, %275 : vector<8x256xf32>
    %cst_220 = arith.constant 0.000000e+00 : f32
    %277 = vector.broadcast %cst_220 : f32 to vector<8x256xf32>
    %278 = arith.maximumf %276, %277 : vector<8x256xf32>
    %c0_221 = arith.constant 0 : index
    %c0_222 = arith.constant 0 : index
    %c2816 = arith.constant 2816 : index
    %279 = vector.load %arg16[%c0_221, %c0_222, %c2816] : memref<1x8x4096xf32, #tpu.memory_space<vmem>>, vector<1x8x256xf32>
    %280 = vector.shape_cast %279 : vector<1x8x256xf32> to vector<8x256xf32>
    %281 = vector.shape_cast %278 : vector<8x256xf32> to vector<1x8x256xf32>
    tpu.vector_store %arg16[%c0_221, %c0_222, %c2816], %281 {strides = array<i32>} : memref<1x8x4096xf32, #tpu.memory_space<vmem>>, vector<1x8x256xf32>,
    %282 = vector.extract_strided_slice %20 {offsets = [0, 384], sizes = [8, 128], strides = [1, 1]} : vector<8x512xf32> to vector<8x128xf32>
    %c0_223 = arith.constant 0 : index
    %c0_224 = arith.constant 0 : index
    %283 = vector.load %arg8[%c0_223, %c0_224] : memref<128x256xf32, #tpu.memory_space<vmem>>, vector<128x256xf32>
    %cst_225 = arith.constant dense<0.000000e+00> : vector<8x256xf32>
    %284 = tpu.matmul %282, %283, %cst_225 {dimension_numbers = #tpu.dot_dimension_numbers<[1], [0], [0], [1], [0, 0, 1, 1], [], []>} : vector<8x128xf32>, vector<128x256xf32>, vector<8x256xf32> -> vector<8x256xf32>
    %c0_226 = arith.constant 0 : index
    %c0_227 = arith.constant 0 : index
    %285 = vector.load %arg9[%c0_226, %c0_227] : memref<1x256xf32, #tpu.memory_space<vmem>>, vector<1x256xf32>
    %286 = vector.broadcast %285 : vector<1x256xf32> to vector<8x256xf32>
    %287 = arith.addf %284, %286 : vector<8x256xf32>
    %cst_228 = arith.constant 0.000000e+00 : f32
    %288 = vector.broadcast %cst_228 : f32 to vector<8x256xf32>
    %289 = arith.maximumf %287, %288 : vector<8x256xf32>
    %c0_229 = arith.constant 0 : index
    %c0_230 = arith.constant 0 : index
    %290 = vector.load %arg10[%c0_229, %c0_230] : memref<256x512xf32, #tpu.memory_space<vmem>>, vector<256x512xf32>
    %cst_231 = arith.constant dense<0.000000e+00> : vector<8x512xf32>
    %291 = tpu.matmul %289, %290, %cst_231 {dimension_numbers = #tpu.dot_dimension_numbers<[1], [0], [0], [1], [0, 0, 1, 1], [], []>} : vector<8x256xf32>, vector<256x512xf32>, vector<8x512xf32> -> vector<8x512xf32>
    %c0_232 = arith.constant 0 : index
    %c0_233 = arith.constant 0 : index
    %292 = vector.load %arg11[%c0_232, %c0_233] : memref<1x512xf32, #tpu.memory_space<vmem>>, vector<1x512xf32>
    %293 = vector.broadcast %292 : vector<1x512xf32> to vector<8x512xf32>
    %294 = arith.addf %291, %293 : vector<8x512xf32>
    %cst_234 = arith.constant 0.000000e+00 : f32
    %295 = vector.broadcast %cst_234 : f32 to vector<8x512xf32>
    %296 = arith.maximumf %294, %295 : vector<8x512xf32>
    %297 = vector.extract_strided_slice %296 {offsets = [0, 0], sizes = [8, 128], strides = [1, 1]} : vector<8x512xf32> to vector<8x128xf32>
    %c0_235 = arith.constant 0 : index
    %c0_236 = arith.constant 0 : index
    %298 = vector.load %arg12[%c0_235, %c0_236] : memref<128x256xf32, #tpu.memory_space<vmem>>, vector<128x256xf32>
    %cst_237 = arith.constant dense<0.000000e+00> : vector<8x256xf32>
    %299 = tpu.matmul %297, %298, %cst_237 {dimension_numbers = #tpu.dot_dimension_numbers<[1], [0], [0], [1], [0, 0, 1, 1], [], []>} : vector<8x128xf32>, vector<128x256xf32>, vector<8x256xf32> -> vector<8x256xf32>
    %c0_238 = arith.constant 0 : index
    %c0_239 = arith.constant 0 : index
    %300 = vector.load %arg13[%c0_238, %c0_239] : memref<1x256xf32, #tpu.memory_space<vmem>>, vector<1x256xf32>
    %301 = vector.broadcast %300 : vector<1x256xf32> to vector<8x256xf32>
    %302 = arith.addf %299, %301 : vector<8x256xf32>
    %cst_240 = arith.constant 0.000000e+00 : f32
    %303 = vector.broadcast %cst_240 : f32 to vector<8x256xf32>
    %304 = arith.maximumf %302, %303 : vector<8x256xf32>
    %c0_241 = arith.constant 0 : index
    %c0_242 = arith.constant 0 : index
    %305 = vector.load %arg14[%c0_241, %c0_242] : memref<256x256xf32, #tpu.memory_space<vmem>>, vector<256x256xf32>
    %cst_243 = arith.constant dense<0.000000e+00> : vector<8x256xf32>
    %306 = tpu.matmul %304, %305, %cst_243 {dimension_numbers = #tpu.dot_dimension_numbers<[1], [0], [0], [1], [0, 0, 1, 1], [], []>} : vector<8x256xf32>, vector<256x256xf32>, vector<8x256xf32> -> vector<8x256xf32>
    %c0_244 = arith.constant 0 : index
    %c0_245 = arith.constant 0 : index
    %307 = vector.load %arg15[%c0_244, %c0_245] : memref<1x256xf32, #tpu.memory_space<vmem>>, vector<1x256xf32>
    %308 = vector.broadcast %307 : vector<1x256xf32> to vector<8x256xf32>
    %309 = arith.addf %306, %308 : vector<8x256xf32>
    %cst_246 = arith.constant 0.000000e+00 : f32
    %310 = vector.broadcast %cst_246 : f32 to vector<8x256xf32>
    %311 = arith.maximumf %309, %310 : vector<8x256xf32>
    %c0_247 = arith.constant 0 : index
    %c0_248 = arith.constant 0 : index
    %c3072 = arith.constant 3072 : index
    %312 = vector.load %arg16[%c0_247, %c0_248, %c3072] : memref<1x8x4096xf32, #tpu.memory_space<vmem>>, vector<1x8x256xf32>
    %313 = vector.shape_cast %312 : vector<1x8x256xf32> to vector<8x256xf32>
    %314 = vector.shape_cast %311 : vector<8x256xf32> to vector<1x8x256xf32>
    tpu.vector_store %arg16[%c0_247, %c0_248, %c3072], %314 {strides = array<i32>} : memref<1x8x4096xf32, #tpu.memory_space<vmem>>, vector<1x8x256xf32>,
    %315 = vector.extract_strided_slice %296 {offsets = [0, 128], sizes = [8, 128], strides = [1, 1]} : vector<8x512xf32> to vector<8x128xf32>
    %c0_249 = arith.constant 0 : index
    %c0_250 = arith.constant 0 : index
    %316 = vector.load %arg12[%c0_249, %c0_250] : memref<128x256xf32, #tpu.memory_space<vmem>>, vector<128x256xf32>
    %cst_251 = arith.constant dense<0.000000e+00> : vector<8x256xf32>
    %317 = tpu.matmul %315, %316, %cst_251 {dimension_numbers = #tpu.dot_dimension_numbers<[1], [0], [0], [1], [0, 0, 1, 1], [], []>} : vector<8x128xf32>, vector<128x256xf32>, vector<8x256xf32> -> vector<8x256xf32>
    %c0_252 = arith.constant 0 : index
    %c0_253 = arith.constant 0 : index
    %318 = vector.load %arg13[%c0_252, %c0_253] : memref<1x256xf32, #tpu.memory_space<vmem>>, vector<1x256xf32>
    %319 = vector.broadcast %318 : vector<1x256xf32> to vector<8x256xf32>
    %320 = arith.addf %317, %319 : vector<8x256xf32>
    %cst_254 = arith.constant 0.000000e+00 : f32
    %321 = vector.broadcast %cst_254 : f32 to vector<8x256xf32>
    %322 = arith.maximumf %320, %321 : vector<8x256xf32>
    %c0_255 = arith.constant 0 : index
    %c0_256 = arith.constant 0 : index
    %323 = vector.load %arg14[%c0_255, %c0_256] : memref<256x256xf32, #tpu.memory_space<vmem>>, vector<256x256xf32>
    %cst_257 = arith.constant dense<0.000000e+00> : vector<8x256xf32>
    %324 = tpu.matmul %322, %323, %cst_257 {dimension_numbers = #tpu.dot_dimension_numbers<[1], [0], [0], [1], [0, 0, 1, 1], [], []>} : vector<8x256xf32>, vector<256x256xf32>, vector<8x256xf32> -> vector<8x256xf32>
    %c0_258 = arith.constant 0 : index
    %c0_259 = arith.constant 0 : index
    %325 = vector.load %arg15[%c0_258, %c0_259] : memref<1x256xf32, #tpu.memory_space<vmem>>, vector<1x256xf32>
    %326 = vector.broadcast %325 : vector<1x256xf32> to vector<8x256xf32>
    %327 = arith.addf %324, %326 : vector<8x256xf32>
    %cst_260 = arith.constant 0.000000e+00 : f32
    %328 = vector.broadcast %cst_260 : f32 to vector<8x256xf32>
    %329 = arith.maximumf %327, %328 : vector<8x256xf32>
    %c0_261 = arith.constant 0 : index
    %c0_262 = arith.constant 0 : index
    %c3328 = arith.constant 3328 : index
    %330 = vector.load %arg16[%c0_261, %c0_262, %c3328] : memref<1x8x4096xf32, #tpu.memory_space<vmem>>, vector<1x8x256xf32>
    %331 = vector.shape_cast %330 : vector<1x8x256xf32> to vector<8x256xf32>
    %332 = vector.shape_cast %329 : vector<8x256xf32> to vector<1x8x256xf32>
    tpu.vector_store %arg16[%c0_261, %c0_262, %c3328], %332 {strides = array<i32>} : memref<1x8x4096xf32, #tpu.memory_space<vmem>>, vector<1x8x256xf32>,
    %333 = vector.extract_strided_slice %296 {offsets = [0, 256], sizes = [8, 128], strides = [1, 1]} : vector<8x512xf32> to vector<8x128xf32>
    %c0_263 = arith.constant 0 : index
    %c0_264 = arith.constant 0 : index
    %334 = vector.load %arg12[%c0_263, %c0_264] : memref<128x256xf32, #tpu.memory_space<vmem>>, vector<128x256xf32>
    %cst_265 = arith.constant dense<0.000000e+00> : vector<8x256xf32>
    %335 = tpu.matmul %333, %334, %cst_265 {dimension_numbers = #tpu.dot_dimension_numbers<[1], [0], [0], [1], [0, 0, 1, 1], [], []>} : vector<8x128xf32>, vector<128x256xf32>, vector<8x256xf32> -> vector<8x256xf32>
    %c0_266 = arith.constant 0 : index
    %c0_267 = arith.constant 0 : index
    %336 = vector.load %arg13[%c0_266, %c0_267] : memref<1x256xf32, #tpu.memory_space<vmem>>, vector<1x256xf32>
    %337 = vector.broadcast %336 : vector<1x256xf32> to vector<8x256xf32>
    %338 = arith.addf %335, %337 : vector<8x256xf32>
    %cst_268 = arith.constant 0.000000e+00 : f32
    %339 = vector.broadcast %cst_268 : f32 to vector<8x256xf32>
    %340 = arith.maximumf %338, %339 : vector<8x256xf32>
    %c0_269 = arith.constant 0 : index
    %c0_270 = arith.constant 0 : index
    %341 = vector.load %arg14[%c0_269, %c0_270] : memref<256x256xf32, #tpu.memory_space<vmem>>, vector<256x256xf32>
    %cst_271 = arith.constant dense<0.000000e+00> : vector<8x256xf32>
    %342 = tpu.matmul %340, %341, %cst_271 {dimension_numbers = #tpu.dot_dimension_numbers<[1], [0], [0], [1], [0, 0, 1, 1], [], []>} : vector<8x256xf32>, vector<256x256xf32>, vector<8x256xf32> -> vector<8x256xf32>
    %c0_272 = arith.constant 0 : index
    %c0_273 = arith.constant 0 : index
    %343 = vector.load %arg15[%c0_272, %c0_273] : memref<1x256xf32, #tpu.memory_space<vmem>>, vector<1x256xf32>
    %344 = vector.broadcast %343 : vector<1x256xf32> to vector<8x256xf32>
    %345 = arith.addf %342, %344 : vector<8x256xf32>
    %cst_274 = arith.constant 0.000000e+00 : f32
    %346 = vector.broadcast %cst_274 : f32 to vector<8x256xf32>
    %347 = arith.maximumf %345, %346 : vector<8x256xf32>
    %c0_275 = arith.constant 0 : index
    %c0_276 = arith.constant 0 : index
    %c3584 = arith.constant 3584 : index
    %348 = vector.load %arg16[%c0_275, %c0_276, %c3584] : memref<1x8x4096xf32, #tpu.memory_space<vmem>>, vector<1x8x256xf32>
    %349 = vector.shape_cast %348 : vector<1x8x256xf32> to vector<8x256xf32>
    %350 = vector.shape_cast %347 : vector<8x256xf32> to vector<1x8x256xf32>
    tpu.vector_store %arg16[%c0_275, %c0_276, %c3584], %350 {strides = array<i32>} : memref<1x8x4096xf32, #tpu.memory_space<vmem>>, vector<1x8x256xf32>,
    %351 = vector.extract_strided_slice %296 {offsets = [0, 384], sizes = [8, 128], strides = [1, 1]} : vector<8x512xf32> to vector<8x128xf32>
    %c0_277 = arith.constant 0 : index
    %c0_278 = arith.constant 0 : index
    %352 = vector.load %arg12[%c0_277, %c0_278] : memref<128x256xf32, #tpu.memory_space<vmem>>, vector<128x256xf32>
    %cst_279 = arith.constant dense<0.000000e+00> : vector<8x256xf32>
    %353 = tpu.matmul %351, %352, %cst_279 {dimension_numbers = #tpu.dot_dimension_numbers<[1], [0], [0], [1], [0, 0, 1, 1], [], []>} : vector<8x128xf32>, vector<128x256xf32>, vector<8x256xf32> -> vector<8x256xf32>
    %c0_280 = arith.constant 0 : index
    %c0_281 = arith.constant 0 : index
    %354 = vector.load %arg13[%c0_280, %c0_281] : memref<1x256xf32, #tpu.memory_space<vmem>>, vector<1x256xf32>
    %355 = vector.broadcast %354 : vector<1x256xf32> to vector<8x256xf32>
    %356 = arith.addf %353, %355 : vector<8x256xf32>
    %cst_282 = arith.constant 0.000000e+00 : f32
    %357 = vector.broadcast %cst_282 : f32 to vector<8x256xf32>
    %358 = arith.maximumf %356, %357 : vector<8x256xf32>
    %c0_283 = arith.constant 0 : index
    %c0_284 = arith.constant 0 : index
    %359 = vector.load %arg14[%c0_283, %c0_284] : memref<256x256xf32, #tpu.memory_space<vmem>>, vector<256x256xf32>
    %cst_285 = arith.constant dense<0.000000e+00> : vector<8x256xf32>
    %360 = tpu.matmul %358, %359, %cst_285 {dimension_numbers = #tpu.dot_dimension_numbers<[1], [0], [0], [1], [0, 0, 1, 1], [], []>} : vector<8x256xf32>, vector<256x256xf32>, vector<8x256xf32> -> vector<8x256xf32>
    %c0_286 = arith.constant 0 : index
    %c0_287 = arith.constant 0 : index
    %361 = vector.load %arg15[%c0_286, %c0_287] : memref<1x256xf32, #tpu.memory_space<vmem>>, vector<1x256xf32>
    %362 = vector.broadcast %361 : vector<1x256xf32> to vector<8x256xf32>
    %363 = arith.addf %360, %362 : vector<8x256xf32>
    %cst_288 = arith.constant 0.000000e+00 : f32
    %364 = vector.broadcast %cst_288 : f32 to vector<8x256xf32>
    %365 = arith.maximumf %363, %364 : vector<8x256xf32>
    %c0_289 = arith.constant 0 : index
    %c0_290 = arith.constant 0 : index
    %c3840 = arith.constant 3840 : index
    %366 = vector.load %arg16[%c0_289, %c0_290, %c3840] : memref<1x8x4096xf32, #tpu.memory_space<vmem>>, vector<1x8x256xf32>
    %367 = vector.shape_cast %366 : vector<1x8x256xf32> to vector<8x256xf32>
    %368 = vector.shape_cast %365 : vector<8x256xf32> to vector<1x8x256xf32>
    tpu.vector_store %arg16[%c0_289, %c0_290, %c3840], %368 {strides = array<i32>} : memref<1x8x4096xf32, #tpu.memory_space<vmem>>, vector<1x8x256xf32>,
    return
  }
  func.func @transform_0(%arg0: i32) -> (i32, i32, i32) {
    %c0_i32 = arith.constant 0 : i32
    %c0_i32_0 = arith.constant 0 : i32
    %c0_i32_1 = arith.constant 0 : i32
    return %arg0, %c0_i32, %c0_i32_0 : i32, i32, i32
  }
  func.func @transform_1(%arg0: i32) -> (i32, i32) {
    %c0_i32 = arith.constant 0 : i32
    %c0_i32_0 = arith.constant 0 : i32
    %c0_i32_1 = arith.constant 0 : i32
    return %c0_i32, %c0_i32_0 : i32, i32
  }
  func.func @transform_2(%arg0: i32) -> (i32, i32) {
    %c0_i32 = arith.constant 0 : i32
    %c0_i32_0 = arith.constant 0 : i32
    %c0_i32_1 = arith.constant 0 : i32
    return %c0_i32, %c0_i32_0 : i32, i32
  }
  func.func @transform_3(%arg0: i32) -> (i32, i32) {
    %c0_i32 = arith.constant 0 : i32
    %c0_i32_0 = arith.constant 0 : i32
    %c0_i32_1 = arith.constant 0 : i32
    return %c0_i32, %c0_i32_0 : i32, i32
  }
  func.func @transform_4(%arg0: i32) -> (i32, i32) {
    %c0_i32 = arith.constant 0 : i32
    %c0_i32_0 = arith.constant 0 : i32
    %c0_i32_1 = arith.constant 0 : i32
    return %c0_i32, %c0_i32_0 : i32, i32
  }
  func.func @transform_5(%arg0: i32) -> (i32, i32) {
    %c0_i32 = arith.constant 0 : i32
    %c0_i32_0 = arith.constant 0 : i32
    %c0_i32_1 = arith.constant 0 : i32
    return %c0_i32, %c0_i32_0 : i32, i32
  }
  func.func @transform_6(%arg0: i32) -> (i32, i32) {
    %c0_i32 = arith.constant 0 : i32
    %c0_i32_0 = arith.constant 0 : i32
    %c0_i32_1 = arith.constant 0 : i32
    return %c0_i32, %c0_i32_0 : i32, i32
  }
  func.func @transform_7(%arg0: i32) -> (i32, i32) {
    %c0_i32 = arith.constant 0 : i32
    %c0_i32_0 = arith.constant 0 : i32
    %c0_i32_1 = arith.constant 0 : i32
    return %c0_i32, %c0_i32_0 : i32, i32
  }
  func.func @transform_8(%arg0: i32) -> (i32, i32) {
    %c0_i32 = arith.constant 0 : i32
    %c0_i32_0 = arith.constant 0 : i32
    %c0_i32_1 = arith.constant 0 : i32
    return %c0_i32, %c0_i32_0 : i32, i32
  }
  func.func @transform_9(%arg0: i32) -> (i32, i32) {
    %c0_i32 = arith.constant 0 : i32
    %c0_i32_0 = arith.constant 0 : i32
    %c0_i32_1 = arith.constant 0 : i32
    return %c0_i32, %c0_i32_0 : i32, i32
  }
  func.func @transform_10(%arg0: i32) -> (i32, i32) {
    %c0_i32 = arith.constant 0 : i32
    %c0_i32_0 = arith.constant 0 : i32
    %c0_i32_1 = arith.constant 0 : i32
    return %c0_i32, %c0_i32_0 : i32, i32
  }
  func.func @transform_11(%arg0: i32) -> (i32, i32) {
    %c0_i32 = arith.constant 0 : i32
    %c0_i32_0 = arith.constant 0 : i32
    %c0_i32_1 = arith.constant 0 : i32
    return %c0_i32, %c0_i32_0 : i32, i32
  }
  func.func @transform_12(%arg0: i32) -> (i32, i32) {
    %c0_i32 = arith.constant 0 : i32
    %c0_i32_0 = arith.constant 0 : i32
    %c0_i32_1 = arith.constant 0 : i32
    return %c0_i32, %c0_i32_0 : i32, i32
  }
  func.func @transform_13(%arg0: i32) -> (i32, i32) {
    %c0_i32 = arith.constant 0 : i32
    %c0_i32_0 = arith.constant 0 : i32
    %c0_i32_1 = arith.constant 0 : i32
    return %c0_i32, %c0_i32_0 : i32, i32
  }
  func.func @transform_14(%arg0: i32) -> (i32, i32) {
    %c0_i32 = arith.constant 0 : i32
    %c0_i32_0 = arith.constant 0 : i32
    %c0_i32_1 = arith.constant 0 : i32
    return %c0_i32, %c0_i32_0 : i32, i32
  }
  func.func @transform_15(%arg0: i32) -> (i32, i32, i32) {
    %c0_i32 = arith.constant 0 : i32
    %c0_i32_0 = arith.constant 0 : i32
    %c0_i32_1 = arith.constant 0 : i32
    return %arg0, %c0_i32, %c0_i32_0 : i32, i32, i32
  }
}

</mosaic_0001>

<llo_original>
// kernel: test_forward.1
$region0: #{test_forward.1}
  #allocation0 [shape = 'u32[]', space=smem, size = 0x4, offset = 0x4, fixed_abs, tag = 'smem constant byte address 0x4 - core index']
  #allocation1 [shape = 'u32[144,128]{1,0:T(1,128)}', space=vmem, size = 0x12000, scoped, tag = 'internal scratch']
  %s0 = inlined_call_operand.hbm [shape: f32[2,8,64], index: 0, kind: input, shape index: {}]
  %s1 = inlined_call_operand.hbm [shape: f32[64,128], index: 1, kind: input, shape index: {}]
  %s2 = inlined_call_operand.hbm [shape: f32[1,128], index: 2, kind: input, shape index: {}]
  %s3 = inlined_call_operand.hbm [shape: f32[128,256], index: 3, kind: input, shape index: {}]
  %s4 = inlined_call_operand.hbm [shape: f32[1,256], index: 4, kind: input, shape index: {}]
  %s5 = inlined_call_operand.hbm [shape: f32[256,512], index: 5, kind: input, shape index: {}]
  %s6 = inlined_call_operand.hbm [shape: f32[1,512], index: 6, kind: input, shape index: {}]
  %s7 = inlined_call_operand.hbm [shape: f32[128,256], index: 7, kind: input, shape index: {}]
  %s8 = inlined_call_operand.hbm [shape: f32[1,256], index: 8, kind: input, shape index: {}]
  %s9 = inlined_call_operand.hbm [shape: f32[256,512], index: 9, kind: input, shape index: {}]
  %s10 = inlined_call_operand.hbm [shape: f32[1,512], index: 10, kind: input, shape index: {}]
  %s11 = inlined_call_operand.hbm [shape: f32[128,256], index: 11, kind: input, shape index: {}]
  %s12 = inlined_call_operand.hbm [shape: f32[1,256], index: 12, kind: input, shape index: {}]
  %s13 = inlined_call_operand.hbm [shape: f32[256,256], index: 13, kind: input, shape index: {}]
  %s14 = inlined_call_operand.hbm [shape: f32[1,256], index: 14, kind: input, shape index: {}]
  %s15 = inlined_call_operand.vmem [shape: f32[2,8,4096], index: 15, kind: output, shape index: {}]
  %s16 = sld [smem:[#allocation0]]
  $region153: #{test_forward.1} parent=0
    _
  %s18 = ssub.s32 1, %s16
  %s19 = scalar_select 0, %s18, %s16
  $region1: #{test_forward.1} parent=0
    #allocation2 [shape = 'u8[8192]{0}', space=vmem, size = 0x2000, scoped, tag = 'input window, operand 0']
    #allocation3 [shape = 's32[2]{0}', space=sflag, size = 0x8, scoped, tag = 'scoped memory for test_forward.1']
    #allocation4 [shape = 'u8[32768]{0}', space=vmem, size = 0x8000, scoped, tag = 'input window, operand 1, single buffered']
    #allocation5 [shape = 's32[1]{0}', space=sflag, size = 0x4, scoped, tag = 'scoped memory for test_forward.1']
    #allocation6 [shape = 'u8[512]{0}', space=vmem, size = 0x400, scoped, tag = 'input window, operand 2, single buffered']
    #allocation7 [shape = 'u8[131072]{0}', space=vmem, size = 0x20000, scoped, tag = 'input window, operand 3, single buffered']
    #allocation8 [shape = 's32[1]{0}', space=sflag, size = 0x4, scoped, tag = 'scoped memory for test_forward.1']
    #allocation9 [shape = 'u8[1024]{0}', space=vmem, size = 0x400, scoped, tag = 'input window, operand 4, single buffered']
    #allocation10 [shape = 'u8[524288]{0}', space=vmem, size = 0x80000, scoped, tag = 'input window, operand 5, single buffered']
    #allocation11 [shape = 's32[1]{0}', space=sflag, size = 0x4, scoped, tag = 'scoped memory for test_forward.1']
    #allocation12 [shape = 'u8[2048]{0}', space=vmem, size = 0x800, scoped, tag = 'input window, operand 6, single buffered']
    #allocation13 [shape = 'u8[131072]{0}', space=vmem, size = 0x20000, scoped, tag = 'input window, operand 7, single buffered']
    #allocation14 [shape = 's32[1]{0}', space=sflag, size = 0x4, scoped, tag = 'scoped memory for test_forward.1']
    #allocation15 [shape = 'u8[1024]{0}', space=vmem, size = 0x400, scoped, tag = 'input window, operand 8, single buffered']
    #allocation16 [shape = 'u8[524288]{0}', space=vmem, size = 0x80000, scoped, tag = 'input window, operand 9, single buffered']
    #allocation17 [shape = 's32[1]{0}', space=sflag, size = 0x4, scoped, tag = 'scoped memory for test_forward.1']
    #allocation18 [shape = 'u8[2048]{0}', space=vmem, size = 0x800, scoped, tag = 'input window, operand 10, single buffered']
    #allocation19 [shape = 'u8[131072]{0}', space=vmem, size = 0x20000, scoped, tag = 'input window, operand 11, single buffered']
    #allocation20 [shape = 's32[1]{0}', space=sflag, size = 0x4, scoped, tag = 'scoped memory for test_forward.1']
    #allocation21 [shape = 'u8[1024]{0}', space=vmem, size = 0x400, scoped, tag = 'input window, operand 12, single buffered']
    #allocation22 [shape = 'u8[262144]{0}', space=vmem, size = 0x40000, scoped, tag = 'input window, operand 13, single buffered']
    #allocation23 [shape = 's32[1]{0}', space=sflag, size = 0x4, scoped, tag = 'scoped memory for test_forward.1']
    #allocation24 [shape = 'u8[1024]{0}', space=vmem, size = 0x400, scoped, tag = 'input window, operand 14, single buffered']
    %20 = vsyncpa [#allocation3], 0
    %s21 = scalar_lea.sflag [#allocation3], 1
    %22 = vsyncpa %s21, 0
    %23 = vsyncpa [#allocation5], 0
    %24 = vsyncpa [#allocation8], 0
    %25 = vsyncpa [#allocation11], 0
    %26 = vsyncpa [#allocation14], 0
    %27 = vsyncpa [#allocation17], 0
    %28 = vsyncpa [#allocation20], 0
    %29 = vsyncpa [#allocation23], 0
    loop: start=0, step=1, limit=4
    $region2: #{test_forward.1} parent=1 // loop_pre_header
      _
    $region3: #{test_forward.1} parent=1 // loop_header
      %s31 = sphi 0, %s35
      %p32 = scmp.ge.s32.totalorder %s31, 4
      %s41 = sphi 0, %s43
      %s44 = sphi 0, %s41
      %s45 = sphi 0, %s44
      %s61 = sphi 0, %s45
      %s65 = sphi 0, %s65
      %s67 = sphi 0, %s65
      %s68 = sphi 0, %s67
      %s82 = sphi 0, %s68
      %s86 = sphi 0, %s86
      %s88 = sphi 0, %s86
      %s89 = sphi 0, %s88
      %s103 = sphi 0, %s89
      %s107 = sphi 0, %s107
      %s109 = sphi 0, %s107
      %s110 = sphi 0, %s109
      %s124 = sphi 0, %s110
      %s128 = sphi 0, %s128
      %s130 = sphi 0, %s128
      %s131 = sphi 0, %s130
      %s145 = sphi 0, %s131
      %s149 = sphi 0, %s149
      %s151 = sphi 0, %s149
      %s152 = sphi 0, %s151
      %s166 = sphi 0, %s152
      %s170 = sphi 0, %s170
      %s172 = sphi 0, %s170
      %s173 = sphi 0, %s172
      %s187 = sphi 0, %s173
      %s191 = sphi 0, %s191
      %s193 = sphi 0, %s191
      %s194 = sphi 0, %s193
      %s208 = sphi 0, %s194
      %s212 = sphi 0, %s212
      %s214 = sphi 0, %s212
      %s215 = sphi 0, %s214
      %s229 = sphi 0, %s215
      %s233 = sphi 0, %s233
      %s235 = sphi 0, %s233
      %s236 = sphi 0, %s235
      %s250 = sphi 0, %s236
      %s254 = sphi 0, %s254
      %s256 = sphi 0, %s254
      %s257 = sphi 0, %s256
      %s271 = sphi 0, %s257
      %s275 = sphi 0, %s275
      %s277 = sphi 0, %s275
      %s278 = sphi 0, %s277
      %s292 = sphi 0, %s278
      %s296 = sphi 0, %s296
      %s298 = sphi 0, %s296
      %s299 = sphi 0, %s298
      %s313 = sphi 0, %s299
      %s317 = sphi 0, %s317
      %s319 = sphi 0, %s317
      %s320 = sphi 0, %s319
      %s334 = sphi 0, %s320
      %s338 = sphi 0, %s338
      %s340 = sphi 0, %s338
      %s341 = sphi 0, %s340
      %s355 = sphi 0, %s341
      %s361 = sphi 0, %s363
      %s364 = sphi 0, %s361
      %s365 = sphi 0, %s364
      %s381 = sphi 0, %s365
    $region4: #{test_forward.1} parent=1 // loop_header_branch
      %34 = sbr.rel (%p32) target = $region8
    $region5: #{test_forward.1} parent=1 // loop_body
      %s36 = ssub.s32 %s31, 1
      %s37 = ssub.s32 %s31, 2
      %s38 = sadd.s32 %s31, 1
      %s39 = ssub.s32 %s31, %s38
      %p40 = scmp.eq.s32.totalorder %s39, 0
      %s42 = sadd.s32 %s41, 1
      %s43 = scalar_select %p40, %s41, %s42
      %p46 = pneg %p40
      %p47 = scmp.eq.s32.totalorder %s31, 1
      %p48 = por %p46, %p47
      %p49 = scmp.ne.s32.totalorder %s41, %s44
      %p50 = scmp.eq.s32.totalorder %s31, 0
      %p51 = por %p49, %p50
      %p52 = scmp.ne.s32.totalorder %s41, %s44
      %p53 = scmp.eq.s32.totalorder %s36, 1
      %p54 = por %p52, %p53
      %p55 = scmp.ne.s32.totalorder %s44, %s45
      %p56 = scmp.eq.s32.totalorder %s36, 0
      %p57 = por %p55, %p56
      %p58 = scmp.ne.s32.totalorder %s44, %s45
      %p59 = scmp.eq.s32.totalorder %s37, 1
      %p60 = por %p58, %p59
      %p62 = scmp.ne.s32.totalorder %s45, %s61
      %p63 = scmp.eq.s32.totalorder %s37, 0
      %p64 = por %p62, %p63
      %s66 = sadd.s32 %s65, 1
      %p69 = scmp.eq.s32.totalorder %s31, 1
      %p70 = scmp.ne.s32.totalorder %s65, %s67
      %p71 = scmp.eq.s32.totalorder %s31, 0
      %p72 = por %p70, %p71
      %p73 = scmp.ne.s32.totalorder %s65, %s67
      %p74 = scmp.eq.s32.totalorder %s36, 1
      %p75 = por %p73, %p74
      %p76 = scmp.ne.s32.totalorder %s67, %s68
      %p77 = scmp.eq.s32.totalorder %s36, 0
      %p78 = por %p76, %p77
      %p79 = scmp.ne.s32.totalorder %s67, %s68
      %p80 = scmp.eq.s32.totalorder %s37, 1
      %p81 = por %p79, %p80
      %p83 = scmp.ne.s32.totalorder %s68, %s82
      %p84 = scmp.eq.s32.totalorder %s37, 0
      %p85 = por %p83, %p84
      %s87 = sadd.s32 %s86, 1
      %p90 = scmp.eq.s32.totalorder %s31, 1
      %p91 = scmp.ne.s32.totalorder %s86, %s88
      %p92 = scmp.eq.s32.totalorder %s31, 0
      %p93 = por %p91, %p92
      %p94 = scmp.ne.s32.totalorder %s86, %s88
      %p95 = scmp.eq.s32.totalorder %s36, 1
      %p96 = por %p94, %p95
      %p97 = scmp.ne.s32.totalorder %s88, %s89
      %p98 = scmp.eq.s32.totalorder %s36, 0
      %p99 = por %p97, %p98
      %p100 = scmp.ne.s32.totalorder %s88, %s89
      %p101 = scmp.eq.s32.totalorder %s37, 1
      %p102 = por %p100, %p101
      %p104 = scmp.ne.s32.totalorder %s89, %s103
      %p105 = scmp.eq.s32.totalorder %s37, 0
      %p106 = por %p104, %p105
      %s108 = sadd.s32 %s107, 1
      %p111 = scmp.eq.s32.totalorder %s31, 1
      %p112 = scmp.ne.s32.totalorder %s107, %s109
      %p113 = scmp.eq.s32.totalorder %s31, 0
      %p114 = por %p112, %p113
      %p115 = scmp.ne.s32.totalorder %s107, %s109
      %p116 = scmp.eq.s32.totalorder %s36, 1
      %p117 = por %p115, %p116
      %p118 = scmp.ne.s32.totalorder %s109, %s110
      %p119 = scmp.eq.s32.totalorder %s36, 0
      %p120 = por %p118, %p119
      %p121 = scmp.ne.s32.totalorder %s109, %s110
      %p122 = scmp.eq.s32.totalorder %s37, 1
      %p123 = por %p121, %p122
      %p125 = scmp.ne.s32.totalorder %s110, %s124
      %p126 = scmp.eq.s32.totalorder %s37, 0
      %p127 = por %p125, %p126
      %s129 = sadd.s32 %s128, 1
      %p132 = scmp.eq.s32.totalorder %s31, 1
      %p133 = scmp.ne.s32.totalorder %s128, %s130
      %p134 = scmp.eq.s32.totalorder %s31, 0
      %p135 = por %p133, %p134
      %p136 = scmp.ne.s32.totalorder %s128, %s130
      %p137 = scmp.eq.s32.totalorder %s36, 1
      %p138 = por %p136, %p137
      %p139 = scmp.ne.s32.totalorder %s130, %s131
      %p140 = scmp.eq.s32.totalorder %s36, 0
      %p141 = por %p139, %p140
      %p142 = scmp.ne.s32.totalorder %s130, %s131
      %p143 = scmp.eq.s32.totalorder %s37, 1
      %p144 = por %p142, %p143
      %p146 = scmp.ne.s32.totalorder %s131, %s145
      %p147 = scmp.eq.s32.totalorder %s37, 0
      %p148 = por %p146, %p147
      %s150 = sadd.s32 %s149, 1
      %p153 = scmp.eq.s32.totalorder %s31, 1
      %p154 = scmp.ne.s32.totalorder %s149, %s151
      %p155 = scmp.eq.s32.totalorder %s31, 0
      %p156 = por %p154, %p155
      %p157 = scmp.ne.s32.totalorder %s149, %s151
      %p158 = scmp.eq.s32.totalorder %s36, 1
      %p159 = por %p157, %p158
      %p160 = scmp.ne.s32.totalorder %s151, %s152
      %p161 = scmp.eq.s32.totalorder %s36, 0
      %p162 = por %p160, %p161
      %p163 = scmp.ne.s32.totalorder %s151, %s152
      %p164 = scmp.eq.s32.totalorder %s37, 1
      %p165 = por %p163, %p164
      %p167 = scmp.ne.s32.totalorder %s152, %s166
      %p168 = scmp.eq.s32.totalorder %s37, 0
      %p169 = por %p167, %p168
      %s171 = sadd.s32 %s170, 1
      %p174 = scmp.eq.s32.totalorder %s31, 1
      %p175 = scmp.ne.s32.totalorder %s170, %s172
      %p176 = scmp.eq.s32.totalorder %s31, 0
      %p177 = por %p175, %p176
      %p178 = scmp.ne.s32.totalorder %s170, %s172
      %p179 = scmp.eq.s32.totalorder %s36, 1
      %p180 = por %p178, %p179
      %p181 = scmp.ne.s32.totalorder %s172, %s173
      %p182 = scmp.eq.s32.totalorder %s36, 0
      %p183 = por %p181, %p182
      %p184 = scmp.ne.s32.totalorder %s172, %s173
      %p185 = scmp.eq.s32.totalorder %s37, 1
      %p186 = por %p184, %p185
      %p188 = scmp.ne.s32.totalorder %s173, %s187
      %p189 = scmp.eq.s32.totalorder %s37, 0
      %p190 = por %p188, %p189
      %s192 = sadd.s32 %s191, 1
      %p195 = scmp.eq.s32.totalorder %s31, 1
      %p196 = scmp.ne.s32.totalorder %s191, %s193
      %p197 = scmp.eq.s32.totalorder %s31, 0
      %p198 = por %p196, %p197
      %p199 = scmp.ne.s32.totalorder %s191, %s193
      %p200 = scmp.eq.s32.totalorder %s36, 1
      %p201 = por %p199, %p200
      %p202 = scmp.ne.s32.totalorder %s193, %s194
      %p203 = scmp.eq.s32.totalorder %s36, 0
      %p204 = por %p202, %p203
      %p205 = scmp.ne.s32.totalorder %s193, %s194
      %p206 = scmp.eq.s32.totalorder %s37, 1
      %p207 = por %p205, %p206
      %p209 = scmp.ne.s32.totalorder %s194, %s208
      %p210 = scmp.eq.s32.totalorder %s37, 0
      %p211 = por %p209, %p210
      %s213 = sadd.s32 %s212, 1
      %p216 = scmp.eq.s32.totalorder %s31, 1
      %p217 = scmp.ne.s32.totalorder %s212, %s214
      %p218 = scmp.eq.s32.totalorder %s31, 0
      %p219 = por %p217, %p218
      %p220 = scmp.ne.s32.totalorder %s212, %s214
      %p221 = scmp.eq.s32.totalorder %s36, 1
      %p222 = por %p220, %p221
      %p223 = scmp.ne.s32.totalorder %s214, %s215
      %p224 = scmp.eq.s32.totalorder %s36, 0
      %p225 = por %p223, %p224
      %p226 = scmp.ne.s32.totalorder %s214, %s215
      %p227 = scmp.eq.s32.totalorder %s37, 1
      %p228 = por %p226, %p227
      %p230 = scmp.ne.s32.totalorder %s215, %s229
      %p231 = scmp.eq.s32.totalorder %s37, 0
      %p232 = por %p230, %p231
      %s234 = sadd.s32 %s233, 1
      %p237 = scmp.eq.s32.totalorder %s31, 1
      %p238 = scmp.ne.s32.totalorder %s233, %s235
      %p239 = scmp.eq.s32.totalorder %s31, 0
      %p240 = por %p238, %p239
      %p241 = scmp.ne.s32.totalorder %s233, %s235
      %p242 = scmp.eq.s32.totalorder %s36, 1
      %p243 = por %p241, %p242
      %p244 = scmp.ne.s32.totalorder %s235, %s236
      %p245 = scmp.eq.s32.totalorder %s36, 0
      %p246 = por %p244, %p245
      %p247 = scmp.ne.s32.totalorder %s235, %s236
      %p248 = scmp.eq.s32.totalorder %s37, 1
      %p249 = por %p247, %p248
      %p251 = scmp.ne.s32.totalorder %s236, %s250
      %p252 = scmp.eq.s32.totalorder %s37, 0
      %p253 = por %p251, %p252
      %s255 = sadd.s32 %s254, 1
      %p258 = scmp.eq.s32.totalorder %s31, 1
      %p259 = scmp.ne.s32.totalorder %s254, %s256
      %p260 = scmp.eq.s32.totalorder %s31, 0
      %p261 = por %p259, %p260
      %p262 = scmp.ne.s32.totalorder %s254, %s256
      %p263 = scmp.eq.s32.totalorder %s36, 1
      %p264 = por %p262, %p263
      %p265 = scmp.ne.s32.totalorder %s256, %s257
      %p266 = scmp.eq.s32.totalorder %s36, 0
      %p267 = por %p265, %p266
      %p268 = scmp.ne.s32.totalorder %s256, %s257
      %p269 = scmp.eq.s32.totalorder %s37, 1
      %p270 = por %p268, %p269
      %p272 = scmp.ne.s32.totalorder %s257, %s271
      %p273 = scmp.eq.s32.totalorder %s37, 0
      %p274 = por %p272, %p273
      %s276 = sadd.s32 %s275, 1
      %p279 = scmp.eq.s32.totalorder %s31, 1
      %p280 = scmp.ne.s32.totalorder %s275, %s277
      %p281 = scmp.eq.s32.totalorder %s31, 0
      %p282 = por %p280, %p281
      %p283 = scmp.ne.s32.totalorder %s275, %s277
      %p284 = scmp.eq.s32.totalorder %s36, 1
      %p285 = por %p283, %p284
      %p286 = scmp.ne.s32.totalorder %s277, %s278
      %p287 = scmp.eq.s32.totalorder %s36, 0
      %p288 = por %p286, %p287
      %p289 = scmp.ne.s32.totalorder %s277, %s278
      %p290 = scmp.eq.s32.totalorder %s37, 1
      %p291 = por %p289, %p290
      %p293 = scmp.ne.s32.totalorder %s278, %s292
      %p294 = scmp.eq.s32.totalorder %s37, 0
      %p295 = por %p293, %p294
      %s297 = sadd.s32 %s296, 1
      %p300 = scmp.eq.s32.totalorder %s31, 1
      %p301 = scmp.ne.s32.totalorder %s296, %s298
      %p302 = scmp.eq.s32.totalorder %s31, 0
      %p303 = por %p301, %p302
      %p304 = scmp.ne.s32.totalorder %s296, %s298
      %p305 = scmp.eq.s32.totalorder %s36, 1
      %p306 = por %p304, %p305
      %p307 = scmp.ne.s32.totalorder %s298, %s299
      %p308 = scmp.eq.s32.totalorder %s36, 0
      %p309 = por %p307, %p308
      %p310 = scmp.ne.s32.totalorder %s298, %s299
      %p311 = scmp.eq.s32.totalorder %s37, 1
      %p312 = por %p310, %p311
      %p314 = scmp.ne.s32.totalorder %s299, %s313
      %p315 = scmp.eq.s32.totalorder %s37, 0
      %p316 = por %p314, %p315
      %s318 = sadd.s32 %s317, 1
      %p321 = scmp.eq.s32.totalorder %s31, 1
      %p322 = scmp.ne.s32.totalorder %s317, %s319
      %p323 = scmp.eq.s32.totalorder %s31, 0
      %p324 = por %p322, %p323
      %p325 = scmp.ne.s32.totalorder %s317, %s319
      %p326 = scmp.eq.s32.totalorder %s36, 1
      %p327 = por %p325, %p326
      %p328 = scmp.ne.s32.totalorder %s319, %s320
      %p329 = scmp.eq.s32.totalorder %s36, 0
      %p330 = por %p328, %p329
      %p331 = scmp.ne.s32.totalorder %s319, %s320
      %p332 = scmp.eq.s32.totalorder %s37, 1
      %p333 = por %p331, %p332
      %p335 = scmp.ne.s32.totalorder %s320, %s334
      %p336 = scmp.eq.s32.totalorder %s37, 0
      %p337 = por %p335, %p336
      %s339 = sadd.s32 %s338, 1
      %p342 = scmp.eq.s32.totalorder %s31, 1
      %p343 = scmp.ne.s32.totalorder %s338, %s340
      %p344 = scmp.eq.s32.totalorder %s31, 0
      %p345 = por %p343, %p344
      %p346 = scmp.ne.s32.totalorder %s338, %s340
      %p347 = scmp.eq.s32.totalorder %s36, 1
      %p348 = por %p346, %p347
      %p349 = scmp.ne.s32.totalorder %s340, %s341
      %p350 = scmp.eq.s32.totalorder %s36, 0
      %p351 = por %p349, %p350
      %p352 = scmp.ne.s32.totalorder %s340, %s341
      %p353 = scmp.eq.s32.totalorder %s37, 1
      %p354 = por %p352, %p353
      %p356 = scmp.ne.s32.totalorder %s341, %s355
      %p357 = scmp.eq.s32.totalorder %s37, 0
      %p358 = por %p356, %p357
      %s359 = ssub.s32 %s31, %s38
      %p360 = scmp.eq.s32.totalorder %s359, 0
      %s362 = sadd.s32 %s361, 1
      %s363 = scalar_select %p360, %s361, %s362
      %p366 = pneg %p360
      %p367 = scmp.eq.s32.totalorder %s31, 1
      %p368 = por %p366, %p367
      %p369 = scmp.ne.s32.totalorder %s361, %s364
      %p370 = scmp.eq.s32.totalorder %s31, 0
      %p371 = por %p369, %p370
      %p372 = scmp.ne.s32.totalorder %s361, %s364
      %p373 = scmp.eq.s32.totalorder %s36, 1
      %p374 = por %p372, %p373
      %p375 = scmp.ne.s32.totalorder %s364, %s365
      %p376 = scmp.eq.s32.totalorder %s36, 0
      %p377 = por %p375, %p376
      %p378 = scmp.ne.s32.totalorder %s364, %s365
      %p379 = scmp.eq.s32.totalorder %s37, 1
      %p380 = por %p378, %p379
      %p382 = scmp.ne.s32.totalorder %s365, %s381
      %p383 = scmp.eq.s32.totalorder %s37, 0
      %p384 = por %p382, %p383
      %p385 = scmp.le.s32.totalorder 1, %s31
      %p386 = scmp.lt.s32.totalorder %s31, 3
      %p387 = pnand %p385, %p386
      %p388 = pneg %p387
      // Predicated region
      $region9: #{test_forward.1} parent=5 // pred_check
        _
      $region10: #{test_forward.1} parent=5 // pred_check_branch
        %390 = sbr.rel (%p387) target = $region12
      $region11: #{test_forward.1} parent=5 // pred_region
        %s391 = ssub.s32 %s31, 1
        // Predicated region
        $region13: #{test_forward.1} parent=11 // pred_check
          %p392 = pneg %p78
        $region14: #{test_forward.1} parent=11 // pred_check_branch
          %394 = sbr.rel (%p392) target = $region16
        $region15: #{test_forward.1} parent=11 // pred_region
          %s396 = ssub.s32 1024, 1024
          %397 = vsyncadd [#allocation5], %s396
          %s398 = sshll.u32 [#allocation4], 4
          %s399 = int_to_ptr.vmem [resolvable:$true] %s398
          %404 = dma.hbm_to_vmem [thread:$0]  %s1, 1024, %s399, [#allocation5], 128, 128, 8
        $region16: #{test_forward.1} parent=11 // pred_fallthru
          _
        // Predicated region
        $region17: #{test_forward.1} parent=11 // pred_check
          %p405 = pneg %p99
        $region18: #{test_forward.1} parent=11 // pred_check_branch
          %407 = sbr.rel (%p405) target = $region20
        $region19: #{test_forward.1} parent=11 // pred_region
          %s409 = ssub.s32 16, 16
          %410 = vsyncadd [#allocation5], %s409
          %s412 = sshll.u32 [#allocation6], 4
          %s413 = int_to_ptr.vmem [resolvable:$true] %s412
          %415 = dma.hbm_to_vmem [thread:$0]  %s2, 16, %s413, [#allocation5]
        $region20: #{test_forward.1} parent=11 // pred_fallthru
          _
        // Predicated region
        $region21: #{test_forward.1} parent=11 // pred_check
          %p416 = pneg %p120
        $region22: #{test_forward.1} parent=11 // pred_check_branch
          %418 = sbr.rel (%p416) target = $region24
        $region23: #{test_forward.1} parent=11 // pred_region
          %s420 = ssub.s32 4096, 4096
          %421 = vsyncadd [#allocation8], %s420
          %s422 = sshll.u32 [#allocation7], 4
          %s423 = int_to_ptr.vmem [resolvable:$true] %s422
          %428 = dma.hbm_to_vmem [thread:$0]  %s3, 4096, %s423, [#allocation8], 256, 256, 16
        $region24: #{test_forward.1} parent=11 // pred_fallthru
          _
        // Predicated region
        $region25: #{test_forward.1} parent=11 // pred_check
          %p429 = pneg %p141
        $region26: #{test_forward.1} parent=11 // pred_check_branch
          %431 = sbr.rel (%p429) target = $region28
        $region27: #{test_forward.1} parent=11 // pred_region
          %s433 = ssub.s32 32, 32
          %434 = vsyncadd [#allocation8], %s433
          %s436 = sshll.u32 [#allocation9], 4
          %s437 = int_to_ptr.vmem [resolvable:$true] %s436
          %439 = dma.hbm_to_vmem [thread:$0]  %s4, 32, %s437, [#allocation8]
        $region28: #{test_forward.1} parent=11 // pred_fallthru
          _
        // Predicated region
        $region29: #{test_forward.1} parent=11 // pred_check
          %p440 = pneg %p162
        $region30: #{test_forward.1} parent=11 // pred_check_branch
          %442 = sbr.rel (%p440) target = $region32
        $region31: #{test_forward.1} parent=11 // pred_region
          %s444 = ssub.s32 16384, 16384
          %445 = vsyncadd [#allocation11], %s444
          %s446 = sshll.u32 [#allocation10], 4
          %s447 = int_to_ptr.vmem [resolvable:$true] %s446
          %452 = dma.hbm_to_vmem [thread:$0]  %s5, 16384, %s447, [#allocation11], 512, 512, 32
        $region32: #{test_forward.1} parent=11 // pred_fallthru
          _
        // Predicated region
        $region33: #{test_forward.1} parent=11 // pred_check
          %p453 = pneg %p183
        $region34: #{test_forward.1} parent=11 // pred_check_branch
          %455 = sbr.rel (%p453) target = $region36
        $region35: #{test_forward.1} parent=11 // pred_region
          %s457 = ssub.s32 64, 64
          %458 = vsyncadd [#allocation11], %s457
          %s460 = sshll.u32 [#allocation12], 4
          %s461 = int_to_ptr.vmem [resolvable:$true] %s460
          %463 = dma.hbm_to_vmem [thread:$0]  %s6, 64, %s461, [#allocation11]
        $region36: #{test_forward.1} parent=11 // pred_fallthru
          _
        // Predicated region
        $region37: #{test_forward.1} parent=11 // pred_check
          %p464 = pneg %p204
        $region38: #{test_forward.1} parent=11 // pred_check_branch
          %466 = sbr.rel (%p464) target = $region40
        $region39: #{test_forward.1} parent=11 // pred_region
          %s468 = ssub.s32 4096, 4096
          %469 = vsyncadd [#allocation14], %s468
          %s470 = sshll.u32 [#allocation13], 4
          %s471 = int_to_ptr.vmem [resolvable:$true] %s470
          %476 = dma.hbm_to_vmem [thread:$0]  %s7, 4096, %s471, [#allocation14], 256, 256, 16
        $region40: #{test_forward.1} parent=11 // pred_fallthru
          _
        // Predicated region
        $region41: #{test_forward.1} parent=11 // pred_check
          %p477 = pneg %p225
        $region42: #{test_forward.1} parent=11 // pred_check_branch
          %479 = sbr.rel (%p477) target = $region44
        $region43: #{test_forward.1} parent=11 // pred_region
          %s481 = ssub.s32 32, 32
          %482 = vsyncadd [#allocation14], %s481
          %s484 = sshll.u32 [#allocation15], 4
          %s485 = int_to_ptr.vmem [resolvable:$true] %s484
          %487 = dma.hbm_to_vmem [thread:$0]  %s8, 32, %s485, [#allocation14]
        $region44: #{test_forward.1} parent=11 // pred_fallthru
          _
        // Predicated region
        $region45: #{test_forward.1} parent=11 // pred_check
          %p488 = pneg %p246
        $region46: #{test_forward.1} parent=11 // pred_check_branch
          %490 = sbr.rel (%p488) target = $region48
        $region47: #{test_forward.1} parent=11 // pred_region
          %s492 = ssub.s32 16384, 16384
          %493 = vsyncadd [#allocation17], %s492
          %s494 = sshll.u32 [#allocation16], 4
          %s495 = int_to_ptr.vmem [resolvable:$true] %s494
          %500 = dma.hbm_to_vmem [thread:$0]  %s9, 16384, %s495, [#allocation17], 512, 512, 32
        $region48: #{test_forward.1} parent=11 // pred_fallthru
          _
        // Predicated region
        $region49: #{test_forward.1} parent=11 // pred_check
          %p501 = pneg %p267
        $region50: #{test_forward.1} parent=11 // pred_check_branch
          %503 = sbr.rel (%p501) target = $region52
        $region51: #{test_forward.1} parent=11 // pred_region
          %s505 = ssub.s32 64, 64
          %506 = vsyncadd [#allocation17], %s505
          %s508 = sshll.u32 [#allocation18], 4
          %s509 = int_to_ptr.vmem [resolvable:$true] %s508
          %511 = dma.hbm_to_vmem [thread:$0]  %s10, 64, %s509, [#allocation17]
        $region52: #{test_forward.1} parent=11 // pred_fallthru
          _
        // Predicated region
        $region53: #{test_forward.1} parent=11 // pred_check
          %p512 = pneg %p288
        $region54: #{test_forward.1} parent=11 // pred_check_branch
          %514 = sbr.rel (%p512) target = $region56
        $region55: #{test_forward.1} parent=11 // pred_region
          %s516 = ssub.s32 4096, 4096
          %517 = vsyncadd [#allocation20], %s516
          %s518 = sshll.u32 [#allocation19], 4
          %s519 = int_to_ptr.vmem [resolvable:$true] %s518
          %524 = dma.hbm_to_vmem [thread:$0]  %s11, 4096, %s519, [#allocation20], 256, 256, 16
        $region56: #{test_forward.1} parent=11 // pred_fallthru
          _
        // Predicated region
        $region57: #{test_forward.1} parent=11 // pred_check
          %p525 = pneg %p309
        $region58: #{test_forward.1} parent=11 // pred_check_branch
          %527 = sbr.rel (%p525) target = $region60
        $region59: #{test_forward.1} parent=11 // pred_region
          %s529 = ssub.s32 32, 32
          %530 = vsyncadd [#allocation20], %s529
          %s532 = sshll.u32 [#allocation21], 4
          %s533 = int_to_ptr.vmem [resolvable:$true] %s532
          %535 = dma.hbm_to_vmem [thread:$0]  %s12, 32, %s533, [#allocation20]
        $region60: #{test_forward.1} parent=11 // pred_fallthru
          _
        // Predicated region
        $region61: #{test_forward.1} parent=11 // pred_check
          %p536 = pneg %p330
        $region62: #{test_forward.1} parent=11 // pred_check_branch
          %538 = sbr.rel (%p536) target = $region64
        $region63: #{test_forward.1} parent=11 // pred_region
          %s540 = ssub.s32 8192, 8192
          %541 = vsyncadd [#allocation23], %s540
          %s542 = sshll.u32 [#allocation22], 4
          %s543 = int_to_ptr.vmem [resolvable:$true] %s542
          %548 = dma.hbm_to_vmem [thread:$0]  %s13, 8192, %s543, [#allocation23], 256, 256, 16
        $region64: #{test_forward.1} parent=11 // pred_fallthru
          _
        // Predicated region
        $region65: #{test_forward.1} parent=11 // pred_check
          %p549 = pneg %p351
        $region66: #{test_forward.1} parent=11 // pred_check_branch
          %551 = sbr.rel (%p549) target = $region68
        $region67: #{test_forward.1} parent=11 // pred_region
          %s553 = ssub.s32 32, 32
          %554 = vsyncadd [#allocation23], %s553
          %s556 = sshll.u32 [#allocation24], 4
          %s557 = int_to_ptr.vmem [resolvable:$true] %s556
          %559 = dma.hbm_to_vmem [thread:$0]  %s14, 32, %s557, [#allocation23]
        $region68: #{test_forward.1} parent=11 // pred_fallthru
          _
      $region12: #{test_forward.1} parent=5 // pred_fallthru
        _
      %p560 = scmp.lt.s32.totalorder %s31, 2
      // Predicated region
      $region69: #{test_forward.1} parent=5 // pred_check
        %p561 = pneg %p560
      $region70: #{test_forward.1} parent=5 // pred_check_branch
        %563 = sbr.rel (%p561) target = $region72
      $region71: #{test_forward.1} parent=5 // pred_region
        // Predicated region
        $region73: #{test_forward.1} parent=71 // pred_check
          %p564 = pneg %p51
        $region74: #{test_forward.1} parent=71 // pred_check_branch
          %566 = sbr.rel (%p564) target = $region76
        $region75: #{test_forward.1} parent=71 // pred_region
          %s567 = sand.u32 %s41, 1
          %s568 = scalar_lea.sflag [#allocation3], %s567
          %s569 = sand.u32 %s41, 1
          %s570 = smul.addr %s569, 8
          %s571 = scalar_lea.vmem [#allocation2], %s570
          %s573 = ssub.s32 128, 128
          %574 = vsyncadd %s568, %s573
          %s575 = smul.addr %s31, 128
          %s576 = scalar_lea.hbm %s0, %s575
          %s578 = sshll.u32 %s571, 4
          %s579 = int_to_ptr.vmem [resolvable:$true] %s578
          %581 = dma.hbm_to_vmem [thread:$0]  %s576, 128, %s579, %s568
        $region76: #{test_forward.1} parent=71 // pred_fallthru
          _
      $region72: #{test_forward.1} parent=5 // pred_fallthru
        _
      %p582 = scmp.le.s32.totalorder 1, %s31
      %p583 = scmp.lt.s32.totalorder %s31, 3
      %p584 = pnand %p582, %p583
      %p585 = pneg %p584
      // Predicated region
      $region77: #{test_forward.1} parent=5 // pred_check
        _
      $region78: #{test_forward.1} parent=5 // pred_check_branch
        %587 = sbr.rel (%p584) target = $region80
      $region79: #{test_forward.1} parent=5 // pred_region
        %s588 = ssub.s32 %s31, 1
        %s589 = sand.u32 %s44, 1
        %s590 = scalar_lea.sflag [#allocation3], %s589
        %s591 = sand.u32 %s44, 1
        %s592 = smul.addr %s591, 8
        %s593 = scalar_lea.vmem [#allocation2], %s592
        // Predicated region
        $region81: #{test_forward.1} parent=79 // pred_check
          %p594 = pneg %p57
        $region82: #{test_forward.1} parent=79 // pred_check_branch
          %596 = sbr.rel (%p594) target = $region84
        $region83: #{test_forward.1} parent=79 // pred_region
          %597 = dma.done %s590, 128
        $region84: #{test_forward.1} parent=79 // pred_fallthru
          _
        // Predicated region
        $region85: #{test_forward.1} parent=79 // pred_check
          %p598 = pneg %p78
        $region86: #{test_forward.1} parent=79 // pred_check_branch
          %600 = sbr.rel (%p598) target = $region88
        $region87: #{test_forward.1} parent=79 // pred_region
          %601 = dma.done [#allocation5], 1024
        $region88: #{test_forward.1} parent=79 // pred_fallthru
          _
        // Predicated region
        $region89: #{test_forward.1} parent=79 // pred_check
          %p602 = pneg %p99
        $region90: #{test_forward.1} parent=79 // pred_check_branch
          %604 = sbr.rel (%p602) target = $region92
        $region91: #{test_forward.1} parent=79 // pred_region
          %605 = dma.done [#allocation5], 16
        $region92: #{test_forward.1} parent=79 // pred_fallthru
          _
        // Predicated region
        $region93: #{test_forward.1} parent=79 // pred_check
          %p606 = pneg %p120
        $region94: #{test_forward.1} parent=79 // pred_check_branch
          %608 = sbr.rel (%p606) target = $region96
        $region95: #{test_forward.1} parent=79 // pred_region
          %609 = dma.done [#allocation8], 4096
        $region96: #{test_forward.1} parent=79 // pred_fallthru
          _
        // Predicated region
        $region97: #{test_forward.1} parent=79 // pred_check
          %p610 = pneg %p141
        $region98: #{test_forward.1} parent=79 // pred_check_branch
          %612 = sbr.rel (%p610) target = $region100
        $region99: #{test_forward.1} parent=79 // pred_region
          %613 = dma.done [#allocation8], 32
        $region100: #{test_forward.1} parent=79 // pred_fallthru
          _
        // Predicated region
        $region101: #{test_forward.1} parent=79 // pred_check
          %p614 = pneg %p162
        $region102: #{test_forward.1} parent=79 // pred_check_branch
          %616 = sbr.rel (%p614) target = $region104
        $region103: #{test_forward.1} parent=79 // pred_region
          %617 = dma.done [#allocation11], 16384
        $region104: #{test_forward.1} parent=79 // pred_fallthru
          _
        // Predicated region
        $region105: #{test_forward.1} parent=79 // pred_check
          %p618 = pneg %p183
        $region106: #{test_forward.1} parent=79 // pred_check_branch
          %620 = sbr.rel (%p618) target = $region108
        $region107: #{test_forward.1} parent=79 // pred_region
          %621 = dma.done [#allocation11], 64
        $region108: #{test_forward.1} parent=79 // pred_fallthru
          _
        // Predicated region
        $region109: #{test_forward.1} parent=79 // pred_check
          %p622 = pneg %p204
        $region110: #{test_forward.1} parent=79 // pred_check_branch
          %624 = sbr.rel (%p622) target = $region112
        $region111: #{test_forward.1} parent=79 // pred_region
          %625 = dma.done [#allocation14], 4096
        $region112: #{test_forward.1} parent=79 // pred_fallthru
          _
        // Predicated region
        $region113: #{test_forward.1} parent=79 // pred_check
          %p626 = pneg %p225
        $region114: #{test_forward.1} parent=79 // pred_check_branch
          %628 = sbr.rel (%p626) target = $region116
        $region115: #{test_forward.1} parent=79 // pred_region
          %629 = dma.done [#allocation14], 32
        $region116: #{test_forward.1} parent=79 // pred_fallthru
          _
        // Predicated region
        $region117: #{test_forward.1} parent=79 // pred_check
          %p630 = pneg %p246
        $region118: #{test_forward.1} parent=79 // pred_check_branch
          %632 = sbr.rel (%p630) target = $region120
        $region119: #{test_forward.1} parent=79 // pred_region
          %633 = dma.done [#allocation17], 16384
        $region120: #{test_forward.1} parent=79 // pred_fallthru
          _
        // Predicated region
        $region121: #{test_forward.1} parent=79 // pred_check
          %p634 = pneg %p267
        $region122: #{test_forward.1} parent=79 // pred_check_branch
          %636 = sbr.rel (%p634) target = $region124
        $region123: #{test_forward.1} parent=79 // pred_region
          %637 = dma.done [#allocation17], 64
        $region124: #{test_forward.1} parent=79 // pred_fallthru
          _
        // Predicated region
        $region125: #{test_forward.1} parent=79 // pred_check
          %p638 = pneg %p288
        $region126: #{test_forward.1} parent=79 // pred_check_branch
          %640 = sbr.rel (%p638) target = $region128
        $region127: #{test_forward.1} parent=79 // pred_region
          %641 = dma.done [#allocation20], 4096
        $region128: #{test_forward.1} parent=79 // pred_fallthru
          _
        // Predicated region
        $region129: #{test_forward.1} parent=79 // pred_check
          %p642 = pneg %p309
        $region130: #{test_forward.1} parent=79 // pred_check_branch
          %644 = sbr.rel (%p642) target = $region132
        $region131: #{test_forward.1} parent=79 // pred_region
          %645 = dma.done [#allocation20], 32
        $region132: #{test_forward.1} parent=79 // pred_fallthru
          _
        // Predicated region
        $region133: #{test_forward.1} parent=79 // pred_check
          %p646 = pneg %p330
        $region134: #{test_forward.1} parent=79 // pred_check_branch
          %648 = sbr.rel (%p646) target = $region136
        $region135: #{test_forward.1} parent=79 // pred_region
          %649 = dma.done [#allocation23], 8192
        $region136: #{test_forward.1} parent=79 // pred_fallthru
          _
        // Predicated region
        $region137: #{test_forward.1} parent=79 // pred_check
          %p650 = pneg %p351
        $region138: #{test_forward.1} parent=79 // pred_check_branch
          %652 = sbr.rel (%p650) target = $region140
        $region139: #{test_forward.1} parent=79 // pred_region
          %653 = dma.done [#allocation23], 32
        $region140: #{test_forward.1} parent=79 // pred_fallthru
          _
        %s654 = sand.u32 %s44, 1
        %s655 = scalar_lea.sflag [#allocation3], %s654
        %s656 = sand.u32 %s44, 1
        %s657 = smul.addr %s656, 8
        %s658 = scalar_lea.vmem [#allocation2], %s657
        %p659 = pneg %p57
        %p660 = pneg %p54
        %p661 = pneg %p78
        %p662 = pneg %p75
        %p663 = pneg %p99
        %p664 = pneg %p96
        %p665 = pneg %p120
        %p666 = pneg %p117
        %p667 = pneg %p141
        %p668 = pneg %p138
        %p669 = pneg %p162
        %p670 = pneg %p159
        %p671 = pneg %p183
        %p672 = pneg %p180
        %p673 = pneg %p204
        %p674 = pneg %p201
        %p675 = pneg %p225
        %p676 = pneg %p222
        %p677 = pneg %p246
        %p678 = pneg %p243
        %p679 = pneg %p267
        %p680 = pneg %p264
        %p681 = pneg %p288
        %p682 = pneg %p285
        %p683 = pneg %p309
        %p684 = pneg %p306
        %p685 = pneg %p330
        %p686 = pneg %p327
        %p687 = pneg %p351
        %p688 = pneg %p348
        %p689 = pneg %p377
        %p690 = pneg %p374
        %p691 = scmp.lt.s32.totalorder %s36, 1
        %s692 = scalar_select %p691, %s36, 1
        %s693 = smul.addr %s692, 32
        %s694 = smul.addr %s693, 8
        %s695 = scalar_lea.vmem %s15, %s694
        %p696 = scmp.lt.s32.totalorder %s36, 1
        %s697 = scalar_select %p696, %s36, 1
        %s698 = smul.addr %s697, 32
        %s699 = smul.addr %s698, 8
        %s700 = scalar_lea.vmem %s15, %s699
        %v701 = vld [vmem:[%s593] sm:$0xff]
        %v702 = vld [vmem:[#allocation4] sm:$0xff]
        %v703 = vld [vmem:[#allocation4 + $0x8] sm:$0xff]
        %v704 = vld [vmem:[#allocation4 + $0x10] sm:$0xff]
        %v705 = vld [vmem:[#allocation4 + $0x18] sm:$0xff]
        %v706 = vld [vmem:[#allocation4 + $0x20] sm:$0xff]
        %v707 = vld [vmem:[#allocation4 + $0x28] sm:$0xff]
        %v708 = vld [vmem:[#allocation4 + $0x30] sm:$0xff]
        %v709 = vld [vmem:[#allocation4 + $0x38] sm:$0xff]
        %v710 = vld [vmem:[#allocation6] sm:$0x1]
        %v712 = vlaneseq
        %v713 = vshrl.u32 %v712, 7
        %v714 = vsub.s32 0, %v713
        %v715 = vrot.slane %v710, %v714
        %vm717 = vcmask 523264
        %v719 = vsel %vm717, %v701, 0
        %721 = vmatprep.subr.mxu0 0.0
        %722 = vmatpush1.msra.mxu0 0.0
        %723 = vmatprep.subr.mxu0 0.0
        %724 = vmatpush1.msra.mxu0 0.0
        %725 = vmatprep.subr.mxu0 0.0
        %726 = vmatpush1.msra.mxu0 0.0
        %727 = vmatprep.subr.mxu0 0.0
        %728 = vmatpush1.msra.mxu0 0.0
        %729 = vmatprep.subr.mxu0 0.0
        %730 = vmatpush1.msra.mxu0 0.0
        %731 = vmatprep.subr.mxu0 0.0
        %732 = vmatpush1.msra.mxu0 0.0
        %733 = vmatprep.subr.mxu0 0.0
        %734 = vmatpush1.msra.mxu0 0.0
        %735 = vmatprep.subr.mxu0 0.0
        %736 = vmatpush1.msra.mxu0 0.0
        %737 = vmatprep.subr.mxu0 0.0
        %738 = vmatpush1.msra.mxu0 %v709
        %739 = vmatprep.subr.mxu0 0.0
        %740 = vmatpush1.msra.mxu0 %v708
        %741 = vmatprep.subr.mxu0 0.0
        %742 = vmatpush1.msra.mxu0 %v707
        %743 = vmatprep.subr.mxu0 0.0
        %744 = vmatpush1.msra.mxu0 %v706
        %745 = vmatprep.subr.mxu0 0.0
        %746 = vmatpush1.msra.mxu0 %v705
        %747 = vmatprep.subr.mxu0 0.0
        %748 = vmatpush1.msra.mxu0 %v704
        %749 = vmatprep.subr.mxu0 0.0
        %750 = vmatpush1.msra.mxu0 %v703
        %751 = vmatprep.subr.mxu0 0.0
        %752 = vmatpush1.msra.mxu0 %v702
        %753 = vmatprep.subr.mxu0 0.0
        %754 = vmatpush2.msra.mxu0 0.0
        %755 = vmatprep.subr.mxu0 0.0
        %756 = vmatpush2.msra.mxu0 0.0
        %757 = vmatprep.subr.mxu0 0.0
        %758 = vmatpush2.msra.mxu0 0.0
        %759 = vmatprep.subr.mxu0 0.0
        %760 = vmatpush2.msra.mxu0 0.0
        %761 = vmatprep.subr.mxu0 0.0
        %762 = vmatpush2.msra.mxu0 0.0
        %763 = vmatprep.subr.mxu0 0.0
        %764 = vmatpush2.msra.mxu0 0.0
        %765 = vmatprep.subr.mxu0 0.0
        %766 = vmatpush2.msra.mxu0 0.0
        %767 = vmatprep.subr.mxu0 0.0
        %768 = vmatpush2.msra.mxu0 0.0
        %769 = vmatprep.subr.mxu0 0.0
        %770 = vmatpush2.msra.mxu0 0.0
        %771 = vmatprep.subr.mxu0 0.0
        %772 = vmatpush2.msra.mxu0 0.0
        %773 = vmatprep.subr.mxu0 0.0
        %774 = vmatpush2.msra.mxu0 0.0
        %775 = vmatprep.subr.mxu0 0.0
        %776 = vmatpush2.msra.mxu0 0.0
        %777 = vmatprep.subr.mxu0 0.0
        %778 = vmatpush2.msra.mxu0 0.0
        %779 = vmatprep.subr.mxu0 0.0
        %780 = vmatpush2.msra.mxu0 0.0
        %781 = vmatprep.subr.mxu0 0.0
        %782 = vmatpush2.msra.mxu0 0.0
        %783 = vmatprep.subr.mxu0 0.0
        %784 = vmatpush2.msra.mxu0 0.0
        %785 = vmatprep.mubr.f32.mxu0 0.0
        %786 = vmatmul.mubr.f32.gmra.mxu0 %v719
        %v787 = vpop.f32.mrf.mxu0
        %v788 = vadd.f32 %v715, %v787
        %v789 = vpop.f32.mrf.mxu0
        %790 = vdwg.mxu0
        %v791 = vld [vmem:[#allocation7] sm:$0xff]
        %v792 = vld [vmem:[#allocation7 + $0x8] sm:$0xff]
        %v793 = vld [vmem:[#allocation7 + $0x10] sm:$0xff]
        %v794 = vld [vmem:[#allocation7 + $0x18] sm:$0xff]
        %v795 = vld [vmem:[#allocation7 + $0x20] sm:$0xff]
        %v796 = vld [vmem:[#allocation7 + $0x28] sm:$0xff]
        %v797 = vld [vmem:[#allocation7 + $0x30] sm:$0xff]
        %v798 = vld [vmem:[#allocation7 + $0x38] sm:$0xff]
        %v799 = vld [vmem:[#allocation7 + $0x40] sm:$0xff]
        %v800 = vld [vmem:[#allocation7 + $0x48] sm:$0xff]
        %v801 = vld [vmem:[#allocation7 + $0x50] sm:$0xff]
        %v802 = vld [vmem:[#allocation7 + $0x58] sm:$0xff]
        %v803 = vld [vmem:[#allocation7 + $0x60] sm:$0xff]
        %v804 = vld [vmem:[#allocation7 + $0x68] sm:$0xff]
        %v805 = vld [vmem:[#allocation7 + $0x70] sm:$0xff]
        %v806 = vld [vmem:[#allocation7 + $0x78] sm:$0xff]
        %v807 = vld [vmem:[#allocation7 + $0x80] sm:$0xff]
        %v808 = vld [vmem:[#allocation7 + $0x88] sm:$0xff]
        %v809 = vld [vmem:[#allocation7 + $0x90] sm:$0xff]
        %v810 = vld [vmem:[#allocation7 + $0x98] sm:$0xff]
        %v811 = vld [vmem:[#allocation7 + $0xa0] sm:$0xff]
        %v812 = vld [vmem:[#allocation7 + $0xa8] sm:$0xff]
        %v813 = vld [vmem:[#allocation7 + $0xb0] sm:$0xff]
        %v814 = vld [vmem:[#allocation7 + $0xb8] sm:$0xff]
        %v815 = vld [vmem:[#allocation7 + $0xc0] sm:$0xff]
        %v816 = vld [vmem:[#allocation7 + $0xc8] sm:$0xff]
        %v817 = vld [vmem:[#allocation7 + $0xd0] sm:$0xff]
        %v818 = vld [vmem:[#allocation7 + $0xd8] sm:$0xff]
        %v819 = vld [vmem:[#allocation7 + $0xe0] sm:$0xff]
        %v820 = vld [vmem:[#allocation7 + $0xe8] sm:$0xff]
        %v821 = vld [vmem:[#allocation7 + $0xf0] sm:$0xff]
        %v822 = vld [vmem:[#allocation7 + $0xf8] sm:$0xff]
        %v823 = vld [vmem:[#allocation9] sm:$0x3]
        %v825 = vlaneseq
        %v826 = vshrl.u32 %v825, 7
        %v827 = vsub.s32 0, %v826
        %v828 = vrot.slane %v823, %v827
        %v829 = vlaneseq
        %v830 = vshrl.u32 %v829, 7
        %v831 = vsub.s32 1, %v830
        %v832 = vrot.slane %v823, %v831
        %835 = vmatprep.subr.mxu0 %v822
        %836 = vmatpush1.msra.mxu0 %v821
        %837 = vmatprep.subr.mxu0 %v820
        %838 = vmatpush1.msra.mxu0 %v819
        %839 = vmatprep.subr.mxu0 %v818
        %840 = vmatpush1.msra.mxu0 %v817
        %841 = vmatprep.subr.mxu0 %v816
        %842 = vmatpush1.msra.mxu0 %v815
        %843 = vmatprep.subr.mxu0 %v814
        %844 = vmatpush1.msra.mxu0 %v813
        %845 = vmatprep.subr.mxu0 %v812
        %846 = vmatpush1.msra.mxu0 %v811
        %847 = vmatprep.subr.mxu0 %v810
        %848 = vmatpush1.msra.mxu0 %v809
        %849 = vmatprep.subr.mxu0 %v808
        %850 = vmatpush1.msra.mxu0 %v807
        %851 = vmatprep.subr.mxu0 %v806
        %852 = vmatpush1.msra.mxu0 %v805
        %853 = vmatprep.subr.mxu0 %v804
        %854 = vmatpush1.msra.mxu0 %v803
        %855 = vmatprep.subr.mxu0 %v802
        %856 = vmatpush1.msra.mxu0 %v801
        %857 = vmatprep.subr.mxu0 %v800
        %858 = vmatpush1.msra.mxu0 %v799
        %859 = vmatprep.subr.mxu0 %v798
        %860 = vmatpush1.msra.mxu0 %v797
        %861 = vmatprep.subr.mxu0 %v796
        %862 = vmatpush1.msra.mxu0 %v795
        %863 = vmatprep.subr.mxu0 %v794
        %864 = vmatpush1.msra.mxu0 %v793
        %865 = vmatprep.subr.mxu0 %v792
        %866 = vmatpush1.msra.mxu0 %v791
        %867 = vmatprep.subr.mxu0 0.0
        %868 = vmatpush2.msra.mxu0 0.0
        %869 = vmatprep.subr.mxu0 0.0
        %870 = vmatpush2.msra.mxu0 0.0
        %871 = vmatprep.subr.mxu0 0.0
        %872 = vmatpush2.msra.mxu0 0.0
        %873 = vmatprep.subr.mxu0 0.0
        %874 = vmatpush2.msra.mxu0 0.0
        %875 = vmatprep.subr.mxu0 0.0
        %876 = vmatpush2.msra.mxu0 0.0
        %877 = vmatprep.subr.mxu0 0.0
        %878 = vmatpush2.msra.mxu0 0.0
        %879 = vmatprep.subr.mxu0 0.0
        %880 = vmatpush2.msra.mxu0 0.0
        %881 = vmatprep.subr.mxu0 0.0
        %882 = vmatpush2.msra.mxu0 0.0
        %883 = vmatprep.subr.mxu0 0.0
        %884 = vmatpush2.msra.mxu0 0.0
        %885 = vmatprep.subr.mxu0 0.0
        %886 = vmatpush2.msra.mxu0 0.0
        %887 = vmatprep.subr.mxu0 0.0
        %888 = vmatpush2.msra.mxu0 0.0
        %889 = vmatprep.subr.mxu0 0.0
        %890 = vmatpush2.msra.mxu0 0.0
        %891 = vmatprep.subr.mxu0 0.0
        %892 = vmatpush2.msra.mxu0 0.0
        %893 = vmatprep.subr.mxu0 0.0
        %894 = vmatpush2.msra.mxu0 0.0
        %895 = vmatprep.subr.mxu0 0.0
        %896 = vmatpush2.msra.mxu0 0.0
        %897 = vmatprep.subr.mxu0 0.0
        %898 = vmatpush2.msra.mxu0 0.0
        %899 = vmatprep.mubr.f32.mxu0 0.0
        %900 = vmatmul.mubr.f32.gmra.mxu0 %v788
        %v901 = vpop.f32.mrf.mxu0
        %v902 = vadd.f32 %v828, %v901
        %v903 = vpop.f32.mrf.mxu0
        %v904 = vadd.f32 %v832, %v903
        %905 = vdwg.mxu0
        %v906 = vmax.f32 %v902, 0.0
        %v907 = vmax.f32 %v904, 0.0
        %v908 = vld [vmem:[#allocation10] sm:$0xff]
        %v909 = vld [vmem:[#allocation10 + $0x8] sm:$0xff]
        %v910 = vld [vmem:[#allocation10 + $0x10] sm:$0xff]
        %v911 = vld [vmem:[#allocation10 + $0x18] sm:$0xff]
        %v912 = vld [vmem:[#allocation10 + $0x20] sm:$0xff]
        %v913 = vld [vmem:[#allocation10 + $0x28] sm:$0xff]
        %v914 = vld [vmem:[#allocation10 + $0x30] sm:$0xff]
        %v915 = vld [vmem:[#allocation10 + $0x38] sm:$0xff]
        %v916 = vld [vmem:[#allocation10 + $0x40] sm:$0xff]
        %v917 = vld [vmem:[#allocation10 + $0x48] sm:$0xff]
        %v918 = vld [vmem:[#allocation10 + $0x50] sm:$0xff]
        %v919 = vld [vmem:[#allocation10 + $0x58] sm:$0xff]
        %v920 = vld [vmem:[#allocation10 + $0x60] sm:$0xff]
        %v921 = vld [vmem:[#allocation10 + $0x68] sm:$0xff]
        %v922 = vld [vmem:[#allocation10 + $0x70] sm:$0xff]
        %v923 = vld [vmem:[#allocation10 + $0x78] sm:$0xff]
        %v924 = vld [vmem:[#allocation10 + $0x80] sm:$0xff]
        %v925 = vld [vmem:[#allocation10 + $0x88] sm:$0xff]
        %v926 = vld [vmem:[#allocation10 + $0x90] sm:$0xff]
        %v927 = vld [vmem:[#allocation10 + $0x98] sm:$0xff]
        %v928 = vld [vmem:[#allocation10 + $0xa0] sm:$0xff]
        %v929 = vld [vmem:[#allocation10 + $0xa8] sm:$0xff]
        %v930 = vld [vmem:[#allocation10 + $0xb0] sm:$0xff]
        %v931 = vld [vmem:[#allocation10 + $0xb8] sm:$0xff]
        %v932 = vld [vmem:[#allocation10 + $0xc0] sm:$0xff]
        %v933 = vld [vmem:[#allocation10 + $0xc8] sm:$0xff]
        %v934 = vld [vmem:[#allocation10 + $0xd0] sm:$0xff]
        %v935 = vld [vmem:[#allocation10 + $0xd8] sm:$0xff]
        %v936 = vld [vmem:[#allocation10 + $0xe0] sm:$0xff]
        %v937 = vld [vmem:[#allocation10 + $0xe8] sm:$0xff]
        %v938 = vld [vmem:[#allocation10 + $0xf0] sm:$0xff]
        %v939 = vld [vmem:[#allocation10 + $0xf8] sm:$0xff]
        %v940 = vld [vmem:[#allocation10 + $0x100] sm:$0xff]
        %v941 = vld [vmem:[#allocation10 + $0x108] sm:$0xff]
        %v942 = vld [vmem:[#allocation10 + $0x110] sm:$0xff]
        %v943 = vld [vmem:[#allocation10 + $0x118] sm:$0xff]
        %v944 = vld [vmem:[#allocation10 + $0x120] sm:$0xff]
        %v945 = vld [vmem:[#allocation10 + $0x128] sm:$0xff]
        %v946 = vld [vmem:[#allocation10 + $0x130] sm:$0xff]
        %v947 = vld [vmem:[#allocation10 + $0x138] sm:$0xff]
        %v948 = vld [vmem:[#allocation10 + $0x140] sm:$0xff]
        %v949 = vld [vmem:[#allocation10 + $0x148] sm:$0xff]
        %v950 = vld [vmem:[#allocation10 + $0x150] sm:$0xff]
        %v951 = vld [vmem:[#allocation10 + $0x158] sm:$0xff]
        %v952 = vld [vmem:[#allocation10 + $0x160] sm:$0xff]
        %v953 = vld [vmem:[#allocation10 + $0x168] sm:$0xff]
        %v954 = vld [vmem:[#allocation10 + $0x170] sm:$0xff]
        %v955 = vld [vmem:[#allocation10 + $0x178] sm:$0xff]
        %v956 = vld [vmem:[#allocation10 + $0x180] sm:$0xff]
        %v957 = vld [vmem:[#allocation10 + $0x188] sm:$0xff]
        %v958 = vld [vmem:[#allocation10 + $0x190] sm:$0xff]
        %v959 = vld [vmem:[#allocation10 + $0x198] sm:$0xff]
        %v960 = vld [vmem:[#allocation10 + $0x1a0] sm:$0xff]
        %v961 = vld [vmem:[#allocation10 + $0x1a8] sm:$0xff]
        %v962 = vld [vmem:[#allocation10 + $0x1b0] sm:$0xff]
        %v963 = vld [vmem:[#allocation10 + $0x1b8] sm:$0xff]
        %v964 = vld [vmem:[#allocation10 + $0x1c0] sm:$0xff]
        %v965 = vld [vmem:[#allocation10 + $0x1c8] sm:$0xff]
        %v966 = vld [vmem:[#allocation10 + $0x1d0] sm:$0xff]
        %v967 = vld [vmem:[#allocation10 + $0x1d8] sm:$0xff]
        %v968 = vld [vmem:[#allocation10 + $0x1e0] sm:$0xff]
        %v969 = vld [vmem:[#allocation10 + $0x1e8] sm:$0xff]
        %v970 = vld [vmem:[#allocation10 + $0x1f0] sm:$0xff]
        %v971 = vld [vmem:[#allocation10 + $0x1f8] sm:$0xff]
        %v972 = vld [vmem:[#allocation10 + $0x200] sm:$0xff]
        %v973 = vld [vmem:[#allocation10 + $0x208] sm:$0xff]
        %v974 = vld [vmem:[#allocation10 + $0x210] sm:$0xff]
        %v975 = vld [vmem:[#allocation10 + $0x218] sm:$0xff]
        %v976 = vld [vmem:[#allocation10 + $0x220] sm:$0xff]
        %v977 = vld [vmem:[#allocation10 + $0x228] sm:$0xff]
        %v978 = vld [vmem:[#allocation10 + $0x230] sm:$0xff]
        %v979 = vld [vmem:[#allocation10 + $0x238] sm:$0xff]
        %v980 = vld [vmem:[#allocation10 + $0x240] sm:$0xff]
        %v981 = vld [vmem:[#allocation10 + $0x248] sm:$0xff]
        %v982 = vld [vmem:[#allocation10 + $0x250] sm:$0xff]
        %v983 = vld [vmem:[#allocation10 + $0x258] sm:$0xff]
        %v984 = vld [vmem:[#allocation10 + $0x260] sm:$0xff]
        %v985 = vld [vmem:[#allocation10 + $0x268] sm:$0xff]
        %v986 = vld [vmem:[#allocation10 + $0x270] sm:$0xff]
        %v987 = vld [vmem:[#allocation10 + $0x278] sm:$0xff]
        %v988 = vld [vmem:[#allocation10 + $0x280] sm:$0xff]
        %v989 = vld [vmem:[#allocation10 + $0x288] sm:$0xff]
        %v990 = vld [vmem:[#allocation10 + $0x290] sm:$0xff]
        %v991 = vld [vmem:[#allocation10 + $0x298] sm:$0xff]
        %v992 = vld [vmem:[#allocation10 + $0x2a0] sm:$0xff]
        %v993 = vld [vmem:[#allocation10 + $0x2a8] sm:$0xff]
        %v994 = vld [vmem:[#allocation10 + $0x2b0] sm:$0xff]
        %v995 = vld [vmem:[#allocation10 + $0x2b8] sm:$0xff]
        %v996 = vld [vmem:[#allocation10 + $0x2c0] sm:$0xff]
        %v997 = vld [vmem:[#allocation10 + $0x2c8] sm:$0xff]
        %v998 = vld [vmem:[#allocation10 + $0x2d0] sm:$0xff]
        %v999 = vld [vmem:[#allocation10 + $0x2d8] sm:$0xff]
        %v1000 = vld [vmem:[#allocation10 + $0x2e0] sm:$0xff]
        %v1001 = vld [vmem:[#allocation10 + $0x2e8] sm:$0xff]
        %v1002 = vld [vmem:[#allocation10 + $0x2f0] sm:$0xff]
        %v1003 = vld [vmem:[#allocation10 + $0x2f8] sm:$0xff]
        %v1004 = vld [vmem:[#allocation10 + $0x300] sm:$0xff]
        %v1005 = vld [vmem:[#allocation10 + $0x308] sm:$0xff]
        %v1006 = vld [vmem:[#allocation10 + $0x310] sm:$0xff]
        %v1007 = vld [vmem:[#allocation10 + $0x318] sm:$0xff]
        %v1008 = vld [vmem:[#allocation10 + $0x320] sm:$0xff]
        %v1009 = vld [vmem:[#allocation10 + $0x328] sm:$0xff]
        %v1010 = vld [vmem:[#allocation10 + $0x330] sm:$0xff]
        %v1011 = vld [vmem:[#allocation10 + $0x338] sm:$0xff]
        %v1012 = vld [vmem:[#allocation10 + $0x340] sm:$0xff]
        %v1013 = vld [vmem:[#allocation10 + $0x348] sm:$0xff]
        %v1014 = vld [vmem:[#allocation10 + $0x350] sm:$0xff]
        %v1015 = vld [vmem:[#allocation10 + $0x358] sm:$0xff]
        %v1016 = vld [vmem:[#allocation10 + $0x360] sm:$0xff]
        %v1017 = vld [vmem:[#allocation10 + $0x368] sm:$0xff]
        %v1018 = vld [vmem:[#allocation10 + $0x370] sm:$0xff]
        %v1019 = vld [vmem:[#allocation10 + $0x378] sm:$0xff]
        %v1020 = vld [vmem:[#allocation10 + $0x380] sm:$0xff]
        %v1021 = vld [vmem:[#allocation10 + $0x388] sm:$0xff]
        %v1022 = vld [vmem:[#allocation10 + $0x390] sm:$0xff]
        %v1023 = vld [vmem:[#allocation10 + $0x398] sm:$0xff]
        %v1024 = vld [vmem:[#allocation10 + $0x3a0] sm:$0xff]
        %v1025 = vld [vmem:[#allocation10 + $0x3a8] sm:$0xff]
        %v1026 = vld [vmem:[#allocation10 + $0x3b0] sm:$0xff]
        %v1027 = vld [vmem:[#allocation10 + $0x3b8] sm:$0xff]
        %v1028 = vld [vmem:[#allocation10 + $0x3c0] sm:$0xff]
        %v1029 = vld [vmem:[#allocation10 + $0x3c8] sm:$0xff]
        %v1030 = vld [vmem:[#allocation10 + $0x3d0] sm:$0xff]
        %v1031 = vld [vmem:[#allocation10 + $0x3d8] sm:$0xff]
        %v1032 = vld [vmem:[#allocation10 + $0x3e0] sm:$0xff]
        %v1033 = vld [vmem:[#allocation10 + $0x3e8] sm:$0xff]
        %v1034 = vld [vmem:[#allocation10 + $0x3f0] sm:$0xff]
        %v1035 = vld [vmem:[#allocation10 + $0x3f8] sm:$0xff]
        %v1036 = vld [vmem:[#allocation12] sm:$0xf]
        %v1038 = vlaneseq
        %v1039 = vshrl.u32 %v1038, 7
        %v1040 = vsub.s32 0, %v1039
        %v1041 = vrot.slane %v1036, %v1040
        %v1042 = vlaneseq
        %v1043 = vshrl.u32 %v1042, 7
        %v1044 = vsub.s32 1, %v1043
        %v1045 = vrot.slane %v1036, %v1044
        %v1046 = vlaneseq
        %v1047 = vshrl.u32 %v1046, 7
        %v1048 = vsub.s32 2, %v1047
        %v1049 = vrot.slane %v1036, %v1048
        %v1050 = vlaneseq
        %v1051 = vshrl.u32 %v1050, 7
        %v1052 = vsub.s32 3, %v1051
        %v1053 = vrot.slane %v1036, %v1052
        %1058 = vmatprep.subr.mxu0 %v969
        %1059 = vmatpush1.msra.mxu0 %v968
        %1060 = vmatprep.subr.mxu0 %v965
        %1061 = vmatpush1.msra.mxu0 %v964
        %1062 = vmatprep.subr.mxu0 %v961
        %1063 = vmatpush1.msra.mxu0 %v960
        %1064 = vmatprep.subr.mxu0 %v957
        %1065 = vmatpush1.msra.mxu0 %v956
        %1066 = vmatprep.subr.mxu0 %v953
        %1067 = vmatpush1.msra.mxu0 %v952
        %1068 = vmatprep.subr.mxu0 %v949
        %1069 = vmatpush1.msra.mxu0 %v948
        %1070 = vmatprep.subr.mxu0 %v945
        %1071 = vmatpush1.msra.mxu0 %v944
        %1072 = vmatprep.subr.mxu0 %v941
        %1073 = vmatpush1.msra.mxu0 %v940
        %1074 = vmatprep.subr.mxu0 %v937
        %1075 = vmatpush1.msra.mxu0 %v936
        %1076 = vmatprep.subr.mxu0 %v933
        %1077 = vmatpush1.msra.mxu0 %v932
        %1078 = vmatprep.subr.mxu0 %v929
        %1079 = vmatpush1.msra.mxu0 %v928
        %1080 = vmatprep.subr.mxu0 %v925
        %1081 = vmatpush1.msra.mxu0 %v924
        %1082 = vmatprep.subr.mxu0 %v921
        %1083 = vmatpush1.msra.mxu0 %v920
        %1084 = vmatprep.subr.mxu0 %v917
        %1085 = vmatpush1.msra.mxu0 %v916
        %1086 = vmatprep.subr.mxu0 %v913
        %1087 = vmatpush1.msra.mxu0 %v912
        %1088 = vmatprep.subr.mxu0 %v909
        %1089 = vmatpush1.msra.mxu0 %v908
        %1090 = vmatprep.subr.mxu0 %v1033
        %1091 = vmatpush2.msra.mxu0 %v1032
        %1092 = vmatprep.subr.mxu0 %v1029
        %1093 = vmatpush2.msra.mxu0 %v1028
        %1094 = vmatprep.subr.mxu0 %v1025
        %1095 = vmatpush2.msra.mxu0 %v1024
        %1096 = vmatprep.subr.mxu0 %v1021
        %1097 = vmatpush2.msra.mxu0 %v1020
        %1098 = vmatprep.subr.mxu0 %v1017
        %1099 = vmatpush2.msra.mxu0 %v1016
        %1100 = vmatprep.subr.mxu0 %v1013
        %1101 = vmatpush2.msra.mxu0 %v1012
        %1102 = vmatprep.subr.mxu0 %v1009
        %1103 = vmatpush2.msra.mxu0 %v1008
        %1104 = vmatprep.subr.mxu0 %v1005
        %1105 = vmatpush2.msra.mxu0 %v1004
        %1106 = vmatprep.subr.mxu0 %v1001
        %1107 = vmatpush2.msra.mxu0 %v1000
        %1108 = vmatprep.subr.mxu0 %v997
        %1109 = vmatpush2.msra.mxu0 %v996
        %1110 = vmatprep.subr.mxu0 %v993
        %1111 = vmatpush2.msra.mxu0 %v992
        %1112 = vmatprep.subr.mxu0 %v989
        %1113 = vmatpush2.msra.mxu0 %v988
        %1114 = vmatprep.subr.mxu0 %v985
        %1115 = vmatpush2.msra.mxu0 %v984
        %1116 = vmatprep.subr.mxu0 %v981
        %1117 = vmatpush2.msra.mxu0 %v980
        %1118 = vmatprep.subr.mxu0 %v977
        %1119 = vmatpush2.msra.mxu0 %v976
        %1120 = vmatprep.subr.mxu0 %v973
        %1121 = vmatpush2.msra.mxu0 %v972
        %1122 = vmatprep.mubr.f32.mxu0 %v907
        %1123 = vmatmul.mubr.f32.gmra.mxu0 %v906
        %v1124 = vpop.f32.mrf.mxu0
        %v1125 = vadd.f32 %v1041, %v1124
        %v1126 = vpop.f32.mrf.mxu0
        %v1127 = vadd.f32 %v1045, %v1126
        %1128 = vdwg.mxu0
        %1129 = vmatprep.subr.mxu0 %v971
        %1130 = vmatpush1.msra.mxu0 %v970
        %1131 = vmatprep.subr.mxu0 %v967
        %1132 = vmatpush1.msra.mxu0 %v966
        %1133 = vmatprep.subr.mxu0 %v963
        %1134 = vmatpush1.msra.mxu0 %v962
        %1135 = vmatprep.subr.mxu0 %v959
        %1136 = vmatpush1.msra.mxu0 %v958
        %1137 = vmatprep.subr.mxu0 %v955
        %1138 = vmatpush1.msra.mxu0 %v954
        %1139 = vmatprep.subr.mxu0 %v951
        %1140 = vmatpush1.msra.mxu0 %v950
        %1141 = vmatprep.subr.mxu0 %v947
        %1142 = vmatpush1.msra.mxu0 %v946
        %1143 = vmatprep.subr.mxu0 %v943
        %1144 = vmatpush1.msra.mxu0 %v942
        %1145 = vmatprep.subr.mxu0 %v939
        %1146 = vmatpush1.msra.mxu0 %v938
        %1147 = vmatprep.subr.mxu0 %v935
        %1148 = vmatpush1.msra.mxu0 %v934
        %1149 = vmatprep.subr.mxu0 %v931
        %1150 = vmatpush1.msra.mxu0 %v930
        %1151 = vmatprep.subr.mxu0 %v927
        %1152 = vmatpush1.msra.mxu0 %v926
        %1153 = vmatprep.subr.mxu0 %v923
        %1154 = vmatpush1.msra.mxu0 %v922
        %1155 = vmatprep.subr.mxu0 %v919
        %1156 = vmatpush1.msra.mxu0 %v918
        %1157 = vmatprep.subr.mxu0 %v915
        %1158 = vmatpush1.msra.mxu0 %v914
        %1159 = vmatprep.subr.mxu0 %v911
        %1160 = vmatpush1.msra.mxu0 %v910
        %1161 = vmatprep.subr.mxu0 %v1035
        %1162 = vmatpush2.msra.mxu0 %v1034
        %1163 = vmatprep.subr.mxu0 %v1031
        %1164 = vmatpush2.msra.mxu0 %v1030
        %1165 = vmatprep.subr.mxu0 %v1027
        %1166 = vmatpush2.msra.mxu0 %v1026
        %1167 = vmatprep.subr.mxu0 %v1023
        %1168 = vmatpush2.msra.mxu0 %v1022
        %1169 = vmatprep.subr.mxu0 %v1019
        %1170 = vmatpush2.msra.mxu0 %v1018
        %1171 = vmatprep.subr.mxu0 %v1015
        %1172 = vmatpush2.msra.mxu0 %v1014
        %1173 = vmatprep.subr.mxu0 %v1011
        %1174 = vmatpush2.msra.mxu0 %v1010
        %1175 = vmatprep.subr.mxu0 %v1007
        %1176 = vmatpush2.msra.mxu0 %v1006
        %1177 = vmatprep.subr.mxu0 %v1003
        %1178 = vmatpush2.msra.mxu0 %v1002
        %1179 = vmatprep.subr.mxu0 %v999
        %1180 = vmatpush2.msra.mxu0 %v998
        %1181 = vmatprep.subr.mxu0 %v995
        %1182 = vmatpush2.msra.mxu0 %v994
        %1183 = vmatprep.subr.mxu0 %v991
        %1184 = vmatpush2.msra.mxu0 %v990
        %1185 = vmatprep.subr.mxu0 %v987
        %1186 = vmatpush2.msra.mxu0 %v986
        %1187 = vmatprep.subr.mxu0 %v983
        %1188 = vmatpush2.msra.mxu0 %v982
        %1189 = vmatprep.subr.mxu0 %v979
        %1190 = vmatpush2.msra.mxu0 %v978
        %1191 = vmatprep.subr.mxu0 %v975
        %1192 = vmatpush2.msra.mxu0 %v974
        %1193 = vmatprep.mubr.f32.mxu0 %v907
        %1194 = vmatmul.mubr.f32.gmra.mxu0 %v906
        %v1195 = vpop.f32.mrf.mxu0
        %v1196 = vadd.f32 %v1049, %v1195
        %v1197 = vpop.f32.mrf.mxu0
        %v1198 = vadd.f32 %v1053, %v1197
        %1199 = vdwg.mxu0
        %v1200 = vmax.f32 %v1125, 0.0
        %v1201 = vmax.f32 %v1127, 0.0
        %v1202 = vmax.f32 %v1196, 0.0
        %v1203 = vmax.f32 %v1198, 0.0
        %v1204 = vld [vmem:[#allocation13] sm:$0xff]
        %v1205 = vld [vmem:[#allocation13 + $0x8] sm:$0xff]
        %v1206 = vld [vmem:[#allocation13 + $0x10] sm:$0xff]
        %v1207 = vld [vmem:[#allocation13 + $0x18] sm:$0xff]
        %v1208 = vld [vmem:[#allocation13 + $0x20] sm:$0xff]
        %v1209 = vld [vmem:[#allocation13 + $0x28] sm:$0xff]
        %v1210 = vld [vmem:[#allocation13 + $0x30] sm:$0xff]
        %v1211 = vld [vmem:[#allocation13 + $0x38] sm:$0xff]
        %v1212 = vld [vmem:[#allocation13 + $0x40] sm:$0xff]
        %v1213 = vld [vmem:[#allocation13 + $0x48] sm:$0xff]
        %v1214 = vld [vmem:[#allocation13 + $0x50] sm:$0xff]
        %v1215 = vld [vmem:[#allocation13 + $0x58] sm:$0xff]
        %v1216 = vld [vmem:[#allocation13 + $0x60] sm:$0xff]
        %v1217 = vld [vmem:[#allocation13 + $0x68] sm:$0xff]
        %v1218 = vld [vmem:[#allocation13 + $0x70] sm:$0xff]
        %v1219 = vld [vmem:[#allocation13 + $0x78] sm:$0xff]
        %v1220 = vld [vmem:[#allocation13 + $0x80] sm:$0xff]
        %v1221 = vld [vmem:[#allocation13 + $0x88] sm:$0xff]
        %v1222 = vld [vmem:[#allocation13 + $0x90] sm:$0xff]
        %v1223 = vld [vmem:[#allocation13 + $0x98] sm:$0xff]
        %v1224 = vld [vmem:[#allocation13 + $0xa0] sm:$0xff]
        %v1225 = vld [vmem:[#allocation13 + $0xa8] sm:$0xff]
        %v1226 = vld [vmem:[#allocation13 + $0xb0] sm:$0xff]
        %v1227 = vld [vmem:[#allocation13 + $0xb8] sm:$0xff]
        %v1228 = vld [vmem:[#allocation13 + $0xc0] sm:$0xff]
        %v1229 = vld [vmem:[#allocation13 + $0xc8] sm:$0xff]
        %v1230 = vld [vmem:[#allocation13 + $0xd0] sm:$0xff]
        %v1231 = vld [vmem:[#allocation13 + $0xd8] sm:$0xff]
        %v1232 = vld [vmem:[#allocation13 + $0xe0] sm:$0xff]
        %v1233 = vld [vmem:[#allocation13 + $0xe8] sm:$0xff]
        %v1234 = vld [vmem:[#allocation13 + $0xf0] sm:$0xff]
        %v1235 = vld [vmem:[#allocation13 + $0xf8] sm:$0xff]
        %v1236 = vld [vmem:[#allocation15] sm:$0x3]
        %v1238 = vlaneseq
        %v1239 = vshrl.u32 %v1238, 7
        %v1240 = vsub.s32 0, %v1239
        %v1241 = vrot.slane %v1236, %v1240
        %v1242 = vlaneseq
        %v1243 = vshrl.u32 %v1242, 7
        %v1244 = vsub.s32 1, %v1243
        %v1245 = vrot.slane %v1236, %v1244
        %1248 = vmatprep.subr.mxu0 %v1235
        %1249 = vmatpush1.msra.mxu0 %v1234
        %1250 = vmatprep.subr.mxu0 %v1233
        %1251 = vmatpush1.msra.mxu0 %v1232
        %1252 = vmatprep.subr.mxu0 %v1231
        %1253 = vmatpush1.msra.mxu0 %v1230
        %1254 = vmatprep.subr.mxu0 %v1229
        %1255 = vmatpush1.msra.mxu0 %v1228
        %1256 = vmatprep.subr.mxu0 %v1227
        %1257 = vmatpush1.msra.mxu0 %v1226
        %1258 = vmatprep.subr.mxu0 %v1225
        %1259 = vmatpush1.msra.mxu0 %v1224
        %1260 = vmatprep.subr.mxu0 %v1223
        %1261 = vmatpush1.msra.mxu0 %v1222
        %1262 = vmatprep.subr.mxu0 %v1221
        %1263 = vmatpush1.msra.mxu0 %v1220
        %1264 = vmatprep.subr.mxu0 %v1219
        %1265 = vmatpush1.msra.mxu0 %v1218
        %1266 = vmatprep.subr.mxu0 %v1217
        %1267 = vmatpush1.msra.mxu0 %v1216
        %1268 = vmatprep.subr.mxu0 %v1215
        %1269 = vmatpush1.msra.mxu0 %v1214
        %1270 = vmatprep.subr.mxu0 %v1213
        %1271 = vmatpush1.msra.mxu0 %v1212
        %1272 = vmatprep.subr.mxu0 %v1211
        %1273 = vmatpush1.msra.mxu0 %v1210
        %1274 = vmatprep.subr.mxu0 %v1209
        %1275 = vmatpush1.msra.mxu0 %v1208
        %1276 = vmatprep.subr.mxu0 %v1207
        %1277 = vmatpush1.msra.mxu0 %v1206
        %1278 = vmatprep.subr.mxu0 %v1205
        %1279 = vmatpush1.msra.mxu0 %v1204
        %1280 = vmatprep.subr.mxu0 0.0
        %1281 = vmatpush2.msra.mxu0 0.0
        %1282 = vmatprep.subr.mxu0 0.0
        %1283 = vmatpush2.msra.mxu0 0.0
        %1284 = vmatprep.subr.mxu0 0.0
        %1285 = vmatpush2.msra.mxu0 0.0
        %1286 = vmatprep.subr.mxu0 0.0
        %1287 = vmatpush2.msra.mxu0 0.0
        %1288 = vmatprep.subr.mxu0 0.0
        %1289 = vmatpush2.msra.mxu0 0.0
        %1290 = vmatprep.subr.mxu0 0.0
        %1291 = vmatpush2.msra.mxu0 0.0
        %1292 = vmatprep.subr.mxu0 0.0
        %1293 = vmatpush2.msra.mxu0 0.0
        %1294 = vmatprep.subr.mxu0 0.0
        %1295 = vmatpush2.msra.mxu0 0.0
        %1296 = vmatprep.subr.mxu0 0.0
        %1297 = vmatpush2.msra.mxu0 0.0
        %1298 = vmatprep.subr.mxu0 0.0
        %1299 = vmatpush2.msra.mxu0 0.0
        %1300 = vmatprep.subr.mxu0 0.0
        %1301 = vmatpush2.msra.mxu0 0.0
        %1302 = vmatprep.subr.mxu0 0.0
        %1303 = vmatpush2.msra.mxu0 0.0
        %1304 = vmatprep.subr.mxu0 0.0
        %1305 = vmatpush2.msra.mxu0 0.0
        %1306 = vmatprep.subr.mxu0 0.0
        %1307 = vmatpush2.msra.mxu0 0.0
        %1308 = vmatprep.subr.mxu0 0.0
        %1309 = vmatpush2.msra.mxu0 0.0
        %1310 = vmatprep.subr.mxu0 0.0
        %1311 = vmatpush2.msra.mxu0 0.0
        %1312 = vmatprep.mubr.f32.mxu0 0.0
        %1313 = vmatmul.mubr.f32.gmra.mxu0 %v1200
        %v1314 = vpop.f32.mrf.mxu0
        %v1315 = vadd.f32 %v1241, %v1314
        %v1316 = vpop.f32.mrf.mxu0
        %v1317 = vadd.f32 %v1245, %v1316
        %1318 = vdwg.mxu0
        %v1319 = vmax.f32 %v1315, 0.0
        %v1320 = vmax.f32 %v1317, 0.0
        %v1321 = vld [vmem:[#allocation16] sm:$0xff]
        %v1322 = vld [vmem:[#allocation16 + $0x8] sm:$0xff]
        %v1323 = vld [vmem:[#allocation16 + $0x10] sm:$0xff]
        %v1324 = vld [vmem:[#allocation16 + $0x18] sm:$0xff]
        %v1325 = vld [vmem:[#allocation16 + $0x20] sm:$0xff]
        %v1326 = vld [vmem:[#allocation16 + $0x28] sm:$0xff]
        %v1327 = vld [vmem:[#allocation16 + $0x30] sm:$0xff]
        %v1328 = vld [vmem:[#allocation16 + $0x38] sm:$0xff]
        %v1329 = vld [vmem:[#allocation16 + $0x40] sm:$0xff]
        %v1330 = vld [vmem:[#allocation16 + $0x48] sm:$0xff]
        %v1331 = vld [vmem:[#allocation16 + $0x50] sm:$0xff]
        %v1332 = vld [vmem:[#allocation16 + $0x58] sm:$0xff]
        %v1333 = vld [vmem:[#allocation16 + $0x60] sm:$0xff]
        %v1334 = vld [vmem:[#allocation16 + $0x68] sm:$0xff]
        %v1335 = vld [vmem:[#allocation16 + $0x70] sm:$0xff]
        %v1336 = vld [vmem:[#allocation16 + $0x78] sm:$0xff]
        %v1337 = vld [vmem:[#allocation16 + $0x80] sm:$0xff]
        %v1338 = vld [vmem:[#allocation16 + $0x88] sm:$0xff]
        %v1339 = vld [vmem:[#allocation16 + $0x90] sm:$0xff]
        %v1340 = vld [vmem:[#allocation16 + $0x98] sm:$0xff]
        %v1341 = vld [vmem:[#allocation16 + $0xa0] sm:$0xff]
        %v1342 = vld [vmem:[#allocation16 + $0xa8] sm:$0xff]
        %v1343 = vld [vmem:[#allocation16 + $0xb0] sm:$0xff]
        %v1344 = vld [vmem:[#allocation16 + $0xb8] sm:$0xff]
        %v1345 = vld [vmem:[#allocation16 + $0xc0] sm:$0xff]
        %v1346 = vld [vmem:[#allocation16 + $0xc8] sm:$0xff]
        %v1347 = vld [vmem:[#allocation16 + $0xd0] sm:$0xff]
        %v1348 = vld [vmem:[#allocation16 + $0xd8] sm:$0xff]
        %v1349 = vld [vmem:[#allocation16 + $0xe0] sm:$0xff]
        %v1350 = vld [vmem:[#allocation16 + $0xe8] sm:$0xff]
        %v1351 = vld [vmem:[#allocation16 + $0xf0] sm:$0xff]
        %v1352 = vld [vmem:[#allocation16 + $0xf8] sm:$0xff]
        %v1353 = vld [vmem:[#allocation16 + $0x100] sm:$0xff]
        %v1354 = vld [vmem:[#allocation16 + $0x108] sm:$0xff]
        %v1355 = vld [vmem:[#allocation16 + $0x110] sm:$0xff]
        %v1356 = vld [vmem:[#allocation16 + $0x118] sm:$0xff]
        %v1357 = vld [vmem:[#allocation16 + $0x120] sm:$0xff]
        %v1358 = vld [vmem:[#allocation16 + $0x128] sm:$0xff]
        %v1359 = vld [vmem:[#allocation16 + $0x130] sm:$0xff]
        %v1360 = vld [vmem:[#allocation16 + $0x138] sm:$0xff]
        %v1361 = vld [vmem:[#allocation16 + $0x140] sm:$0xff]
        %v1362 = vld [vmem:[#allocation16 + $0x148] sm:$0xff]
        %v1363 = vld [vmem:[#allocation16 + $0x150] sm:$0xff]
        %v1364 = vld [vmem:[#allocation16 + $0x158] sm:$0xff]
        %v1365 = vld [vmem:[#allocation16 + $0x160] sm:$0xff]
        %v1366 = vld [vmem:[#allocation16 + $0x168] sm:$0xff]
        %v1367 = vld [vmem:[#allocation16 + $0x170] sm:$0xff]
        %v1368 = vld [vmem:[#allocation16 + $0x178] sm:$0xff]
        %v1369 = vld [vmem:[#allocation16 + $0x180] sm:$0xff]
        %v1370 = vld [vmem:[#allocation16 + $0x188] sm:$0xff]
        %v1371 = vld [vmem:[#allocation16 + $0x190] sm:$0xff]
        %v1372 = vld [vmem:[#allocation16 + $0x198] sm:$0xff]
        %v1373 = vld [vmem:[#allocation16 + $0x1a0] sm:$0xff]
        %v1374 = vld [vmem:[#allocation16 + $0x1a8] sm:$0xff]
        %v1375 = vld [vmem:[#allocation16 + $0x1b0] sm:$0xff]
        %v1376 = vld [vmem:[#allocation16 + $0x1b8] sm:$0xff]
        %v1377 = vld [vmem:[#allocation16 + $0x1c0] sm:$0xff]
        %v1378 = vld [vmem:[#allocation16 + $0x1c8] sm:$0xff]
        %v1379 = vld [vmem:[#allocation16 + $0x1d0] sm:$0xff]
        %v1380 = vld [vmem:[#allocation16 + $0x1d8] sm:$0xff]
        %v1381 = vld [vmem:[#allocation16 + $0x1e0] sm:$0xff]
        %v1382 = vld [vmem:[#allocation16 + $0x1e8] sm:$0xff]
        %v1383 = vld [vmem:[#allocation16 + $0x1f0] sm:$0xff]
        %v1384 = vld [vmem:[#allocation16 + $0x1f8] sm:$0xff]
        %v1385 = vld [vmem:[#allocation16 + $0x200] sm:$0xff]
        %v1386 = vld [vmem:[#allocation16 + $0x208] sm:$0xff]
        %v1387 = vld [vmem:[#allocation16 + $0x210] sm:$0xff]
        %v1388 = vld [vmem:[#allocation16 + $0x218] sm:$0xff]
        %v1389 = vld [vmem:[#allocation16 + $0x220] sm:$0xff]
        %v1390 = vld [vmem:[#allocation16 + $0x228] sm:$0xff]
        %v1391 = vld [vmem:[#allocation16 + $0x230] sm:$0xff]
        %v1392 = vld [vmem:[#allocation16 + $0x238] sm:$0xff]
        %v1393 = vld [vmem:[#allocation16 + $0x240] sm:$0xff]
        %v1394 = vld [vmem:[#allocation16 + $0x248] sm:$0xff]
        %v1395 = vld [vmem:[#allocation16 + $0x250] sm:$0xff]
        %v1396 = vld [vmem:[#allocation16 + $0x258] sm:$0xff]
        %v1397 = vld [vmem:[#allocation16 + $0x260] sm:$0xff]
        %v1398 = vld [vmem:[#allocation16 + $0x268] sm:$0xff]
        %v1399 = vld [vmem:[#allocation16 + $0x270] sm:$0xff]
        %v1400 = vld [vmem:[#allocation16 + $0x278] sm:$0xff]
        %v1401 = vld [vmem:[#allocation16 + $0x280] sm:$0xff]
        %v1402 = vld [vmem:[#allocation16 + $0x288] sm:$0xff]
        %v1403 = vld [vmem:[#allocation16 + $0x290] sm:$0xff]
        %v1404 = vld [vmem:[#allocation16 + $0x298] sm:$0xff]
        %v1405 = vld [vmem:[#allocation16 + $0x2a0] sm:$0xff]
        %v1406 = vld [vmem:[#allocation16 + $0x2a8] sm:$0xff]
        %v1407 = vld [vmem:[#allocation16 + $0x2b0] sm:$0xff]
        %v1408 = vld [vmem:[#allocation16 + $0x2b8] sm:$0xff]
        %v1409 = vld [vmem:[#allocation16 + $0x2c0] sm:$0xff]
        %v1410 = vld [vmem:[#allocation16 + $0x2c8] sm:$0xff]
        %v1411 = vld [vmem:[#allocation16 + $0x2d0] sm:$0xff]
        %v1412 = vld [vmem:[#allocation16 + $0x2d8] sm:$0xff]
        %v1413 = vld [vmem:[#allocation16 + $0x2e0] sm:$0xff]
        %v1414 = vld [vmem:[#allocation16 + $0x2e8] sm:$0xff]
        %v1415 = vld [vmem:[#allocation16 + $0x2f0] sm:$0xff]
        %v1416 = vld [vmem:[#allocation16 + $0x2f8] sm:$0xff]
        %v1417 = vld [vmem:[#allocation16 + $0x300] sm:$0xff]
        %v1418 = vld [vmem:[#allocation16 + $0x308] sm:$0xff]
        %v1419 = vld [vmem:[#allocation16 + $0x310] sm:$0xff]
        %v1420 = vld [vmem:[#allocation16 + $0x318] sm:$0xff]
        %v1421 = vld [vmem:[#allocation16 + $0x320] sm:$0xff]
        %v1422 = vld [vmem:[#allocation16 + $0x328] sm:$0xff]
        %v1423 = vld [vmem:[#allocation16 + $0x330] sm:$0xff]
        %v1424 = vld [vmem:[#allocation16 + $0x338] sm:$0xff]
        %v1425 = vld [vmem:[#allocation16 + $0x340] sm:$0xff]
        %v1426 = vld [vmem:[#allocation16 + $0x348] sm:$0xff]
        %v1427 = vld [vmem:[#allocation16 + $0x350] sm:$0xff]
        %v1428 = vld [vmem:[#allocation16 + $0x358] sm:$0xff]
        %v1429 = vld [vmem:[#allocation16 + $0x360] sm:$0xff]
        %v1430 = vld [vmem:[#allocation16 + $0x368] sm:$0xff]
        %v1431 = vld [vmem:[#allocation16 + $0x370] sm:$0xff]
        %v1432 = vld [vmem:[#allocation16 + $0x378] sm:$0xff]
        %v1433 = vld [vmem:[#allocation16 + $0x380] sm:$0xff]
        %v1434 = vld [vmem:[#allocation16 + $0x388] sm:$0xff]
        %v1435 = vld [vmem:[#allocation16 + $0x390] sm:$0xff]
        %v1436 = vld [vmem:[#allocation16 + $0x398] sm:$0xff]
        %v1437 = vld [vmem:[#allocation16 + $0x3a0] sm:$0xff]
        %v1438 = vld [vmem:[#allocation16 + $0x3a8] sm:$0xff]
        %v1439 = vld [vmem:[#allocation16 + $0x3b0] sm:$0xff]
        %v1440 = vld [vmem:[#allocation16 + $0x3b8] sm:$0xff]
        %v1441 = vld [vmem:[#allocation16 + $0x3c0] sm:$0xff]
        %v1442 = vld [vmem:[#allocation16 + $0x3c8] sm:$0xff]
        %v1443 = vld [vmem:[#allocation16 + $0x3d0] sm:$0xff]
        %v1444 = vld [vmem:[#allocation16 + $0x3d8] sm:$0xff]
        %v1445 = vld [vmem:[#allocation16 + $0x3e0] sm:$0xff]
        %v1446 = vld [vmem:[#allocation16 + $0x3e8] sm:$0xff]
        %v1447 = vld [vmem:[#allocation16 + $0x3f0] sm:$0xff]
        %v1448 = vld [vmem:[#allocation16 + $0x3f8] sm:$0xff]
        %v1449 = vld [vmem:[#allocation18] sm:$0xf]
        %v1451 = vlaneseq
        %v1452 = vshrl.u32 %v1451, 7
        %v1453 = vsub.s32 0, %v1452
        %v1454 = vrot.slane %v1449, %v1453
        %v1455 = vlaneseq
        %v1456 = vshrl.u32 %v1455, 7
        %v1457 = vsub.s32 1, %v1456
        %v1458 = vrot.slane %v1449, %v1457
        %v1459 = vlaneseq
        %v1460 = vshrl.u32 %v1459, 7
        %v1461 = vsub.s32 2, %v1460
        %v1462 = vrot.slane %v1449, %v1461
        %v1463 = vlaneseq
        %v1464 = vshrl.u32 %v1463, 7
        %v1465 = vsub.s32 3, %v1464
        %v1466 = vrot.slane %v1449, %v1465
        %1471 = vmatprep.subr.mxu0 %v1382
        %1472 = vmatpush1.msra.mxu0 %v1381
        %1473 = vmatprep.subr.mxu0 %v1378
        %1474 = vmatpush1.msra.mxu0 %v1377
        %1475 = vmatprep.subr.mxu0 %v1374
        %1476 = vmatpush1.msra.mxu0 %v1373
        %1477 = vmatprep.subr.mxu0 %v1370
        %1478 = vmatpush1.msra.mxu0 %v1369
        %1479 = vmatprep.subr.mxu0 %v1366
        %1480 = vmatpush1.msra.mxu0 %v1365
        %1481 = vmatprep.subr.mxu0 %v1362
        %1482 = vmatpush1.msra.mxu0 %v1361
        %1483 = vmatprep.subr.mxu0 %v1358
        %1484 = vmatpush1.msra.mxu0 %v1357
        %1485 = vmatprep.subr.mxu0 %v1354
        %1486 = vmatpush1.msra.mxu0 %v1353
        %1487 = vmatprep.subr.mxu0 %v1350
        %1488 = vmatpush1.msra.mxu0 %v1349
        %1489 = vmatprep.subr.mxu0 %v1346
        %1490 = vmatpush1.msra.mxu0 %v1345
        %1491 = vmatprep.subr.mxu0 %v1342
        %1492 = vmatpush1.msra.mxu0 %v1341
        %1493 = vmatprep.subr.mxu0 %v1338
        %1494 = vmatpush1.msra.mxu0 %v1337
        %1495 = vmatprep.subr.mxu0 %v1334
        %1496 = vmatpush1.msra.mxu0 %v1333
        %1497 = vmatprep.subr.mxu0 %v1330
        %1498 = vmatpush1.msra.mxu0 %v1329
        %1499 = vmatprep.subr.mxu0 %v1326
        %1500 = vmatpush1.msra.mxu0 %v1325
        %1501 = vmatprep.subr.mxu0 %v1322
        %1502 = vmatpush1.msra.mxu0 %v1321
        %1503 = vmatprep.subr.mxu0 %v1446
        %1504 = vmatpush2.msra.mxu0 %v1445
        %1505 = vmatprep.subr.mxu0 %v1442
        %1506 = vmatpush2.msra.mxu0 %v1441
        %1507 = vmatprep.subr.mxu0 %v1438
        %1508 = vmatpush2.msra.mxu0 %v1437
        %1509 = vmatprep.subr.mxu0 %v1434
        %1510 = vmatpush2.msra.mxu0 %v1433
        %1511 = vmatprep.subr.mxu0 %v1430
        %1512 = vmatpush2.msra.mxu0 %v1429
        %1513 = vmatprep.subr.mxu0 %v1426
        %1514 = vmatpush2.msra.mxu0 %v1425
        %1515 = vmatprep.subr.mxu0 %v1422
        %1516 = vmatpush2.msra.mxu0 %v1421
        %1517 = vmatprep.subr.mxu0 %v1418
        %1518 = vmatpush2.msra.mxu0 %v1417
        %1519 = vmatprep.subr.mxu0 %v1414
        %1520 = vmatpush2.msra.mxu0 %v1413
        %1521 = vmatprep.subr.mxu0 %v1410
        %1522 = vmatpush2.msra.mxu0 %v1409
        %1523 = vmatprep.subr.mxu0 %v1406
        %1524 = vmatpush2.msra.mxu0 %v1405
        %1525 = vmatprep.subr.mxu0 %v1402
        %1526 = vmatpush2.msra.mxu0 %v1401
        %1527 = vmatprep.subr.mxu0 %v1398
        %1528 = vmatpush2.msra.mxu0 %v1397
        %1529 = vmatprep.subr.mxu0 %v1394
        %1530 = vmatpush2.msra.mxu0 %v1393
        %1531 = vmatprep.subr.mxu0 %v1390
        %1532 = vmatpush2.msra.mxu0 %v1389
        %1533 = vmatprep.subr.mxu0 %v1386
        %1534 = vmatpush2.msra.mxu0 %v1385
        %1535 = vmatprep.mubr.f32.mxu0 %v1320
        %1536 = vmatmul.mubr.f32.gmra.mxu0 %v1319
        %v1537 = vpop.f32.mrf.mxu0
        %v1538 = vadd.f32 %v1454, %v1537
        %v1539 = vpop.f32.mrf.mxu0
        %v1540 = vadd.f32 %v1458, %v1539
        %1541 = vdwg.mxu0
        %1542 = vmatprep.subr.mxu0 %v1384
        %1543 = vmatpush1.msra.mxu0 %v1383
        %1544 = vmatprep.subr.mxu0 %v1380
        %1545 = vmatpush1.msra.mxu0 %v1379
        %1546 = vmatprep.subr.mxu0 %v1376
        %1547 = vmatpush1.msra.mxu0 %v1375
        %1548 = vmatprep.subr.mxu0 %v1372
        %1549 = vmatpush1.msra.mxu0 %v1371
        %1550 = vmatprep.subr.mxu0 %v1368
        %1551 = vmatpush1.msra.mxu0 %v1367
        %1552 = vmatprep.subr.mxu0 %v1364
        %1553 = vmatpush1.msra.mxu0 %v1363
        %1554 = vmatprep.subr.mxu0 %v1360
        %1555 = vmatpush1.msra.mxu0 %v1359
        %1556 = vmatprep.subr.mxu0 %v1356
        %1557 = vmatpush1.msra.mxu0 %v1355
        %1558 = vmatprep.subr.mxu0 %v1352
        %1559 = vmatpush1.msra.mxu0 %v1351
        %1560 = vmatprep.subr.mxu0 %v1348
        %1561 = vmatpush1.msra.mxu0 %v1347
        %1562 = vmatprep.subr.mxu0 %v1344
        %1563 = vmatpush1.msra.mxu0 %v1343
        %1564 = vmatprep.subr.mxu0 %v1340
        %1565 = vmatpush1.msra.mxu0 %v1339
        %1566 = vmatprep.subr.mxu0 %v1336
        %1567 = vmatpush1.msra.mxu0 %v1335
        %1568 = vmatprep.subr.mxu0 %v1332
        %1569 = vmatpush1.msra.mxu0 %v1331
        %1570 = vmatprep.subr.mxu0 %v1328
        %1571 = vmatpush1.msra.mxu0 %v1327
        %1572 = vmatprep.subr.mxu0 %v1324
        %1573 = vmatpush1.msra.mxu0 %v1323
        %1574 = vmatprep.subr.mxu0 %v1448
        %1575 = vmatpush2.msra.mxu0 %v1447
        %1576 = vmatprep.subr.mxu0 %v1444
        %1577 = vmatpush2.msra.mxu0 %v1443
        %1578 = vmatprep.subr.mxu0 %v1440
        %1579 = vmatpush2.msra.mxu0 %v1439
        %1580 = vmatprep.subr.mxu0 %v1436
        %1581 = vmatpush2.msra.mxu0 %v1435
        %1582 = vmatprep.subr.mxu0 %v1432
        %1583 = vmatpush2.msra.mxu0 %v1431
        %1584 = vmatprep.subr.mxu0 %v1428
        %1585 = vmatpush2.msra.mxu0 %v1427
        %1586 = vmatprep.subr.mxu0 %v1424
        %1587 = vmatpush2.msra.mxu0 %v1423
        %1588 = vmatprep.subr.mxu0 %v1420
        %1589 = vmatpush2.msra.mxu0 %v1419
        %1590 = vmatprep.subr.mxu0 %v1416
        %1591 = vmatpush2.msra.mxu0 %v1415
        %1592 = vmatprep.subr.mxu0 %v1412
        %1593 = vmatpush2.msra.mxu0 %v1411
        %1594 = vmatprep.subr.mxu0 %v1408
        %1595 = vmatpush2.msra.mxu0 %v1407
        %1596 = vmatprep.subr.mxu0 %v1404
        %1597 = vmatpush2.msra.mxu0 %v1403
        %1598 = vmatprep.subr.mxu0 %v1400
        %1599 = vmatpush2.msra.mxu0 %v1399
        %1600 = vmatprep.subr.mxu0 %v1396
        %1601 = vmatpush2.msra.mxu0 %v1395
        %1602 = vmatprep.subr.mxu0 %v1392
        %1603 = vmatpush2.msra.mxu0 %v1391
        %1604 = vmatprep.subr.mxu0 %v1388
        %1605 = vmatpush2.msra.mxu0 %v1387
        %1606 = vmatprep.mubr.f32.mxu0 %v1320
        %1607 = vmatmul.mubr.f32.gmra.mxu0 %v1319
        %v1608 = vpop.f32.mrf.mxu0
        %v1609 = vadd.f32 %v1462, %v1608
        %v1610 = vpop.f32.mrf.mxu0
        %v1611 = vadd.f32 %v1466, %v1610
        %1612 = vdwg.mxu0
        %v1613 = vmax.f32 %v1538, 0.0
        %v1614 = vmax.f32 %v1540, 0.0
        %v1615 = vmax.f32 %v1609, 0.0
        %v1616 = vmax.f32 %v1611, 0.0
        %v1617 = vld [vmem:[#allocation19] sm:$0xff]
        %v1618 = vld [vmem:[#allocation19 + $0x8] sm:$0xff]
        %v1619 = vld [vmem:[#allocation19 + $0x10] sm:$0xff]
        %v1620 = vld [vmem:[#allocation19 + $0x18] sm:$0xff]
        %v1621 = vld [vmem:[#allocation19 + $0x20] sm:$0xff]
        %v1622 = vld [vmem:[#allocation19 + $0x28] sm:$0xff]
        %v1623 = vld [vmem:[#allocation19 + $0x30] sm:$0xff]
        %v1624 = vld [vmem:[#allocation19 + $0x38] sm:$0xff]
        %v1625 = vld [vmem:[#allocation19 + $0x40] sm:$0xff]
        %v1626 = vld [vmem:[#allocation19 + $0x48] sm:$0xff]
        %v1627 = vld [vmem:[#allocation19 + $0x50] sm:$0xff]
        %v1628 = vld [vmem:[#allocation19 + $0x58] sm:$0xff]
        %v1629 = vld [vmem:[#allocation19 + $0x60] sm:$0xff]
        %v1630 = vld [vmem:[#allocation19 + $0x68] sm:$0xff]
        %v1631 = vld [vmem:[#allocation19 + $0x70] sm:$0xff]
        %v1632 = vld [vmem:[#allocation19 + $0x78] sm:$0xff]
        %v1633 = vld [vmem:[#allocation19 + $0x80] sm:$0xff]
        %v1634 = vld [vmem:[#allocation19 + $0x88] sm:$0xff]
        %v1635 = vld [vmem:[#allocation19 + $0x90] sm:$0xff]
        %v1636 = vld [vmem:[#allocation19 + $0x98] sm:$0xff]
        %v1637 = vld [vmem:[#allocation19 + $0xa0] sm:$0xff]
        %v1638 = vld [vmem:[#allocation19 + $0xa8] sm:$0xff]
        %v1639 = vld [vmem:[#allocation19 + $0xb0] sm:$0xff]
        %v1640 = vld [vmem:[#allocation19 + $0xb8] sm:$0xff]
        %v1641 = vld [vmem:[#allocation19 + $0xc0] sm:$0xff]
        %v1642 = vld [vmem:[#allocation19 + $0xc8] sm:$0xff]
        %v1643 = vld [vmem:[#allocation19 + $0xd0] sm:$0xff]
        %v1644 = vld [vmem:[#allocation19 + $0xd8] sm:$0xff]
        %v1645 = vld [vmem:[#allocation19 + $0xe0] sm:$0xff]
        %v1646 = vld [vmem:[#allocation19 + $0xe8] sm:$0xff]
        %v1647 = vld [vmem:[#allocation19 + $0xf0] sm:$0xff]
        %v1648 = vld [vmem:[#allocation19 + $0xf8] sm:$0xff]
        %v1649 = vld [vmem:[#allocation21] sm:$0x3]
        %v1651 = vlaneseq
        %v1652 = vshrl.u32 %v1651, 7
        %v1653 = vsub.s32 0, %v1652
        %v1654 = vrot.slane %v1649, %v1653
        %v1655 = vlaneseq
        %v1656 = vshrl.u32 %v1655, 7
        %v1657 = vsub.s32 1, %v1656
        %v1658 = vrot.slane %v1649, %v1657
        %1661 = vmatprep.subr.mxu0 %v1648
        %1662 = vmatpush1.msra.mxu0 %v1647
        %1663 = vmatprep.subr.mxu0 %v1646
        %1664 = vmatpush1.msra.mxu0 %v1645
        %1665 = vmatprep.subr.mxu0 %v1644
        %1666 = vmatpush1.msra.mxu0 %v1643
        %1667 = vmatprep.subr.mxu0 %v1642
        %1668 = vmatpush1.msra.mxu0 %v1641
        %1669 = vmatprep.subr.mxu0 %v1640
        %1670 = vmatpush1.msra.mxu0 %v1639
        %1671 = vmatprep.subr.mxu0 %v1638
        %1672 = vmatpush1.msra.mxu0 %v1637
        %1673 = vmatprep.subr.mxu0 %v1636
        %1674 = vmatpush1.msra.mxu0 %v1635
        %1675 = vmatprep.subr.mxu0 %v1634
        %1676 = vmatpush1.msra.mxu0 %v1633
        %1677 = vmatprep.subr.mxu0 %v1632
        %1678 = vmatpush1.msra.mxu0 %v1631
        %1679 = vmatprep.subr.mxu0 %v1630
        %1680 = vmatpush1.msra.mxu0 %v1629
        %1681 = vmatprep.subr.mxu0 %v1628
        %1682 = vmatpush1.msra.mxu0 %v1627
        %1683 = vmatprep.subr.mxu0 %v1626
        %1684 = vmatpush1.msra.mxu0 %v1625
        %1685 = vmatprep.subr.mxu0 %v1624
        %1686 = vmatpush1.msra.mxu0 %v1623
        %1687 = vmatprep.subr.mxu0 %v1622
        %1688 = vmatpush1.msra.mxu0 %v1621
        %1689 = vmatprep.subr.mxu0 %v1620
        %1690 = vmatpush1.msra.mxu0 %v1619
        %1691 = vmatprep.subr.mxu0 %v1618
        %1692 = vmatpush1.msra.mxu0 %v1617
        %1693 = vmatprep.subr.mxu0 0.0
        %1694 = vmatpush2.msra.mxu0 0.0
        %1695 = vmatprep.subr.mxu0 0.0
        %1696 = vmatpush2.msra.mxu0 0.0
        %1697 = vmatprep.subr.mxu0 0.0
        %1698 = vmatpush2.msra.mxu0 0.0
        %1699 = vmatprep.subr.mxu0 0.0
        %1700 = vmatpush2.msra.mxu0 0.0
        %1701 = vmatprep.subr.mxu0 0.0
        %1702 = vmatpush2.msra.mxu0 0.0
        %1703 = vmatprep.subr.mxu0 0.0
        %1704 = vmatpush2.msra.mxu0 0.0
        %1705 = vmatprep.subr.mxu0 0.0
        %1706 = vmatpush2.msra.mxu0 0.0
        %1707 = vmatprep.subr.mxu0 0.0
        %1708 = vmatpush2.msra.mxu0 0.0
        %1709 = vmatprep.subr.mxu0 0.0
        %1710 = vmatpush2.msra.mxu0 0.0
        %1711 = vmatprep.subr.mxu0 0.0
        %1712 = vmatpush2.msra.mxu0 0.0
        %1713 = vmatprep.subr.mxu0 0.0
        %1714 = vmatpush2.msra.mxu0 0.0
        %1715 = vmatprep.subr.mxu0 0.0
        %1716 = vmatpush2.msra.mxu0 0.0
        %1717 = vmatprep.subr.mxu0 0.0
        %1718 = vmatpush2.msra.mxu0 0.0
        %1719 = vmatprep.subr.mxu0 0.0
        %1720 = vmatpush2.msra.mxu0 0.0
        %1721 = vmatprep.subr.mxu0 0.0
        %1722 = vmatpush2.msra.mxu0 0.0
        %1723 = vmatprep.subr.mxu0 0.0
        %1724 = vmatpush2.msra.mxu0 0.0
        %1725 = vmatprep.mubr.f32.mxu0 0.0
        %1726 = vmatmul.mubr.f32.gmra.mxu0 %v1613
        %v1727 = vpop.f32.mrf.mxu0
        %v1728 = vadd.f32 %v1654, %v1727
        %v1729 = vpop.f32.mrf.mxu0
        %v1730 = vadd.f32 %v1658, %v1729
        %1731 = vdwg.mxu0
        %v1732 = vmax.f32 %v1728, 0.0
        %v1733 = vmax.f32 %v1730, 0.0
        %v1734 = vld [vmem:[#allocation22] sm:$0xff]
        %v1735 = vld [vmem:[#allocation22 + $0x8] sm:$0xff]
        %v1736 = vld [vmem:[#allocation22 + $0x10] sm:$0xff]
        %v1737 = vld [vmem:[#allocation22 + $0x18] sm:$0xff]
        %v1738 = vld [vmem:[#allocation22 + $0x20] sm:$0xff]
        %v1739 = vld [vmem:[#allocation22 + $0x28] sm:$0xff]
        %v1740 = vld [vmem:[#allocation22 + $0x30] sm:$0xff]
        %v1741 = vld [vmem:[#allocation22 + $0x38] sm:$0xff]
        %v1742 = vld [vmem:[#allocation22 + $0x40] sm:$0xff]
        %v1743 = vld [vmem:[#allocation22 + $0x48] sm:$0xff]
        %v1744 = vld [vmem:[#allocation22 + $0x50] sm:$0xff]
        %v1745 = vld [vmem:[#allocation22 + $0x58] sm:$0xff]
        %v1746 = vld [vmem:[#allocation22 + $0x60] sm:$0xff]
        %v1747 = vld [vmem:[#allocation22 + $0x68] sm:$0xff]
        %v1748 = vld [vmem:[#allocation22 + $0x70] sm:$0xff]
        %v1749 = vld [vmem:[#allocation22 + $0x78] sm:$0xff]
        %v1750 = vld [vmem:[#allocation22 + $0x80] sm:$0xff]
        %v1751 = vld [vmem:[#allocation22 + $0x88] sm:$0xff]
        %v1752 = vld [vmem:[#allocation22 + $0x90] sm:$0xff]
        %v1753 = vld [vmem:[#allocation22 + $0x98] sm:$0xff]
        %v1754 = vld [vmem:[#allocation22 + $0xa0] sm:$0xff]
        %v1755 = vld [vmem:[#allocation22 + $0xa8] sm:$0xff]
        %v1756 = vld [vmem:[#allocation22 + $0xb0] sm:$0xff]
        %v1757 = vld [vmem:[#allocation22 + $0xb8] sm:$0xff]
        %v1758 = vld [vmem:[#allocation22 + $0xc0] sm:$0xff]
        %v1759 = vld [vmem:[#allocation22 + $0xc8] sm:$0xff]
        %v1760 = vld [vmem:[#allocation22 + $0xd0] sm:$0xff]
        %v1761 = vld [vmem:[#allocation22 + $0xd8] sm:$0xff]
        %v1762 = vld [vmem:[#allocation22 + $0xe0] sm:$0xff]
        %v1763 = vld [vmem:[#allocation22 + $0xe8] sm:$0xff]
        %v1764 = vld [vmem:[#allocation22 + $0xf0] sm:$0xff]
        %v1765 = vld [vmem:[#allocation22 + $0xf8] sm:$0xff]
        %v1766 = vld [vmem:[#allocation22 + $0x100] sm:$0xff]
        %v1767 = vld [vmem:[#allocation22 + $0x108] sm:$0xff]
        %v1768 = vld [vmem:[#allocation22 + $0x110] sm:$0xff]
        %v1769 = vld [vmem:[#allocation22 + $0x118] sm:$0xff]
        %v1770 = vld [vmem:[#allocation22 + $0x120] sm:$0xff]
        %v1771 = vld [vmem:[#allocation22 + $0x128] sm:$0xff]
        %v1772 = vld [vmem:[#allocation22 + $0x130] sm:$0xff]
        %v1773 = vld [vmem:[#allocation22 + $0x138] sm:$0xff]
        %v1774 = vld [vmem:[#allocation22 + $0x140] sm:$0xff]
        %v1775 = vld [vmem:[#allocation22 + $0x148] sm:$0xff]
        %v1776 = vld [vmem:[#allocation22 + $0x150] sm:$0xff]
        %v1777 = vld [vmem:[#allocation22 + $0x158] sm:$0xff]
        %v1778 = vld [vmem:[#allocation22 + $0x160] sm:$0xff]
        %v1779 = vld [vmem:[#allocation22 + $0x168] sm:$0xff]
        %v1780 = vld [vmem:[#allocation22 + $0x170] sm:$0xff]
        %v1781 = vld [vmem:[#allocation22 + $0x178] sm:$0xff]
        %v1782 = vld [vmem:[#allocation22 + $0x180] sm:$0xff]
        %v1783 = vld [vmem:[#allocation22 + $0x188] sm:$0xff]
        %v1784 = vld [vmem:[#allocation22 + $0x190] sm:$0xff]
        %v1785 = vld [vmem:[#allocation22 + $0x198] sm:$0xff]
        %v1786 = vld [vmem:[#allocation22 + $0x1a0] sm:$0xff]
        %v1787 = vld [vmem:[#allocation22 + $0x1a8] sm:$0xff]
        %v1788 = vld [vmem:[#allocation22 + $0x1b0] sm:$0xff]
        %v1789 = vld [vmem:[#allocation22 + $0x1b8] sm:$0xff]
        %v1790 = vld [vmem:[#allocation22 + $0x1c0] sm:$0xff]
        %v1791 = vld [vmem:[#allocation22 + $0x1c8] sm:$0xff]
        %v1792 = vld [vmem:[#allocation22 + $0x1d0] sm:$0xff]
        %v1793 = vld [vmem:[#allocation22 + $0x1d8] sm:$0xff]
        %v1794 = vld [vmem:[#allocation22 + $0x1e0] sm:$0xff]
        %v1795 = vld [vmem:[#allocation22 + $0x1e8] sm:$0xff]
        %v1796 = vld [vmem:[#allocation22 + $0x1f0] sm:$0xff]
        %v1797 = vld [vmem:[#allocation22 + $0x1f8] sm:$0xff]
        %v1798 = vld [vmem:[#allocation24] sm:$0x3]
        %v1800 = vlaneseq
        %v1801 = vshrl.u32 %v1800, 7
        %v1802 = vsub.s32 0, %v1801
        %v1803 = vrot.slane %v1798, %v1802
        %v1804 = vlaneseq
        %v1805 = vshrl.u32 %v1804, 7
        %v1806 = vsub.s32 1, %v1805
        %v1807 = vrot.slane %v1798, %v1806
        %1810 = vmatprep.subr.mxu0 %v1765
        %1811 = vmatpush1.msra.mxu0 %v1764
        %1812 = vmatprep.subr.mxu0 %v1763
        %1813 = vmatpush1.msra.mxu0 %v1762
        %1814 = vmatprep.subr.mxu0 %v1761
        %1815 = vmatpush1.msra.mxu0 %v1760
        %1816 = vmatprep.subr.mxu0 %v1759
        %1817 = vmatpush1.msra.mxu0 %v1758
        %1818 = vmatprep.subr.mxu0 %v1757
        %1819 = vmatpush1.msra.mxu0 %v1756
        %1820 = vmatprep.subr.mxu0 %v1755
        %1821 = vmatpush1.msra.mxu0 %v1754
        %1822 = vmatprep.subr.mxu0 %v1753
        %1823 = vmatpush1.msra.mxu0 %v1752
        %1824 = vmatprep.subr.mxu0 %v1751
        %1825 = vmatpush1.msra.mxu0 %v1750
        %1826 = vmatprep.subr.mxu0 %v1749
        %1827 = vmatpush1.msra.mxu0 %v1748
        %1828 = vmatprep.subr.mxu0 %v1747
        %1829 = vmatpush1.msra.mxu0 %v1746
        %1830 = vmatprep.subr.mxu0 %v1745
        %1831 = vmatpush1.msra.mxu0 %v1744
        %1832 = vmatprep.subr.mxu0 %v1743
        %1833 = vmatpush1.msra.mxu0 %v1742
        %1834 = vmatprep.subr.mxu0 %v1741
        %1835 = vmatpush1.msra.mxu0 %v1740
        %1836 = vmatprep.subr.mxu0 %v1739
        %1837 = vmatpush1.msra.mxu0 %v1738
        %1838 = vmatprep.subr.mxu0 %v1737
        %1839 = vmatpush1.msra.mxu0 %v1736
        %1840 = vmatprep.subr.mxu0 %v1735
        %1841 = vmatpush1.msra.mxu0 %v1734
        %1842 = vmatprep.subr.mxu0 %v1797
        %1843 = vmatpush2.msra.mxu0 %v1796
        %1844 = vmatprep.subr.mxu0 %v1795
        %1845 = vmatpush2.msra.mxu0 %v1794
        %1846 = vmatprep.subr.mxu0 %v1793
        %1847 = vmatpush2.msra.mxu0 %v1792
        %1848 = vmatprep.subr.mxu0 %v1791
        %1849 = vmatpush2.msra.mxu0 %v1790
        %1850 = vmatprep.subr.mxu0 %v1789
        %1851 = vmatpush2.msra.mxu0 %v1788
        %1852 = vmatprep.subr.mxu0 %v1787
        %1853 = vmatpush2.msra.mxu0 %v1786
        %1854 = vmatprep.subr.mxu0 %v1785
        %1855 = vmatpush2.msra.mxu0 %v1784
        %1856 = vmatprep.subr.mxu0 %v1783
        %1857 = vmatpush2.msra.mxu0 %v1782
        %1858 = vmatprep.subr.mxu0 %v1781
        %1859 = vmatpush2.msra.mxu0 %v1780
        %1860 = vmatprep.subr.mxu0 %v1779
        %1861 = vmatpush2.msra.mxu0 %v1778
        %1862 = vmatprep.subr.mxu0 %v1777
        %1863 = vmatpush2.msra.mxu0 %v1776
        %1864 = vmatprep.subr.mxu0 %v1775
        %1865 = vmatpush2.msra.mxu0 %v1774
        %1866 = vmatprep.subr.mxu0 %v1773
        %1867 = vmatpush2.msra.mxu0 %v1772
        %1868 = vmatprep.subr.mxu0 %v1771
        %1869 = vmatpush2.msra.mxu0 %v1770
        %1870 = vmatprep.subr.mxu0 %v1769
        %1871 = vmatpush2.msra.mxu0 %v1768
        %1872 = vmatprep.subr.mxu0 %v1767
        %1873 = vmatpush2.msra.mxu0 %v1766
        %1874 = vmatprep.mubr.f32.mxu0 %v1733
        %1875 = vmatmul.mubr.f32.gmra.mxu0 %v1732
        %v1876 = vpop.f32.mrf.mxu0
        %v1877 = vadd.f32 %v1803, %v1876
        %v1878 = vpop.f32.mrf.mxu0
        %v1879 = vadd.f32 %v1807, %v1878
        %1880 = vdwg.mxu0
        %v1881 = vmax.f32 %v1877, 0.0
        %v1882 = vmax.f32 %v1879, 0.0
        %1883 = vst [vmem:[%s700] sm:$0xff] %v1881
        %1884 = vst [vmem:[%s700 + $0x8] sm:$0xff] %v1882
        %v1885 = vld [vmem:[#allocation19] sm:$0xff]
        %v1886 = vld [vmem:[#allocation19 + $0x8] sm:$0xff]
        %v1887 = vld [vmem:[#allocation19 + $0x10] sm:$0xff]
        %v1888 = vld [vmem:[#allocation19 + $0x18] sm:$0xff]
        %v1889 = vld [vmem:[#allocation19 + $0x20] sm:$0xff]
        %v1890 = vld [vmem:[#allocation19 + $0x28] sm:$0xff]
        %v1891 = vld [vmem:[#allocation19 + $0x30] sm:$0xff]
        %v1892 = vld [vmem:[#allocation19 + $0x38] sm:$0xff]
        %v1893 = vld [vmem:[#allocation19 + $0x40] sm:$0xff]
        %v1894 = vld [vmem:[#allocation19 + $0x48] sm:$0xff]
        %v1895 = vld [vmem:[#allocation19 + $0x50] sm:$0xff]
        %v1896 = vld [vmem:[#allocation19 + $0x58] sm:$0xff]
        %v1897 = vld [vmem:[#allocation19 + $0x60] sm:$0xff]
        %v1898 = vld [vmem:[#allocation19 + $0x68] sm:$0xff]
        %v1899 = vld [vmem:[#allocation19 + $0x70] sm:$0xff]
        %v1900 = vld [vmem:[#allocation19 + $0x78] sm:$0xff]
        %v1901 = vld [vmem:[#allocation19 + $0x80] sm:$0xff]
        %v1902 = vld [vmem:[#allocation19 + $0x88] sm:$0xff]
        %v1903 = vld [vmem:[#allocation19 + $0x90] sm:$0xff]
        %v1904 = vld [vmem:[#allocation19 + $0x98] sm:$0xff]
        %v1905 = vld [vmem:[#allocation19 + $0xa0] sm:$0xff]
        %v1906 = vld [vmem:[#allocation19 + $0xa8] sm:$0xff]
        %v1907 = vld [vmem:[#allocation19 + $0xb0] sm:$0xff]
        %v1908 = vld [vmem:[#allocation19 + $0xb8] sm:$0xff]
        %v1909 = vld [vmem:[#allocation19 + $0xc0] sm:$0xff]
        %v1910 = vld [vmem:[#allocation19 + $0xc8] sm:$0xff]
        %v1911 = vld [vmem:[#allocation19 + $0xd0] sm:$0xff]
        %v1912 = vld [vmem:[#allocation19 + $0xd8] sm:$0xff]
        %v1913 = vld [vmem:[#allocation19 + $0xe0] sm:$0xff]
        %v1914 = vld [vmem:[#allocation19 + $0xe8] sm:$0xff]
        %v1915 = vld [vmem:[#allocation19 + $0xf0] sm:$0xff]
        %v1916 = vld [vmem:[#allocation19 + $0xf8] sm:$0xff]
        %v1917 = vld [vmem:[#allocation21] sm:$0x3]
        %v1919 = vlaneseq
        %v1920 = vshrl.u32 %v1919, 7
        %v1921 = vsub.s32 0, %v1920
        %v1922 = vrot.slane %v1917, %v1921
        %v1923 = vlaneseq
        %v1924 = vshrl.u32 %v1923, 7
        %v1925 = vsub.s32 1, %v1924
        %v1926 = vrot.slane %v1917, %v1925
        %1929 = vmatprep.subr.mxu0 %v1916
        %1930 = vmatpush1.msra.mxu0 %v1915
        %1931 = vmatprep.subr.mxu0 %v1914
        %1932 = vmatpush1.msra.mxu0 %v1913
        %1933 = vmatprep.subr.mxu0 %v1912
        %1934 = vmatpush1.msra.mxu0 %v1911
        %1935 = vmatprep.subr.mxu0 %v1910
        %1936 = vmatpush1.msra.mxu0 %v1909
        %1937 = vmatprep.subr.mxu0 %v1908
        %1938 = vmatpush1.msra.mxu0 %v1907
        %1939 = vmatprep.subr.mxu0 %v1906
        %1940 = vmatpush1.msra.mxu0 %v1905
        %1941 = vmatprep.subr.mxu0 %v1904
        %1942 = vmatpush1.msra.mxu0 %v1903
        %1943 = vmatprep.subr.mxu0 %v1902
        %1944 = vmatpush1.msra.mxu0 %v1901
        %1945 = vmatprep.subr.mxu0 %v1900
        %1946 = vmatpush1.msra.mxu0 %v1899
        %1947 = vmatprep.subr.mxu0 %v1898
        %1948 = vmatpush1.msra.mxu0 %v1897
        %1949 = vmatprep.subr.mxu0 %v1896
        %1950 = vmatpush1.msra.mxu0 %v1895
        %1951 = vmatprep.subr.mxu0 %v1894
        %1952 = vmatpush1.msra.mxu0 %v1893
        %1953 = vmatprep.subr.mxu0 %v1892
        %1954 = vmatpush1.msra.mxu0 %v1891
        %1955 = vmatprep.subr.mxu0 %v1890
        %1956 = vmatpush1.msra.mxu0 %v1889
        %1957 = vmatprep.subr.mxu0 %v1888
        %1958 = vmatpush1.msra.mxu0 %v1887
        %1959 = vmatprep.subr.mxu0 %v1886
        %1960 = vmatpush1.msra.mxu0 %v1885
        %1961 = vmatprep.subr.mxu0 0.0
        %1962 = vmatpush2.msra.mxu0 0.0
        %1963 = vmatprep.subr.mxu0 0.0
        %1964 = vmatpush2.msra.mxu0 0.0
        %1965 = vmatprep.subr.mxu0 0.0
        %1966 = vmatpush2.msra.mxu0 0.0
        %1967 = vmatprep.subr.mxu0 0.0
        %1968 = vmatpush2.msra.mxu0 0.0
        %1969 = vmatprep.subr.mxu0 0.0
        %1970 = vmatpush2.msra.mxu0 0.0
        %1971 = vmatprep.subr.mxu0 0.0
        %1972 = vmatpush2.msra.mxu0 0.0
        %1973 = vmatprep.subr.mxu0 0.0
        %1974 = vmatpush2.msra.mxu0 0.0
        %1975 = vmatprep.subr.mxu0 0.0
        %1976 = vmatpush2.msra.mxu0 0.0
        %1977 = vmatprep.subr.mxu0 0.0
        %1978 = vmatpush2.msra.mxu0 0.0
        %1979 = vmatprep.subr.mxu0 0.0
        %1980 = vmatpush2.msra.mxu0 0.0
        %1981 = vmatprep.subr.mxu0 0.0
        %1982 = vmatpush2.msra.mxu0 0.0
        %1983 = vmatprep.subr.mxu0 0.0
        %1984 = vmatpush2.msra.mxu0 0.0
        %1985 = vmatprep.subr.mxu0 0.0
        %1986 = vmatpush2.msra.mxu0 0.0
        %1987 = vmatprep.subr.mxu0 0.0
        %1988 = vmatpush2.msra.mxu0 0.0
        %1989 = vmatprep.subr.mxu0 0.0
        %1990 = vmatpush2.msra.mxu0 0.0
        %1991 = vmatprep.subr.mxu0 0.0
        %1992 = vmatpush2.msra.mxu0 0.0
        %1993 = vmatprep.mubr.f32.mxu0 0.0
        %1994 = vmatmul.mubr.f32.gmra.mxu0 %v1614
        %v1995 = vpop.f32.mrf.mxu0
        %v1996 = vadd.f32 %v1922, %v1995
        %v1997 = vpop.f32.mrf.mxu0
        %v1998 = vadd.f32 %v1926, %v1997
        %1999 = vdwg.mxu0
        %v2000 = vmax.f32 %v1996, 0.0
        %v2001 = vmax.f32 %v1998, 0.0
        %v2002 = vld [vmem:[#allocation22] sm:$0xff]
        %v2003 = vld [vmem:[#allocation22 + $0x8] sm:$0xff]
        %v2004 = vld [vmem:[#allocation22 + $0x10] sm:$0xff]
        %v2005 = vld [vmem:[#allocation22 + $0x18] sm:$0xff]
        %v2006 = vld [vmem:[#allocation22 + $0x20] sm:$0xff]
        %v2007 = vld [vmem:[#allocation22 + $0x28] sm:$0xff]
        %v2008 = vld [vmem:[#allocation22 + $0x30] sm:$0xff]
        %v2009 = vld [vmem:[#allocation22 + $0x38] sm:$0xff]
        %v2010 = vld [vmem:[#allocation22 + $0x40] sm:$0xff]
        %v2011 = vld [vmem:[#allocation22 + $0x48] sm:$0xff]
        %v2012 = vld [vmem:[#allocation22 + $0x50] sm:$0xff]
        %v2013 = vld [vmem:[#allocation22 + $0x58] sm:$0xff]
        %v2014 = vld [vmem:[#allocation22 + $0x60] sm:$0xff]
        %v2015 = vld [vmem:[#allocation22 + $0x68] sm:$0xff]
        %v2016 = vld [vmem:[#allocation22 + $0x70] sm:$0xff]
        %v2017 = vld [vmem:[#allocation22 + $0x78] sm:$0xff]
        %v2018 = vld [vmem:[#allocation22 + $0x80] sm:$0xff]
        %v2019 = vld [vmem:[#allocation22 + $0x88] sm:$0xff]
        %v2020 = vld [vmem:[#allocation22 + $0x90] sm:$0xff]
        %v2021 = vld [vmem:[#allocation22 + $0x98] sm:$0xff]
        %v2022 = vld [vmem:[#allocation22 + $0xa0] sm:$0xff]
        %v2023 = vld [vmem:[#allocation22 + $0xa8] sm:$0xff]
        %v2024 = vld [vmem:[#allocation22 + $0xb0] sm:$0xff]
        %v2025 = vld [vmem:[#allocation22 + $0xb8] sm:$0xff]
        %v2026 = vld [vmem:[#allocation22 + $0xc0] sm:$0xff]
        %v2027 = vld [vmem:[#allocation22 + $0xc8] sm:$0xff]
        %v2028 = vld [vmem:[#allocation22 + $0xd0] sm:$0xff]
        %v2029 = vld [vmem:[#allocation22 + $0xd8] sm:$0xff]
        %v2030 = vld [vmem:[#allocation22 + $0xe0] sm:$0xff]
        %v2031 = vld [vmem:[#allocation22 + $0xe8] sm:$0xff]
        %v2032 = vld [vmem:[#allocation22 + $0xf0] sm:$0xff]
        %v2033 = vld [vmem:[#allocation22 + $0xf8] sm:$0xff]
        %v2034 = vld [vmem:[#allocation22 + $0x100] sm:$0xff]
        %v2035 = vld [vmem:[#allocation22 + $0x108] sm:$0xff]
        %v2036 = vld [vmem:[#allocation22 + $0x110] sm:$0xff]
        %v2037 = vld [vmem:[#allocation22 + $0x118] sm:$0xff]
        %v2038 = vld [vmem:[#allocation22 + $0x120] sm:$0xff]
        %v2039 = vld [vmem:[#allocation22 + $0x128] sm:$0xff]
        %v2040 = vld [vmem:[#allocation22 + $0x130] sm:$0xff]
        %v2041 = vld [vmem:[#allocation22 + $0x138] sm:$0xff]
        %v2042 = vld [vmem:[#allocation22 + $0x140] sm:$0xff]
        %v2043 = vld [vmem:[#allocation22 + $0x148] sm:$0xff]
        %v2044 = vld [vmem:[#allocation22 + $0x150] sm:$0xff]
        %v2045 = vld [vmem:[#allocation22 + $0x158] sm:$0xff]
        %v2046 = vld [vmem:[#allocation22 + $0x160] sm:$0xff]
        %v2047 = vld [vmem:[#allocation22 + $0x168] sm:$0xff]
        %v2048 = vld [vmem:[#allocation22 + $0x170] sm:$0xff]
        %v2049 = vld [vmem:[#allocation22 + $0x178] sm:$0xff]
        %v2050 = vld [vmem:[#allocation22 + $0x180] sm:$0xff]
        %v2051 = vld [vmem:[#allocation22 + $0x188] sm:$0xff]
        %v2052 = vld [vmem:[#allocation22 + $0x190] sm:$0xff]
        %v2053 = vld [vmem:[#allocation22 + $0x198] sm:$0xff]
        %v2054 = vld [vmem:[#allocation22 + $0x1a0] sm:$0xff]
        %v2055 = vld [vmem:[#allocation22 + $0x1a8] sm:$0xff]
        %v2056 = vld [vmem:[#allocation22 + $0x1b0] sm:$0xff]
        %v2057 = vld [vmem:[#allocation22 + $0x1b8] sm:$0xff]
        %v2058 = vld [vmem:[#allocation22 + $0x1c0] sm:$0xff]
        %v2059 = vld [vmem:[#allocation22 + $0x1c8] sm:$0xff]
        %v2060 = vld [vmem:[#allocation22 + $0x1d0] sm:$0xff]
        %v2061 = vld [vmem:[#allocation22 + $0x1d8] sm:$0xff]
        %v2062 = vld [vmem:[#allocation22 + $0x1e0] sm:$0xff]
        %v2063 = vld [vmem:[#allocation22 + $0x1e8] sm:$0xff]
        %v2064 = vld [vmem:[#allocation22 + $0x1f0] sm:$0xff]
        %v2065 = vld [vmem:[#allocation22 + $0x1f8] sm:$0xff]
        %v2066 = vld [vmem:[#allocation24] sm:$0x3]
        %v2068 = vlaneseq
        %v2069 = vshrl.u32 %v2068, 7
        %v2070 = vsub.s32 0, %v2069
        %v2071 = vrot.slane %v2066, %v2070
        %v2072 = vlaneseq
        %v2073 = vshrl.u32 %v2072, 7
        %v2074 = vsub.s32 1, %v2073
        %v2075 = vrot.slane %v2066, %v2074
        %2078 = vmatprep.subr.mxu0 %v2033
        %2079 = vmatpush1.msra.mxu0 %v2032
        %2080 = vmatprep.subr.mxu0 %v2031
        %2081 = vmatpush1.msra.mxu0 %v2030
        %2082 = vmatprep.subr.mxu0 %v2029
        %2083 = vmatpush1.msra.mxu0 %v2028
        %2084 = vmatprep.subr.mxu0 %v2027
        %2085 = vmatpush1.msra.mxu0 %v2026
        %2086 = vmatprep.subr.mxu0 %v2025
        %2087 = vmatpush1.msra.mxu0 %v2024
        %2088 = vmatprep.subr.mxu0 %v2023
        %2089 = vmatpush1.msra.mxu0 %v2022
        %2090 = vmatprep.subr.mxu0 %v2021
        %2091 = vmatpush1.msra.mxu0 %v2020
        %2092 = vmatprep.subr.mxu0 %v2019
        %2093 = vmatpush1.msra.mxu0 %v2018
        %2094 = vmatprep.subr.mxu0 %v2017
        %2095 = vmatpush1.msra.mxu0 %v2016
        %2096 = vmatprep.subr.mxu0 %v2015
        %2097 = vmatpush1.msra.mxu0 %v2014
        %2098 = vmatprep.subr.mxu0 %v2013
        %2099 = vmatpush1.msra.mxu0 %v2012
        %2100 = vmatprep.subr.mxu0 %v2011
        %2101 = vmatpush1.msra.mxu0 %v2010
        %2102 = vmatprep.subr.mxu0 %v2009
        %2103 = vmatpush1.msra.mxu0 %v2008
        %2104 = vmatprep.subr.mxu0 %v2007
        %2105 = vmatpush1.msra.mxu0 %v2006
        %2106 = vmatprep.subr.mxu0 %v2005
        %2107 = vmatpush1.msra.mxu0 %v2004
        %2108 = vmatprep.subr.mxu0 %v2003
        %2109 = vmatpush1.msra.mxu0 %v2002
        %2110 = vmatprep.subr.mxu0 %v2065
        %2111 = vmatpush2.msra.mxu0 %v2064
        %2112 = vmatprep.subr.mxu0 %v2063
        %2113 = vmatpush2.msra.mxu0 %v2062
        %2114 = vmatprep.subr.mxu0 %v2061
        %2115 = vmatpush2.msra.mxu0 %v2060
        %2116 = vmatprep.subr.mxu0 %v2059
        %2117 = vmatpush2.msra.mxu0 %v2058
        %2118 = vmatprep.subr.mxu0 %v2057
        %2119 = vmatpush2.msra.mxu0 %v2056
        %2120 = vmatprep.subr.mxu0 %v2055
        %2121 = vmatpush2.msra.mxu0 %v2054
        %2122 = vmatprep.subr.mxu0 %v2053
        %2123 = vmatpush2.msra.mxu0 %v2052
        %2124 = vmatprep.subr.mxu0 %v2051
        %2125 = vmatpush2.msra.mxu0 %v2050
        %2126 = vmatprep.subr.mxu0 %v2049
        %2127 = vmatpush2.msra.mxu0 %v2048
        %2128 = vmatprep.subr.mxu0 %v2047
        %2129 = vmatpush2.msra.mxu0 %v2046
        %2130 = vmatprep.subr.mxu0 %v2045
        %2131 = vmatpush2.msra.mxu0 %v2044
        %2132 = vmatprep.subr.mxu0 %v2043
        %2133 = vmatpush2.msra.mxu0 %v2042
        %2134 = vmatprep.subr.mxu0 %v2041
        %2135 = vmatpush2.msra.mxu0 %v2040
        %2136 = vmatprep.subr.mxu0 %v2039
        %2137 = vmatpush2.msra.mxu0 %v2038
        %2138 = vmatprep.subr.mxu0 %v2037
        %2139 = vmatpush2.msra.mxu0 %v2036
        %2140 = vmatprep.subr.mxu0 %v2035
        %2141 = vmatpush2.msra.mxu0 %v2034
        %2142 = vmatprep.mubr.f32.mxu0 %v2001
        %2143 = vmatmul.mubr.f32.gmra.mxu0 %v2000
        %v2144 = vpop.f32.mrf.mxu0
        %v2145 = vadd.f32 %v2071, %v2144
        %v2146 = vpop.f32.mrf.mxu0
        %v2147 = vadd.f32 %v2075, %v2146
        %2148 = vdwg.mxu0
        %v2149 = vmax.f32 %v2145, 0.0
        %v2150 = vmax.f32 %v2147, 0.0
        %2151 = vst [vmem:[%s700 + $0x10] sm:$0xff] %v2149
        %2152 = vst [vmem:[%s700 + $0x18] sm:$0xff] %v2150
        %v2153 = vld [vmem:[#allocation19] sm:$0xff]
        %v2154 = vld [vmem:[#allocation19 + $0x8] sm:$0xff]
        %v2155 = vld [vmem:[#allocation19 + $0x10] sm:$0xff]
        %v2156 = vld [vmem:[#allocation19 + $0x18] sm:$0xff]
        %v2157 = vld [vmem:[#allocation19 + $0x20] sm:$0xff]
        %v2158 = vld [vmem:[#allocation19 + $0x28] sm:$0xff]
        %v2159 = vld [vmem:[#allocation19 + $0x30] sm:$0xff]
        %v2160 = vld [vmem:[#allocation19 + $0x38] sm:$0xff]
        %v2161 = vld [vmem:[#allocation19 + $0x40] sm:$0xff]
        %v2162 = vld [vmem:[#allocation19 + $0x48] sm:$0xff]
        %v2163 = vld [vmem:[#allocation19 + $0x50] sm:$0xff]
        %v2164 = vld [vmem:[#allocation19 + $0x58] sm:$0xff]
        %v2165 = vld [vmem:[#allocation19 + $0x60] sm:$0xff]
        %v2166 = vld [vmem:[#allocation19 + $0x68] sm:$0xff]
        %v2167 = vld [vmem:[#allocation19 + $0x70] sm:$0xff]
        %v2168 = vld [vmem:[#allocation19 + $0x78] sm:$0xff]
        %v2169 = vld [vmem:[#allocation19 + $0x80] sm:$0xff]
        %v2170 = vld [vmem:[#allocation19 + $0x88] sm:$0xff]
        %v2171 = vld [vmem:[#allocation19 + $0x90] sm:$0xff]
        %v2172 = vld [vmem:[#allocation19 + $0x98] sm:$0xff]
        %v2173 = vld [vmem:[#allocation19 + $0xa0] sm:$0xff]
        %v2174 = vld [vmem:[#allocation19 + $0xa8] sm:$0xff]
        %v2175 = vld [vmem:[#allocation19 + $0xb0] sm:$0xff]
        %v2176 = vld [vmem:[#allocation19 + $0xb8] sm:$0xff]
        %v2177 = vld [vmem:[#allocation19 + $0xc0] sm:$0xff]
        %v2178 = vld [vmem:[#allocation19 + $0xc8] sm:$0xff]
        %v2179 = vld [vmem:[#allocation19 + $0xd0] sm:$0xff]
        %v2180 = vld [vmem:[#allocation19 + $0xd8] sm:$0xff]
        %v2181 = vld [vmem:[#allocation19 + $0xe0] sm:$0xff]
        %v2182 = vld [vmem:[#allocation19 + $0xe8] sm:$0xff]
        %v2183 = vld [vmem:[#allocation19 + $0xf0] sm:$0xff]
        %v2184 = vld [vmem:[#allocation19 + $0xf8] sm:$0xff]
        %v2185 = vld [vmem:[#allocation21] sm:$0x3]
        %v2187 = vlaneseq
        %v2188 = vshrl.u32 %v2187, 7
        %v2189 = vsub.s32 0, %v2188
        %v2190 = vrot.slane %v2185, %v2189
        %v2191 = vlaneseq
        %v2192 = vshrl.u32 %v2191, 7
        %v2193 = vsub.s32 1, %v2192
        %v2194 = vrot.slane %v2185, %v2193
        %2197 = vmatprep.subr.mxu0 %v2184
        %2198 = vmatpush1.msra.mxu0 %v2183
        %2199 = vmatprep.subr.mxu0 %v2182
        %2200 = vmatpush1.msra.mxu0 %v2181
        %2201 = vmatprep.subr.mxu0 %v2180
        %2202 = vmatpush1.msra.mxu0 %v2179
        %2203 = vmatprep.subr.mxu0 %v2178
        %2204 = vmatpush1.msra.mxu0 %v2177
        %2205 = vmatprep.subr.mxu0 %v2176
        %2206 = vmatpush1.msra.mxu0 %v2175
        %2207 = vmatprep.subr.mxu0 %v2174
        %2208 = vmatpush1.msra.mxu0 %v2173
        %2209 = vmatprep.subr.mxu0 %v2172
        %2210 = vmatpush1.msra.mxu0 %v2171
        %2211 = vmatprep.subr.mxu0 %v2170
        %2212 = vmatpush1.msra.mxu0 %v2169
        %2213 = vmatprep.subr.mxu0 %v2168
        %2214 = vmatpush1.msra.mxu0 %v2167
        %2215 = vmatprep.subr.mxu0 %v2166
        %2216 = vmatpush1.msra.mxu0 %v2165
        %2217 = vmatprep.subr.mxu0 %v2164
        %2218 = vmatpush1.msra.mxu0 %v2163
        %2219 = vmatprep.subr.mxu0 %v2162
        %2220 = vmatpush1.msra.mxu0 %v2161
        %2221 = vmatprep.subr.mxu0 %v2160
        %2222 = vmatpush1.msra.mxu0 %v2159
        %2223 = vmatprep.subr.mxu0 %v2158
        %2224 = vmatpush1.msra.mxu0 %v2157
        %2225 = vmatprep.subr.mxu0 %v2156
        %2226 = vmatpush1.msra.mxu0 %v2155
        %2227 = vmatprep.subr.mxu0 %v2154
        %2228 = vmatpush1.msra.mxu0 %v2153
        %2229 = vmatprep.subr.mxu0 0.0
        %2230 = vmatpush2.msra.mxu0 0.0
        %2231 = vmatprep.subr.mxu0 0.0
        %2232 = vmatpush2.msra.mxu0 0.0
        %2233 = vmatprep.subr.mxu0 0.0
        %2234 = vmatpush2.msra.mxu0 0.0
        %2235 = vmatprep.subr.mxu0 0.0
        %2236 = vmatpush2.msra.mxu0 0.0
        %2237 = vmatprep.subr.mxu0 0.0
        %2238 = vmatpush2.msra.mxu0 0.0
        %2239 = vmatprep.subr.mxu0 0.0
        %2240 = vmatpush2.msra.mxu0 0.0
        %2241 = vmatprep.subr.mxu0 0.0
        %2242 = vmatpush2.msra.mxu0 0.0
        %2243 = vmatprep.subr.mxu0 0.0
        %2244 = vmatpush2.msra.mxu0 0.0
        %2245 = vmatprep.subr.mxu0 0.0
        %2246 = vmatpush2.msra.mxu0 0.0
        %2247 = vmatprep.subr.mxu0 0.0
        %2248 = vmatpush2.msra.mxu0 0.0
        %2249 = vmatprep.subr.mxu0 0.0
        %2250 = vmatpush2.msra.mxu0 0.0
        %2251 = vmatprep.subr.mxu0 0.0
        %2252 = vmatpush2.msra.mxu0 0.0
        %2253 = vmatprep.subr.mxu0 0.0
        %2254 = vmatpush2.msra.mxu0 0.0
        %2255 = vmatprep.subr.mxu0 0.0
        %2256 = vmatpush2.msra.mxu0 0.0
        %2257 = vmatprep.subr.mxu0 0.0
        %2258 = vmatpush2.msra.mxu0 0.0
        %2259 = vmatprep.subr.mxu0 0.0
        %2260 = vmatpush2.msra.mxu0 0.0
        %2261 = vmatprep.mubr.f32.mxu0 0.0
        %2262 = vmatmul.mubr.f32.gmra.mxu0 %v1615
        %v2263 = vpop.f32.mrf.mxu0
        %v2264 = vadd.f32 %v2190, %v2263
        %v2265 = vpop.f32.mrf.mxu0
        %v2266 = vadd.f32 %v2194, %v2265
        %2267 = vdwg.mxu0
        %v2268 = vmax.f32 %v2264, 0.0
        %v2269 = vmax.f32 %v2266, 0.0
        %v2270 = vld [vmem:[#allocation22] sm:$0xff]
        %v2271 = vld [vmem:[#allocation22 + $0x8] sm:$0xff]
        %v2272 = vld [vmem:[#allocation22 + $0x10] sm:$0xff]
        %v2273 = vld [vmem:[#allocation22 + $0x18] sm:$0xff]
        %v2274 = vld [vmem:[#allocation22 + $0x20] sm:$0xff]
        %v2275 = vld [vmem:[#allocation22 + $0x28] sm:$0xff]
        %v2276 = vld [vmem:[#allocation22 + $0x30] sm:$0xff]
        %v2277 = vld [vmem:[#allocation22 + $0x38] sm:$0xff]
        %v2278 = vld [vmem:[#allocation22 + $0x40] sm:$0xff]
        %v2279 = vld [vmem:[#allocation22 + $0x48] sm:$0xff]
        %v2280 = vld [vmem:[#allocation22 + $0x50] sm:$0xff]
        %v2281 = vld [vmem:[#allocation22 + $0x58] sm:$0xff]
        %v2282 = vld [vmem:[#allocation22 + $0x60] sm:$0xff]
        %v2283 = vld [vmem:[#allocation22 + $0x68] sm:$0xff]
        %v2284 = vld [vmem:[#allocation22 + $0x70] sm:$0xff]
        %v2285 = vld [vmem:[#allocation22 + $0x78] sm:$0xff]
        %v2286 = vld [vmem:[#allocation22 + $0x80] sm:$0xff]
        %v2287 = vld [vmem:[#allocation22 + $0x88] sm:$0xff]
        %v2288 = vld [vmem:[#allocation22 + $0x90] sm:$0xff]
        %v2289 = vld [vmem:[#allocation22 + $0x98] sm:$0xff]
        %v2290 = vld [vmem:[#allocation22 + $0xa0] sm:$0xff]
        %v2291 = vld [vmem:[#allocation22 + $0xa8] sm:$0xff]
        %v2292 = vld [vmem:[#allocation22 + $0xb0] sm:$0xff]
        %v2293 = vld [vmem:[#allocation22 + $0xb8] sm:$0xff]
        %v2294 = vld [vmem:[#allocation22 + $0xc0] sm:$0xff]
        %v2295 = vld [vmem:[#allocation22 + $0xc8] sm:$0xff]
        %v2296 = vld [vmem:[#allocation22 + $0xd0] sm:$0xff]
        %v2297 = vld [vmem:[#allocation22 + $0xd8] sm:$0xff]
        %v2298 = vld [vmem:[#allocation22 + $0xe0] sm:$0xff]
        %v2299 = vld [vmem:[#allocation22 + $0xe8] sm:$0xff]
        %v2300 = vld [vmem:[#allocation22 + $0xf0] sm:$0xff]
        %v2301 = vld [vmem:[#allocation22 + $0xf8] sm:$0xff]
        %v2302 = vld [vmem:[#allocation22 + $0x100] sm:$0xff]
        %v2303 = vld [vmem:[#allocation22 + $0x108] sm:$0xff]
        %v2304 = vld [vmem:[#allocation22 + $0x110] sm:$0xff]
        %v2305 = vld [vmem:[#allocation22 + $0x118] sm:$0xff]
        %v2306 = vld [vmem:[#allocation22 + $0x120] sm:$0xff]
        %v2307 = vld [vmem:[#allocation22 + $0x128] sm:$0xff]
        %v2308 = vld [vmem:[#allocation22 + $0x130] sm:$0xff]
        %v2309 = vld [vmem:[#allocation22 + $0x138] sm:$0xff]
        %v2310 = vld [vmem:[#allocation22 + $0x140] sm:$0xff]
        %v2311 = vld [vmem:[#allocation22 + $0x148] sm:$0xff]
        %v2312 = vld [vmem:[#allocation22 + $0x150] sm:$0xff]
        %v2313 = vld [vmem:[#allocation22 + $0x158] sm:$0xff]
        %v2314 = vld [vmem:[#allocation22 + $0x160] sm:$0xff]
        %v2315 = vld [vmem:[#allocation22 + $0x168] sm:$0xff]
        %v2316 = vld [vmem:[#allocation22 + $0x170] sm:$0xff]
        %v2317 = vld [vmem:[#allocation22 + $0x178] sm:$0xff]
        %v2318 = vld [vmem:[#allocation22 + $0x180] sm:$0xff]
        %v2319 = vld [vmem:[#allocation22 + $0x188] sm:$0xff]
        %v2320 = vld [vmem:[#allocation22 + $0x190] sm:$0xff]
        %v2321 = vld [vmem:[#allocation22 + $0x198] sm:$0xff]
        %v2322 = vld [vmem:[#allocation22 + $0x1a0] sm:$0xff]
        %v2323 = vld [vmem:[#allocation22 + $0x1a8] sm:$0xff]
        %v2324 = vld [vmem:[#allocation22 + $0x1b0] sm:$0xff]
        %v2325 = vld [vmem:[#allocation22 + $0x1b8] sm:$0xff]
        %v2326 = vld [vmem:[#allocation22 + $0x1c0] sm:$0xff]
        %v2327 = vld [vmem:[#allocation22 + $0x1c8] sm:$0xff]
        %v2328 = vld [vmem:[#allocation22 + $0x1d0] sm:$0xff]
        %v2329 = vld [vmem:[#allocation22 + $0x1d8] sm:$0xff]
        %v2330 = vld [vmem:[#allocation22 + $0x1e0] sm:$0xff]
        %v2331 = vld [vmem:[#allocation22 + $0x1e8] sm:$0xff]
        %v2332 = vld [vmem:[#allocation22 + $0x1f0] sm:$0xff]
        %v2333 = vld [vmem:[#allocation22 + $0x1f8] sm:$0xff]
        %v2334 = vld [vmem:[#allocation24] sm:$0x3]
        %v2336 = vlaneseq
        %v2337 = vshrl.u32 %v2336, 7
        %v2338 = vsub.s32 0, %v2337
        %v2339 = vrot.slane %v2334, %v2338
        %v2340 = vlaneseq
        %v2341 = vshrl.u32 %v2340, 7
        %v2342 = vsub.s32 1, %v2341
        %v2343 = vrot.slane %v2334, %v2342
        %2346 = vmatprep.subr.mxu0 %v2301
        %2347 = vmatpush1.msra.mxu0 %v2300
        %2348 = vmatprep.subr.mxu0 %v2299
        %2349 = vmatpush1.msra.mxu0 %v2298
        %2350 = vmatprep.subr.mxu0 %v2297
        %2351 = vmatpush1.msra.mxu0 %v2296
        %2352 = vmatprep.subr.mxu0 %v2295
        %2353 = vmatpush1.msra.mxu0 %v2294
        %2354 = vmatprep.subr.mxu0 %v2293
        %2355 = vmatpush1.msra.mxu0 %v2292
        %2356 = vmatprep.subr.mxu0 %v2291
        %2357 = vmatpush1.msra.mxu0 %v2290
        %2358 = vmatprep.subr.mxu0 %v2289
        %2359 = vmatpush1.msra.mxu0 %v2288
        %2360 = vmatprep.subr.mxu0 %v2287
        %2361 = vmatpush1.msra.mxu0 %v2286
        %2362 = vmatprep.subr.mxu0 %v2285
        %2363 = vmatpush1.msra.mxu0 %v2284
        %2364 = vmatprep.subr.mxu0 %v2283
        %2365 = vmatpush1.msra.mxu0 %v2282
        %2366 = vmatprep.subr.mxu0 %v2281
        %2367 = vmatpush1.msra.mxu0 %v2280
        %2368 = vmatprep.subr.mxu0 %v2279
        %2369 = vmatpush1.msra.mxu0 %v2278
        %2370 = vmatprep.subr.mxu0 %v2277
        %2371 = vmatpush1.msra.mxu0 %v2276
        %2372 = vmatprep.subr.mxu0 %v2275
        %2373 = vmatpush1.msra.mxu0 %v2274
        %2374 = vmatprep.subr.mxu0 %v2273
        %2375 = vmatpush1.msra.mxu0 %v2272
        %2376 = vmatprep.subr.mxu0 %v2271
        %2377 = vmatpush1.msra.mxu0 %v2270
        %2378 = vmatprep.subr.mxu0 %v2333
        %2379 = vmatpush2.msra.mxu0 %v2332
        %2380 = vmatprep.subr.mxu0 %v2331
        %2381 = vmatpush2.msra.mxu0 %v2330
        %2382 = vmatprep.subr.mxu0 %v2329
        %2383 = vmatpush2.msra.mxu0 %v2328
        %2384 = vmatprep.subr.mxu0 %v2327
        %2385 = vmatpush2.msra.mxu0 %v2326
        %2386 = vmatprep.subr.mxu0 %v2325
        %2387 = vmatpush2.msra.mxu0 %v2324
        %2388 = vmatprep.subr.mxu0 %v2323
        %2389 = vmatpush2.msra.mxu0 %v2322
        %2390 = vmatprep.subr.mxu0 %v2321
        %2391 = vmatpush2.msra.mxu0 %v2320
        %2392 = vmatprep.subr.mxu0 %v2319
        %2393 = vmatpush2.msra.mxu0 %v2318
        %2394 = vmatprep.subr.mxu0 %v2317
        %2395 = vmatpush2.msra.mxu0 %v2316
        %2396 = vmatprep.subr.mxu0 %v2315
        %2397 = vmatpush2.msra.mxu0 %v2314
        %2398 = vmatprep.subr.mxu0 %v2313
        %2399 = vmatpush2.msra.mxu0 %v2312
        %2400 = vmatprep.subr.mxu0 %v2311
        %2401 = vmatpush2.msra.mxu0 %v2310
        %2402 = vmatprep.subr.mxu0 %v2309
        %2403 = vmatpush2.msra.mxu0 %v2308
        %2404 = vmatprep.subr.mxu0 %v2307
        %2405 = vmatpush2.msra.mxu0 %v2306
        %2406 = vmatprep.subr.mxu0 %v2305
        %2407 = vmatpush2.msra.mxu0 %v2304
        %2408 = vmatprep.subr.mxu0 %v2303
        %2409 = vmatpush2.msra.mxu0 %v2302
        %2410 = vmatprep.mubr.f32.mxu0 %v2269
        %2411 = vmatmul.mubr.f32.gmra.mxu0 %v2268
        %v2412 = vpop.f32.mrf.mxu0
        %v2413 = vadd.f32 %v2339, %v2412
        %v2414 = vpop.f32.mrf.mxu0
        %v2415 = vadd.f32 %v2343, %v2414
        %2416 = vdwg.mxu0
        %v2417 = vmax.f32 %v2413, 0.0
        %v2418 = vmax.f32 %v2415, 0.0
        %2419 = vst [vmem:[%s700 + $0x20] sm:$0xff] %v2417
        %2420 = vst [vmem:[%s700 + $0x28] sm:$0xff] %v2418
        %v2421 = vld [vmem:[#allocation19] sm:$0xff]
        %v2422 = vld [vmem:[#allocation19 + $0x8] sm:$0xff]
        %v2423 = vld [vmem:[#allocation19 + $0x10] sm:$0xff]
        %v2424 = vld [vmem:[#allocation19 + $0x18] sm:$0xff]
        %v2425 = vld [vmem:[#allocation19 + $0x20] sm:$0xff]
        %v2426 = vld [vmem:[#allocation19 + $0x28] sm:$0xff]
        %v2427 = vld [vmem:[#allocation19 + $0x30] sm:$0xff]
        %v2428 = vld [vmem:[#allocation19 + $0x38] sm:$0xff]
        %v2429 = vld [vmem:[#allocation19 + $0x40] sm:$0xff]
        %v2430 = vld [vmem:[#allocation19 + $0x48] sm:$0xff]
        %v2431 = vld [vmem:[#allocation19 + $0x50] sm:$0xff]
        %v2432 = vld [vmem:[#allocation19 + $0x58] sm:$0xff]
        %v2433 = vld [vmem:[#allocation19 + $0x60] sm:$0xff]
        %v2434 = vld [vmem:[#allocation19 + $0x68] sm:$0xff]
        %v2435 = vld [vmem:[#allocation19 + $0x70] sm:$0xff]
        %v2436 = vld [vmem:[#allocation19 + $0x78] sm:$0xff]
        %v2437 = vld [vmem:[#allocation19 + $0x80] sm:$0xff]
        %v2438 = vld [vmem:[#allocation19 + $0x88] sm:$0xff]
        %v2439 = vld [vmem:[#allocation19 + $0x90] sm:$0xff]
        %v2440 = vld [vmem:[#allocation19 + $0x98] sm:$0xff]
        %v2441 = vld [vmem:[#allocation19 + $0xa0] sm:$0xff]
        %v2442 = vld [vmem:[#allocation19 + $0xa8] sm:$0xff]
        %v2443 = vld [vmem:[#allocation19 + $0xb0] sm:$0xff]
        %v2444 = vld [vmem:[#allocation19 + $0xb8] sm:$0xff]
        %v2445 = vld [vmem:[#allocation19 + $0xc0] sm:$0xff]
        %v2446 = vld [vmem:[#allocation19 + $0xc8] sm:$0xff]
        %v2447 = vld [vmem:[#allocation19 + $0xd0] sm:$0xff]
        %v2448 = vld [vmem:[#allocation19 + $0xd8] sm:$0xff]
        %v2449 = vld [vmem:[#allocation19 + $0xe0] sm:$0xff]
        %v2450 = vld [vmem:[#allocation19 + $0xe8] sm:$0xff]
        %v2451 = vld [vmem:[#allocation19 + $0xf0] sm:$0xff]
        %v2452 = vld [vmem:[#allocation19 + $0xf8] sm:$0xff]
        %v2453 = vld [vmem:[#allocation21] sm:$0x3]
        %v2455 = vlaneseq
        %v2456 = vshrl.u32 %v2455, 7
        %v2457 = vsub.s32 0, %v2456
        %v2458 = vrot.slane %v2453, %v2457
        %v2459 = vlaneseq
        %v2460 = vshrl.u32 %v2459, 7
        %v2461 = vsub.s32 1, %v2460
        %v2462 = vrot.slane %v2453, %v2461
        %2465 = vmatprep.subr.mxu0 %v2452
        %2466 = vmatpush1.msra.mxu0 %v2451
        %2467 = vmatprep.subr.mxu0 %v2450
        %2468 = vmatpush1.msra.mxu0 %v2449
        %2469 = vmatprep.subr.mxu0 %v2448
        %2470 = vmatpush1.msra.mxu0 %v2447
        %2471 = vmatprep.subr.mxu0 %v2446
        %2472 = vmatpush1.msra.mxu0 %v2445
        %2473 = vmatprep.subr.mxu0 %v2444
        %2474 = vmatpush1.msra.mxu0 %v2443
        %2475 = vmatprep.subr.mxu0 %v2442
        %2476 = vmatpush1.msra.mxu0 %v2441
        %2477 = vmatprep.subr.mxu0 %v2440
        %2478 = vmatpush1.msra.mxu0 %v2439
        %2479 = vmatprep.subr.mxu0 %v2438
        %2480 = vmatpush1.msra.mxu0 %v2437
        %2481 = vmatprep.subr.mxu0 %v2436
        %2482 = vmatpush1.msra.mxu0 %v2435
        %2483 = vmatprep.subr.mxu0 %v2434
        %2484 = vmatpush1.msra.mxu0 %v2433
        %2485 = vmatprep.subr.mxu0 %v2432
        %2486 = vmatpush1.msra.mxu0 %v2431
        %2487 = vmatprep.subr.mxu0 %v2430
        %2488 = vmatpush1.msra.mxu0 %v2429
        %2489 = vmatprep.subr.mxu0 %v2428
        %2490 = vmatpush1.msra.mxu0 %v2427
        %2491 = vmatprep.subr.mxu0 %v2426
        %2492 = vmatpush1.msra.mxu0 %v2425
        %2493 = vmatprep.subr.mxu0 %v2424
        %2494 = vmatpush1.msra.mxu0 %v2423
        %2495 = vmatprep.subr.mxu0 %v2422
        %2496 = vmatpush1.msra.mxu0 %v2421
        %2497 = vmatprep.subr.mxu0 0.0
        %2498 = vmatpush2.msra.mxu0 0.0
        %2499 = vmatprep.subr.mxu0 0.0
        %2500 = vmatpush2.msra.mxu0 0.0
        %2501 = vmatprep.subr.mxu0 0.0
        %2502 = vmatpush2.msra.mxu0 0.0
        %2503 = vmatprep.subr.mxu0 0.0
        %2504 = vmatpush2.msra.mxu0 0.0
        %2505 = vmatprep.subr.mxu0 0.0
        %2506 = vmatpush2.msra.mxu0 0.0
        %2507 = vmatprep.subr.mxu0 0.0
        %2508 = vmatpush2.msra.mxu0 0.0
        %2509 = vmatprep.subr.mxu0 0.0
        %2510 = vmatpush2.msra.mxu0 0.0
        %2511 = vmatprep.subr.mxu0 0.0
        %2512 = vmatpush2.msra.mxu0 0.0
        %2513 = vmatprep.subr.mxu0 0.0
        %2514 = vmatpush2.msra.mxu0 0.0
        %2515 = vmatprep.subr.mxu0 0.0
        %2516 = vmatpush2.msra.mxu0 0.0
        %2517 = vmatprep.subr.mxu0 0.0
        %2518 = vmatpush2.msra.mxu0 0.0
        %2519 = vmatprep.subr.mxu0 0.0
        %2520 = vmatpush2.msra.mxu0 0.0
        %2521 = vmatprep.subr.mxu0 0.0
        %2522 = vmatpush2.msra.mxu0 0.0
        %2523 = vmatprep.subr.mxu0 0.0
        %2524 = vmatpush2.msra.mxu0 0.0
        %2525 = vmatprep.subr.mxu0 0.0
        %2526 = vmatpush2.msra.mxu0 0.0
        %2527 = vmatprep.subr.mxu0 0.0
        %2528 = vmatpush2.msra.mxu0 0.0
        %2529 = vmatprep.mubr.f32.mxu0 0.0
        %2530 = vmatmul.mubr.f32.gmra.mxu0 %v1616
        %v2531 = vpop.f32.mrf.mxu0
        %v2532 = vadd.f32 %v2458, %v2531
        %v2533 = vpop.f32.mrf.mxu0
        %v2534 = vadd.f32 %v2462, %v2533
        %2535 = vdwg.mxu0
        %v2536 = vmax.f32 %v2532, 0.0
        %v2537 = vmax.f32 %v2534, 0.0
        %v2538 = vld [vmem:[#allocation22] sm:$0xff]
        %v2539 = vld [vmem:[#allocation22 + $0x8] sm:$0xff]
        %v2540 = vld [vmem:[#allocation22 + $0x10] sm:$0xff]
        %v2541 = vld [vmem:[#allocation22 + $0x18] sm:$0xff]
        %v2542 = vld [vmem:[#allocation22 + $0x20] sm:$0xff]
        %v2543 = vld [vmem:[#allocation22 + $0x28] sm:$0xff]
        %v2544 = vld [vmem:[#allocation22 + $0x30] sm:$0xff]
        %v2545 = vld [vmem:[#allocation22 + $0x38] sm:$0xff]
        %v2546 = vld [vmem:[#allocation22 + $0x40] sm:$0xff]
        %v2547 = vld [vmem:[#allocation22 + $0x48] sm:$0xff]
        %v2548 = vld [vmem:[#allocation22 + $0x50] sm:$0xff]
        %v2549 = vld [vmem:[#allocation22 + $0x58] sm:$0xff]
        %v2550 = vld [vmem:[#allocation22 + $0x60] sm:$0xff]
        %v2551 = vld [vmem:[#allocation22 + $0x68] sm:$0xff]
        %v2552 = vld [vmem:[#allocation22 + $0x70] sm:$0xff]
        %v2553 = vld [vmem:[#allocation22 + $0x78] sm:$0xff]
        %v2554 = vld [vmem:[#allocation22 + $0x80] sm:$0xff]
        %v2555 = vld [vmem:[#allocation22 + $0x88] sm:$0xff]
        %v2556 = vld [vmem:[#allocation22 + $0x90] sm:$0xff]
        %v2557 = vld [vmem:[#allocation22 + $0x98] sm:$0xff]
        %v2558 = vld [vmem:[#allocation22 + $0xa0] sm:$0xff]
        %v2559 = vld [vmem:[#allocation22 + $0xa8] sm:$0xff]
        %v2560 = vld [vmem:[#allocation22 + $0xb0] sm:$0xff]
        %v2561 = vld [vmem:[#allocation22 + $0xb8] sm:$0xff]
        %v2562 = vld [vmem:[#allocation22 + $0xc0] sm:$0xff]
        %v2563 = vld [vmem:[#allocation22 + $0xc8] sm:$0xff]
        %v2564 = vld [vmem:[#allocation22 + $0xd0] sm:$0xff]
        %v2565 = vld [vmem:[#allocation22 + $0xd8] sm:$0xff]
        %v2566 = vld [vmem:[#allocation22 + $0xe0] sm:$0xff]
        %v2567 = vld [vmem:[#allocation22 + $0xe8] sm:$0xff]
        %v2568 = vld [vmem:[#allocation22 + $0xf0] sm:$0xff]
        %v2569 = vld [vmem:[#allocation22 + $0xf8] sm:$0xff]
        %v2570 = vld [vmem:[#allocation22 + $0x100] sm:$0xff]
        %v2571 = vld [vmem:[#allocation22 + $0x108] sm:$0xff]
        %v2572 = vld [vmem:[#allocation22 + $0x110] sm:$0xff]
        %v2573 = vld [vmem:[#allocation22 + $0x118] sm:$0xff]
        %v2574 = vld [vmem:[#allocation22 + $0x120] sm:$0xff]
        %v2575 = vld [vmem:[#allocation22 + $0x128] sm:$0xff]
        %v2576 = vld [vmem:[#allocation22 + $0x130] sm:$0xff]
        %v2577 = vld [vmem:[#allocation22 + $0x138] sm:$0xff]
        %v2578 = vld [vmem:[#allocation22 + $0x140] sm:$0xff]
        %v2579 = vld [vmem:[#allocation22 + $0x148] sm:$0xff]
        %v2580 = vld [vmem:[#allocation22 + $0x150] sm:$0xff]
        %v2581 = vld [vmem:[#allocation22 + $0x158] sm:$0xff]
        %v2582 = vld [vmem:[#allocation22 + $0x160] sm:$0xff]
        %v2583 = vld [vmem:[#allocation22 + $0x168] sm:$0xff]
        %v2584 = vld [vmem:[#allocation22 + $0x170] sm:$0xff]
        %v2585 = vld [vmem:[#allocation22 + $0x178] sm:$0xff]
        %v2586 = vld [vmem:[#allocation22 + $0x180] sm:$0xff]
        %v2587 = vld [vmem:[#allocation22 + $0x188] sm:$0xff]
        %v2588 = vld [vmem:[#allocation22 + $0x190] sm:$0xff]
        %v2589 = vld [vmem:[#allocation22 + $0x198] sm:$0xff]
        %v2590 = vld [vmem:[#allocation22 + $0x1a0] sm:$0xff]
        %v2591 = vld [vmem:[#allocation22 + $0x1a8] sm:$0xff]
        %v2592 = vld [vmem:[#allocation22 + $0x1b0] sm:$0xff]
        %v2593 = vld [vmem:[#allocation22 + $0x1b8] sm:$0xff]
        %v2594 = vld [vmem:[#allocation22 + $0x1c0] sm:$0xff]
        %v2595 = vld [vmem:[#allocation22 + $0x1c8] sm:$0xff]
        %v2596 = vld [vmem:[#allocation22 + $0x1d0] sm:$0xff]
        %v2597 = vld [vmem:[#allocation22 + $0x1d8] sm:$0xff]
        %v2598 = vld [vmem:[#allocation22 + $0x1e0] sm:$0xff]
        %v2599 = vld [vmem:[#allocation22 + $0x1e8] sm:$0xff]
        %v2600 = vld [vmem:[#allocation22 + $0x1f0] sm:$0xff]
        %v2601 = vld [vmem:[#allocation22 + $0x1f8] sm:$0xff]
        %v2602 = vld [vmem:[#allocation24] sm:$0x3]
        %v2604 = vlaneseq
        %v2605 = vshrl.u32 %v2604, 7
        %v2606 = vsub.s32 0, %v2605
        %v2607 = vrot.slane %v2602, %v2606
        %v2608 = vlaneseq
        %v2609 = vshrl.u32 %v2608, 7
        %v2610 = vsub.s32 1, %v2609
        %v2611 = vrot.slane %v2602, %v2610
        %2614 = vmatprep.subr.mxu0 %v2569
        %2615 = vmatpush1.msra.mxu0 %v2568
        %2616 = vmatprep.subr.mxu0 %v2567
        %2617 = vmatpush1.msra.mxu0 %v2566
        %2618 = vmatprep.subr.mxu0 %v2565
        %2619 = vmatpush1.msra.mxu0 %v2564
        %2620 = vmatprep.subr.mxu0 %v2563
        %2621 = vmatpush1.msra.mxu0 %v2562
        %2622 = vmatprep.subr.mxu0 %v2561
        %2623 = vmatpush1.msra.mxu0 %v2560
        %2624 = vmatprep.subr.mxu0 %v2559
        %2625 = vmatpush1.msra.mxu0 %v2558
        %2626 = vmatprep.subr.mxu0 %v2557
        %2627 = vmatpush1.msra.mxu0 %v2556
        %2628 = vmatprep.subr.mxu0 %v2555
        %2629 = vmatpush1.msra.mxu0 %v2554
        %2630 = vmatprep.subr.mxu0 %v2553
        %2631 = vmatpush1.msra.mxu0 %v2552
        %2632 = vmatprep.subr.mxu0 %v2551
        %2633 = vmatpush1.msra.mxu0 %v2550
        %2634 = vmatprep.subr.mxu0 %v2549
        %2635 = vmatpush1.msra.mxu0 %v2548
        %2636 = vmatprep.subr.mxu0 %v2547
        %2637 = vmatpush1.msra.mxu0 %v2546
        %2638 = vmatprep.subr.mxu0 %v2545
        %2639 = vmatpush1.msra.mxu0 %v2544
        %2640 = vmatprep.subr.mxu0 %v2543
        %2641 = vmatpush1.msra.mxu0 %v2542
        %2642 = vmatprep.subr.mxu0 %v2541
        %2643 = vmatpush1.msra.mxu0 %v2540
        %2644 = vmatprep.subr.mxu0 %v2539
        %2645 = vmatpush1.msra.mxu0 %v2538
        %2646 = vmatprep.subr.mxu0 %v2601
        %2647 = vmatpush2.msra.mxu0 %v2600
        %2648 = vmatprep.subr.mxu0 %v2599
        %2649 = vmatpush2.msra.mxu0 %v2598
        %2650 = vmatprep.subr.mxu0 %v2597
        %2651 = vmatpush2.msra.mxu0 %v2596
        %2652 = vmatprep.subr.mxu0 %v2595
        %2653 = vmatpush2.msra.mxu0 %v2594
        %2654 = vmatprep.subr.mxu0 %v2593
        %2655 = vmatpush2.msra.mxu0 %v2592
        %2656 = vmatprep.subr.mxu0 %v2591
        %2657 = vmatpush2.msra.mxu0 %v2590
        %2658 = vmatprep.subr.mxu0 %v2589
        %2659 = vmatpush2.msra.mxu0 %v2588
        %2660 = vmatprep.subr.mxu0 %v2587
        %2661 = vmatpush2.msra.mxu0 %v2586
        %2662 = vmatprep.subr.mxu0 %v2585
        %2663 = vmatpush2.msra.mxu0 %v2584
        %2664 = vmatprep.subr.mxu0 %v2583
        %2665 = vmatpush2.msra.mxu0 %v2582
        %2666 = vmatprep.subr.mxu0 %v2581
        %2667 = vmatpush2.msra.mxu0 %v2580
        %2668 = vmatprep.subr.mxu0 %v2579
        %2669 = vmatpush2.msra.mxu0 %v2578
        %2670 = vmatprep.subr.mxu0 %v2577
        %2671 = vmatpush2.msra.mxu0 %v2576
        %2672 = vmatprep.subr.mxu0 %v2575
        %2673 = vmatpush2.msra.mxu0 %v2574
        %2674 = vmatprep.subr.mxu0 %v2573
        %2675 = vmatpush2.msra.mxu0 %v2572
        %2676 = vmatprep.subr.mxu0 %v2571
        %2677 = vmatpush2.msra.mxu0 %v2570
        %2678 = vmatprep.mubr.f32.mxu0 %v2537
        %2679 = vmatmul.mubr.f32.gmra.mxu0 %v2536
        %v2680 = vpop.f32.mrf.mxu0
        %v2681 = vadd.f32 %v2607, %v2680
        %v2682 = vpop.f32.mrf.mxu0
        %v2683 = vadd.f32 %v2611, %v2682
        %2684 = vdwg.mxu0
        %v2685 = vmax.f32 %v2681, 0.0
        %v2686 = vmax.f32 %v2683, 0.0
        %2687 = vst [vmem:[%s700 + $0x30] sm:$0xff] %v2685
        %2688 = vst [vmem:[%s700 + $0x38] sm:$0xff] %v2686
        %v2689 = vld [vmem:[#allocation13] sm:$0xff]
        %v2690 = vld [vmem:[#allocation13 + $0x8] sm:$0xff]
        %v2691 = vld [vmem:[#allocation13 + $0x10] sm:$0xff]
        %v2692 = vld [vmem:[#allocation13 + $0x18] sm:$0xff]
        %v2693 = vld [vmem:[#allocation13 + $0x20] sm:$0xff]
        %v2694 = vld [vmem:[#allocation13 + $0x28] sm:$0xff]
        %v2695 = vld [vmem:[#allocation13 + $0x30] sm:$0xff]
        %v2696 = vld [vmem:[#allocation13 + $0x38] sm:$0xff]
        %v2697 = vld [vmem:[#allocation13 + $0x40] sm:$0xff]
        %v2698 = vld [vmem:[#allocation13 + $0x48] sm:$0xff]
        %v2699 = vld [vmem:[#allocation13 + $0x50] sm:$0xff]
        %v2700 = vld [vmem:[#allocation13 + $0x58] sm:$0xff]
        %v2701 = vld [vmem:[#allocation13 + $0x60] sm:$0xff]
        %v2702 = vld [vmem:[#allocation13 + $0x68] sm:$0xff]
        %v2703 = vld [vmem:[#allocation13 + $0x70] sm:$0xff]
        %v2704 = vld [vmem:[#allocation13 + $0x78] sm:$0xff]
        %v2705 = vld [vmem:[#allocation13 + $0x80] sm:$0xff]
        %v2706 = vld [vmem:[#allocation13 + $0x88] sm:$0xff]
        %v2707 = vld [vmem:[#allocation13 + $0x90] sm:$0xff]
        %v2708 = vld [vmem:[#allocation13 + $0x98] sm:$0xff]
        %v2709 = vld [vmem:[#allocation13 + $0xa0] sm:$0xff]
        %v2710 = vld [vmem:[#allocation13 + $0xa8] sm:$0xff]
        %v2711 = vld [vmem:[#allocation13 + $0xb0] sm:$0xff]
        %v2712 = vld [vmem:[#allocation13 + $0xb8] sm:$0xff]
        %v2713 = vld [vmem:[#allocation13 + $0xc0] sm:$0xff]
        %v2714 = vld [vmem:[#allocation13 + $0xc8] sm:$0xff]
        %v2715 = vld [vmem:[#allocation13 + $0xd0] sm:$0xff]
        %v2716 = vld [vmem:[#allocation13 + $0xd8] sm:$0xff]
        %v2717 = vld [vmem:[#allocation13 + $0xe0] sm:$0xff]
        %v2718 = vld [vmem:[#allocation13 + $0xe8] sm:$0xff]
        %v2719 = vld [vmem:[#allocation13 + $0xf0] sm:$0xff]
        %v2720 = vld [vmem:[#allocation13 + $0xf8] sm:$0xff]
        %v2721 = vld [vmem:[#allocation15] sm:$0x3]
        %v2723 = vlaneseq
        %v2724 = vshrl.u32 %v2723, 7
        %v2725 = vsub.s32 0, %v2724
        %v2726 = vrot.slane %v2721, %v2725
        %v2727 = vlaneseq
        %v2728 = vshrl.u32 %v2727, 7
        %v2729 = vsub.s32 1, %v2728
        %v2730 = vrot.slane %v2721, %v2729
        %2733 = vmatprep.subr.mxu0 %v2720
        %2734 = vmatpush1.msra.mxu0 %v2719
        %2735 = vmatprep.subr.mxu0 %v2718
        %2736 = vmatpush1.msra.mxu0 %v2717
        %2737 = vmatprep.subr.mxu0 %v2716
        %2738 = vmatpush1.msra.mxu0 %v2715
        %2739 = vmatprep.subr.mxu0 %v2714
        %2740 = vmatpush1.msra.mxu0 %v2713
        %2741 = vmatprep.subr.mxu0 %v2712
        %2742 = vmatpush1.msra.mxu0 %v2711
        %2743 = vmatprep.subr.mxu0 %v2710
        %2744 = vmatpush1.msra.mxu0 %v2709
        %2745 = vmatprep.subr.mxu0 %v2708
        %2746 = vmatpush1.msra.mxu0 %v2707
        %2747 = vmatprep.subr.mxu0 %v2706
        %2748 = vmatpush1.msra.mxu0 %v2705
        %2749 = vmatprep.subr.mxu0 %v2704
        %2750 = vmatpush1.msra.mxu0 %v2703
        %2751 = vmatprep.subr.mxu0 %v2702
        %2752 = vmatpush1.msra.mxu0 %v2701
        %2753 = vmatprep.subr.mxu0 %v2700
        %2754 = vmatpush1.msra.mxu0 %v2699
        %2755 = vmatprep.subr.mxu0 %v2698
        %2756 = vmatpush1.msra.mxu0 %v2697
        %2757 = vmatprep.subr.mxu0 %v2696
        %2758 = vmatpush1.msra.mxu0 %v2695
        %2759 = vmatprep.subr.mxu0 %v2694
        %2760 = vmatpush1.msra.mxu0 %v2693
        %2761 = vmatprep.subr.mxu0 %v2692
        %2762 = vmatpush1.msra.mxu0 %v2691
        %2763 = vmatprep.subr.mxu0 %v2690
        %2764 = vmatpush1.msra.mxu0 %v2689
        %2765 = vmatprep.subr.mxu0 0.0
        %2766 = vmatpush2.msra.mxu0 0.0
        %2767 = vmatprep.subr.mxu0 0.0
        %2768 = vmatpush2.msra.mxu0 0.0
        %2769 = vmatprep.subr.mxu0 0.0
        %2770 = vmatpush2.msra.mxu0 0.0
        %2771 = vmatprep.subr.mxu0 0.0
        %2772 = vmatpush2.msra.mxu0 0.0
        %2773 = vmatprep.subr.mxu0 0.0
        %2774 = vmatpush2.msra.mxu0 0.0
        %2775 = vmatprep.subr.mxu0 0.0
        %2776 = vmatpush2.msra.mxu0 0.0
        %2777 = vmatprep.subr.mxu0 0.0
        %2778 = vmatpush2.msra.mxu0 0.0
        %2779 = vmatprep.subr.mxu0 0.0
        %2780 = vmatpush2.msra.mxu0 0.0
        %2781 = vmatprep.subr.mxu0 0.0
        %2782 = vmatpush2.msra.mxu0 0.0
        %2783 = vmatprep.subr.mxu0 0.0
        %2784 = vmatpush2.msra.mxu0 0.0
        %2785 = vmatprep.subr.mxu0 0.0
        %2786 = vmatpush2.msra.mxu0 0.0
        %2787 = vmatprep.subr.mxu0 0.0
        %2788 = vmatpush2.msra.mxu0 0.0
        %2789 = vmatprep.subr.mxu0 0.0
        %2790 = vmatpush2.msra.mxu0 0.0
        %2791 = vmatprep.subr.mxu0 0.0
        %2792 = vmatpush2.msra.mxu0 0.0
        %2793 = vmatprep.subr.mxu0 0.0
        %2794 = vmatpush2.msra.mxu0 0.0
        %2795 = vmatprep.subr.mxu0 0.0
        %2796 = vmatpush2.msra.mxu0 0.0
        %2797 = vmatprep.mubr.f32.mxu0 0.0
        %2798 = vmatmul.mubr.f32.gmra.mxu0 %v1201
        %v2799 = vpop.f32.mrf.mxu0
        %v2800 = vadd.f32 %v2726, %v2799
        %v2801 = vpop.f32.mrf.mxu0
        %v2802 = vadd.f32 %v2730, %v2801
        %2803 = vdwg.mxu0
        %v2804 = vmax.f32 %v2800, 0.0
        %v2805 = vmax.f32 %v2802, 0.0
        %v2806 = vld [vmem:[#allocation16] sm:$0xff]
        %v2807 = vld [vmem:[#allocation16 + $0x8] sm:$0xff]
        %v2808 = vld [vmem:[#allocation16 + $0x10] sm:$0xff]
        %v2809 = vld [vmem:[#allocation16 + $0x18] sm:$0xff]
        %v2810 = vld [vmem:[#allocation16 + $0x20] sm:$0xff]
        %v2811 = vld [vmem:[#allocation16 + $0x28] sm:$0xff]
        %v2812 = vld [vmem:[#allocation16 + $0x30] sm:$0xff]
        %v2813 = vld [vmem:[#allocation16 + $0x38] sm:$0xff]
        %v2814 = vld [vmem:[#allocation16 + $0x40] sm:$0xff]
        %v2815 = vld [vmem:[#allocation16 + $0x48] sm:$0xff]
        %v2816 = vld [vmem:[#allocation16 + $0x50] sm:$0xff]
        %v2817 = vld [vmem:[#allocation16 + $0x58] sm:$0xff]
        %v2818 = vld [vmem:[#allocation16 + $0x60] sm:$0xff]
        %v2819 = vld [vmem:[#allocation16 + $0x68] sm:$0xff]
        %v2820 = vld [vmem:[#allocation16 + $0x70] sm:$0xff]
        %v2821 = vld [vmem:[#allocation16 + $0x78] sm:$0xff]
        %v2822 = vld [vmem:[#allocation16 + $0x80] sm:$0xff]
        %v2823 = vld [vmem:[#allocation16 + $0x88] sm:$0xff]
        %v2824 = vld [vmem:[#allocation16 + $0x90] sm:$0xff]
        %v2825 = vld [vmem:[#allocation16 + $0x98] sm:$0xff]
        %v2826 = vld [vmem:[#allocation16 + $0xa0] sm:$0xff]
        %v2827 = vld [vmem:[#allocation16 + $0xa8] sm:$0xff]
        %v2828 = vld [vmem:[#allocation16 + $0xb0] sm:$0xff]
        %v2829 = vld [vmem:[#allocation16 + $0xb8] sm:$0xff]
        %v2830 = vld [vmem:[#allocation16 + $0xc0] sm:$0xff]
        %v2831 = vld [vmem:[#allocation16 + $0xc8] sm:$0xff]
        %v2832 = vld [vmem:[#allocation16 + $0xd0] sm:$0xff]
        %v2833 = vld [vmem:[#allocation16 + $0xd8] sm:$0xff]
        %v2834 = vld [vmem:[#allocation16 + $0xe0] sm:$0xff]
        %v2835 = vld [vmem:[#allocation16 + $0xe8] sm:$0xff]
        %v2836 = vld [vmem:[#allocation16 + $0xf0] sm:$0xff]
        %v2837 = vld [vmem:[#allocation16 + $0xf8] sm:$0xff]
        %v2838 = vld [vmem:[#allocation16 + $0x100] sm:$0xff]
        %v2839 = vld [vmem:[#allocation16 + $0x108] sm:$0xff]
        %v2840 = vld [vmem:[#allocation16 + $0x110] sm:$0xff]
        %v2841 = vld [vmem:[#allocation16 + $0x118] sm:$0xff]
        %v2842 = vld [vmem:[#allocation16 + $0x120] sm:$0xff]
        %v2843 = vld [vmem:[#allocation16 + $0x128] sm:$0xff]
        %v2844 = vld [vmem:[#allocation16 + $0x130] sm:$0xff]
        %v2845 = vld [vmem:[#allocation16 + $0x138] sm:$0xff]
        %v2846 = vld [vmem:[#allocation16 + $0x140] sm:$0xff]
        %v2847 = vld [vmem:[#allocation16 + $0x148] sm:$0xff]
        %v2848 = vld [vmem:[#allocation16 + $0x150] sm:$0xff]
        %v2849 = vld [vmem:[#allocation16 + $0x158] sm:$0xff]
        %v2850 = vld [vmem:[#allocation16 + $0x160] sm:$0xff]
        %v2851 = vld [vmem:[#allocation16 + $0x168] sm:$0xff]
        %v2852 = vld [vmem:[#allocation16 + $0x170] sm:$0xff]
        %v2853 = vld [vmem:[#allocation16 + $0x178] sm:$0xff]
        %v2854 = vld [vmem:[#allocation16 + $0x180] sm:$0xff]
        %v2855 = vld [vmem:[#allocation16 + $0x188] sm:$0xff]
        %v2856 = vld [vmem:[#allocation16 + $0x190] sm:$0xff]
        %v2857 = vld [vmem:[#allocation16 + $0x198] sm:$0xff]
        %v2858 = vld [vmem:[#allocation16 + $0x1a0] sm:$0xff]
        %v2859 = vld [vmem:[#allocation16 + $0x1a8] sm:$0xff]
        %v2860 = vld [vmem:[#allocation16 + $0x1b0] sm:$0xff]
        %v2861 = vld [vmem:[#allocation16 + $0x1b8] sm:$0xff]
        %v2862 = vld [vmem:[#allocation16 + $0x1c0] sm:$0xff]
        %v2863 = vld [vmem:[#allocation16 + $0x1c8] sm:$0xff]
        %v2864 = vld [vmem:[#allocation16 + $0x1d0] sm:$0xff]
        %v2865 = vld [vmem:[#allocation16 + $0x1d8] sm:$0xff]
        %v2866 = vld [vmem:[#allocation16 + $0x1e0] sm:$0xff]
        %v2867 = vld [vmem:[#allocation16 + $0x1e8] sm:$0xff]
        %v2868 = vld [vmem:[#allocation16 + $0x1f0] sm:$0xff]
        %v2869 = vld [vmem:[#allocation16 + $0x1f8] sm:$0xff]
        %v2870 = vld [vmem:[#allocation16 + $0x200] sm:$0xff]
        %v2871 = vld [vmem:[#allocation16 + $0x208] sm:$0xff]
        %v2872 = vld [vmem:[#allocation16 + $0x210] sm:$0xff]
        %v2873 = vld [vmem:[#allocation16 + $0x218] sm:$0xff]
        %v2874 = vld [vmem:[#allocation16 + $0x220] sm:$0xff]
        %v2875 = vld [vmem:[#allocation16 + $0x228] sm:$0xff]
        %v2876 = vld [vmem:[#allocation16 + $0x230] sm:$0xff]
        %v2877 = vld [vmem:[#allocation16 + $0x238] sm:$0xff]
        %v2878 = vld [vmem:[#allocation16 + $0x240] sm:$0xff]
        %v2879 = vld [vmem:[#allocation16 + $0x248] sm:$0xff]
        %v2880 = vld [vmem:[#allocation16 + $0x250] sm:$0xff]
        %v2881 = vld [vmem:[#allocation16 + $0x258] sm:$0xff]
        %v2882 = vld [vmem:[#allocation16 + $0x260] sm:$0xff]
        %v2883 = vld [vmem:[#allocation16 + $0x268] sm:$0xff]
        %v2884 = vld [vmem:[#allocation16 + $0x270] sm:$0xff]
        %v2885 = vld [vmem:[#allocation16 + $0x278] sm:$0xff]
        %v2886 = vld [vmem:[#allocation16 + $0x280] sm:$0xff]
        %v2887 = vld [vmem:[#allocation16 + $0x288] sm:$0xff]
        %v2888 = vld [vmem:[#allocation16 + $0x290] sm:$0xff]
        %v2889 = vld [vmem:[#allocation16 + $0x298] sm:$0xff]
        %v2890 = vld [vmem:[#allocation16 + $0x2a0] sm:$0xff]
        %v2891 = vld [vmem:[#allocation16 + $0x2a8] sm:$0xff]
        %v2892 = vld [vmem:[#allocation16 + $0x2b0] sm:$0xff]
        %v2893 = vld [vmem:[#allocation16 + $0x2b8] sm:$0xff]
        %v2894 = vld [vmem:[#allocation16 + $0x2c0] sm:$0xff]
        %v2895 = vld [vmem:[#allocation16 + $0x2c8] sm:$0xff]
        %v2896 = vld [vmem:[#allocation16 + $0x2d0] sm:$0xff]
        %v2897 = vld [vmem:[#allocation16 + $0x2d8] sm:$0xff]
        %v2898 = vld [vmem:[#allocation16 + $0x2e0] sm:$0xff]
        %v2899 = vld [vmem:[#allocation16 + $0x2e8] sm:$0xff]
        %v2900 = vld [vmem:[#allocation16 + $0x2f0] sm:$0xff]
        %v2901 = vld [vmem:[#allocation16 + $0x2f8] sm:$0xff]
        %v2902 = vld [vmem:[#allocation16 + $0x300] sm:$0xff]
        %v2903 = vld [vmem:[#allocation16 + $0x308] sm:$0xff]
        %v2904 = vld [vmem:[#allocation16 + $0x310] sm:$0xff]
        %v2905 = vld [vmem:[#allocation16 + $0x318] sm:$0xff]
        %v2906 = vld [vmem:[#allocation16 + $0x320] sm:$0xff]
        %v2907 = vld [vmem:[#allocation16 + $0x328] sm:$0xff]
        %v2908 = vld [vmem:[#allocation16 + $0x330] sm:$0xff]
        %v2909 = vld [vmem:[#allocation16 + $0x338] sm:$0xff]
        %v2910 = vld [vmem:[#allocation16 + $0x340] sm:$0xff]
        %v2911 = vld [vmem:[#allocation16 + $0x348] sm:$0xff]
        %v2912 = vld [vmem:[#allocation16 + $0x350] sm:$0xff]
        %v2913 = vld [vmem:[#allocation16 + $0x358] sm:$0xff]
        %v2914 = vld [vmem:[#allocation16 + $0x360] sm:$0xff]
        %v2915 = vld [vmem:[#allocation16 + $0x368] sm:$0xff]
        %v2916 = vld [vmem:[#allocation16 + $0x370] sm:$0xff]
        %v2917 = vld [vmem:[#allocation16 + $0x378] sm:$0xff]
        %v2918 = vld [vmem:[#allocation16 + $0x380] sm:$0xff]
        %v2919 = vld [vmem:[#allocation16 + $0x388] sm:$0xff]
        %v2920 = vld [vmem:[#allocation16 + $0x390] sm:$0xff]
        %v2921 = vld [vmem:[#allocation16 + $0x398] sm:$0xff]
        %v2922 = vld [vmem:[#allocation16 + $0x3a0] sm:$0xff]
        %v2923 = vld [vmem:[#allocation16 + $0x3a8] sm:$0xff]
        %v2924 = vld [vmem:[#allocation16 + $0x3b0] sm:$0xff]
        %v2925 = vld [vmem:[#allocation16 + $0x3b8] sm:$0xff]
        %v2926 = vld [vmem:[#allocation16 + $0x3c0] sm:$0xff]
        %v2927 = vld [vmem:[#allocation16 + $0x3c8] sm:$0xff]
        %v2928 = vld [vmem:[#allocation16 + $0x3d0] sm:$0xff]
        %v2929 = vld [vmem:[#allocation16 + $0x3d8] sm:$0xff]
        %v2930 = vld [vmem:[#allocation16 + $0x3e0] sm:$0xff]
        %v2931 = vld [vmem:[#allocation16 + $0x3e8] sm:$0xff]
        %v2932 = vld [vmem:[#allocation16 + $0x3f0] sm:$0xff]
        %v2933 = vld [vmem:[#allocation16 + $0x3f8] sm:$0xff]
        %v2934 = vld [vmem:[#allocation18] sm:$0xf]
        %v2936 = vlaneseq
        %v2937 = vshrl.u32 %v2936, 7
        %v2938 = vsub.s32 0, %v2937
        %v2939 = vrot.slane %v2934, %v2938
        %v2940 = vlaneseq
        %v2941 = vshrl.u32 %v2940, 7
        %v2942 = vsub.s32 1, %v2941
        %v2943 = vrot.slane %v2934, %v2942
        %v2944 = vlaneseq
        %v2945 = vshrl.u32 %v2944, 7
        %v2946 = vsub.s32 2, %v2945
        %v2947 = vrot.slane %v2934, %v2946
        %v2948 = vlaneseq
        %v2949 = vshrl.u32 %v2948, 7
        %v2950 = vsub.s32 3, %v2949
        %v2951 = vrot.slane %v2934, %v2950
        %2956 = vmatprep.subr.mxu0 %v2867
        %2957 = vmatpush1.msra.mxu0 %v2866
        %2958 = vmatprep.subr.mxu0 %v2863
        %2959 = vmatpush1.msra.mxu0 %v2862
        %2960 = vmatprep.subr.mxu0 %v2859
        %2961 = vmatpush1.msra.mxu0 %v2858
        %2962 = vmatprep.subr.mxu0 %v2855
        %2963 = vmatpush1.msra.mxu0 %v2854
        %2964 = vmatprep.subr.mxu0 %v2851
        %2965 = vmatpush1.msra.mxu0 %v2850
        %2966 = vmatprep.subr.mxu0 %v2847
        %2967 = vmatpush1.msra.mxu0 %v2846
        %2968 = vmatprep.subr.mxu0 %v2843
        %2969 = vmatpush1.msra.mxu0 %v2842
        %2970 = vmatprep.subr.mxu0 %v2839
        %2971 = vmatpush1.msra.mxu0 %v2838
        %2972 = vmatprep.subr.mxu0 %v2835
        %2973 = vmatpush1.msra.mxu0 %v2834
        %2974 = vmatprep.subr.mxu0 %v2831
        %2975 = vmatpush1.msra.mxu0 %v2830
        %2976 = vmatprep.subr.mxu0 %v2827
        %2977 = vmatpush1.msra.mxu0 %v2826
        %2978 = vmatprep.subr.mxu0 %v2823
        %2979 = vmatpush1.msra.mxu0 %v2822
        %2980 = vmatprep.subr.mxu0 %v2819
        %2981 = vmatpush1.msra.mxu0 %v2818
        %2982 = vmatprep.subr.mxu0 %v2815
        %2983 = vmatpush1.msra.mxu0 %v2814
        %2984 = vmatprep.subr.mxu0 %v2811
        %2985 = vmatpush1.msra.mxu0 %v2810
        %2986 = vmatprep.subr.mxu0 %v2807
        %2987 = vmatpush1.msra.mxu0 %v2806
        %2988 = vmatprep.subr.mxu0 %v2931
        %2989 = vmatpush2.msra.mxu0 %v2930
        %2990 = vmatprep.subr.mxu0 %v2927
        %2991 = vmatpush2.msra.mxu0 %v2926
        %2992 = vmatprep.subr.mxu0 %v2923
        %2993 = vmatpush2.msra.mxu0 %v2922
        %2994 = vmatprep.subr.mxu0 %v2919
        %2995 = vmatpush2.msra.mxu0 %v2918
        %2996 = vmatprep.subr.mxu0 %v2915
        %2997 = vmatpush2.msra.mxu0 %v2914
        %2998 = vmatprep.subr.mxu0 %v2911
        %2999 = vmatpush2.msra.mxu0 %v2910
        %3000 = vmatprep.subr.mxu0 %v2907
        %3001 = vmatpush2.msra.mxu0 %v2906
        %3002 = vmatprep.subr.mxu0 %v2903
        %3003 = vmatpush2.msra.mxu0 %v2902
        %3004 = vmatprep.subr.mxu0 %v2899
        %3005 = vmatpush2.msra.mxu0 %v2898
        %3006 = vmatprep.subr.mxu0 %v2895
        %3007 = vmatpush2.msra.mxu0 %v2894
        %3008 = vmatprep.subr.mxu0 %v2891
        %3009 = vmatpush2.msra.mxu0 %v2890
        %3010 = vmatprep.subr.mxu0 %v2887
        %3011 = vmatpush2.msra.mxu0 %v2886
        %3012 = vmatprep.subr.mxu0 %v2883
        %3013 = vmatpush2.msra.mxu0 %v2882
        %3014 = vmatprep.subr.mxu0 %v2879
        %3015 = vmatpush2.msra.mxu0 %v2878
        %3016 = vmatprep.subr.mxu0 %v2875
        %3017 = vmatpush2.msra.mxu0 %v2874
        %3018 = vmatprep.subr.mxu0 %v2871
        %3019 = vmatpush2.msra.mxu0 %v2870
        %3020 = vmatprep.mubr.f32.mxu0 %v2805
        %3021 = vmatmul.mubr.f32.gmra.mxu0 %v2804
        %v3022 = vpop.f32.mrf.mxu0
        %v3023 = vadd.f32 %v2939, %v3022
        %v3024 = vpop.f32.mrf.mxu0
        %v3025 = vadd.f32 %v2943, %v3024
        %3026 = vdwg.mxu0
        %3027 = vmatprep.subr.mxu0 %v2869
        %3028 = vmatpush1.msra.mxu0 %v2868
        %3029 = vmatprep.subr.mxu0 %v2865
        %3030 = vmatpush1.msra.mxu0 %v2864
        %3031 = vmatprep.subr.mxu0 %v2861
        %3032 = vmatpush1.msra.mxu0 %v2860
        %3033 = vmatprep.subr.mxu0 %v2857
        %3034 = vmatpush1.msra.mxu0 %v2856
        %3035 = vmatprep.subr.mxu0 %v2853
        %3036 = vmatpush1.msra.mxu0 %v2852
        %3037 = vmatprep.subr.mxu0 %v2849
        %3038 = vmatpush1.msra.mxu0 %v2848
        %3039 = vmatprep.subr.mxu0 %v2845
        %3040 = vmatpush1.msra.mxu0 %v2844
        %3041 = vmatprep.subr.mxu0 %v2841
        %3042 = vmatpush1.msra.mxu0 %v2840
        %3043 = vmatprep.subr.mxu0 %v2837
        %3044 = vmatpush1.msra.mxu0 %v2836
        %3045 = vmatprep.subr.mxu0 %v2833
        %3046 = vmatpush1.msra.mxu0 %v2832
        %3047 = vmatprep.subr.mxu0 %v2829
        %3048 = vmatpush1.msra.mxu0 %v2828
        %3049 = vmatprep.subr.mxu0 %v2825
        %3050 = vmatpush1.msra.mxu0 %v2824
        %3051 = vmatprep.subr.mxu0 %v2821
        %3052 = vmatpush1.msra.mxu0 %v2820
        %3053 = vmatprep.subr.mxu0 %v2817
        %3054 = vmatpush1.msra.mxu0 %v2816
        %3055 = vmatprep.subr.mxu0 %v2813
        %3056 = vmatpush1.msra.mxu0 %v2812
        %3057 = vmatprep.subr.mxu0 %v2809
        %3058 = vmatpush1.msra.mxu0 %v2808
        %3059 = vmatprep.subr.mxu0 %v2933
        %3060 = vmatpush2.msra.mxu0 %v2932
        %3061 = vmatprep.subr.mxu0 %v2929
        %3062 = vmatpush2.msra.mxu0 %v2928
        %3063 = vmatprep.subr.mxu0 %v2925
        %3064 = vmatpush2.msra.mxu0 %v2924
        %3065 = vmatprep.subr.mxu0 %v2921
        %3066 = vmatpush2.msra.mxu0 %v2920
        %3067 = vmatprep.subr.mxu0 %v2917
        %3068 = vmatpush2.msra.mxu0 %v2916
        %3069 = vmatprep.subr.mxu0 %v2913
        %3070 = vmatpush2.msra.mxu0 %v2912
        %3071 = vmatprep.subr.mxu0 %v2909
        %3072 = vmatpush2.msra.mxu0 %v2908
        %3073 = vmatprep.subr.mxu0 %v2905
        %3074 = vmatpush2.msra.mxu0 %v2904
        %3075 = vmatprep.subr.mxu0 %v2901
        %3076 = vmatpush2.msra.mxu0 %v2900
        %3077 = vmatprep.subr.mxu0 %v2897
        %3078 = vmatpush2.msra.mxu0 %v2896
        %3079 = vmatprep.subr.mxu0 %v2893
        %3080 = vmatpush2.msra.mxu0 %v2892
        %3081 = vmatprep.subr.mxu0 %v2889
        %3082 = vmatpush2.msra.mxu0 %v2888
        %3083 = vmatprep.subr.mxu0 %v2885
        %3084 = vmatpush2.msra.mxu0 %v2884
        %3085 = vmatprep.subr.mxu0 %v2881
        %3086 = vmatpush2.msra.mxu0 %v2880
        %3087 = vmatprep.subr.mxu0 %v2877
        %3088 = vmatpush2.msra.mxu0 %v2876
        %3089 = vmatprep.subr.mxu0 %v2873
        %3090 = vmatpush2.msra.mxu0 %v2872
        %3091 = vmatprep.mubr.f32.mxu0 %v2805
        %3092 = vmatmul.mubr.f32.gmra.mxu0 %v2804
        %v3093 = vpop.f32.mrf.mxu0
        %v3094 = vadd.f32 %v2947, %v3093
        %v3095 = vpop.f32.mrf.mxu0
        %v3096 = vadd.f32 %v2951, %v3095
        %3097 = vdwg.mxu0
        %v3098 = vmax.f32 %v3023, 0.0
        %v3099 = vmax.f32 %v3025, 0.0
        %v3100 = vmax.f32 %v3094, 0.0
        %v3101 = vmax.f32 %v3096, 0.0
        %v3102 = vld [vmem:[#allocation19] sm:$0xff]
        %v3103 = vld [vmem:[#allocation19 + $0x8] sm:$0xff]
        %v3104 = vld [vmem:[#allocation19 + $0x10] sm:$0xff]
        %v3105 = vld [vmem:[#allocation19 + $0x18] sm:$0xff]
        %v3106 = vld [vmem:[#allocation19 + $0x20] sm:$0xff]
        %v3107 = vld [vmem:[#allocation19 + $0x28] sm:$0xff]
        %v3108 = vld [vmem:[#allocation19 + $0x30] sm:$0xff]
        %v3109 = vld [vmem:[#allocation19 + $0x38] sm:$0xff]
        %v3110 = vld [vmem:[#allocation19 + $0x40] sm:$0xff]
        %v3111 = vld [vmem:[#allocation19 + $0x48] sm:$0xff]
        %v3112 = vld [vmem:[#allocation19 + $0x50] sm:$0xff]
        %v3113 = vld [vmem:[#allocation19 + $0x58] sm:$0xff]
        %v3114 = vld [vmem:[#allocation19 + $0x60] sm:$0xff]
        %v3115 = vld [vmem:[#allocation19 + $0x68] sm:$0xff]
        %v3116 = vld [vmem:[#allocation19 + $0x70] sm:$0xff]
        %v3117 = vld [vmem:[#allocation19 + $0x78] sm:$0xff]
        %v3118 = vld [vmem:[#allocation19 + $0x80] sm:$0xff]
        %v3119 = vld [vmem:[#allocation19 + $0x88] sm:$0xff]
        %v3120 = vld [vmem:[#allocation19 + $0x90] sm:$0xff]
        %v3121 = vld [vmem:[#allocation19 + $0x98] sm:$0xff]
        %v3122 = vld [vmem:[#allocation19 + $0xa0] sm:$0xff]
        %v3123 = vld [vmem:[#allocation19 + $0xa8] sm:$0xff]
        %v3124 = vld [vmem:[#allocation19 + $0xb0] sm:$0xff]
        %v3125 = vld [vmem:[#allocation19 + $0xb8] sm:$0xff]
        %v3126 = vld [vmem:[#allocation19 + $0xc0] sm:$0xff]
        %v3127 = vld [vmem:[#allocation19 + $0xc8] sm:$0xff]
        %v3128 = vld [vmem:[#allocation19 + $0xd0] sm:$0xff]
        %v3129 = vld [vmem:[#allocation19 + $0xd8] sm:$0xff]
        %v3130 = vld [vmem:[#allocation19 + $0xe0] sm:$0xff]
        %v3131 = vld [vmem:[#allocation19 + $0xe8] sm:$0xff]
        %v3132 = vld [vmem:[#allocation19 + $0xf0] sm:$0xff]
        %v3133 = vld [vmem:[#allocation19 + $0xf8] sm:$0xff]
        %v3134 = vld [vmem:[#allocation21] sm:$0x3]
        %v3136 = vlaneseq
        %v3137 = vshrl.u32 %v3136, 7
        %v3138 = vsub.s32 0, %v3137
        %v3139 = vrot.slane %v3134, %v3138
        %v3140 = vlaneseq
        %v3141 = vshrl.u32 %v3140, 7
        %v3142 = vsub.s32 1, %v3141
        %v3143 = vrot.slane %v3134, %v3142
        %3146 = vmatprep.subr.mxu0 %v3133
        %3147 = vmatpush1.msra.mxu0 %v3132
        %3148 = vmatprep.subr.mxu0 %v3131
        %3149 = vmatpush1.msra.mxu0 %v3130
        %3150 = vmatprep.subr.mxu0 %v3129
        %3151 = vmatpush1.msra.mxu0 %v3128
        %3152 = vmatprep.subr.mxu0 %v3127
        %3153 = vmatpush1.msra.mxu0 %v3126
        %3154 = vmatprep.subr.mxu0 %v3125
        %3155 = vmatpush1.msra.mxu0 %v3124
        %3156 = vmatprep.subr.mxu0 %v3123
        %3157 = vmatpush1.msra.mxu0 %v3122
        %3158 = vmatprep.subr.mxu0 %v3121
        %3159 = vmatpush1.msra.mxu0 %v3120
        %3160 = vmatprep.subr.mxu0 %v3119
        %3161 = vmatpush1.msra.mxu0 %v3118
        %3162 = vmatprep.subr.mxu0 %v3117
        %3163 = vmatpush1.msra.mxu0 %v3116
        %3164 = vmatprep.subr.mxu0 %v3115
        %3165 = vmatpush1.msra.mxu0 %v3114
        %3166 = vmatprep.subr.mxu0 %v3113
        %3167 = vmatpush1.msra.mxu0 %v3112
        %3168 = vmatprep.subr.mxu0 %v3111
        %3169 = vmatpush1.msra.mxu0 %v3110
        %3170 = vmatprep.subr.mxu0 %v3109
        %3171 = vmatpush1.msra.mxu0 %v3108
        %3172 = vmatprep.subr.mxu0 %v3107
        %3173 = vmatpush1.msra.mxu0 %v3106
        %3174 = vmatprep.subr.mxu0 %v3105
        %3175 = vmatpush1.msra.mxu0 %v3104
        %3176 = vmatprep.subr.mxu0 %v3103
        %3177 = vmatpush1.msra.mxu0 %v3102
        %3178 = vmatprep.subr.mxu0 0.0
        %3179 = vmatpush2.msra.mxu0 0.0
        %3180 = vmatprep.subr.mxu0 0.0
        %3181 = vmatpush2.msra.mxu0 0.0
        %3182 = vmatprep.subr.mxu0 0.0
        %3183 = vmatpush2.msra.mxu0 0.0
        %3184 = vmatprep.subr.mxu0 0.0
        %3185 = vmatpush2.msra.mxu0 0.0
        %3186 = vmatprep.subr.mxu0 0.0
        %3187 = vmatpush2.msra.mxu0 0.0
        %3188 = vmatprep.subr.mxu0 0.0
        %3189 = vmatpush2.msra.mxu0 0.0
        %3190 = vmatprep.subr.mxu0 0.0
        %3191 = vmatpush2.msra.mxu0 0.0
        %3192 = vmatprep.subr.mxu0 0.0
        %3193 = vmatpush2.msra.mxu0 0.0
        %3194 = vmatprep.subr.mxu0 0.0
        %3195 = vmatpush2.msra.mxu0 0.0
        %3196 = vmatprep.subr.mxu0 0.0
        %3197 = vmatpush2.msra.mxu0 0.0
        %3198 = vmatprep.subr.mxu0 0.0
        %3199 = vmatpush2.msra.mxu0 0.0
        %3200 = vmatprep.subr.mxu0 0.0
        %3201 = vmatpush2.msra.mxu0 0.0
        %3202 = vmatprep.subr.mxu0 0.0
        %3203 = vmatpush2.msra.mxu0 0.0
        %3204 = vmatprep.subr.mxu0 0.0
        %3205 = vmatpush2.msra.mxu0 0.0
        %3206 = vmatprep.subr.mxu0 0.0
        %3207 = vmatpush2.msra.mxu0 0.0
        %3208 = vmatprep.subr.mxu0 0.0
        %3209 = vmatpush2.msra.mxu0 0.0
        %3210 = vmatprep.mubr.f32.mxu0 0.0
        %3211 = vmatmul.mubr.f32.gmra.mxu0 %v3098
        %v3212 = vpop.f32.mrf.mxu0
        %v3213 = vadd.f32 %v3139, %v3212
        %v3214 = vpop.f32.mrf.mxu0
        %v3215 = vadd.f32 %v3143, %v3214
        %3216 = vdwg.mxu0
        %v3217 = vmax.f32 %v3213, 0.0
        %v3218 = vmax.f32 %v3215, 0.0
        %v3219 = vld [vmem:[#allocation22] sm:$0xff]
        %v3220 = vld [vmem:[#allocation22 + $0x8] sm:$0xff]
        %v3221 = vld [vmem:[#allocation22 + $0x10] sm:$0xff]
        %v3222 = vld [vmem:[#allocation22 + $0x18] sm:$0xff]
        %v3223 = vld [vmem:[#allocation22 + $0x20] sm:$0xff]
        %v3224 = vld [vmem:[#allocation22 + $0x28] sm:$0xff]
        %v3225 = vld [vmem:[#allocation22 + $0x30] sm:$0xff]
        %v3226 = vld [vmem:[#allocation22 + $0x38] sm:$0xff]
        %v3227 = vld [vmem:[#allocation22 + $0x40] sm:$0xff]
        %v3228 = vld [vmem:[#allocation22 + $0x48] sm:$0xff]
        %v3229 = vld [vmem:[#allocation22 + $0x50] sm:$0xff]
        %v3230 = vld [vmem:[#allocation22 + $0x58] sm:$0xff]
        %v3231 = vld [vmem:[#allocation22 + $0x60] sm:$0xff]
        %v3232 = vld [vmem:[#allocation22 + $0x68] sm:$0xff]
        %v3233 = vld [vmem:[#allocation22 + $0x70] sm:$0xff]
        %v3234 = vld [vmem:[#allocation22 + $0x78] sm:$0xff]
        %v3235 = vld [vmem:[#allocation22 + $0x80] sm:$0xff]
        %v3236 = vld [vmem:[#allocation22 + $0x88] sm:$0xff]
        %v3237 = vld [vmem:[#allocation22 + $0x90] sm:$0xff]
        %v3238 = vld [vmem:[#allocation22 + $0x98] sm:$0xff]
        %v3239 = vld [vmem:[#allocation22 + $0xa0] sm:$0xff]
        %v3240 = vld [vmem:[#allocation22 + $0xa8] sm:$0xff]
        %v3241 = vld [vmem:[#allocation22 + $0xb0] sm:$0xff]
        %v3242 = vld [vmem:[#allocation22 + $0xb8] sm:$0xff]
        %v3243 = vld [vmem:[#allocation22 + $0xc0] sm:$0xff]
        %v3244 = vld [vmem:[#allocation22 + $0xc8] sm:$0xff]
        %v3245 = vld [vmem:[#allocation22 + $0xd0] sm:$0xff]
        %v3246 = vld [vmem:[#allocation22 + $0xd8] sm:$0xff]
        %v3247 = vld [vmem:[#allocation22 + $0xe0] sm:$0xff]
        %v3248 = vld [vmem:[#allocation22 + $0xe8] sm:$0xff]
        %v3249 = vld [vmem:[#allocation22 + $0xf0] sm:$0xff]
        %v3250 = vld [vmem:[#allocation22 + $0xf8] sm:$0xff]
        %v3251 = vld [vmem:[#allocation22 + $0x100] sm:$0xff]
        %v3252 = vld [vmem:[#allocation22 + $0x108] sm:$0xff]
        %v3253 = vld [vmem:[#allocation22 + $0x110] sm:$0xff]
        %v3254 = vld [vmem:[#allocation22 + $0x118] sm:$0xff]
        %v3255 = vld [vmem:[#allocation22 + $0x120] sm:$0xff]
        %v3256 = vld [vmem:[#allocation22 + $0x128] sm:$0xff]
        %v3257 = vld [vmem:[#allocation22 + $0x130] sm:$0xff]
        %v3258 = vld [vmem:[#allocation22 + $0x138] sm:$0xff]
        %v3259 = vld [vmem:[#allocation22 + $0x140] sm:$0xff]
        %v3260 = vld [vmem:[#allocation22 + $0x148] sm:$0xff]
        %v3261 = vld [vmem:[#allocation22 + $0x150] sm:$0xff]
        %v3262 = vld [vmem:[#allocation22 + $0x158] sm:$0xff]
        %v3263 = vld [vmem:[#allocation22 + $0x160] sm:$0xff]
        %v3264 = vld [vmem:[#allocation22 + $0x168] sm:$0xff]
        %v3265 = vld [vmem:[#allocation22 + $0x170] sm:$0xff]
        %v3266 = vld [vmem:[#allocation22 + $0x178] sm:$0xff]
        %v3267 = vld [vmem:[#allocation22 + $0x180] sm:$0xff]
        %v3268 = vld [vmem:[#allocation22 + $0x188] sm:$0xff]
        %v3269 = vld [vmem:[#allocation22 + $0x190] sm:$0xff]
        %v3270 = vld [vmem:[#allocation22 + $0x198] sm:$0xff]
        %v3271 = vld [vmem:[#allocation22 + $0x1a0] sm:$0xff]
        %v3272 = vld [vmem:[#allocation22 + $0x1a8] sm:$0xff]
        %v3273 = vld [vmem:[#allocation22 + $0x1b0] sm:$0xff]
        %v3274 = vld [vmem:[#allocation22 + $0x1b8] sm:$0xff]
        %v3275 = vld [vmem:[#allocation22 + $0x1c0] sm:$0xff]
        %v3276 = vld [vmem:[#allocation22 + $0x1c8] sm:$0xff]
        %v3277 = vld [vmem:[#allocation22 + $0x1d0] sm:$0xff]
        %v3278 = vld [vmem:[#allocation22 + $0x1d8] sm:$0xff]
        %v3279 = vld [vmem:[#allocation22 + $0x1e0] sm:$0xff]
        %v3280 = vld [vmem:[#allocation22 + $0x1e8] sm:$0xff]
        %v3281 = vld [vmem:[#allocation22 + $0x1f0] sm:$0xff]
        %v3282 = vld [vmem:[#allocation22 + $0x1f8] sm:$0xff]
        %v3283 = vld [vmem:[#allocation24] sm:$0x3]
        %v3285 = vlaneseq
        %v3286 = vshrl.u32 %v3285, 7
        %v3287 = vsub.s32 0, %v3286
        %v3288 = vrot.slane %v3283, %v3287
        %v3289 = vlaneseq
        %v3290 = vshrl.u32 %v3289, 7
        %v3291 = vsub.s32 1, %v3290
        %v3292 = vrot.slane %v3283, %v3291
        %3295 = vmatprep.subr.mxu0 %v3250
        %3296 = vmatpush1.msra.mxu0 %v3249
        %3297 = vmatprep.subr.mxu0 %v3248
        %3298 = vmatpush1.msra.mxu0 %v3247
        %3299 = vmatprep.subr.mxu0 %v3246
        %3300 = vmatpush1.msra.mxu0 %v3245
        %3301 = vmatprep.subr.mxu0 %v3244
        %3302 = vmatpush1.msra.mxu0 %v3243
        %3303 = vmatprep.subr.mxu0 %v3242
        %3304 = vmatpush1.msra.mxu0 %v3241
        %3305 = vmatprep.subr.mxu0 %v3240
        %3306 = vmatpush1.msra.mxu0 %v3239
        %3307 = vmatprep.subr.mxu0 %v3238
        %3308 = vmatpush1.msra.mxu0 %v3237
        %3309 = vmatprep.subr.mxu0 %v3236
        %3310 = vmatpush1.msra.mxu0 %v3235
        %3311 = vmatprep.subr.mxu0 %v3234
        %3312 = vmatpush1.msra.mxu0 %v3233
        %3313 = vmatprep.subr.mxu0 %v3232
        %3314 = vmatpush1.msra.mxu0 %v3231
        %3315 = vmatprep.subr.mxu0 %v3230
        %3316 = vmatpush1.msra.mxu0 %v3229
        %3317 = vmatprep.subr.mxu0 %v3228
        %3318 = vmatpush1.msra.mxu0 %v3227
        %3319 = vmatprep.subr.mxu0 %v3226
        %3320 = vmatpush1.msra.mxu0 %v3225
        %3321 = vmatprep.subr.mxu0 %v3224
        %3322 = vmatpush1.msra.mxu0 %v3223
        %3323 = vmatprep.subr.mxu0 %v3222
        %3324 = vmatpush1.msra.mxu0 %v3221
        %3325 = vmatprep.subr.mxu0 %v3220
        %3326 = vmatpush1.msra.mxu0 %v3219
        %3327 = vmatprep.subr.mxu0 %v3282
        %3328 = vmatpush2.msra.mxu0 %v3281
        %3329 = vmatprep.subr.mxu0 %v3280
        %3330 = vmatpush2.msra.mxu0 %v3279
        %3331 = vmatprep.subr.mxu0 %v3278
        %3332 = vmatpush2.msra.mxu0 %v3277
        %3333 = vmatprep.subr.mxu0 %v3276
        %3334 = vmatpush2.msra.mxu0 %v3275
        %3335 = vmatprep.subr.mxu0 %v3274
        %3336 = vmatpush2.msra.mxu0 %v3273
        %3337 = vmatprep.subr.mxu0 %v3272
        %3338 = vmatpush2.msra.mxu0 %v3271
        %3339 = vmatprep.subr.mxu0 %v3270
        %3340 = vmatpush2.msra.mxu0 %v3269
        %3341 = vmatprep.subr.mxu0 %v3268
        %3342 = vmatpush2.msra.mxu0 %v3267
        %3343 = vmatprep.subr.mxu0 %v3266
        %3344 = vmatpush2.msra.mxu0 %v3265
        %3345 = vmatprep.subr.mxu0 %v3264
        %3346 = vmatpush2.msra.mxu0 %v3263
        %3347 = vmatprep.subr.mxu0 %v3262
        %3348 = vmatpush2.msra.mxu0 %v3261
        %3349 = vmatprep.subr.mxu0 %v3260
        %3350 = vmatpush2.msra.mxu0 %v3259
        %3351 = vmatprep.subr.mxu0 %v3258
        %3352 = vmatpush2.msra.mxu0 %v3257
        %3353 = vmatprep.subr.mxu0 %v3256
        %3354 = vmatpush2.msra.mxu0 %v3255
        %3355 = vmatprep.subr.mxu0 %v3254
        %3356 = vmatpush2.msra.mxu0 %v3253
        %3357 = vmatprep.subr.mxu0 %v3252
        %3358 = vmatpush2.msra.mxu0 %v3251
        %3359 = vmatprep.mubr.f32.mxu0 %v3218
        %3360 = vmatmul.mubr.f32.gmra.mxu0 %v3217
        %v3361 = vpop.f32.mrf.mxu0
        %v3362 = vadd.f32 %v3288, %v3361
        %v3363 = vpop.f32.mrf.mxu0
        %v3364 = vadd.f32 %v3292, %v3363
        %3365 = vdwg.mxu0
        %v3366 = vmax.f32 %v3362, 0.0
        %v3367 = vmax.f32 %v3364, 0.0
        %3368 = vst [vmem:[%s700 + $0x40] sm:$0xff] %v3366
        %3369 = vst [vmem:[%s700 + $0x48] sm:$0xff] %v3367
        %v3370 = vld [vmem:[#allocation19] sm:$0xff]
        %v3371 = vld [vmem:[#allocation19 + $0x8] sm:$0xff]
        %v3372 = vld [vmem:[#allocation19 + $0x10] sm:$0xff]
        %v3373 = vld [vmem:[#allocation19 + $0x18] sm:$0xff]
        %v3374 = vld [vmem:[#allocation19 + $0x20] sm:$0xff]
        %v3375 = vld [vmem:[#allocation19 + $0x28] sm:$0xff]
        %v3376 = vld [vmem:[#allocation19 + $0x30] sm:$0xff]
        %v3377 = vld [vmem:[#allocation19 + $0x38] sm:$0xff]
        %v3378 = vld [vmem:[#allocation19 + $0x40] sm:$0xff]
        %v3379 = vld [vmem:[#allocation19 + $0x48] sm:$0xff]
        %v3380 = vld [vmem:[#allocation19 + $0x50] sm:$0xff]
        %v3381 = vld [vmem:[#allocation19 + $0x58] sm:$0xff]
        %v3382 = vld [vmem:[#allocation19 + $0x60] sm:$0xff]
        %v3383 = vld [vmem:[#allocation19 + $0x68] sm:$0xff]
        %v3384 = vld [vmem:[#allocation19 + $0x70] sm:$0xff]
        %v3385 = vld [vmem:[#allocation19 + $0x78] sm:$0xff]
        %v3386 = vld [vmem:[#allocation19 + $0x80] sm:$0xff]
        %v3387 = vld [vmem:[#allocation19 + $0x88] sm:$0xff]
        %v3388 = vld [vmem:[#allocation19 + $0x90] sm:$0xff]
        %v3389 = vld [vmem:[#allocation19 + $0x98] sm:$0xff]
        %v3390 = vld [vmem:[#allocation19 + $0xa0] sm:$0xff]
        %v3391 = vld [vmem:[#allocation19 + $0xa8] sm:$0xff]
        %v3392 = vld [vmem:[#allocation19 + $0xb0] sm:$0xff]
        %v3393 = vld [vmem:[#allocation19 + $0xb8] sm:$0xff]
        %v3394 = vld [vmem:[#allocation19 + $0xc0] sm:$0xff]
        %v3395 = vld [vmem:[#allocation19 + $0xc8] sm:$0xff]
        %v3396 = vld [vmem:[#allocation19 + $0xd0] sm:$0xff]
        %v3397 = vld [vmem:[#allocation19 + $0xd8] sm:$0xff]
        %v3398 = vld [vmem:[#allocation19 + $0xe0] sm:$0xff]
        %v3399 = vld [vmem:[#allocation19 + $0xe8] sm:$0xff]
        %v3400 = vld [vmem:[#allocation19 + $0xf0] sm:$0xff]
        %v3401 = vld [vmem:[#allocation19 + $0xf8] sm:$0xff]
        %v3402 = vld [vmem:[#allocation21] sm:$0x3]
        %v3404 = vlaneseq
        %v3405 = vshrl.u32 %v3404, 7
        %v3406 = vsub.s32 0, %v3405
        %v3407 = vrot.slane %v3402, %v3406
        %v3408 = vlaneseq
        %v3409 = vshrl.u32 %v3408, 7
        %v3410 = vsub.s32 1, %v3409
        %v3411 = vrot.slane %v3402, %v3410
        %3414 = vmatprep.subr.mxu0 %v3401
        %3415 = vmatpush1.msra.mxu0 %v3400
        %3416 = vmatprep.subr.mxu0 %v3399
        %3417 = vmatpush1.msra.mxu0 %v3398
        %3418 = vmatprep.subr.mxu0 %v3397
        %3419 = vmatpush1.msra.mxu0 %v3396
        %3420 = vmatprep.subr.mxu0 %v3395
        %3421 = vmatpush1.msra.mxu0 %v3394
        %3422 = vmatprep.subr.mxu0 %v3393
        %3423 = vmatpush1.msra.mxu0 %v3392
        %3424 = vmatprep.subr.mxu0 %v3391
        %3425 = vmatpush1.msra.mxu0 %v3390
        %3426 = vmatprep.subr.mxu0 %v3389
        %3427 = vmatpush1.msra.mxu0 %v3388
        %3428 = vmatprep.subr.mxu0 %v3387
        %3429 = vmatpush1.msra.mxu0 %v3386
        %3430 = vmatprep.subr.mxu0 %v3385
        %3431 = vmatpush1.msra.mxu0 %v3384
        %3432 = vmatprep.subr.mxu0 %v3383
        %3433 = vmatpush1.msra.mxu0 %v3382
        %3434 = vmatprep.subr.mxu0 %v3381
        %3435 = vmatpush1.msra.mxu0 %v3380
        %3436 = vmatprep.subr.mxu0 %v3379
        %3437 = vmatpush1.msra.mxu0 %v3378
        %3438 = vmatprep.subr.mxu0 %v3377
        %3439 = vmatpush1.msra.mxu0 %v3376
        %3440 = vmatprep.subr.mxu0 %v3375
        %3441 = vmatpush1.msra.mxu0 %v3374
        %3442 = vmatprep.subr.mxu0 %v3373
        %3443 = vmatpush1.msra.mxu0 %v3372
        %3444 = vmatprep.subr.mxu0 %v3371
        %3445 = vmatpush1.msra.mxu0 %v3370
        %3446 = vmatprep.subr.mxu0 0.0
        %3447 = vmatpush2.msra.mxu0 0.0
        %3448 = vmatprep.subr.mxu0 0.0
        %3449 = vmatpush2.msra.mxu0 0.0
        %3450 = vmatprep.subr.mxu0 0.0
        %3451 = vmatpush2.msra.mxu0 0.0
        %3452 = vmatprep.subr.mxu0 0.0
        %3453 = vmatpush2.msra.mxu0 0.0
        %3454 = vmatprep.subr.mxu0 0.0
        %3455 = vmatpush2.msra.mxu0 0.0
        %3456 = vmatprep.subr.mxu0 0.0
        %3457 = vmatpush2.msra.mxu0 0.0
        %3458 = vmatprep.subr.mxu0 0.0
        %3459 = vmatpush2.msra.mxu0 0.0
        %3460 = vmatprep.subr.mxu0 0.0
        %3461 = vmatpush2.msra.mxu0 0.0
        %3462 = vmatprep.subr.mxu0 0.0
        %3463 = vmatpush2.msra.mxu0 0.0
        %3464 = vmatprep.subr.mxu0 0.0
        %3465 = vmatpush2.msra.mxu0 0.0
        %3466 = vmatprep.subr.mxu0 0.0
        %3467 = vmatpush2.msra.mxu0 0.0
        %3468 = vmatprep.subr.mxu0 0.0
        %3469 = vmatpush2.msra.mxu0 0.0
        %3470 = vmatprep.subr.mxu0 0.0
        %3471 = vmatpush2.msra.mxu0 0.0
        %3472 = vmatprep.subr.mxu0 0.0
        %3473 = vmatpush2.msra.mxu0 0.0
        %3474 = vmatprep.subr.mxu0 0.0
        %3475 = vmatpush2.msra.mxu0 0.0
        %3476 = vmatprep.subr.mxu0 0.0
        %3477 = vmatpush2.msra.mxu0 0.0
        %3478 = vmatprep.mubr.f32.mxu0 0.0
        %3479 = vmatmul.mubr.f32.gmra.mxu0 %v3099
        %v3480 = vpop.f32.mrf.mxu0
        %v3481 = vadd.f32 %v3407, %v3480
        %v3482 = vpop.f32.mrf.mxu0
        %v3483 = vadd.f32 %v3411, %v3482
        %3484 = vdwg.mxu0
        %v3485 = vmax.f32 %v3481, 0.0
        %v3486 = vmax.f32 %v3483, 0.0
        %v3487 = vld [vmem:[#allocation22] sm:$0xff]
        %v3488 = vld [vmem:[#allocation22 + $0x8] sm:$0xff]
        %v3489 = vld [vmem:[#allocation22 + $0x10] sm:$0xff]
        %v3490 = vld [vmem:[#allocation22 + $0x18] sm:$0xff]
        %v3491 = vld [vmem:[#allocation22 + $0x20] sm:$0xff]
        %v3492 = vld [vmem:[#allocation22 + $0x28] sm:$0xff]
        %v3493 = vld [vmem:[#allocation22 + $0x30] sm:$0xff]
        %v3494 = vld [vmem:[#allocation22 + $0x38] sm:$0xff]
        %v3495 = vld [vmem:[#allocation22 + $0x40] sm:$0xff]
        %v3496 = vld [vmem:[#allocation22 + $0x48] sm:$0xff]
        %v3497 = vld [vmem:[#allocation22 + $0x50] sm:$0xff]
        %v3498 = vld [vmem:[#allocation22 + $0x58] sm:$0xff]
        %v3499 = vld [vmem:[#allocation22 + $0x60] sm:$0xff]
        %v3500 = vld [vmem:[#allocation22 + $0x68] sm:$0xff]
        %v3501 = vld [vmem:[#allocation22 + $0x70] sm:$0xff]
        %v3502 = vld [vmem:[#allocation22 + $0x78] sm:$0xff]
        %v3503 = vld [vmem:[#allocation22 + $0x80] sm:$0xff]
        %v3504 = vld [vmem:[#allocation22 + $0x88] sm:$0xff]
        %v3505 = vld [vmem:[#allocation22 + $0x90] sm:$0xff]
        %v3506 = vld [vmem:[#allocation22 + $0x98] sm:$0xff]
        %v3507 = vld [vmem:[#allocation22 + $0xa0] sm:$0xff]
        %v3508 = vld [vmem:[#allocation22 + $0xa8] sm:$0xff]
        %v3509 = vld [vmem:[#allocation22 + $0xb0] sm:$0xff]
        %v3510 = vld [vmem:[#allocation22 + $0xb8] sm:$0xff]
        %v3511 = vld [vmem:[#allocation22 + $0xc0] sm:$0xff]
        %v3512 = vld [vmem:[#allocation22 + $0xc8] sm:$0xff]
        %v3513 = vld [vmem:[#allocation22 + $0xd0] sm:$0xff]
        %v3514 = vld [vmem:[#allocation22 + $0xd8] sm:$0xff]
        %v3515 = vld [vmem:[#allocation22 + $0xe0] sm:$0xff]
        %v3516 = vld [vmem:[#allocation22 + $0xe8] sm:$0xff]
        %v3517 = vld [vmem:[#allocation22 + $0xf0] sm:$0xff]
        %v3518 = vld [vmem:[#allocation22 + $0xf8] sm:$0xff]
        %v3519 = vld [vmem:[#allocation22 + $0x100] sm:$0xff]
        %v3520 = vld [vmem:[#allocation22 + $0x108] sm:$0xff]
        %v3521 = vld [vmem:[#allocation22 + $0x110] sm:$0xff]
        %v3522 = vld [vmem:[#allocation22 + $0x118] sm:$0xff]
        %v3523 = vld [vmem:[#allocation22 + $0x120] sm:$0xff]
        %v3524 = vld [vmem:[#allocation22 + $0x128] sm:$0xff]
        %v3525 = vld [vmem:[#allocation22 + $0x130] sm:$0xff]
        %v3526 = vld [vmem:[#allocation22 + $0x138] sm:$0xff]
        %v3527 = vld [vmem:[#allocation22 + $0x140] sm:$0xff]
        %v3528 = vld [vmem:[#allocation22 + $0x148] sm:$0xff]
        %v3529 = vld [vmem:[#allocation22 + $0x150] sm:$0xff]
        %v3530 = vld [vmem:[#allocation22 + $0x158] sm:$0xff]
        %v3531 = vld [vmem:[#allocation22 + $0x160] sm:$0xff]
        %v3532 = vld [vmem:[#allocation22 + $0x168] sm:$0xff]
        %v3533 = vld [vmem:[#allocation22 + $0x170] sm:$0xff]
        %v3534 = vld [vmem:[#allocation22 + $0x178] sm:$0xff]
        %v3535 = vld [vmem:[#allocation22 + $0x180] sm:$0xff]
        %v3536 = vld [vmem:[#allocation22 + $0x188] sm:$0xff]
        %v3537 = vld [vmem:[#allocation22 + $0x190] sm:$0xff]
        %v3538 = vld [vmem:[#allocation22 + $0x198] sm:$0xff]
        %v3539 = vld [vmem:[#allocation22 + $0x1a0] sm:$0xff]
        %v3540 = vld [vmem:[#allocation22 + $0x1a8] sm:$0xff]
        %v3541 = vld [vmem:[#allocation22 + $0x1b0] sm:$0xff]
        %v3542 = vld [vmem:[#allocation22 + $0x1b8] sm:$0xff]
        %v3543 = vld [vmem:[#allocation22 + $0x1c0] sm:$0xff]
        %v3544 = vld [vmem:[#allocation22 + $0x1c8] sm:$0xff]
        %v3545 = vld [vmem:[#allocation22 + $0x1d0] sm:$0xff]
        %v3546 = vld [vmem:[#allocation22 + $0x1d8] sm:$0xff]
        %v3547 = vld [vmem:[#allocation22 + $0x1e0] sm:$0xff]
        %v3548 = vld [vmem:[#allocation22 + $0x1e8] sm:$0xff]
        %v3549 = vld [vmem:[#allocation22 + $0x1f0] sm:$0xff]
        %v3550 = vld [vmem:[#allocation22 + $0x1f8] sm:$0xff]
        %v3551 = vld [vmem:[#allocation24] sm:$0x3]
        %v3553 = vlaneseq
        %v3554 = vshrl.u32 %v3553, 7
        %v3555 = vsub.s32 0, %v3554
        %v3556 = vrot.slane %v3551, %v3555
        %v3557 = vlaneseq
        %v3558 = vshrl.u32 %v3557, 7
        %v3559 = vsub.s32 1, %v3558
        %v3560 = vrot.slane %v3551, %v3559
        %3563 = vmatprep.subr.mxu0 %v3518
        %3564 = vmatpush1.msra.mxu0 %v3517
        %3565 = vmatprep.subr.mxu0 %v3516
        %3566 = vmatpush1.msra.mxu0 %v3515
        %3567 = vmatprep.subr.mxu0 %v3514
        %3568 = vmatpush1.msra.mxu0 %v3513
        %3569 = vmatprep.subr.mxu0 %v3512
        %3570 = vmatpush1.msra.mxu0 %v3511
        %3571 = vmatprep.subr.mxu0 %v3510
        %3572 = vmatpush1.msra.mxu0 %v3509
        %3573 = vmatprep.subr.mxu0 %v3508
        %3574 = vmatpush1.msra.mxu0 %v3507
        %3575 = vmatprep.subr.mxu0 %v3506
        %3576 = vmatpush1.msra.mxu0 %v3505
        %3577 = vmatprep.subr.mxu0 %v3504
        %3578 = vmatpush1.msra.mxu0 %v3503
        %3579 = vmatprep.subr.mxu0 %v3502
        %3580 = vmatpush1.msra.mxu0 %v3501
        %3581 = vmatprep.subr.mxu0 %v3500
        %3582 = vmatpush1.msra.mxu0 %v3499
        %3583 = vmatprep.subr.mxu0 %v3498
        %3584 = vmatpush1.msra.mxu0 %v3497
        %3585 = vmatprep.subr.mxu0 %v3496
        %3586 = vmatpush1.msra.mxu0 %v3495
        %3587 = vmatprep.subr.mxu0 %v3494
        %3588 = vmatpush1.msra.mxu0 %v3493
        %3589 = vmatprep.subr.mxu0 %v3492
        %3590 = vmatpush1.msra.mxu0 %v3491
        %3591 = vmatprep.subr.mxu0 %v3490
        %3592 = vmatpush1.msra.mxu0 %v3489
        %3593 = vmatprep.subr.mxu0 %v3488
        %3594 = vmatpush1.msra.mxu0 %v3487
        %3595 = vmatprep.subr.mxu0 %v3550
        %3596 = vmatpush2.msra.mxu0 %v3549
        %3597 = vmatprep.subr.mxu0 %v3548
        %3598 = vmatpush2.msra.mxu0 %v3547
        %3599 = vmatprep.subr.mxu0 %v3546
        %3600 = vmatpush2.msra.mxu0 %v3545
        %3601 = vmatprep.subr.mxu0 %v3544
        %3602 = vmatpush2.msra.mxu0 %v3543
        %3603 = vmatprep.subr.mxu0 %v3542
        %3604 = vmatpush2.msra.mxu0 %v3541
        %3605 = vmatprep.subr.mxu0 %v3540
        %3606 = vmatpush2.msra.mxu0 %v3539
        %3607 = vmatprep.subr.mxu0 %v3538
        %3608 = vmatpush2.msra.mxu0 %v3537
        %3609 = vmatprep.subr.mxu0 %v3536
        %3610 = vmatpush2.msra.mxu0 %v3535
        %3611 = vmatprep.subr.mxu0 %v3534
        %3612 = vmatpush2.msra.mxu0 %v3533
        %3613 = vmatprep.subr.mxu0 %v3532
        %3614 = vmatpush2.msra.mxu0 %v3531
        %3615 = vmatprep.subr.mxu0 %v3530
        %3616 = vmatpush2.msra.mxu0 %v3529
        %3617 = vmatprep.subr.mxu0 %v3528
        %3618 = vmatpush2.msra.mxu0 %v3527
        %3619 = vmatprep.subr.mxu0 %v3526
        %3620 = vmatpush2.msra.mxu0 %v3525
        %3621 = vmatprep.subr.mxu0 %v3524
        %3622 = vmatpush2.msra.mxu0 %v3523
        %3623 = vmatprep.subr.mxu0 %v3522
        %3624 = vmatpush2.msra.mxu0 %v3521
        %3625 = vmatprep.subr.mxu0 %v3520
        %3626 = vmatpush2.msra.mxu0 %v3519
        %3627 = vmatprep.mubr.f32.mxu0 %v3486
        %3628 = vmatmul.mubr.f32.gmra.mxu0 %v3485
        %v3629 = vpop.f32.mrf.mxu0
        %v3630 = vadd.f32 %v3556, %v3629
        %v3631 = vpop.f32.mrf.mxu0
        %v3632 = vadd.f32 %v3560, %v3631
        %3633 = vdwg.mxu0
        %v3634 = vmax.f32 %v3630, 0.0
        %v3635 = vmax.f32 %v3632, 0.0
        %3636 = vst [vmem:[%s700 + $0x50] sm:$0xff] %v3634
        %3637 = vst [vmem:[%s700 + $0x58] sm:$0xff] %v3635
        %v3638 = vld [vmem:[#allocation19] sm:$0xff]
        %v3639 = vld [vmem:[#allocation19 + $0x8] sm:$0xff]
        %v3640 = vld [vmem:[#allocation19 + $0x10] sm:$0xff]
        %v3641 = vld [vmem:[#allocation19 + $0x18] sm:$0xff]
        %v3642 = vld [vmem:[#allocation19 + $0x20] sm:$0xff]
        %v3643 = vld [vmem:[#allocation19 + $0x28] sm:$0xff]
        %v3644 = vld [vmem:[#allocation19 + $0x30] sm:$0xff]
        %v3645 = vld [vmem:[#allocation19 + $0x38] sm:$0xff]
        %v3646 = vld [vmem:[#allocation19 + $0x40] sm:$0xff]
        %v3647 = vld [vmem:[#allocation19 + $0x48] sm:$0xff]
        %v3648 = vld [vmem:[#allocation19 + $0x50] sm:$0xff]
        %v3649 = vld [vmem:[#allocation19 + $0x58] sm:$0xff]
        %v3650 = vld [vmem:[#allocation19 + $0x60] sm:$0xff]
        %v3651 = vld [vmem:[#allocation19 + $0x68] sm:$0xff]
        %v3652 = vld [vmem:[#allocation19 + $0x70] sm:$0xff]
        %v3653 = vld [vmem:[#allocation19 + $0x78] sm:$0xff]
        %v3654 = vld [vmem:[#allocation19 + $0x80] sm:$0xff]
        %v3655 = vld [vmem:[#allocation19 + $0x88] sm:$0xff]
        %v3656 = vld [vmem:[#allocation19 + $0x90] sm:$0xff]
        %v3657 = vld [vmem:[#allocation19 + $0x98] sm:$0xff]
        %v3658 = vld [vmem:[#allocation19 + $0xa0] sm:$0xff]
        %v3659 = vld [vmem:[#allocation19 + $0xa8] sm:$0xff]
        %v3660 = vld [vmem:[#allocation19 + $0xb0] sm:$0xff]
        %v3661 = vld [vmem:[#allocation19 + $0xb8] sm:$0xff]
        %v3662 = vld [vmem:[#allocation19 + $0xc0] sm:$0xff]
        %v3663 = vld [vmem:[#allocation19 + $0xc8] sm:$0xff]
        %v3664 = vld [vmem:[#allocation19 + $0xd0] sm:$0xff]
        %v3665 = vld [vmem:[#allocation19 + $0xd8] sm:$0xff]
        %v3666 = vld [vmem:[#allocation19 + $0xe0] sm:$0xff]
        %v3667 = vld [vmem:[#allocation19 + $0xe8] sm:$0xff]
        %v3668 = vld [vmem:[#allocation19 + $0xf0] sm:$0xff]
        %v3669 = vld [vmem:[#allocation19 + $0xf8] sm:$0xff]
        %v3670 = vld [vmem:[#allocation21] sm:$0x3]
        %v3672 = vlaneseq
        %v3673 = vshrl.u32 %v3672, 7
        %v3674 = vsub.s32 0, %v3673
        %v3675 = vrot.slane %v3670, %v3674
        %v3676 = vlaneseq
        %v3677 = vshrl.u32 %v3676, 7
        %v3678 = vsub.s32 1, %v3677
        %v3679 = vrot.slane %v3670, %v3678
        %3682 = vmatprep.subr.mxu0 %v3669
        %3683 = vmatpush1.msra.mxu0 %v3668
        %3684 = vmatprep.subr.mxu0 %v3667
        %3685 = vmatpush1.msra.mxu0 %v3666
        %3686 = vmatprep.subr.mxu0 %v3665
        %3687 = vmatpush1.msra.mxu0 %v3664
        %3688 = vmatprep.subr.mxu0 %v3663
        %3689 = vmatpush1.msra.mxu0 %v3662
        %3690 = vmatprep.subr.mxu0 %v3661
        %3691 = vmatpush1.msra.mxu0 %v3660
        %3692 = vmatprep.subr.mxu0 %v3659
        %3693 = vmatpush1.msra.mxu0 %v3658
        %3694 = vmatprep.subr.mxu0 %v3657
        %3695 = vmatpush1.msra.mxu0 %v3656
        %3696 = vmatprep.subr.mxu0 %v3655
        %3697 = vmatpush1.msra.mxu0 %v3654
        %3698 = vmatprep.subr.mxu0 %v3653
        %3699 = vmatpush1.msra.mxu0 %v3652
        %3700 = vmatprep.subr.mxu0 %v3651
        %3701 = vmatpush1.msra.mxu0 %v3650
        %3702 = vmatprep.subr.mxu0 %v3649
        %3703 = vmatpush1.msra.mxu0 %v3648
        %3704 = vmatprep.subr.mxu0 %v3647
        %3705 = vmatpush1.msra.mxu0 %v3646
        %3706 = vmatprep.subr.mxu0 %v3645
        %3707 = vmatpush1.msra.mxu0 %v3644
        %3708 = vmatprep.subr.mxu0 %v3643
        %3709 = vmatpush1.msra.mxu0 %v3642
        %3710 = vmatprep.subr.mxu0 %v3641
        %3711 = vmatpush1.msra.mxu0 %v3640
        %3712 = vmatprep.subr.mxu0 %v3639
        %3713 = vmatpush1.msra.mxu0 %v3638
        %3714 = vmatprep.subr.mxu0 0.0
        %3715 = vmatpush2.msra.mxu0 0.0
        %3716 = vmatprep.subr.mxu0 0.0
        %3717 = vmatpush2.msra.mxu0 0.0
        %3718 = vmatprep.subr.mxu0 0.0
        %3719 = vmatpush2.msra.mxu0 0.0
        %3720 = vmatprep.subr.mxu0 0.0
        %3721 = vmatpush2.msra.mxu0 0.0
        %3722 = vmatprep.subr.mxu0 0.0
        %3723 = vmatpush2.msra.mxu0 0.0
        %3724 = vmatprep.subr.mxu0 0.0
        %3725 = vmatpush2.msra.mxu0 0.0
        %3726 = vmatprep.subr.mxu0 0.0
        %3727 = vmatpush2.msra.mxu0 0.0
        %3728 = vmatprep.subr.mxu0 0.0
        %3729 = vmatpush2.msra.mxu0 0.0
        %3730 = vmatprep.subr.mxu0 0.0
        %3731 = vmatpush2.msra.mxu0 0.0
        %3732 = vmatprep.subr.mxu0 0.0
        %3733 = vmatpush2.msra.mxu0 0.0
        %3734 = vmatprep.subr.mxu0 0.0
        %3735 = vmatpush2.msra.mxu0 0.0
        %3736 = vmatprep.subr.mxu0 0.0
        %3737 = vmatpush2.msra.mxu0 0.0
        %3738 = vmatprep.subr.mxu0 0.0
        %3739 = vmatpush2.msra.mxu0 0.0
        %3740 = vmatprep.subr.mxu0 0.0
        %3741 = vmatpush2.msra.mxu0 0.0
        %3742 = vmatprep.subr.mxu0 0.0
        %3743 = vmatpush2.msra.mxu0 0.0
        %3744 = vmatprep.subr.mxu0 0.0
        %3745 = vmatpush2.msra.mxu0 0.0
        %3746 = vmatprep.mubr.f32.mxu0 0.0
        %3747 = vmatmul.mubr.f32.gmra.mxu0 %v3100
        %v3748 = vpop.f32.mrf.mxu0
        %v3749 = vadd.f32 %v3675, %v3748
        %v3750 = vpop.f32.mrf.mxu0
        %v3751 = vadd.f32 %v3679, %v3750
        %3752 = vdwg.mxu0
        %v3753 = vmax.f32 %v3749, 0.0
        %v3754 = vmax.f32 %v3751, 0.0
        %v3755 = vld [vmem:[#allocation22] sm:$0xff]
        %v3756 = vld [vmem:[#allocation22 + $0x8] sm:$0xff]
        %v3757 = vld [vmem:[#allocation22 + $0x10] sm:$0xff]
        %v3758 = vld [vmem:[#allocation22 + $0x18] sm:$0xff]
        %v3759 = vld [vmem:[#allocation22 + $0x20] sm:$0xff]
        %v3760 = vld [vmem:[#allocation22 + $0x28] sm:$0xff]
        %v3761 = vld [vmem:[#allocation22 + $0x30] sm:$0xff]
        %v3762 = vld [vmem:[#allocation22 + $0x38] sm:$0xff]
        %v3763 = vld [vmem:[#allocation22 + $0x40] sm:$0xff]
        %v3764 = vld [vmem:[#allocation22 + $0x48] sm:$0xff]
        %v3765 = vld [vmem:[#allocation22 + $0x50] sm:$0xff]
        %v3766 = vld [vmem:[#allocation22 + $0x58] sm:$0xff]
        %v3767 = vld [vmem:[#allocation22 + $0x60] sm:$0xff]
        %v3768 = vld [vmem:[#allocation22 + $0x68] sm:$0xff]
        %v3769 = vld [vmem:[#allocation22 + $0x70] sm:$0xff]
        %v3770 = vld [vmem:[#allocation22 + $0x78] sm:$0xff]
        %v3771 = vld [vmem:[#allocation22 + $0x80] sm:$0xff]
        %v3772 = vld [vmem:[#allocation22 + $0x88] sm:$0xff]
        %v3773 = vld [vmem:[#allocation22 + $0x90] sm:$0xff]
        %v3774 = vld [vmem:[#allocation22 + $0x98] sm:$0xff]
        %v3775 = vld [vmem:[#allocation22 + $0xa0] sm:$0xff]
        %v3776 = vld [vmem:[#allocation22 + $0xa8] sm:$0xff]
        %v3777 = vld [vmem:[#allocation22 + $0xb0] sm:$0xff]
        %v3778 = vld [vmem:[#allocation22 + $0xb8] sm:$0xff]
        %v3779 = vld [vmem:[#allocation22 + $0xc0] sm:$0xff]
        %v3780 = vld [vmem:[#allocation22 + $0xc8] sm:$0xff]
        %v3781 = vld [vmem:[#allocation22 + $0xd0] sm:$0xff]
        %v3782 = vld [vmem:[#allocation22 + $0xd8] sm:$0xff]
        %v3783 = vld [vmem:[#allocation22 + $0xe0] sm:$0xff]
        %v3784 = vld [vmem:[#allocation22 + $0xe8] sm:$0xff]
        %v3785 = vld [vmem:[#allocation22 + $0xf0] sm:$0xff]
        %v3786 = vld [vmem:[#allocation22 + $0xf8] sm:$0xff]
        %v3787 = vld [vmem:[#allocation22 + $0x100] sm:$0xff]
        %v3788 = vld [vmem:[#allocation22 + $0x108] sm:$0xff]
        %v3789 = vld [vmem:[#allocation22 + $0x110] sm:$0xff]
        %v3790 = vld [vmem:[#allocation22 + $0x118] sm:$0xff]
        %v3791 = vld [vmem:[#allocation22 + $0x120] sm:$0xff]
        %v3792 = vld [vmem:[#allocation22 + $0x128] sm:$0xff]
        %v3793 = vld [vmem:[#allocation22 + $0x130] sm:$0xff]
        %v3794 = vld [vmem:[#allocation22 + $0x138] sm:$0xff]
        %v3795 = vld [vmem:[#allocation22 + $0x140] sm:$0xff]
        %v3796 = vld [vmem:[#allocation22 + $0x148] sm:$0xff]
        %v3797 = vld [vmem:[#allocation22 + $0x150] sm:$0xff]
        %v3798 = vld [vmem:[#allocation22 + $0x158] sm:$0xff]
        %v3799 = vld [vmem:[#allocation22 + $0x160] sm:$0xff]
        %v3800 = vld [vmem:[#allocation22 + $0x168] sm:$0xff]
        %v3801 = vld [vmem:[#allocation22 + $0x170] sm:$0xff]
        %v3802 = vld [vmem:[#allocation22 + $0x178] sm:$0xff]
        %v3803 = vld [vmem:[#allocation22 + $0x180] sm:$0xff]
        %v3804 = vld [vmem:[#allocation22 + $0x188] sm:$0xff]
        %v3805 = vld [vmem:[#allocation22 + $0x190] sm:$0xff]
        %v3806 = vld [vmem:[#allocation22 + $0x198] sm:$0xff]
        %v3807 = vld [vmem:[#allocation22 + $0x1a0] sm:$0xff]
        %v3808 = vld [vmem:[#allocation22 + $0x1a8] sm:$0xff]
        %v3809 = vld [vmem:[#allocation22 + $0x1b0] sm:$0xff]
        %v3810 = vld [vmem:[#allocation22 + $0x1b8] sm:$0xff]
        %v3811 = vld [vmem:[#allocation22 + $0x1c0] sm:$0xff]
        %v3812 = vld [vmem:[#allocation22 + $0x1c8] sm:$0xff]
        %v3813 = vld [vmem:[#allocation22 + $0x1d0] sm:$0xff]
        %v3814 = vld [vmem:[#allocation22 + $0x1d8] sm:$0xff]
        %v3815 = vld [vmem:[#allocation22 + $0x1e0] sm:$0xff]
        %v3816 = vld [vmem:[#allocation22 + $0x1e8] sm:$0xff]
        %v3817 = vld [vmem:[#allocation22 + $0x1f0] sm:$0xff]
        %v3818 = vld [vmem:[#allocation22 + $0x1f8] sm:$0xff]
        %v3819 = vld [vmem:[#allocation24] sm:$0x3]
        %v3821 = vlaneseq
        %v3822 = vshrl.u32 %v3821, 7
        %v3823 = vsub.s32 0, %v3822
        %v3824 = vrot.slane %v3819, %v3823
        %v3825 = vlaneseq
        %v3826 = vshrl.u32 %v3825, 7
        %v3827 = vsub.s32 1, %v3826
        %v3828 = vrot.slane %v3819, %v3827
        %3831 = vmatprep.subr.mxu0 %v3786
        %3832 = vmatpush1.msra.mxu0 %v3785
        %3833 = vmatprep.subr.mxu0 %v3784
        %3834 = vmatpush1.msra.mxu0 %v3783
        %3835 = vmatprep.subr.mxu0 %v3782
        %3836 = vmatpush1.msra.mxu0 %v3781
        %3837 = vmatprep.subr.mxu0 %v3780
        %3838 = vmatpush1.msra.mxu0 %v3779
        %3839 = vmatprep.subr.mxu0 %v3778
        %3840 = vmatpush1.msra.mxu0 %v3777
        %3841 = vmatprep.subr.mxu0 %v3776
        %3842 = vmatpush1.msra.mxu0 %v3775
        %3843 = vmatprep.subr.mxu0 %v3774
        %3844 = vmatpush1.msra.mxu0 %v3773
        %3845 = vmatprep.subr.mxu0 %v3772
        %3846 = vmatpush1.msra.mxu0 %v3771
        %3847 = vmatprep.subr.mxu0 %v3770
        %3848 = vmatpush1.msra.mxu0 %v3769
        %3849 = vmatprep.subr.mxu0 %v3768
        %3850 = vmatpush1.msra.mxu0 %v3767
        %3851 = vmatprep.subr.mxu0 %v3766
        %3852 = vmatpush1.msra.mxu0 %v3765
        %3853 = vmatprep.subr.mxu0 %v3764
        %3854 = vmatpush1.msra.mxu0 %v3763
        %3855 = vmatprep.subr.mxu0 %v3762
        %3856 = vmatpush1.msra.mxu0 %v3761
        %3857 = vmatprep.subr.mxu0 %v3760
        %3858 = vmatpush1.msra.mxu0 %v3759
        %3859 = vmatprep.subr.mxu0 %v3758
        %3860 = vmatpush1.msra.mxu0 %v3757
        %3861 = vmatprep.subr.mxu0 %v3756
        %3862 = vmatpush1.msra.mxu0 %v3755
        %3863 = vmatprep.subr.mxu0 %v3818
        %3864 = vmatpush2.msra.mxu0 %v3817
        %3865 = vmatprep.subr.mxu0 %v3816
        %3866 = vmatpush2.msra.mxu0 %v3815
        %3867 = vmatprep.subr.mxu0 %v3814
        %3868 = vmatpush2.msra.mxu0 %v3813
        %3869 = vmatprep.subr.mxu0 %v3812
        %3870 = vmatpush2.msra.mxu0 %v3811
        %3871 = vmatprep.subr.mxu0 %v3810
        %3872 = vmatpush2.msra.mxu0 %v3809
        %3873 = vmatprep.subr.mxu0 %v3808
        %3874 = vmatpush2.msra.mxu0 %v3807
        %3875 = vmatprep.subr.mxu0 %v3806
        %3876 = vmatpush2.msra.mxu0 %v3805
        %3877 = vmatprep.subr.mxu0 %v3804
        %3878 = vmatpush2.msra.mxu0 %v3803
        %3879 = vmatprep.subr.mxu0 %v3802
        %3880 = vmatpush2.msra.mxu0 %v3801
        %3881 = vmatprep.subr.mxu0 %v3800
        %3882 = vmatpush2.msra.mxu0 %v3799
        %3883 = vmatprep.subr.mxu0 %v3798
        %3884 = vmatpush2.msra.mxu0 %v3797
        %3885 = vmatprep.subr.mxu0 %v3796
        %3886 = vmatpush2.msra.mxu0 %v3795
        %3887 = vmatprep.subr.mxu0 %v3794
        %3888 = vmatpush2.msra.mxu0 %v3793
        %3889 = vmatprep.subr.mxu0 %v3792
        %3890 = vmatpush2.msra.mxu0 %v3791
        %3891 = vmatprep.subr.mxu0 %v3790
        %3892 = vmatpush2.msra.mxu0 %v3789
        %3893 = vmatprep.subr.mxu0 %v3788
        %3894 = vmatpush2.msra.mxu0 %v3787
        %3895 = vmatprep.mubr.f32.mxu0 %v3754
        %3896 = vmatmul.mubr.f32.gmra.mxu0 %v3753
        %v3897 = vpop.f32.mrf.mxu0
        %v3898 = vadd.f32 %v3824, %v3897
        %v3899 = vpop.f32.mrf.mxu0
        %v3900 = vadd.f32 %v3828, %v3899
        %3901 = vdwg.mxu0
        %v3902 = vmax.f32 %v3898, 0.0
        %v3903 = vmax.f32 %v3900, 0.0
        %3904 = vst [vmem:[%s700 + $0x60] sm:$0xff] %v3902
        %3905 = vst [vmem:[%s700 + $0x68] sm:$0xff] %v3903
        %v3906 = vld [vmem:[#allocation19] sm:$0xff]
        %v3907 = vld [vmem:[#allocation19 + $0x8] sm:$0xff]
        %v3908 = vld [vmem:[#allocation19 + $0x10] sm:$0xff]
        %v3909 = vld [vmem:[#allocation19 + $0x18] sm:$0xff]
        %v3910 = vld [vmem:[#allocation19 + $0x20] sm:$0xff]
        %v3911 = vld [vmem:[#allocation19 + $0x28] sm:$0xff]
        %v3912 = vld [vmem:[#allocation19 + $0x30] sm:$0xff]
        %v3913 = vld [vmem:[#allocation19 + $0x38] sm:$0xff]
        %v3914 = vld [vmem:[#allocation19 + $0x40] sm:$0xff]
        %v3915 = vld [vmem:[#allocation19 + $0x48] sm:$0xff]
        %v3916 = vld [vmem:[#allocation19 + $0x50] sm:$0xff]
        %v3917 = vld [vmem:[#allocation19 + $0x58] sm:$0xff]
        %v3918 = vld [vmem:[#allocation19 + $0x60] sm:$0xff]
        %v3919 = vld [vmem:[#allocation19 + $0x68] sm:$0xff]
        %v3920 = vld [vmem:[#allocation19 + $0x70] sm:$0xff]
        %v3921 = vld [vmem:[#allocation19 + $0x78] sm:$0xff]
        %v3922 = vld [vmem:[#allocation19 + $0x80] sm:$0xff]
        %v3923 = vld [vmem:[#allocation19 + $0x88] sm:$0xff]
        %v3924 = vld [vmem:[#allocation19 + $0x90] sm:$0xff]
        %v3925 = vld [vmem:[#allocation19 + $0x98] sm:$0xff]
        %v3926 = vld [vmem:[#allocation19 + $0xa0] sm:$0xff]
        %v3927 = vld [vmem:[#allocation19 + $0xa8] sm:$0xff]
        %v3928 = vld [vmem:[#allocation19 + $0xb0] sm:$0xff]
        %v3929 = vld [vmem:[#allocation19 + $0xb8] sm:$0xff]
        %v3930 = vld [vmem:[#allocation19 + $0xc0] sm:$0xff]
        %v3931 = vld [vmem:[#allocation19 + $0xc8] sm:$0xff]
        %v3932 = vld [vmem:[#allocation19 + $0xd0] sm:$0xff]
        %v3933 = vld [vmem:[#allocation19 + $0xd8] sm:$0xff]
        %v3934 = vld [vmem:[#allocation19 + $0xe0] sm:$0xff]
        %v3935 = vld [vmem:[#allocation19 + $0xe8] sm:$0xff]
        %v3936 = vld [vmem:[#allocation19 + $0xf0] sm:$0xff]
        %v3937 = vld [vmem:[#allocation19 + $0xf8] sm:$0xff]
        %v3938 = vld [vmem:[#allocation21] sm:$0x3]
        %v3940 = vlaneseq
        %v3941 = vshrl.u32 %v3940, 7
        %v3942 = vsub.s32 0, %v3941
        %v3943 = vrot.slane %v3938, %v3942
        %v3944 = vlaneseq
        %v3945 = vshrl.u32 %v3944, 7
        %v3946 = vsub.s32 1, %v3945
        %v3947 = vrot.slane %v3938, %v3946
        %3950 = vmatprep.subr.mxu0 %v3937
        %3951 = vmatpush1.msra.mxu0 %v3936
        %3952 = vmatprep.subr.mxu0 %v3935
        %3953 = vmatpush1.msra.mxu0 %v3934
        %3954 = vmatprep.subr.mxu0 %v3933
        %3955 = vmatpush1.msra.mxu0 %v3932
        %3956 = vmatprep.subr.mxu0 %v3931
        %3957 = vmatpush1.msra.mxu0 %v3930
        %3958 = vmatprep.subr.mxu0 %v3929
        %3959 = vmatpush1.msra.mxu0 %v3928
        %3960 = vmatprep.subr.mxu0 %v3927
        %3961 = vmatpush1.msra.mxu0 %v3926
        %3962 = vmatprep.subr.mxu0 %v3925
        %3963 = vmatpush1.msra.mxu0 %v3924
        %3964 = vmatprep.subr.mxu0 %v3923
        %3965 = vmatpush1.msra.mxu0 %v3922
        %3966 = vmatprep.subr.mxu0 %v3921
        %3967 = vmatpush1.msra.mxu0 %v3920
        %3968 = vmatprep.subr.mxu0 %v3919
        %3969 = vmatpush1.msra.mxu0 %v3918
        %3970 = vmatprep.subr.mxu0 %v3917
        %3971 = vmatpush1.msra.mxu0 %v3916
        %3972 = vmatprep.subr.mxu0 %v3915
        %3973 = vmatpush1.msra.mxu0 %v3914
        %3974 = vmatprep.subr.mxu0 %v3913
        %3975 = vmatpush1.msra.mxu0 %v3912
        %3976 = vmatprep.subr.mxu0 %v3911
        %3977 = vmatpush1.msra.mxu0 %v3910
        %3978 = vmatprep.subr.mxu0 %v3909
        %3979 = vmatpush1.msra.mxu0 %v3908
        %3980 = vmatprep.subr.mxu0 %v3907
        %3981 = vmatpush1.msra.mxu0 %v3906
        %3982 = vmatprep.subr.mxu0 0.0
        %3983 = vmatpush2.msra.mxu0 0.0
        %3984 = vmatprep.subr.mxu0 0.0
        %3985 = vmatpush2.msra.mxu0 0.0
        %3986 = vmatprep.subr.mxu0 0.0
        %3987 = vmatpush2.msra.mxu0 0.0
        %3988 = vmatprep.subr.mxu0 0.0
        %3989 = vmatpush2.msra.mxu0 0.0
        %3990 = vmatprep.subr.mxu0 0.0
        %3991 = vmatpush2.msra.mxu0 0.0
        %3992 = vmatprep.subr.mxu0 0.0
        %3993 = vmatpush2.msra.mxu0 0.0
        %3994 = vmatprep.subr.mxu0 0.0
        %3995 = vmatpush2.msra.mxu0 0.0
        %3996 = vmatprep.subr.mxu0 0.0
        %3997 = vmatpush2.msra.mxu0 0.0
        %3998 = vmatprep.subr.mxu0 0.0
        %3999 = vmatpush2.msra.mxu0 0.0
        %4000 = vmatprep.subr.mxu0 0.0
        %4001 = vmatpush2.msra.mxu0 0.0
        %4002 = vmatprep.subr.mxu0 0.0
        %4003 = vmatpush2.msra.mxu0 0.0
        %4004 = vmatprep.subr.mxu0 0.0
        %4005 = vmatpush2.msra.mxu0 0.0
        %4006 = vmatprep.subr.mxu0 0.0
        %4007 = vmatpush2.msra.mxu0 0.0
        %4008 = vmatprep.subr.mxu0 0.0
        %4009 = vmatpush2.msra.mxu0 0.0
        %4010 = vmatprep.subr.mxu0 0.0
        %4011 = vmatpush2.msra.mxu0 0.0
        %4012 = vmatprep.subr.mxu0 0.0
        %4013 = vmatpush2.msra.mxu0 0.0
        %4014 = vmatprep.mubr.f32.mxu0 0.0
        %4015 = vmatmul.mubr.f32.gmra.mxu0 %v3101
        %v4016 = vpop.f32.mrf.mxu0
        %v4017 = vadd.f32 %v3943, %v4016
        %v4018 = vpop.f32.mrf.mxu0
        %v4019 = vadd.f32 %v3947, %v4018
        %4020 = vdwg.mxu0
        %v4021 = vmax.f32 %v4017, 0.0
        %v4022 = vmax.f32 %v4019, 0.0
        %v4023 = vld [vmem:[#allocation22] sm:$0xff]
        %v4024 = vld [vmem:[#allocation22 + $0x8] sm:$0xff]
        %v4025 = vld [vmem:[#allocation22 + $0x10] sm:$0xff]
        %v4026 = vld [vmem:[#allocation22 + $0x18] sm:$0xff]
        %v4027 = vld [vmem:[#allocation22 + $0x20] sm:$0xff]
        %v4028 = vld [vmem:[#allocation22 + $0x28] sm:$0xff]
        %v4029 = vld [vmem:[#allocation22 + $0x30] sm:$0xff]
        %v4030 = vld [vmem:[#allocation22 + $0x38] sm:$0xff]
        %v4031 = vld [vmem:[#allocation22 + $0x40] sm:$0xff]
        %v4032 = vld [vmem:[#allocation22 + $0x48] sm:$0xff]
        %v4033 = vld [vmem:[#allocation22 + $0x50] sm:$0xff]
        %v4034 = vld [vmem:[#allocation22 + $0x58] sm:$0xff]
        %v4035 = vld [vmem:[#allocation22 + $0x60] sm:$0xff]
        %v4036 = vld [vmem:[#allocation22 + $0x68] sm:$0xff]
        %v4037 = vld [vmem:[#allocation22 + $0x70] sm:$0xff]
        %v4038 = vld [vmem:[#allocation22 + $0x78] sm:$0xff]
        %v4039 = vld [vmem:[#allocation22 + $0x80] sm:$0xff]
        %v4040 = vld [vmem:[#allocation22 + $0x88] sm:$0xff]
        %v4041 = vld [vmem:[#allocation22 + $0x90] sm:$0xff]
        %v4042 = vld [vmem:[#allocation22 + $0x98] sm:$0xff]
        %v4043 = vld [vmem:[#allocation22 + $0xa0] sm:$0xff]
        %v4044 = vld [vmem:[#allocation22 + $0xa8] sm:$0xff]
        %v4045 = vld [vmem:[#allocation22 + $0xb0] sm:$0xff]
        %v4046 = vld [vmem:[#allocation22 + $0xb8] sm:$0xff]
        %v4047 = vld [vmem:[#allocation22 + $0xc0] sm:$0xff]
        %v4048 = vld [vmem:[#allocation22 + $0xc8] sm:$0xff]
        %v4049 = vld [vmem:[#allocation22 + $0xd0] sm:$0xff]
        %v4050 = vld [vmem:[#allocation22 + $0xd8] sm:$0xff]
        %v4051 = vld [vmem:[#allocation22 + $0xe0] sm:$0xff]
        %v4052 = vld [vmem:[#allocation22 + $0xe8] sm:$0xff]
        %v4053 = vld [vmem:[#allocation22 + $0xf0] sm:$0xff]
        %v4054 = vld [vmem:[#allocation22 + $0xf8] sm:$0xff]
        %v4055 = vld [vmem:[#allocation22 + $0x100] sm:$0xff]
        %v4056 = vld [vmem:[#allocation22 + $0x108] sm:$0xff]
        %v4057 = vld [vmem:[#allocation22 + $0x110] sm:$0xff]
        %v4058 = vld [vmem:[#allocation22 + $0x118] sm:$0xff]
        %v4059 = vld [vmem:[#allocation22 + $0x120] sm:$0xff]
        %v4060 = vld [vmem:[#allocation22 + $0x128] sm:$0xff]
        %v4061 = vld [vmem:[#allocation22 + $0x130] sm:$0xff]
        %v4062 = vld [vmem:[#allocation22 + $0x138] sm:$0xff]
        %v4063 = vld [vmem:[#allocation22 + $0x140] sm:$0xff]
        %v4064 = vld [vmem:[#allocation22 + $0x148] sm:$0xff]
        %v4065 = vld [vmem:[#allocation22 + $0x150] sm:$0xff]
        %v4066 = vld [vmem:[#allocation22 + $0x158] sm:$0xff]
        %v4067 = vld [vmem:[#allocation22 + $0x160] sm:$0xff]
        %v4068 = vld [vmem:[#allocation22 + $0x168] sm:$0xff]
        %v4069 = vld [vmem:[#allocation22 + $0x170] sm:$0xff]
        %v4070 = vld [vmem:[#allocation22 + $0x178] sm:$0xff]
        %v4071 = vld [vmem:[#allocation22 + $0x180] sm:$0xff]
        %v4072 = vld [vmem:[#allocation22 + $0x188] sm:$0xff]
        %v4073 = vld [vmem:[#allocation22 + $0x190] sm:$0xff]
        %v4074 = vld [vmem:[#allocation22 + $0x198] sm:$0xff]
        %v4075 = vld [vmem:[#allocation22 + $0x1a0] sm:$0xff]
        %v4076 = vld [vmem:[#allocation22 + $0x1a8] sm:$0xff]
        %v4077 = vld [vmem:[#allocation22 + $0x1b0] sm:$0xff]
        %v4078 = vld [vmem:[#allocation22 + $0x1b8] sm:$0xff]
        %v4079 = vld [vmem:[#allocation22 + $0x1c0] sm:$0xff]
        %v4080 = vld [vmem:[#allocation22 + $0x1c8] sm:$0xff]
        %v4081 = vld [vmem:[#allocation22 + $0x1d0] sm:$0xff]
        %v4082 = vld [vmem:[#allocation22 + $0x1d8] sm:$0xff]
        %v4083 = vld [vmem:[#allocation22 + $0x1e0] sm:$0xff]
        %v4084 = vld [vmem:[#allocation22 + $0x1e8] sm:$0xff]
        %v4085 = vld [vmem:[#allocation22 + $0x1f0] sm:$0xff]
        %v4086 = vld [vmem:[#allocation22 + $0x1f8] sm:$0xff]
        %v4087 = vld [vmem:[#allocation24] sm:$0x3]
        %v4089 = vlaneseq
        %v4090 = vshrl.u32 %v4089, 7
        %v4091 = vsub.s32 0, %v4090
        %v4092 = vrot.slane %v4087, %v4091
        %v4093 = vlaneseq
        %v4094 = vshrl.u32 %v4093, 7
        %v4095 = vsub.s32 1, %v4094
        %v4096 = vrot.slane %v4087, %v4095
        %4099 = vmatprep.subr.mxu0 %v4054
        %4100 = vmatpush1.msra.mxu0 %v4053
        %4101 = vmatprep.subr.mxu0 %v4052
        %4102 = vmatpush1.msra.mxu0 %v4051
        %4103 = vmatprep.subr.mxu0 %v4050
        %4104 = vmatpush1.msra.mxu0 %v4049
        %4105 = vmatprep.subr.mxu0 %v4048
        %4106 = vmatpush1.msra.mxu0 %v4047
        %4107 = vmatprep.subr.mxu0 %v4046
        %4108 = vmatpush1.msra.mxu0 %v4045
        %4109 = vmatprep.subr.mxu0 %v4044
        %4110 = vmatpush1.msra.mxu0 %v4043
        %4111 = vmatprep.subr.mxu0 %v4042
        %4112 = vmatpush1.msra.mxu0 %v4041
        %4113 = vmatprep.subr.mxu0 %v4040
        %4114 = vmatpush1.msra.mxu0 %v4039
        %4115 = vmatprep.subr.mxu0 %v4038
        %4116 = vmatpush1.msra.mxu0 %v4037
        %4117 = vmatprep.subr.mxu0 %v4036
        %4118 = vmatpush1.msra.mxu0 %v4035
        %4119 = vmatprep.subr.mxu0 %v4034
        %4120 = vmatpush1.msra.mxu0 %v4033
        %4121 = vmatprep.subr.mxu0 %v4032
        %4122 = vmatpush1.msra.mxu0 %v4031
        %4123 = vmatprep.subr.mxu0 %v4030
        %4124 = vmatpush1.msra.mxu0 %v4029
        %4125 = vmatprep.subr.mxu0 %v4028
        %4126 = vmatpush1.msra.mxu0 %v4027
        %4127 = vmatprep.subr.mxu0 %v4026
        %4128 = vmatpush1.msra.mxu0 %v4025
        %4129 = vmatprep.subr.mxu0 %v4024
        %4130 = vmatpush1.msra.mxu0 %v4023
        %4131 = vmatprep.subr.mxu0 %v4086
        %4132 = vmatpush2.msra.mxu0 %v4085
        %4133 = vmatprep.subr.mxu0 %v4084
        %4134 = vmatpush2.msra.mxu0 %v4083
        %4135 = vmatprep.subr.mxu0 %v4082
        %4136 = vmatpush2.msra.mxu0 %v4081
        %4137 = vmatprep.subr.mxu0 %v4080
        %4138 = vmatpush2.msra.mxu0 %v4079
        %4139 = vmatprep.subr.mxu0 %v4078
        %4140 = vmatpush2.msra.mxu0 %v4077
        %4141 = vmatprep.subr.mxu0 %v4076
        %4142 = vmatpush2.msra.mxu0 %v4075
        %4143 = vmatprep.subr.mxu0 %v4074
        %4144 = vmatpush2.msra.mxu0 %v4073
        %4145 = vmatprep.subr.mxu0 %v4072
        %4146 = vmatpush2.msra.mxu0 %v4071
        %4147 = vmatprep.subr.mxu0 %v4070
        %4148 = vmatpush2.msra.mxu0 %v4069
        %4149 = vmatprep.subr.mxu0 %v4068
        %4150 = vmatpush2.msra.mxu0 %v4067
        %4151 = vmatprep.subr.mxu0 %v4066
        %4152 = vmatpush2.msra.mxu0 %v4065
        %4153 = vmatprep.subr.mxu0 %v4064
        %4154 = vmatpush2.msra.mxu0 %v4063
        %4155 = vmatprep.subr.mxu0 %v4062
        %4156 = vmatpush2.msra.mxu0 %v4061
        %4157 = vmatprep.subr.mxu0 %v4060
        %4158 = vmatpush2.msra.mxu0 %v4059
        %4159 = vmatprep.subr.mxu0 %v4058
        %4160 = vmatpush2.msra.mxu0 %v4057
        %4161 = vmatprep.subr.mxu0 %v4056
        %4162 = vmatpush2.msra.mxu0 %v4055
        %4163 = vmatprep.mubr.f32.mxu0 %v4022
        %4164 = vmatmul.mubr.f32.gmra.mxu0 %v4021
        %v4165 = vpop.f32.mrf.mxu0
        %v4166 = vadd.f32 %v4092, %v4165
        %v4167 = vpop.f32.mrf.mxu0
        %v4168 = vadd.f32 %v4096, %v4167
        %4169 = vdwg.mxu0
        %v4170 = vmax.f32 %v4166, 0.0
        %v4171 = vmax.f32 %v4168, 0.0
        %4172 = vst [vmem:[%s700 + $0x70] sm:$0xff] %v4170
        %4173 = vst [vmem:[%s700 + $0x78] sm:$0xff] %v4171
        %v4174 = vld [vmem:[#allocation13] sm:$0xff]
        %v4175 = vld [vmem:[#allocation13 + $0x8] sm:$0xff]
        %v4176 = vld [vmem:[#allocation13 + $0x10] sm:$0xff]
        %v4177 = vld [vmem:[#allocation13 + $0x18] sm:$0xff]
        %v4178 = vld [vmem:[#allocation13 + $0x20] sm:$0xff]
        %v4179 = vld [vmem:[#allocation13 + $0x28] sm:$0xff]
        %v4180 = vld [vmem:[#allocation13 + $0x30] sm:$0xff]
        %v4181 = vld [vmem:[#allocation13 + $0x38] sm:$0xff]
        %v4182 = vld [vmem:[#allocation13 + $0x40] sm:$0xff]
        %v4183 = vld [vmem:[#allocation13 + $0x48] sm:$0xff]
        %v4184 = vld [vmem:[#allocation13 + $0x50] sm:$0xff]
        %v4185 = vld [vmem:[#allocation13 + $0x58] sm:$0xff]
        %v4186 = vld [vmem:[#allocation13 + $0x60] sm:$0xff]
        %v4187 = vld [vmem:[#allocation13 + $0x68] sm:$0xff]
        %v4188 = vld [vmem:[#allocation13 + $0x70] sm:$0xff]
        %v4189 = vld [vmem:[#allocation13 + $0x78] sm:$0xff]
        %v4190 = vld [vmem:[#allocation13 + $0x80] sm:$0xff]
        %v4191 = vld [vmem:[#allocation13 + $0x88] sm:$0xff]
        %v4192 = vld [vmem:[#allocation13 + $0x90] sm:$0xff]
        %v4193 = vld [vmem:[#allocation13 + $0x98] sm:$0xff]
        %v4194 = vld [vmem:[#allocation13 + $0xa0] sm:$0xff]
        %v4195 = vld [vmem:[#allocation13 + $0xa8] sm:$0xff]
        %v4196 = vld [vmem:[#allocation13 + $0xb0] sm:$0xff]
        %v4197 = vld [vmem:[#allocation13 + $0xb8] sm:$0xff]
        %v4198 = vld [vmem:[#allocation13 + $0xc0] sm:$0xff]
        %v4199 = vld [vmem:[#allocation13 + $0xc8] sm:$0xff]
        %v4200 = vld [vmem:[#allocation13 + $0xd0] sm:$0xff]
        %v4201 = vld [vmem:[#allocation13 + $0xd8] sm:$0xff]
        %v4202 = vld [vmem:[#allocation13 + $0xe0] sm:$0xff]
        %v4203 = vld [vmem:[#allocation13 + $0xe8] sm:$0xff]
        %v4204 = vld [vmem:[#allocation13 + $0xf0] sm:$0xff]
        %v4205 = vld [vmem:[#allocation13 + $0xf8] sm:$0xff]
        %v4206 = vld [vmem:[#allocation15] sm:$0x3]
        %v4208 = vlaneseq
        %v4209 = vshrl.u32 %v4208, 7
        %v4210 = vsub.s32 0, %v4209
        %v4211 = vrot.slane %v4206, %v4210
        %v4212 = vlaneseq
        %v4213 = vshrl.u32 %v4212, 7
        %v4214 = vsub.s32 1, %v4213
        %v4215 = vrot.slane %v4206, %v4214
        %4218 = vmatprep.subr.mxu0 %v4205
        %4219 = vmatpush1.msra.mxu0 %v4204
        %4220 = vmatprep.subr.mxu0 %v4203
        %4221 = vmatpush1.msra.mxu0 %v4202
        %4222 = vmatprep.subr.mxu0 %v4201
        %4223 = vmatpush1.msra.mxu0 %v4200
        %4224 = vmatprep.subr.mxu0 %v4199
        %4225 = vmatpush1.msra.mxu0 %v4198
        %4226 = vmatprep.subr.mxu0 %v4197
        %4227 = vmatpush1.msra.mxu0 %v4196
        %4228 = vmatprep.subr.mxu0 %v4195
        %4229 = vmatpush1.msra.mxu0 %v4194
        %4230 = vmatprep.subr.mxu0 %v4193
        %4231 = vmatpush1.msra.mxu0 %v4192
        %4232 = vmatprep.subr.mxu0 %v4191
        %4233 = vmatpush1.msra.mxu0 %v4190
        %4234 = vmatprep.subr.mxu0 %v4189
        %4235 = vmatpush1.msra.mxu0 %v4188
        %4236 = vmatprep.subr.mxu0 %v4187
        %4237 = vmatpush1.msra.mxu0 %v4186
        %4238 = vmatprep.subr.mxu0 %v4185
        %4239 = vmatpush1.msra.mxu0 %v4184
        %4240 = vmatprep.subr.mxu0 %v4183
        %4241 = vmatpush1.msra.mxu0 %v4182
        %4242 = vmatprep.subr.mxu0 %v4181
        %4243 = vmatpush1.msra.mxu0 %v4180
        %4244 = vmatprep.subr.mxu0 %v4179
        %4245 = vmatpush1.msra.mxu0 %v4178
        %4246 = vmatprep.subr.mxu0 %v4177
        %4247 = vmatpush1.msra.mxu0 %v4176
        %4248 = vmatprep.subr.mxu0 %v4175
        %4249 = vmatpush1.msra.mxu0 %v4174
        %4250 = vmatprep.subr.mxu0 0.0
        %4251 = vmatpush2.msra.mxu0 0.0
        %4252 = vmatprep.subr.mxu0 0.0
        %4253 = vmatpush2.msra.mxu0 0.0
        %4254 = vmatprep.subr.mxu0 0.0
        %4255 = vmatpush2.msra.mxu0 0.0
        %4256 = vmatprep.subr.mxu0 0.0
        %4257 = vmatpush2.msra.mxu0 0.0
        %4258 = vmatprep.subr.mxu0 0.0
        %4259 = vmatpush2.msra.mxu0 0.0
        %4260 = vmatprep.subr.mxu0 0.0
        %4261 = vmatpush2.msra.mxu0 0.0
        %4262 = vmatprep.subr.mxu0 0.0
        %4263 = vmatpush2.msra.mxu0 0.0
        %4264 = vmatprep.subr.mxu0 0.0
        %4265 = vmatpush2.msra.mxu0 0.0
        %4266 = vmatprep.subr.mxu0 0.0
        %4267 = vmatpush2.msra.mxu0 0.0
        %4268 = vmatprep.subr.mxu0 0.0
        %4269 = vmatpush2.msra.mxu0 0.0
        %4270 = vmatprep.subr.mxu0 0.0
        %4271 = vmatpush2.msra.mxu0 0.0
        %4272 = vmatprep.subr.mxu0 0.0
        %4273 = vmatpush2.msra.mxu0 0.0
        %4274 = vmatprep.subr.mxu0 0.0
        %4275 = vmatpush2.msra.mxu0 0.0
        %4276 = vmatprep.subr.mxu0 0.0
        %4277 = vmatpush2.msra.mxu0 0.0
        %4278 = vmatprep.subr.mxu0 0.0
        %4279 = vmatpush2.msra.mxu0 0.0
        %4280 = vmatprep.subr.mxu0 0.0
        %4281 = vmatpush2.msra.mxu0 0.0
        %4282 = vmatprep.mubr.f32.mxu0 0.0
        %4283 = vmatmul.mubr.f32.gmra.mxu0 %v1202
        %v4284 = vpop.f32.mrf.mxu0
        %v4285 = vadd.f32 %v4211, %v4284
        %v4286 = vpop.f32.mrf.mxu0
        %v4287 = vadd.f32 %v4215, %v4286
        %4288 = vdwg.mxu0
        %v4289 = vmax.f32 %v4285, 0.0
        %v4290 = vmax.f32 %v4287, 0.0
        %v4291 = vld [vmem:[#allocation16] sm:$0xff]
        %v4292 = vld [vmem:[#allocation16 + $0x8] sm:$0xff]
        %v4293 = vld [vmem:[#allocation16 + $0x10] sm:$0xff]
        %v4294 = vld [vmem:[#allocation16 + $0x18] sm:$0xff]
        %v4295 = vld [vmem:[#allocation16 + $0x20] sm:$0xff]
        %v4296 = vld [vmem:[#allocation16 + $0x28] sm:$0xff]
        %v4297 = vld [vmem:[#allocation16 + $0x30] sm:$0xff]
        %v4298 = vld [vmem:[#allocation16 + $0x38] sm:$0xff]
        %v4299 = vld [vmem:[#allocation16 + $0x40] sm:$0xff]
        %v4300 = vld [vmem:[#allocation16 + $0x48] sm:$0xff]
        %v4301 = vld [vmem:[#allocation16 + $0x50] sm:$0xff]
        %v4302 = vld [vmem:[#allocation16 + $0x58] sm:$0xff]
        %v4303 = vld [vmem:[#allocation16 + $0x60] sm:$0xff]
        %v4304 = vld [vmem:[#allocation16 + $0x68] sm:$0xff]
        %v4305 = vld [vmem:[#allocation16 + $0x70] sm:$0xff]
        %v4306 = vld [vmem:[#allocation16 + $0x78] sm:$0xff]
        %v4307 = vld [vmem:[#allocation16 + $0x80] sm:$0xff]
        %v4308 = vld [vmem:[#allocation16 + $0x88] sm:$0xff]
        %v4309 = vld [vmem:[#allocation16 + $0x90] sm:$0xff]
        %v4310 = vld [vmem:[#allocation16 + $0x98] sm:$0xff]
        %v4311 = vld [vmem:[#allocation16 + $0xa0] sm:$0xff]
        %v4312 = vld [vmem:[#allocation16 + $0xa8] sm:$0xff]
        %v4313 = vld [vmem:[#allocation16 + $0xb0] sm:$0xff]
        %v4314 = vld [vmem:[#allocation16 + $0xb8] sm:$0xff]
        %v4315 = vld [vmem:[#allocation16 + $0xc0] sm:$0xff]
        %v4316 = vld [vmem:[#allocation16 + $0xc8] sm:$0xff]
        %v4317 = vld [vmem:[#allocation16 + $0xd0] sm:$0xff]
        %v4318 = vld [vmem:[#allocation16 + $0xd8] sm:$0xff]
        %v4319 = vld [vmem:[#allocation16 + $0xe0] sm:$0xff]
        %v4320 = vld [vmem:[#allocation16 + $0xe8] sm:$0xff]
        %v4321 = vld [vmem:[#allocation16 + $0xf0] sm:$0xff]
        %v4322 = vld [vmem:[#allocation16 + $0xf8] sm:$0xff]
        %v4323 = vld [vmem:[#allocation16 + $0x100] sm:$0xff]
        %v4324 = vld [vmem:[#allocation16 + $0x108] sm:$0xff]
        %v4325 = vld [vmem:[#allocation16 + $0x110] sm:$0xff]
        %v4326 = vld [vmem:[#allocation16 + $0x118] sm:$0xff]
        %v4327 = vld [vmem:[#allocation16 + $0x120] sm:$0xff]
        %v4328 = vld [vmem:[#allocation16 + $0x128] sm:$0xff]
        %v4329 = vld [vmem:[#allocation16 + $0x130] sm:$0xff]
        %v4330 = vld [vmem:[#allocation16 + $0x138] sm:$0xff]
        %v4331 = vld [vmem:[#allocation16 + $0x140] sm:$0xff]
        %v4332 = vld [vmem:[#allocation16 + $0x148] sm:$0xff]
        %v4333 = vld [vmem:[#allocation16 + $0x150] sm:$0xff]
        %v4334 = vld [vmem:[#allocation16 + $0x158] sm:$0xff]
        %v4335 = vld [vmem:[#allocation16 + $0x160] sm:$0xff]
        %v4336 = vld [vmem:[#allocation16 + $0x168] sm:$0xff]
        %v4337 = vld [vmem:[#allocation16 + $0x170] sm:$0xff]
        %v4338 = vld [vmem:[#allocation16 + $0x178] sm:$0xff]
        %v4339 = vld [vmem:[#allocation16 + $0x180] sm:$0xff]
        %v4340 = vld [vmem:[#allocation16 + $0x188] sm:$0xff]
        %v4341 = vld [vmem:[#allocation16 + $0x190] sm:$0xff]
        %v4342 = vld [vmem:[#allocation16 + $0x198] sm:$0xff]
        %v4343 = vld [vmem:[#allocation16 + $0x1a0] sm:$0xff]
        %v4344 = vld [vmem:[#allocation16 + $0x1a8] sm:$0xff]
        %v4345 = vld [vmem:[#allocation16 + $0x1b0] sm:$0xff]
        %v4346 = vld [vmem:[#allocation16 + $0x1b8] sm:$0xff]
        %v4347 = vld [vmem:[#allocation16 + $0x1c0] sm:$0xff]
        %v4348 = vld [vmem:[#allocation16 + $0x1c8] sm:$0xff]
        %v4349 = vld [vmem:[#allocation16 + $0x1d0] sm:$0xff]
        %v4350 = vld [vmem:[#allocation16 + $0x1d8] sm:$0xff]
        %v4351 = vld [vmem:[#allocation16 + $0x1e0] sm:$0xff]
        %v4352 = vld [vmem:[#allocation16 + $0x1e8] sm:$0xff]
        %v4353 = vld [vmem:[#allocation16 + $0x1f0] sm:$0xff]
        %v4354 = vld [vmem:[#allocation16 + $0x1f8] sm:$0xff]
        %v4355 = vld [vmem:[#allocation16 + $0x200] sm:$0xff]
        %v4356 = vld [vmem:[#allocation16 + $0x208] sm:$0xff]
        %v4357 = vld [vmem:[#allocation16 + $0x210] sm:$0xff]
        %v4358 = vld [vmem:[#allocation16 + $0x218] sm:$0xff]
        %v4359 = vld [vmem:[#allocation16 + $0x220] sm:$0xff]
        %v4360 = vld [vmem:[#allocation16 + $0x228] sm:$0xff]
        %v4361 = vld [vmem:[#allocation16 + $0x230] sm:$0xff]
        %v4362 = vld [vmem:[#allocation16 + $0x238] sm:$0xff]
        %v4363 = vld [vmem:[#allocation16 + $0x240] sm:$0xff]
        %v4364 = vld [vmem:[#allocation16 + $0x248] sm:$0xff]
        %v4365 = vld [vmem:[#allocation16 + $0x250] sm:$0xff]
        %v4366 = vld [vmem:[#allocation16 + $0x258] sm:$0xff]
        %v4367 = vld [vmem:[#allocation16 + $0x260] sm:$0xff]
        %v4368 = vld [vmem:[#allocation16 + $0x268] sm:$0xff]
        %v4369 = vld [vmem:[#allocation16 + $0x270] sm:$0xff]
        %v4370 = vld [vmem:[#allocation16 + $0x278] sm:$0xff]
        %v4371 = vld [vmem:[#allocation16 + $0x280] sm:$0xff]
        %v4372 = vld [vmem:[#allocation16 + $0x288] sm:$0xff]
        %v4373 = vld [vmem:[#allocation16 + $0x290] sm:$0xff]
        %v4374 = vld [vmem:[#allocation16 + $0x298] sm:$0xff]
        %v4375 = vld [vmem:[#allocation16 + $0x2a0] sm:$0xff]
        %v4376 = vld [vmem:[#allocation16 + $0x2a8] sm:$0xff]
        %v4377 = vld [vmem:[#allocation16 + $0x2b0] sm:$0xff]
        %v4378 = vld [vmem:[#allocation16 + $0x2b8] sm:$0xff]
        %v4379 = vld [vmem:[#allocation16 + $0x2c0] sm:$0xff]
        %v4380 = vld [vmem:[#allocation16 + $0x2c8] sm:$0xff]
        %v4381 = vld [vmem:[#allocation16 + $0x2d0] sm:$0xff]
        %v4382 = vld [vmem:[#allocation16 + $0x2d8] sm:$0xff]
        %v4383 = vld [vmem:[#allocation16 + $0x2e0] sm:$0xff]
        %v4384 = vld [vmem:[#allocation16 + $0x2e8] sm:$0xff]
        %v4385 = vld [vmem:[#allocation16 + $0x2f0] sm:$0xff]
        %v4386 = vld [vmem:[#allocation16 + $0x2f8] sm:$0xff]
        %v4387 = vld [vmem:[#allocation16 + $0x300] sm:$0xff]
        %v4388 = vld [vmem:[#allocation16 + $0x308] sm:$0xff]
        %v4389 = vld [vmem:[#allocation16 + $0x310] sm:$0xff]
        %v4390 = vld [vmem:[#allocation16 + $0x318] sm:$0xff]
        %v4391 = vld [vmem:[#allocation16 + $0x320] sm:$0xff]
        %v4392 = vld [vmem:[#allocation16 + $0x328] sm:$0xff]
        %v4393 = vld [vmem:[#allocation16 + $0x330] sm:$0xff]
        %v4394 = vld [vmem:[#allocation16 + $0x338] sm:$0xff]
        %v4395 = vld [vmem:[#allocation16 + $0x340] sm:$0xff]
        %v4396 = vld [vmem:[#allocation16 + $0x348] sm:$0xff]
        %v4397 = vld [vmem:[#allocation16 + $0x350] sm:$0xff]
        %v4398 = vld [vmem:[#allocation16 + $0x358] sm:$0xff]
        %v4399 = vld [vmem:[#allocation16 + $0x360] sm:$0xff]
        %v4400 = vld [vmem:[#allocation16 + $0x368] sm:$0xff]
        %v4401 = vld [vmem:[#allocation16 + $0x370] sm:$0xff]
        %v4402 = vld [vmem:[#allocation16 + $0x378] sm:$0xff]
        %v4403 = vld [vmem:[#allocation16 + $0x380] sm:$0xff]
        %v4404 = vld [vmem:[#allocation16 + $0x388] sm:$0xff]
        %v4405 = vld [vmem:[#allocation16 + $0x390] sm:$0xff]
        %v4406 = vld [vmem:[#allocation16 + $0x398] sm:$0xff]
        %v4407 = vld [vmem:[#allocation16 + $0x3a0] sm:$0xff]
        %v4408 = vld [vmem:[#allocation16 + $0x3a8] sm:$0xff]
        %v4409 = vld [vmem:[#allocation16 + $0x3b0] sm:$0xff]
        %v4410 = vld [vmem:[#allocation16 + $0x3b8] sm:$0xff]
        %v4411 = vld [vmem:[#allocation16 + $0x3c0] sm:$0xff]
        %v4412 = vld [vmem:[#allocation16 + $0x3c8] sm:$0xff]
        %v4413 = vld [vmem:[#allocation16 + $0x3d0] sm:$0xff]
        %v4414 = vld [vmem:[#allocation16 + $0x3d8] sm:$0xff]
        %v4415 = vld [vmem:[#allocation16 + $0x3e0] sm:$0xff]
        %v4416 = vld [vmem:[#allocation16 + $0x3e8] sm:$0xff]
        %v4417 = vld [vmem:[#allocation16 + $0x3f0] sm:$0xff]
        %v4418 = vld [vmem:[#allocation16 + $0x3f8] sm:$0xff]
        %v4419 = vld [vmem:[#allocation18] sm:$0xf]
        %v4421 = vlaneseq
        %v4422 = vshrl.u32 %v4421, 7
        %v4423 = vsub.s32 0, %v4422
        %v4424 = vrot.slane %v4419, %v4423
        %v4425 = vlaneseq
        %v4426 = vshrl.u32 %v4425, 7
        %v4427 = vsub.s32 1, %v4426
        %v4428 = vrot.slane %v4419, %v4427
        %v4429 = vlaneseq
        %v4430 = vshrl.u32 %v4429, 7
        %v4431 = vsub.s32 2, %v4430
        %v4432 = vrot.slane %v4419, %v4431
        %v4433 = vlaneseq
        %v4434 = vshrl.u32 %v4433, 7
        %v4435 = vsub.s32 3, %v4434
        %v4436 = vrot.slane %v4419, %v4435
        %4441 = vmatprep.subr.mxu0 %v4352
        %4442 = vmatpush1.msra.mxu0 %v4351
        %4443 = vmatprep.subr.mxu0 %v4348
        %4444 = vmatpush1.msra.mxu0 %v4347
        %4445 = vmatprep.subr.mxu0 %v4344
        %4446 = vmatpush1.msra.mxu0 %v4343
        %4447 = vmatprep.subr.mxu0 %v4340
        %4448 = vmatpush1.msra.mxu0 %v4339
        %4449 = vmatprep.subr.mxu0 %v4336
        %4450 = vmatpush1.msra.mxu0 %v4335
        %4451 = vmatprep.subr.mxu0 %v4332
        %4452 = vmatpush1.msra.mxu0 %v4331
        %4453 = vmatprep.subr.mxu0 %v4328
        %4454 = vmatpush1.msra.mxu0 %v4327
        %4455 = vmatprep.subr.mxu0 %v4324
        %4456 = vmatpush1.msra.mxu0 %v4323
        %4457 = vmatprep.subr.mxu0 %v4320
        %4458 = vmatpush1.msra.mxu0 %v4319
        %4459 = vmatprep.subr.mxu0 %v4316
        %4460 = vmatpush1.msra.mxu0 %v4315
        %4461 = vmatprep.subr.mxu0 %v4312
        %4462 = vmatpush1.msra.mxu0 %v4311
        %4463 = vmatprep.subr.mxu0 %v4308
        %4464 = vmatpush1.msra.mxu0 %v4307
        %4465 = vmatprep.subr.mxu0 %v4304
        %4466 = vmatpush1.msra.mxu0 %v4303
        %4467 = vmatprep.subr.mxu0 %v4300
        %4468 = vmatpush1.msra.mxu0 %v4299
        %4469 = vmatprep.subr.mxu0 %v4296
        %4470 = vmatpush1.msra.mxu0 %v4295
        %4471 = vmatprep.subr.mxu0 %v4292
        %4472 = vmatpush1.msra.mxu0 %v4291
        %4473 = vmatprep.subr.mxu0 %v4416
        %4474 = vmatpush2.msra.mxu0 %v4415
        %4475 = vmatprep.subr.mxu0 %v4412
        %4476 = vmatpush2.msra.mxu0 %v4411
        %4477 = vmatprep.subr.mxu0 %v4408
        %4478 = vmatpush2.msra.mxu0 %v4407
        %4479 = vmatprep.subr.mxu0 %v4404
        %4480 = vmatpush2.msra.mxu0 %v4403
        %4481 = vmatprep.subr.mxu0 %v4400
        %4482 = vmatpush2.msra.mxu0 %v4399
        %4483 = vmatprep.subr.mxu0 %v4396
        %4484 = vmatpush2.msra.mxu0 %v4395
        %4485 = vmatprep.subr.mxu0 %v4392
        %4486 = vmatpush2.msra.mxu0 %v4391
        %4487 = vmatprep.subr.mxu0 %v4388
        %4488 = vmatpush2.msra.mxu0 %v4387
        %4489 = vmatprep.subr.mxu0 %v4384
        %4490 = vmatpush2.msra.mxu0 %v4383
        %4491 = vmatprep.subr.mxu0 %v4380
        %4492 = vmatpush2.msra.mxu0 %v4379
        %4493 = vmatprep.subr.mxu0 %v4376
        %4494 = vmatpush2.msra.mxu0 %v4375
        %4495 = vmatprep.subr.mxu0 %v4372
        %4496 = vmatpush2.msra.mxu0 %v4371
        %4497 = vmatprep.subr.mxu0 %v4368
        %4498 = vmatpush2.msra.mxu0 %v4367
        %4499 = vmatprep.subr.mxu0 %v4364
        %4500 = vmatpush2.msra.mxu0 %v4363
        %4501 = vmatprep.subr.mxu0 %v4360
        %4502 = vmatpush2.msra.mxu0 %v4359
        %4503 = vmatprep.subr.mxu0 %v4356
        %4504 = vmatpush2.msra.mxu0 %v4355
        %4505 = vmatprep.mubr.f32.mxu0 %v4290
        %4506 = vmatmul.mubr.f32.gmra.mxu0 %v4289
        %v4507 = vpop.f32.mrf.mxu0
        %v4508 = vadd.f32 %v4424, %v4507
        %v4509 = vpop.f32.mrf.mxu0
        %v4510 = vadd.f32 %v4428, %v4509
        %4511 = vdwg.mxu0
        %4512 = vmatprep.subr.mxu0 %v4354
        %4513 = vmatpush1.msra.mxu0 %v4353
        %4514 = vmatprep.subr.mxu0 %v4350
        %4515 = vmatpush1.msra.mxu0 %v4349
        %4516 = vmatprep.subr.mxu0 %v4346
        %4517 = vmatpush1.msra.mxu0 %v4345
        %4518 = vmatprep.subr.mxu0 %v4342
        %4519 = vmatpush1.msra.mxu0 %v4341
        %4520 = vmatprep.subr.mxu0 %v4338
        %4521 = vmatpush1.msra.mxu0 %v4337
        %4522 = vmatprep.subr.mxu0 %v4334
        %4523 = vmatpush1.msra.mxu0 %v4333
        %4524 = vmatprep.subr.mxu0 %v4330
        %4525 = vmatpush1.msra.mxu0 %v4329
        %4526 = vmatprep.subr.mxu0 %v4326
        %4527 = vmatpush1.msra.mxu0 %v4325
        %4528 = vmatprep.subr.mxu0 %v4322
        %4529 = vmatpush1.msra.mxu0 %v4321
        %4530 = vmatprep.subr.mxu0 %v4318
        %4531 = vmatpush1.msra.mxu0 %v4317
        %4532 = vmatprep.subr.mxu0 %v4314
        %4533 = vmatpush1.msra.mxu0 %v4313
        %4534 = vmatprep.subr.mxu0 %v4310
        %4535 = vmatpush1.msra.mxu0 %v4309
        %4536 = vmatprep.subr.mxu0 %v4306
        %4537 = vmatpush1.msra.mxu0 %v4305
        %4538 = vmatprep.subr.mxu0 %v4302
        %4539 = vmatpush1.msra.mxu0 %v4301
        %4540 = vmatprep.subr.mxu0 %v4298
        %4541 = vmatpush1.msra.mxu0 %v4297
        %4542 = vmatprep.subr.mxu0 %v4294
        %4543 = vmatpush1.msra.mxu0 %v4293
        %4544 = vmatprep.subr.mxu0 %v4418
        %4545 = vmatpush2.msra.mxu0 %v4417
        %4546 = vmatprep.subr.mxu0 %v4414
        %4547 = vmatpush2.msra.mxu0 %v4413
        %4548 = vmatprep.subr.mxu0 %v4410
        %4549 = vmatpush2.msra.mxu0 %v4409
        %4550 = vmatprep.subr.mxu0 %v4406
        %4551 = vmatpush2.msra.mxu0 %v4405
        %4552 = vmatprep.subr.mxu0 %v4402
        %4553 = vmatpush2.msra.mxu0 %v4401
        %4554 = vmatprep.subr.mxu0 %v4398
        %4555 = vmatpush2.msra.mxu0 %v4397
        %4556 = vmatprep.subr.mxu0 %v4394
        %4557 = vmatpush2.msra.mxu0 %v4393
        %4558 = vmatprep.subr.mxu0 %v4390
        %4559 = vmatpush2.msra.mxu0 %v4389
        %4560 = vmatprep.subr.mxu0 %v4386
        %4561 = vmatpush2.msra.mxu0 %v4385
        %4562 = vmatprep.subr.mxu0 %v4382
        %4563 = vmatpush2.msra.mxu0 %v4381
        %4564 = vmatprep.subr.mxu0 %v4378
        %4565 = vmatpush2.msra.mxu0 %v4377
        %4566 = vmatprep.subr.mxu0 %v4374
        %4567 = vmatpush2.msra.mxu0 %v4373
        %4568 = vmatprep.subr.mxu0 %v4370
        %4569 = vmatpush2.msra.mxu0 %v4369
        %4570 = vmatprep.subr.mxu0 %v4366
        %4571 = vmatpush2.msra.mxu0 %v4365
        %4572 = vmatprep.subr.mxu0 %v4362
        %4573 = vmatpush2.msra.mxu0 %v4361
        %4574 = vmatprep.subr.mxu0 %v4358
        %4575 = vmatpush2.msra.mxu0 %v4357
        %4576 = vmatprep.mubr.f32.mxu0 %v4290
        %4577 = vmatmul.mubr.f32.gmra.mxu0 %v4289
        %v4578 = vpop.f32.mrf.mxu0
        %v4579 = vadd.f32 %v4432, %v4578
        %v4580 = vpop.f32.mrf.mxu0
        %v4581 = vadd.f32 %v4436, %v4580
        %4582 = vdwg.mxu0
        %v4583 = vmax.f32 %v4508, 0.0
        %v4584 = vmax.f32 %v4510, 0.0
        %v4585 = vmax.f32 %v4579, 0.0
        %v4586 = vmax.f32 %v4581, 0.0
        %v4587 = vld [vmem:[#allocation19] sm:$0xff]
        %v4588 = vld [vmem:[#allocation19 + $0x8] sm:$0xff]
        %v4589 = vld [vmem:[#allocation19 + $0x10] sm:$0xff]
        %v4590 = vld [vmem:[#allocation19 + $0x18] sm:$0xff]
        %v4591 = vld [vmem:[#allocation19 + $0x20] sm:$0xff]
        %v4592 = vld [vmem:[#allocation19 + $0x28] sm:$0xff]
        %v4593 = vld [vmem:[#allocation19 + $0x30] sm:$0xff]
        %v4594 = vld [vmem:[#allocation19 + $0x38] sm:$0xff]
        %v4595 = vld [vmem:[#allocation19 + $0x40] sm:$0xff]
        %v4596 = vld [vmem:[#allocation19 + $0x48] sm:$0xff]
        %v4597 = vld [vmem:[#allocation19 + $0x50] sm:$0xff]
        %v4598 = vld [vmem:[#allocation19 + $0x58] sm:$0xff]
        %v4599 = vld [vmem:[#allocation19 + $0x60] sm:$0xff]
        %v4600 = vld [vmem:[#allocation19 + $0x68] sm:$0xff]
        %v4601 = vld [vmem:[#allocation19 + $0x70] sm:$0xff]
        %v4602 = vld [vmem:[#allocation19 + $0x78] sm:$0xff]
        %v4603 = vld [vmem:[#allocation19 + $0x80] sm:$0xff]
        %v4604 = vld [vmem:[#allocation19 + $0x88] sm:$0xff]
        %v4605 = vld [vmem:[#allocation19 + $0x90] sm:$0xff]
        %v4606 = vld [vmem:[#allocation19 + $0x98] sm:$0xff]
        %v4607 = vld [vmem:[#allocation19 + $0xa0] sm:$0xff]
        %v4608 = vld [vmem:[#allocation19 + $0xa8] sm:$0xff]
        %v4609 = vld [vmem:[#allocation19 + $0xb0] sm:$0xff]
        %v4610 = vld [vmem:[#allocation19 + $0xb8] sm:$0xff]
        %v4611 = vld [vmem:[#allocation19 + $0xc0] sm:$0xff]
        %v4612 = vld [vmem:[#allocation19 + $0xc8] sm:$0xff]
        %v4613 = vld [vmem:[#allocation19 + $0xd0] sm:$0xff]
        %v4614 = vld [vmem:[#allocation19 + $0xd8] sm:$0xff]
        %v4615 = vld [vmem:[#allocation19 + $0xe0] sm:$0xff]
        %v4616 = vld [vmem:[#allocation19 + $0xe8] sm:$0xff]
        %v4617 = vld [vmem:[#allocation19 + $0xf0] sm:$0xff]
        %v4618 = vld [vmem:[#allocation19 + $0xf8] sm:$0xff]
        %v4619 = vld [vmem:[#allocation21] sm:$0x3]
        %v4621 = vlaneseq
        %v4622 = vshrl.u32 %v4621, 7
        %v4623 = vsub.s32 0, %v4622
        %v4624 = vrot.slane %v4619, %v4623
        %v4625 = vlaneseq
        %v4626 = vshrl.u32 %v4625, 7
        %v4627 = vsub.s32 1, %v4626
        %v4628 = vrot.slane %v4619, %v4627
        %4631 = vmatprep.subr.mxu0 %v4618
        %4632 = vmatpush1.msra.mxu0 %v4617
        %4633 = vmatprep.subr.mxu0 %v4616
        %4634 = vmatpush1.msra.mxu0 %v4615
        %4635 = vmatprep.subr.mxu0 %v4614
        %4636 = vmatpush1.msra.mxu0 %v4613
        %4637 = vmatprep.subr.mxu0 %v4612
        %4638 = vmatpush1.msra.mxu0 %v4611
        %4639 = vmatprep.subr.mxu0 %v4610
        %4640 = vmatpush1.msra.mxu0 %v4609
        %4641 = vmatprep.subr.mxu0 %v4608
        %4642 = vmatpush1.msra.mxu0 %v4607
        %4643 = vmatprep.subr.mxu0 %v4606
        %4644 = vmatpush1.msra.mxu0 %v4605
        %4645 = vmatprep.subr.mxu0 %v4604
        %4646 = vmatpush1.msra.mxu0 %v4603
        %4647 = vmatprep.subr.mxu0 %v4602
        %4648 = vmatpush1.msra.mxu0 %v4601
        %4649 = vmatprep.subr.mxu0 %v4600
        %4650 = vmatpush1.msra.mxu0 %v4599
        %4651 = vmatprep.subr.mxu0 %v4598
        %4652 = vmatpush1.msra.mxu0 %v4597
        %4653 = vmatprep.subr.mxu0 %v4596
        %4654 = vmatpush1.msra.mxu0 %v4595
        %4655 = vmatprep.subr.mxu0 %v4594
        %4656 = vmatpush1.msra.mxu0 %v4593
        %4657 = vmatprep.subr.mxu0 %v4592
        %4658 = vmatpush1.msra.mxu0 %v4591
        %4659 = vmatprep.subr.mxu0 %v4590
        %4660 = vmatpush1.msra.mxu0 %v4589
        %4661 = vmatprep.subr.mxu0 %v4588
        %4662 = vmatpush1.msra.mxu0 %v4587
        %4663 = vmatprep.subr.mxu0 0.0
        %4664 = vmatpush2.msra.mxu0 0.0
        %4665 = vmatprep.subr.mxu0 0.0
        %4666 = vmatpush2.msra.mxu0 0.0
        %4667 = vmatprep.subr.mxu0 0.0
        %4668 = vmatpush2.msra.mxu0 0.0
        %4669 = vmatprep.subr.mxu0 0.0
        %4670 = vmatpush2.msra.mxu0 0.0
        %4671 = vmatprep.subr.mxu0 0.0
        %4672 = vmatpush2.msra.mxu0 0.0
        %4673 = vmatprep.subr.mxu0 0.0
        %4674 = vmatpush2.msra.mxu0 0.0
        %4675 = vmatprep.subr.mxu0 0.0
        %4676 = vmatpush2.msra.mxu0 0.0
        %4677 = vmatprep.subr.mxu0 0.0
        %4678 = vmatpush2.msra.mxu0 0.0
        %4679 = vmatprep.subr.mxu0 0.0
        %4680 = vmatpush2.msra.mxu0 0.0
        %4681 = vmatprep.subr.mxu0 0.0
        %4682 = vmatpush2.msra.mxu0 0.0
        %4683 = vmatprep.subr.mxu0 0.0
        %4684 = vmatpush2.msra.mxu0 0.0
        %4685 = vmatprep.subr.mxu0 0.0
        %4686 = vmatpush2.msra.mxu0 0.0
        %4687 = vmatprep.subr.mxu0 0.0
        %4688 = vmatpush2.msra.mxu0 0.0
        %4689 = vmatprep.subr.mxu0 0.0
        %4690 = vmatpush2.msra.mxu0 0.0
        %4691 = vmatprep.subr.mxu0 0.0
        %4692 = vmatpush2.msra.mxu0 0.0
        %4693 = vmatprep.subr.mxu0 0.0
        %4694 = vmatpush2.msra.mxu0 0.0
        %4695 = vmatprep.mubr.f32.mxu0 0.0
        %4696 = vmatmul.mubr.f32.gmra.mxu0 %v4583
        %v4697 = vpop.f32.mrf.mxu0
        %v4698 = vadd.f32 %v4624, %v4697
        %v4699 = vpop.f32.mrf.mxu0
        %v4700 = vadd.f32 %v4628, %v4699
        %4701 = vdwg.mxu0
        %v4702 = vmax.f32 %v4698, 0.0
        %v4703 = vmax.f32 %v4700, 0.0
        %v4704 = vld [vmem:[#allocation22] sm:$0xff]
        %v4705 = vld [vmem:[#allocation22 + $0x8] sm:$0xff]
        %v4706 = vld [vmem:[#allocation22 + $0x10] sm:$0xff]
        %v4707 = vld [vmem:[#allocation22 + $0x18] sm:$0xff]
        %v4708 = vld [vmem:[#allocation22 + $0x20] sm:$0xff]
        %v4709 = vld [vmem:[#allocation22 + $0x28] sm:$0xff]
        %v4710 = vld [vmem:[#allocation22 + $0x30] sm:$0xff]
        %v4711 = vld [vmem:[#allocation22 + $0x38] sm:$0xff]
        %v4712 = vld [vmem:[#allocation22 + $0x40] sm:$0xff]
        %v4713 = vld [vmem:[#allocation22 + $0x48] sm:$0xff]
        %v4714 = vld [vmem:[#allocation22 + $0x50] sm:$0xff]
        %v4715 = vld [vmem:[#allocation22 + $0x58] sm:$0xff]
        %v4716 = vld [vmem:[#allocation22 + $0x60] sm:$0xff]
        %v4717 = vld [vmem:[#allocation22 + $0x68] sm:$0xff]
        %v4718 = vld [vmem:[#allocation22 + $0x70] sm:$0xff]
        %v4719 = vld [vmem:[#allocation22 + $0x78] sm:$0xff]
        %v4720 = vld [vmem:[#allocation22 + $0x80] sm:$0xff]
        %v4721 = vld [vmem:[#allocation22 + $0x88] sm:$0xff]
        %v4722 = vld [vmem:[#allocation22 + $0x90] sm:$0xff]
        %v4723 = vld [vmem:[#allocation22 + $0x98] sm:$0xff]
        %v4724 = vld [vmem:[#allocation22 + $0xa0] sm:$0xff]
        %v4725 = vld [vmem:[#allocation22 + $0xa8] sm:$0xff]
        %v4726 = vld [vmem:[#allocation22 + $0xb0] sm:$0xff]
        %v4727 = vld [vmem:[#allocation22 + $0xb8] sm:$0xff]
        %v4728 = vld [vmem:[#allocation22 + $0xc0] sm:$0xff]
        %v4729 = vld [vmem:[#allocation22 + $0xc8] sm:$0xff]
        %v4730 = vld [vmem:[#allocation22 + $0xd0] sm:$0xff]
        %v4731 = vld [vmem:[#allocation22 + $0xd8] sm:$0xff]
        %v4732 = vld [vmem:[#allocation22 + $0xe0] sm:$0xff]
        %v4733 = vld [vmem:[#allocation22 + $0xe8] sm:$0xff]
        %v4734 = vld [vmem:[#allocation22 + $0xf0] sm:$0xff]
        %v4735 = vld [vmem:[#allocation22 + $0xf8] sm:$0xff]
        %v4736 = vld [vmem:[#allocation22 + $0x100] sm:$0xff]
        %v4737 = vld [vmem:[#allocation22 + $0x108] sm:$0xff]
        %v4738 = vld [vmem:[#allocation22 + $0x110] sm:$0xff]
        %v4739 = vld [vmem:[#allocation22 + $0x118] sm:$0xff]
        %v4740 = vld [vmem:[#allocation22 + $0x120] sm:$0xff]
        %v4741 = vld [vmem:[#allocation22 + $0x128] sm:$0xff]
        %v4742 = vld [vmem:[#allocation22 + $0x130] sm:$0xff]
        %v4743 = vld [vmem:[#allocation22 + $0x138] sm:$0xff]
        %v4744 = vld [vmem:[#allocation22 + $0x140] sm:$0xff]
        %v4745 = vld [vmem:[#allocation22 + $0x148] sm:$0xff]
        %v4746 = vld [vmem:[#allocation22 + $0x150] sm:$0xff]
        %v4747 = vld [vmem:[#allocation22 + $0x158] sm:$0xff]
        %v4748 = vld [vmem:[#allocation22 + $0x160] sm:$0xff]
        %v4749 = vld [vmem:[#allocation22 + $0x168] sm:$0xff]
        %v4750 = vld [vmem:[#allocation22 + $0x170] sm:$0xff]
        %v4751 = vld [vmem:[#allocation22 + $0x178] sm:$0xff]
        %v4752 = vld [vmem:[#allocation22 + $0x180] sm:$0xff]
        %v4753 = vld [vmem:[#allocation22 + $0x188] sm:$0xff]
        %v4754 = vld [vmem:[#allocation22 + $0x190] sm:$0xff]
        %v4755 = vld [vmem:[#allocation22 + $0x198] sm:$0xff]
        %v4756 = vld [vmem:[#allocation22 + $0x1a0] sm:$0xff]
        %v4757 = vld [vmem:[#allocation22 + $0x1a8] sm:$0xff]
        %v4758 = vld [vmem:[#allocation22 + $0x1b0] sm:$0xff]
        %v4759 = vld [vmem:[#allocation22 + $0x1b8] sm:$0xff]
        %v4760 = vld [vmem:[#allocation22 + $0x1c0] sm:$0xff]
        %v4761 = vld [vmem:[#allocation22 + $0x1c8] sm:$0xff]
        %v4762 = vld [vmem:[#allocation22 + $0x1d0] sm:$0xff]
        %v4763 = vld [vmem:[#allocation22 + $0x1d8] sm:$0xff]
        %v4764 = vld [vmem:[#allocation22 + $0x1e0] sm:$0xff]
        %v4765 = vld [vmem:[#allocation22 + $0x1e8] sm:$0xff]
        %v4766 = vld [vmem:[#allocation22 + $0x1f0] sm:$0xff]
        %v4767 = vld [vmem:[#allocation22 + $0x1f8] sm:$0xff]
        %v4768 = vld [vmem:[#allocation24] sm:$0x3]
        %v4770 = vlaneseq
        %v4771 = vshrl.u32 %v4770, 7
        %v4772 = vsub.s32 0, %v4771
        %v4773 = vrot.slane %v4768, %v4772
        %v4774 = vlaneseq
        %v4775 = vshrl.u32 %v4774, 7
        %v4776 = vsub.s32 1, %v4775
        %v4777 = vrot.slane %v4768, %v4776
        %4780 = vmatprep.subr.mxu0 %v4735
        %4781 = vmatpush1.msra.mxu0 %v4734
        %4782 = vmatprep.subr.mxu0 %v4733
        %4783 = vmatpush1.msra.mxu0 %v4732
        %4784 = vmatprep.subr.mxu0 %v4731
        %4785 = vmatpush1.msra.mxu0 %v4730
        %4786 = vmatprep.subr.mxu0 %v4729
        %4787 = vmatpush1.msra.mxu0 %v4728
        %4788 = vmatprep.subr.mxu0 %v4727
        %4789 = vmatpush1.msra.mxu0 %v4726
        %4790 = vmatprep.subr.mxu0 %v4725
        %4791 = vmatpush1.msra.mxu0 %v4724
        %4792 = vmatprep.subr.mxu0 %v4723
        %4793 = vmatpush1.msra.mxu0 %v4722
        %4794 = vmatprep.subr.mxu0 %v4721
        %4795 = vmatpush1.msra.mxu0 %v4720
        %4796 = vmatprep.subr.mxu0 %v4719
        %4797 = vmatpush1.msra.mxu0 %v4718
        %4798 = vmatprep.subr.mxu0 %v4717
        %4799 = vmatpush1.msra.mxu0 %v4716
        %4800 = vmatprep.subr.mxu0 %v4715
        %4801 = vmatpush1.msra.mxu0 %v4714
        %4802 = vmatprep.subr.mxu0 %v4713
        %4803 = vmatpush1.msra.mxu0 %v4712
        %4804 = vmatprep.subr.mxu0 %v4711
        %4805 = vmatpush1.msra.mxu0 %v4710
        %4806 = vmatprep.subr.mxu0 %v4709
        %4807 = vmatpush1.msra.mxu0 %v4708
        %4808 = vmatprep.subr.mxu0 %v4707
        %4809 = vmatpush1.msra.mxu0 %v4706
        %4810 = vmatprep.subr.mxu0 %v4705
        %4811 = vmatpush1.msra.mxu0 %v4704
        %4812 = vmatprep.subr.mxu0 %v4767
        %4813 = vmatpush2.msra.mxu0 %v4766
        %4814 = vmatprep.subr.mxu0 %v4765
        %4815 = vmatpush2.msra.mxu0 %v4764
        %4816 = vmatprep.subr.mxu0 %v4763
        %4817 = vmatpush2.msra.mxu0 %v4762
        %4818 = vmatprep.subr.mxu0 %v4761
        %4819 = vmatpush2.msra.mxu0 %v4760
        %4820 = vmatprep.subr.mxu0 %v4759
        %4821 = vmatpush2.msra.mxu0 %v4758
        %4822 = vmatprep.subr.mxu0 %v4757
        %4823 = vmatpush2.msra.mxu0 %v4756
        %4824 = vmatprep.subr.mxu0 %v4755
        %4825 = vmatpush2.msra.mxu0 %v4754
        %4826 = vmatprep.subr.mxu0 %v4753
        %4827 = vmatpush2.msra.mxu0 %v4752
        %4828 = vmatprep.subr.mxu0 %v4751
        %4829 = vmatpush2.msra.mxu0 %v4750
        %4830 = vmatprep.subr.mxu0 %v4749
        %4831 = vmatpush2.msra.mxu0 %v4748
        %4832 = vmatprep.subr.mxu0 %v4747
        %4833 = vmatpush2.msra.mxu0 %v4746
        %4834 = vmatprep.subr.mxu0 %v4745
        %4835 = vmatpush2.msra.mxu0 %v4744
        %4836 = vmatprep.subr.mxu0 %v4743
        %4837 = vmatpush2.msra.mxu0 %v4742
        %4838 = vmatprep.subr.mxu0 %v4741
        %4839 = vmatpush2.msra.mxu0 %v4740
        %4840 = vmatprep.subr.mxu0 %v4739
        %4841 = vmatpush2.msra.mxu0 %v4738
        %4842 = vmatprep.subr.mxu0 %v4737
        %4843 = vmatpush2.msra.mxu0 %v4736
        %4844 = vmatprep.mubr.f32.mxu0 %v4703
        %4845 = vmatmul.mubr.f32.gmra.mxu0 %v4702
        %v4846 = vpop.f32.mrf.mxu0
        %v4847 = vadd.f32 %v4773, %v4846
        %v4848 = vpop.f32.mrf.mxu0
        %v4849 = vadd.f32 %v4777, %v4848
        %4850 = vdwg.mxu0
        %v4851 = vmax.f32 %v4847, 0.0
        %v4852 = vmax.f32 %v4849, 0.0
        %4853 = vst [vmem:[%s700 + $0x80] sm:$0xff] %v4851
        %4854 = vst [vmem:[%s700 + $0x88] sm:$0xff] %v4852
        %v4855 = vld [vmem:[#allocation19] sm:$0xff]
        %v4856 = vld [vmem:[#allocation19 + $0x8] sm:$0xff]
        %v4857 = vld [vmem:[#allocation19 + $0x10] sm:$0xff]
        %v4858 = vld [vmem:[#allocation19 + $0x18] sm:$0xff]
        %v4859 = vld [vmem:[#allocation19 + $0x20] sm:$0xff]
        %v4860 = vld [vmem:[#allocation19 + $0x28] sm:$0xff]
        %v4861 = vld [vmem:[#allocation19 + $0x30] sm:$0xff]
        %v4862 = vld [vmem:[#allocation19 + $0x38] sm:$0xff]
        %v4863 = vld [vmem:[#allocation19 + $0x40] sm:$0xff]
        %v4864 = vld [vmem:[#allocation19 + $0x48] sm:$0xff]
        %v4865 = vld [vmem:[#allocation19 + $0x50] sm:$0xff]
        %v4866 = vld [vmem:[#allocation19 + $0x58] sm:$0xff]
        %v4867 = vld [vmem:[#allocation19 + $0x60] sm:$0xff]
        %v4868 = vld [vmem:[#allocation19 + $0x68] sm:$0xff]
        %v4869 = vld [vmem:[#allocation19 + $0x70] sm:$0xff]
        %v4870 = vld [vmem:[#allocation19 + $0x78] sm:$0xff]
        %v4871 = vld [vmem:[#allocation19 + $0x80] sm:$0xff]
        %v4872 = vld [vmem:[#allocation19 + $0x88] sm:$0xff]
        %v4873 = vld [vmem:[#allocation19 + $0x90] sm:$0xff]
        %v4874 = vld [vmem:[#allocation19 + $0x98] sm:$0xff]
        %v4875 = vld [vmem:[#allocation19 + $0xa0] sm:$0xff]
        %v4876 = vld [vmem:[#allocation19 + $0xa8] sm:$0xff]
        %v4877 = vld [vmem:[#allocation19 + $0xb0] sm:$0xff]
        %v4878 = vld [vmem:[#allocation19 + $0xb8] sm:$0xff]
        %v4879 = vld [vmem:[#allocation19 + $0xc0] sm:$0xff]
        %v4880 = vld [vmem:[#allocation19 + $0xc8] sm:$0xff]
        %v4881 = vld [vmem:[#allocation19 + $0xd0] sm:$0xff]
        %v4882 = vld [vmem:[#allocation19 + $0xd8] sm:$0xff]
        %v4883 = vld [vmem:[#allocation19 + $0xe0] sm:$0xff]
        %v4884 = vld [vmem:[#allocation19 + $0xe8] sm:$0xff]
        %v4885 = vld [vmem:[#allocation19 + $0xf0] sm:$0xff]
        %v4886 = vld [vmem:[#allocation19 + $0xf8] sm:$0xff]
        %v4887 = vld [vmem:[#allocation21] sm:$0x3]
        %v4889 = vlaneseq
        %v4890 = vshrl.u32 %v4889, 7
        %v4891 = vsub.s32 0, %v4890
        %v4892 = vrot.slane %v4887, %v4891
        %v4893 = vlaneseq
        %v4894 = vshrl.u32 %v4893, 7
        %v4895 = vsub.s32 1, %v4894
        %v4896 = vrot.slane %v4887, %v4895
        %4899 = vmatprep.subr.mxu0 %v4886
        %4900 = vmatpush1.msra.mxu0 %v4885
        %4901 = vmatprep.subr.mxu0 %v4884
        %4902 = vmatpush1.msra.mxu0 %v4883
        %4903 = vmatprep.subr.mxu0 %v4882
        %4904 = vmatpush1.msra.mxu0 %v4881
        %4905 = vmatprep.subr.mxu0 %v4880
        %4906 = vmatpush1.msra.mxu0 %v4879
        %4907 = vmatprep.subr.mxu0 %v4878
        %4908 = vmatpush1.msra.mxu0 %v4877
        %4909 = vmatprep.subr.mxu0 %v4876
        %4910 = vmatpush1.msra.mxu0 %v4875
        %4911 = vmatprep.subr.mxu0 %v4874
        %4912 = vmatpush1.msra.mxu0 %v4873
        %4913 = vmatprep.subr.mxu0 %v4872
        %4914 = vmatpush1.msra.mxu0 %v4871
        %4915 = vmatprep.subr.mxu0 %v4870
        %4916 = vmatpush1.msra.mxu0 %v4869
        %4917 = vmatprep.subr.mxu0 %v4868
        %4918 = vmatpush1.msra.mxu0 %v4867
        %4919 = vmatprep.subr.mxu0 %v4866
        %4920 = vmatpush1.msra.mxu0 %v4865
        %4921 = vmatprep.subr.mxu0 %v4864
        %4922 = vmatpush1.msra.mxu0 %v4863
        %4923 = vmatprep.subr.mxu0 %v4862
        %4924 = vmatpush1.msra.mxu0 %v4861
        %4925 = vmatprep.subr.mxu0 %v4860
        %4926 = vmatpush1.msra.mxu0 %v4859
        %4927 = vmatprep.subr.mxu0 %v4858
        %4928 = vmatpush1.msra.mxu0 %v4857
        %4929 = vmatprep.subr.mxu0 %v4856
        %4930 = vmatpush1.msra.mxu0 %v4855
        %4931 = vmatprep.subr.mxu0 0.0
        %4932 = vmatpush2.msra.mxu0 0.0
        %4933 = vmatprep.subr.mxu0 0.0
        %4934 = vmatpush2.msra.mxu0 0.0
        %4935 = vmatprep.subr.mxu0 0.0
        %4936 = vmatpush2.msra.mxu0 0.0
        %4937 = vmatprep.subr.mxu0 0.0
        %4938 = vmatpush2.msra.mxu0 0.0
        %4939 = vmatprep.subr.mxu0 0.0
        %4940 = vmatpush2.msra.mxu0 0.0
        %4941 = vmatprep.subr.mxu0 0.0
        %4942 = vmatpush2.msra.mxu0 0.0
        %4943 = vmatprep.subr.mxu0 0.0
        %4944 = vmatpush2.msra.mxu0 0.0
        %4945 = vmatprep.subr.mxu0 0.0
        %4946 = vmatpush2.msra.mxu0 0.0
        %4947 = vmatprep.subr.mxu0 0.0
        %4948 = vmatpush2.msra.mxu0 0.0
        %4949 = vmatprep.subr.mxu0 0.0
        %4950 = vmatpush2.msra.mxu0 0.0
        %4951 = vmatprep.subr.mxu0 0.0
        %4952 = vmatpush2.msra.mxu0 0.0
        %4953 = vmatprep.subr.mxu0 0.0
        %4954 = vmatpush2.msra.mxu0 0.0
        %4955 = vmatprep.subr.mxu0 0.0
        %4956 = vmatpush2.msra.mxu0 0.0
        %4957 = vmatprep.subr.mxu0 0.0
        %4958 = vmatpush2.msra.mxu0 0.0
        %4959 = vmatprep.subr.mxu0 0.0
        %4960 = vmatpush2.msra.mxu0 0.0
        %4961 = vmatprep.subr.mxu0 0.0
        %4962 = vmatpush2.msra.mxu0 0.0
        %4963 = vmatprep.mubr.f32.mxu0 0.0
        %4964 = vmatmul.mubr.f32.gmra.mxu0 %v4584
        %v4965 = vpop.f32.mrf.mxu0
        %v4966 = vadd.f32 %v4892, %v4965
        %v4967 = vpop.f32.mrf.mxu0
        %v4968 = vadd.f32 %v4896, %v4967
        %4969 = vdwg.mxu0
        %v4970 = vmax.f32 %v4966, 0.0
        %v4971 = vmax.f32 %v4968, 0.0
        %v4972 = vld [vmem:[#allocation22] sm:$0xff]
        %v4973 = vld [vmem:[#allocation22 + $0x8] sm:$0xff]
        %v4974 = vld [vmem:[#allocation22 + $0x10] sm:$0xff]
        %v4975 = vld [vmem:[#allocation22 + $0x18] sm:$0xff]
        %v4976 = vld [vmem:[#allocation22 + $0x20] sm:$0xff]
        %v4977 = vld [vmem:[#allocation22 + $0x28] sm:$0xff]
        %v4978 = vld [vmem:[#allocation22 + $0x30] sm:$0xff]
        %v4979 = vld [vmem:[#allocation22 + $0x38] sm:$0xff]
        %v4980 = vld [vmem:[#allocation22 + $0x40] sm:$0xff]
        %v4981 = vld [vmem:[#allocation22 + $0x48] sm:$0xff]
        %v4982 = vld [vmem:[#allocation22 + $0x50] sm:$0xff]
        %v4983 = vld [vmem:[#allocation22 + $0x58] sm:$0xff]
        %v4984 = vld [vmem:[#allocation22 + $0x60] sm:$0xff]
        %v4985 = vld [vmem:[#allocation22 + $0x68] sm:$0xff]
        %v4986 = vld [vmem:[#allocation22 + $0x70] sm:$0xff]
        %v4987 = vld [vmem:[#allocation22 + $0x78] sm:$0xff]
        %v4988 = vld [vmem:[#allocation22 + $0x80] sm:$0xff]
        %v4989 = vld [vmem:[#allocation22 + $0x88] sm:$0xff]
        %v4990 = vld [vmem:[#allocation22 + $0x90] sm:$0xff]
        %v4991 = vld [vmem:[#allocation22 + $0x98] sm:$0xff]
        %v4992 = vld [vmem:[#allocation22 + $0xa0] sm:$0xff]
        %v4993 = vld [vmem:[#allocation22 + $0xa8] sm:$0xff]
        %v4994 = vld [vmem:[#allocation22 + $0xb0] sm:$0xff]
        %v4995 = vld [vmem:[#allocation22 + $0xb8] sm:$0xff]
        %v4996 = vld [vmem:[#allocation22 + $0xc0] sm:$0xff]
        %v4997 = vld [vmem:[#allocation22 + $0xc8] sm:$0xff]
        %v4998 = vld [vmem:[#allocation22 + $0xd0] sm:$0xff]
        %v4999 = vld [vmem:[#allocation22 + $0xd8] sm:$0xff]
        %v5000 = vld [vmem:[#allocation22 + $0xe0] sm:$0xff]
        %v5001 = vld [vmem:[#allocation22 + $0xe8] sm:$0xff]
        %v5002 = vld [vmem:[#allocation22 + $0xf0] sm:$0xff]
        %v5003 = vld [vmem:[#allocation22 + $0xf8] sm:$0xff]
        %v5004 = vld [vmem:[#allocation22 + $0x100] sm:$0xff]
        %v5005 = vld [vmem:[#allocation22 + $0x108] sm:$0xff]
        %v5006 = vld [vmem:[#allocation22 + $0x110] sm:$0xff]
        %v5007 = vld [vmem:[#allocation22 + $0x118] sm:$0xff]
        %v5008 = vld [vmem:[#allocation22 + $0x120] sm:$0xff]
        %v5009 = vld [vmem:[#allocation22 + $0x128] sm:$0xff]
        %v5010 = vld [vmem:[#allocation22 + $0x130] sm:$0xff]
        %v5011 = vld [vmem:[#allocation22 + $0x138] sm:$0xff]
        %v5012 = vld [vmem:[#allocation22 + $0x140] sm:$0xff]
        %v5013 = vld [vmem:[#allocation22 + $0x148] sm:$0xff]
        %v5014 = vld [vmem:[#allocation22 + $0x150] sm:$0xff]
        %v5015 = vld [vmem:[#allocation22 + $0x158] sm:$0xff]
        %v5016 = vld [vmem:[#allocation22 + $0x160] sm:$0xff]
        %v5017 = vld [vmem:[#allocation22 + $0x168] sm:$0xff]
        %v5018 = vld [vmem:[#allocation22 + $0x170] sm:$0xff]
        %v5019 = vld [vmem:[#allocation22 + $0x178] sm:$0xff]
        %v5020 = vld [vmem:[#allocation22 + $0x180] sm:$0xff]
        %v5021 = vld [vmem:[#allocation22 + $0x188] sm:$0xff]
        %v5022 = vld [vmem:[#allocation22 + $0x190] sm:$0xff]
        %v5023 = vld [vmem:[#allocation22 + $0x198] sm:$0xff]
        %v5024 = vld [vmem:[#allocation22 + $0x1a0] sm:$0xff]
        %v5025 = vld [vmem:[#allocation22 + $0x1a8] sm:$0xff]
        %v5026 = vld [vmem:[#allocation22 + $0x1b0] sm:$0xff]
        %v5027 = vld [vmem:[#allocation22 + $0x1b8] sm:$0xff]
        %v5028 = vld [vmem:[#allocation22 + $0x1c0] sm:$0xff]
        %v5029 = vld [vmem:[#allocation22 + $0x1c8] sm:$0xff]
        %v5030 = vld [vmem:[#allocation22 + $0x1d0] sm:$0xff]
        %v5031 = vld [vmem:[#allocation22 + $0x1d8] sm:$0xff]
        %v5032 = vld [vmem:[#allocation22 + $0x1e0] sm:$0xff]
        %v5033 = vld [vmem:[#allocation22 + $0x1e8] sm:$0xff]
        %v5034 = vld [vmem:[#allocation22 + $0x1f0] sm:$0xff]
        %v5035 = vld [vmem:[#allocation22 + $0x1f8] sm:$0xff]
        %v5036 = vld [vmem:[#allocation24] sm:$0x3]
        %v5038 = vlaneseq
        %v5039 = vshrl.u32 %v5038, 7
        %v5040 = vsub.s32 0, %v5039
        %v5041 = vrot.slane %v5036, %v5040
        %v5042 = vlaneseq
        %v5043 = vshrl.u32 %v5042, 7
        %v5044 = vsub.s32 1, %v5043
        %v5045 = vrot.slane %v5036, %v5044
        %5048 = vmatprep.subr.mxu0 %v5003
        %5049 = vmatpush1.msra.mxu0 %v5002
        %5050 = vmatprep.subr.mxu0 %v5001
        %5051 = vmatpush1.msra.mxu0 %v5000
        %5052 = vmatprep.subr.mxu0 %v4999
        %5053 = vmatpush1.msra.mxu0 %v4998
        %5054 = vmatprep.subr.mxu0 %v4997
        %5055 = vmatpush1.msra.mxu0 %v4996
        %5056 = vmatprep.subr.mxu0 %v4995
        %5057 = vmatpush1.msra.mxu0 %v4994
        %5058 = vmatprep.subr.mxu0 %v4993
        %5059 = vmatpush1.msra.mxu0 %v4992
        %5060 = vmatprep.subr.mxu0 %v4991
        %5061 = vmatpush1.msra.mxu0 %v4990
        %5062 = vmatprep.subr.mxu0 %v4989
        %5063 = vmatpush1.msra.mxu0 %v4988
        %5064 = vmatprep.subr.mxu0 %v4987
        %5065 = vmatpush1.msra.mxu0 %v4986
        %5066 = vmatprep.subr.mxu0 %v4985
        %5067 = vmatpush1.msra.mxu0 %v4984
        %5068 = vmatprep.subr.mxu0 %v4983
        %5069 = vmatpush1.msra.mxu0 %v4982
        %5070 = vmatprep.subr.mxu0 %v4981
        %5071 = vmatpush1.msra.mxu0 %v4980
        %5072 = vmatprep.subr.mxu0 %v4979
        %5073 = vmatpush1.msra.mxu0 %v4978
        %5074 = vmatprep.subr.mxu0 %v4977
        %5075 = vmatpush1.msra.mxu0 %v4976
        %5076 = vmatprep.subr.mxu0 %v4975
        %5077 = vmatpush1.msra.mxu0 %v4974
        %5078 = vmatprep.subr.mxu0 %v4973
        %5079 = vmatpush1.msra.mxu0 %v4972
        %5080 = vmatprep.subr.mxu0 %v5035
        %5081 = vmatpush2.msra.mxu0 %v5034
        %5082 = vmatprep.subr.mxu0 %v5033
        %5083 = vmatpush2.msra.mxu0 %v5032
        %5084 = vmatprep.subr.mxu0 %v5031
        %5085 = vmatpush2.msra.mxu0 %v5030
        %5086 = vmatprep.subr.mxu0 %v5029
        %5087 = vmatpush2.msra.mxu0 %v5028
        %5088 = vmatprep.subr.mxu0 %v5027
        %5089 = vmatpush2.msra.mxu0 %v5026
        %5090 = vmatprep.subr.mxu0 %v5025
        %5091 = vmatpush2.msra.mxu0 %v5024
        %5092 = vmatprep.subr.mxu0 %v5023
        %5093 = vmatpush2.msra.mxu0 %v5022
        %5094 = vmatprep.subr.mxu0 %v5021
        %5095 = vmatpush2.msra.mxu0 %v5020
        %5096 = vmatprep.subr.mxu0 %v5019
        %5097 = vmatpush2.msra.mxu0 %v5018
        %5098 = vmatprep.subr.mxu0 %v5017
        %5099 = vmatpush2.msra.mxu0 %v5016
        %5100 = vmatprep.subr.mxu0 %v5015
        %5101 = vmatpush2.msra.mxu0 %v5014
        %5102 = vmatprep.subr.mxu0 %v5013
        %5103 = vmatpush2.msra.mxu0 %v5012
        %5104 = vmatprep.subr.mxu0 %v5011
        %5105 = vmatpush2.msra.mxu0 %v5010
        %5106 = vmatprep.subr.mxu0 %v5009
        %5107 = vmatpush2.msra.mxu0 %v5008
        %5108 = vmatprep.subr.mxu0 %v5007
        %5109 = vmatpush2.msra.mxu0 %v5006
        %5110 = vmatprep.subr.mxu0 %v5005
        %5111 = vmatpush2.msra.mxu0 %v5004
        %5112 = vmatprep.mubr.f32.mxu0 %v4971
        %5113 = vmatmul.mubr.f32.gmra.mxu0 %v4970
        %v5114 = vpop.f32.mrf.mxu0
        %v5115 = vadd.f32 %v5041, %v5114
        %v5116 = vpop.f32.mrf.mxu0
        %v5117 = vadd.f32 %v5045, %v5116
        %5118 = vdwg.mxu0
        %v5119 = vmax.f32 %v5115, 0.0
        %v5120 = vmax.f32 %v5117, 0.0
        %5121 = vst [vmem:[%s700 + $0x90] sm:$0xff] %v5119
        %5122 = vst [vmem:[%s700 + $0x98] sm:$0xff] %v5120
        %v5123 = vld [vmem:[#allocation19] sm:$0xff]
        %v5124 = vld [vmem:[#allocation19 + $0x8] sm:$0xff]
        %v5125 = vld [vmem:[#allocation19 + $0x10] sm:$0xff]
        %v5126 = vld [vmem:[#allocation19 + $0x18] sm:$0xff]
        %v5127 = vld [vmem:[#allocation19 + $0x20] sm:$0xff]
        %v5128 = vld [vmem:[#allocation19 + $0x28] sm:$0xff]
        %v5129 = vld [vmem:[#allocation19 + $0x30] sm:$0xff]
        %v5130 = vld [vmem:[#allocation19 + $0x38] sm:$0xff]
        %v5131 = vld [vmem:[#allocation19 + $0x40] sm:$0xff]
        %v5132 = vld [vmem:[#allocation19 + $0x48] sm:$0xff]
        %v5133 = vld [vmem:[#allocation19 + $0x50] sm:$0xff]
        %v5134 = vld [vmem:[#allocation19 + $0x58] sm:$0xff]
        %v5135 = vld [vmem:[#allocation19 + $0x60] sm:$0xff]
        %v5136 = vld [vmem:[#allocation19 + $0x68] sm:$0xff]
        %v5137 = vld [vmem:[#allocation19 + $0x70] sm:$0xff]
        %v5138 = vld [vmem:[#allocation19 + $0x78] sm:$0xff]
        %v5139 = vld [vmem:[#allocation19 + $0x80] sm:$0xff]
        %v5140 = vld [vmem:[#allocation19 + $0x88] sm:$0xff]
        %v5141 = vld [vmem:[#allocation19 + $0x90] sm:$0xff]
        %v5142 = vld [vmem:[#allocation19 + $0x98] sm:$0xff]
        %v5143 = vld [vmem:[#allocation19 + $0xa0] sm:$0xff]
        %v5144 = vld [vmem:[#allocation19 + $0xa8] sm:$0xff]
        %v5145 = vld [vmem:[#allocation19 + $0xb0] sm:$0xff]
        %v5146 = vld [vmem:[#allocation19 + $0xb8] sm:$0xff]
        %v5147 = vld [vmem:[#allocation19 + $0xc0] sm:$0xff]
        %v5148 = vld [vmem:[#allocation19 + $0xc8] sm:$0xff]
        %v5149 = vld [vmem:[#allocation19 + $0xd0] sm:$0xff]
        %v5150 = vld [vmem:[#allocation19 + $0xd8] sm:$0xff]
        %v5151 = vld [vmem:[#allocation19 + $0xe0] sm:$0xff]
        %v5152 = vld [vmem:[#allocation19 + $0xe8] sm:$0xff]
        %v5153 = vld [vmem:[#allocation19 + $0xf0] sm:$0xff]
        %v5154 = vld [vmem:[#allocation19 + $0xf8] sm:$0xff]
        %v5155 = vld [vmem:[#allocation21] sm:$0x3]
        %v5157 = vlaneseq
        %v5158 = vshrl.u32 %v5157, 7
        %v5159 = vsub.s32 0, %v5158
        %v5160 = vrot.slane %v5155, %v5159
        %v5161 = vlaneseq
        %v5162 = vshrl.u32 %v5161, 7
        %v5163 = vsub.s32 1, %v5162
        %v5164 = vrot.slane %v5155, %v5163
        %5167 = vmatprep.subr.mxu0 %v5154
        %5168 = vmatpush1.msra.mxu0 %v5153
        %5169 = vmatprep.subr.mxu0 %v5152
        %5170 = vmatpush1.msra.mxu0 %v5151
        %5171 = vmatprep.subr.mxu0 %v5150
        %5172 = vmatpush1.msra.mxu0 %v5149
        %5173 = vmatprep.subr.mxu0 %v5148
        %5174 = vmatpush1.msra.mxu0 %v5147
        %5175 = vmatprep.subr.mxu0 %v5146
        %5176 = vmatpush1.msra.mxu0 %v5145
        %5177 = vmatprep.subr.mxu0 %v5144
        %5178 = vmatpush1.msra.mxu0 %v5143
        %5179 = vmatprep.subr.mxu0 %v5142
        %5180 = vmatpush1.msra.mxu0 %v5141
        %5181 = vmatprep.subr.mxu0 %v5140
        %5182 = vmatpush1.msra.mxu0 %v5139
        %5183 = vmatprep.subr.mxu0 %v5138
        %5184 = vmatpush1.msra.mxu0 %v5137
        %5185 = vmatprep.subr.mxu0 %v5136
        %5186 = vmatpush1.msra.mxu0 %v5135
        %5187 = vmatprep.subr.mxu0 %v5134
        %5188 = vmatpush1.msra.mxu0 %v5133
        %5189 = vmatprep.subr.mxu0 %v5132
        %5190 = vmatpush1.msra.mxu0 %v5131
        %5191 = vmatprep.subr.mxu0 %v5130
        %5192 = vmatpush1.msra.mxu0 %v5129
        %5193 = vmatprep.subr.mxu0 %v5128
        %5194 = vmatpush1.msra.mxu0 %v5127
        %5195 = vmatprep.subr.mxu0 %v5126
        %5196 = vmatpush1.msra.mxu0 %v5125
        %5197 = vmatprep.subr.mxu0 %v5124
        %5198 = vmatpush1.msra.mxu0 %v5123
        %5199 = vmatprep.subr.mxu0 0.0
        %5200 = vmatpush2.msra.mxu0 0.0
        %5201 = vmatprep.subr.mxu0 0.0
        %5202 = vmatpush2.msra.mxu0 0.0
        %5203 = vmatprep.subr.mxu0 0.0
        %5204 = vmatpush2.msra.mxu0 0.0
        %5205 = vmatprep.subr.mxu0 0.0
        %5206 = vmatpush2.msra.mxu0 0.0
        %5207 = vmatprep.subr.mxu0 0.0
        %5208 = vmatpush2.msra.mxu0 0.0
        %5209 = vmatprep.subr.mxu0 0.0
        %5210 = vmatpush2.msra.mxu0 0.0
        %5211 = vmatprep.subr.mxu0 0.0
        %5212 = vmatpush2.msra.mxu0 0.0
        %5213 = vmatprep.subr.mxu0 0.0
        %5214 = vmatpush2.msra.mxu0 0.0
        %5215 = vmatprep.subr.mxu0 0.0
        %5216 = vmatpush2.msra.mxu0 0.0
        %5217 = vmatprep.subr.mxu0 0.0
        %5218 = vmatpush2.msra.mxu0 0.0
        %5219 = vmatprep.subr.mxu0 0.0
        %5220 = vmatpush2.msra.mxu0 0.0
        %5221 = vmatprep.subr.mxu0 0.0
        %5222 = vmatpush2.msra.mxu0 0.0
        %5223 = vmatprep.subr.mxu0 0.0
        %5224 = vmatpush2.msra.mxu0 0.0
        %5225 = vmatprep.subr.mxu0 0.0
        %5226 = vmatpush2.msra.mxu0 0.0
        %5227 = vmatprep.subr.mxu0 0.0
        %5228 = vmatpush2.msra.mxu0 0.0
        %5229 = vmatprep.subr.mxu0 0.0
        %5230 = vmatpush2.msra.mxu0 0.0
        %5231 = vmatprep.mubr.f32.mxu0 0.0
        %5232 = vmatmul.mubr.f32.gmra.mxu0 %v4585
        %v5233 = vpop.f32.mrf.mxu0
        %v5234 = vadd.f32 %v5160, %v5233
        %v5235 = vpop.f32.mrf.mxu0
        %v5236 = vadd.f32 %v5164, %v5235
        %5237 = vdwg.mxu0
        %v5238 = vmax.f32 %v5234, 0.0
        %v5239 = vmax.f32 %v5236, 0.0
        %v5240 = vld [vmem:[#allocation22] sm:$0xff]
        %v5241 = vld [vmem:[#allocation22 + $0x8] sm:$0xff]
        %v5242 = vld [vmem:[#allocation22 + $0x10] sm:$0xff]
        %v5243 = vld [vmem:[#allocation22 + $0x18] sm:$0xff]
        %v5244 = vld [vmem:[#allocation22 + $0x20] sm:$0xff]
        %v5245 = vld [vmem:[#allocation22 + $0x28] sm:$0xff]
        %v5246 = vld [vmem:[#allocation22 + $0x30] sm:$0xff]
        %v5247 = vld [vmem:[#allocation22 + $0x38] sm:$0xff]
        %v5248 = vld [vmem:[#allocation22 + $0x40] sm:$0xff]
        %v5249 = vld [vmem:[#allocation22 + $0x48] sm:$0xff]
        %v5250 = vld [vmem:[#allocation22 + $0x50] sm:$0xff]
        %v5251 = vld [vmem:[#allocation22 + $0x58] sm:$0xff]
        %v5252 = vld [vmem:[#allocation22 + $0x60] sm:$0xff]
        %v5253 = vld [vmem:[#allocation22 + $0x68] sm:$0xff]
        %v5254 = vld [vmem:[#allocation22 + $0x70] sm:$0xff]
        %v5255 = vld [vmem:[#allocation22 + $0x78] sm:$0xff]
        %v5256 = vld [vmem:[#allocation22 + $0x80] sm:$0xff]
        %v5257 = vld [vmem:[#allocation22 + $0x88] sm:$0xff]
        %v5258 = vld [vmem:[#allocation22 + $0x90] sm:$0xff]
        %v5259 = vld [vmem:[#allocation22 + $0x98] sm:$0xff]
        %v5260 = vld [vmem:[#allocation22 + $0xa0] sm:$0xff]
        %v5261 = vld [vmem:[#allocation22 + $0xa8] sm:$0xff]
        %v5262 = vld [vmem:[#allocation22 + $0xb0] sm:$0xff]
        %v5263 = vld [vmem:[#allocation22 + $0xb8] sm:$0xff]
        %v5264 = vld [vmem:[#allocation22 + $0xc0] sm:$0xff]
        %v5265 = vld [vmem:[#allocation22 + $0xc8] sm:$0xff]
        %v5266 = vld [vmem:[#allocation22 + $0xd0] sm:$0xff]
        %v5267 = vld [vmem:[#allocation22 + $0xd8] sm:$0xff]
        %v5268 = vld [vmem:[#allocation22 + $0xe0] sm:$0xff]
        %v5269 = vld [vmem:[#allocation22 + $0xe8] sm:$0xff]
        %v5270 = vld [vmem:[#allocation22 + $0xf0] sm:$0xff]
        %v5271 = vld [vmem:[#allocation22 + $0xf8] sm:$0xff]
        %v5272 = vld [vmem:[#allocation22 + $0x100] sm:$0xff]
        %v5273 = vld [vmem:[#allocation22 + $0x108] sm:$0xff]
        %v5274 = vld [vmem:[#allocation22 + $0x110] sm:$0xff]
        %v5275 = vld [vmem:[#allocation22 + $0x118] sm:$0xff]
        %v5276 = vld [vmem:[#allocation22 + $0x120] sm:$0xff]
        %v5277 = vld [vmem:[#allocation22 + $0x128] sm:$0xff]
        %v5278 = vld [vmem:[#allocation22 + $0x130] sm:$0xff]
        %v5279 = vld [vmem:[#allocation22 + $0x138] sm:$0xff]
        %v5280 = vld [vmem:[#allocation22 + $0x140] sm:$0xff]
        %v5281 = vld [vmem:[#allocation22 + $0x148] sm:$0xff]
        %v5282 = vld [vmem:[#allocation22 + $0x150] sm:$0xff]
        %v5283 = vld [vmem:[#allocation22 + $0x158] sm:$0xff]
        %v5284 = vld [vmem:[#allocation22 + $0x160] sm:$0xff]
        %v5285 = vld [vmem:[#allocation22 + $0x168] sm:$0xff]
        %v5286 = vld [vmem:[#allocation22 + $0x170] sm:$0xff]
        %v5287 = vld [vmem:[#allocation22 + $0x178] sm:$0xff]
        %v5288 = vld [vmem:[#allocation22 + $0x180] sm:$0xff]
        %v5289 = vld [vmem:[#allocation22 + $0x188] sm:$0xff]
        %v5290 = vld [vmem:[#allocation22 + $0x190] sm:$0xff]
        %v5291 = vld [vmem:[#allocation22 + $0x198] sm:$0xff]
        %v5292 = vld [vmem:[#allocation22 + $0x1a0] sm:$0xff]
        %v5293 = vld [vmem:[#allocation22 + $0x1a8] sm:$0xff]
        %v5294 = vld [vmem:[#allocation22 + $0x1b0] sm:$0xff]
        %v5295 = vld [vmem:[#allocation22 + $0x1b8] sm:$0xff]
        %v5296 = vld [vmem:[#allocation22 + $0x1c0] sm:$0xff]
        %v5297 = vld [vmem:[#allocation22 + $0x1c8] sm:$0xff]
        %v5298 = vld [vmem:[#allocation22 + $0x1d0] sm:$0xff]
        %v5299 = vld [vmem:[#allocation22 + $0x1d8] sm:$0xff]
        %v5300 = vld [vmem:[#allocation22 + $0x1e0] sm:$0xff]
        %v5301 = vld [vmem:[#allocation22 + $0x1e8] sm:$0xff]
        %v5302 = vld [vmem:[#allocation22 + $0x1f0] sm:$0xff]
        %v5303 = vld [vmem:[#allocation22 + $0x1f8] sm:$0xff]
        %v5304 = vld [vmem:[#allocation24] sm:$0x3]
        %v5306 = vlaneseq
        %v5307 = vshrl.u32 %v5306, 7
        %v5308 = vsub.s32 0, %v5307
        %v5309 = vrot.slane %v5304, %v5308
        %v5310 = vlaneseq
        %v5311 = vshrl.u32 %v5310, 7
        %v5312 = vsub.s32 1, %v5311
        %v5313 = vrot.slane %v5304, %v5312
        %5316 = vmatprep.subr.mxu0 %v5271
        %5317 = vmatpush1.msra.mxu0 %v5270
        %5318 = vmatprep.subr.mxu0 %v5269
        %5319 = vmatpush1.msra.mxu0 %v5268
        %5320 = vmatprep.subr.mxu0 %v5267
        %5321 = vmatpush1.msra.mxu0 %v5266
        %5322 = vmatprep.subr.mxu0 %v5265
        %5323 = vmatpush1.msra.mxu0 %v5264
        %5324 = vmatprep.subr.mxu0 %v5263
        %5325 = vmatpush1.msra.mxu0 %v5262
        %5326 = vmatprep.subr.mxu0 %v5261
        %5327 = vmatpush1.msra.mxu0 %v5260
        %5328 = vmatprep.subr.mxu0 %v5259
        %5329 = vmatpush1.msra.mxu0 %v5258
        %5330 = vmatprep.subr.mxu0 %v5257
        %5331 = vmatpush1.msra.mxu0 %v5256
        %5332 = vmatprep.subr.mxu0 %v5255
        %5333 = vmatpush1.msra.mxu0 %v5254
        %5334 = vmatprep.subr.mxu0 %v5253
        %5335 = vmatpush1.msra.mxu0 %v5252
        %5336 = vmatprep.subr.mxu0 %v5251
        %5337 = vmatpush1.msra.mxu0 %v5250
        %5338 = vmatprep.subr.mxu0 %v5249
        %5339 = vmatpush1.msra.mxu0 %v5248
        %5340 = vmatprep.subr.mxu0 %v5247
        %5341 = vmatpush1.msra.mxu0 %v5246
        %5342 = vmatprep.subr.mxu0 %v5245
        %5343 = vmatpush1.msra.mxu0 %v5244
        %5344 = vmatprep.subr.mxu0 %v5243
        %5345 = vmatpush1.msra.mxu0 %v5242
        %5346 = vmatprep.subr.mxu0 %v5241
        %5347 = vmatpush1.msra.mxu0 %v5240
        %5348 = vmatprep.subr.mxu0 %v5303
        %5349 = vmatpush2.msra.mxu0 %v5302
        %5350 = vmatprep.subr.mxu0 %v5301
        %5351 = vmatpush2.msra.mxu0 %v5300
        %5352 = vmatprep.subr.mxu0 %v5299
        %5353 = vmatpush2.msra.mxu0 %v5298
        %5354 = vmatprep.subr.mxu0 %v5297
        %5355 = vmatpush2.msra.mxu0 %v5296
        %5356 = vmatprep.subr.mxu0 %v5295
        %5357 = vmatpush2.msra.mxu0 %v5294
        %5358 = vmatprep.subr.mxu0 %v5293
        %5359 = vmatpush2.msra.mxu0 %v5292
        %5360 = vmatprep.subr.mxu0 %v5291
        %5361 = vmatpush2.msra.mxu0 %v5290
        %5362 = vmatprep.subr.mxu0 %v5289
        %5363 = vmatpush2.msra.mxu0 %v5288
        %5364 = vmatprep.subr.mxu0 %v5287
        %5365 = vmatpush2.msra.mxu0 %v5286
        %5366 = vmatprep.subr.mxu0 %v5285
        %5367 = vmatpush2.msra.mxu0 %v5284
        %5368 = vmatprep.subr.mxu0 %v5283
        %5369 = vmatpush2.msra.mxu0 %v5282
        %5370 = vmatprep.subr.mxu0 %v5281
        %5371 = vmatpush2.msra.mxu0 %v5280
        %5372 = vmatprep.subr.mxu0 %v5279
        %5373 = vmatpush2.msra.mxu0 %v5278
        %5374 = vmatprep.subr.mxu0 %v5277
        %5375 = vmatpush2.msra.mxu0 %v5276
        %5376 = vmatprep.subr.mxu0 %v5275
        %5377 = vmatpush2.msra.mxu0 %v5274
        %5378 = vmatprep.subr.mxu0 %v5273
        %5379 = vmatpush2.msra.mxu0 %v5272
        %5380 = vmatprep.mubr.f32.mxu0 %v5239
        %5381 = vmatmul.mubr.f32.gmra.mxu0 %v5238
        %v5382 = vpop.f32.mrf.mxu0
        %v5383 = vadd.f32 %v5309, %v5382
        %v5384 = vpop.f32.mrf.mxu0
        %v5385 = vadd.f32 %v5313, %v5384
        %5386 = vdwg.mxu0
        %v5387 = vmax.f32 %v5383, 0.0
        %v5388 = vmax.f32 %v5385, 0.0
        %5389 = vst [vmem:[%s700 + $0xa0] sm:$0xff] %v5387
        %5390 = vst [vmem:[%s700 + $0xa8] sm:$0xff] %v5388
        %v5391 = vld [vmem:[#allocation19] sm:$0xff]
        %v5392 = vld [vmem:[#allocation19 + $0x8] sm:$0xff]
        %v5393 = vld [vmem:[#allocation19 + $0x10] sm:$0xff]
        %v5394 = vld [vmem:[#allocation19 + $0x18] sm:$0xff]
        %v5395 = vld [vmem:[#allocation19 + $0x20] sm:$0xff]
        %v5396 = vld [vmem:[#allocation19 + $0x28] sm:$0xff]
        %v5397 = vld [vmem:[#allocation19 + $0x30] sm:$0xff]
        %v5398 = vld [vmem:[#allocation19 + $0x38] sm:$0xff]
        %v5399 = vld [vmem:[#allocation19 + $0x40] sm:$0xff]
        %v5400 = vld [vmem:[#allocation19 + $0x48] sm:$0xff]
        %v5401 = vld [vmem:[#allocation19 + $0x50] sm:$0xff]
        %v5402 = vld [vmem:[#allocation19 + $0x58] sm:$0xff]
        %v5403 = vld [vmem:[#allocation19 + $0x60] sm:$0xff]
        %v5404 = vld [vmem:[#allocation19 + $0x68] sm:$0xff]
        %v5405 = vld [vmem:[#allocation19 + $0x70] sm:$0xff]
        %v5406 = vld [vmem:[#allocation19 + $0x78] sm:$0xff]
        %v5407 = vld [vmem:[#allocation19 + $0x80] sm:$0xff]
        %v5408 = vld [vmem:[#allocation19 + $0x88] sm:$0xff]
        %v5409 = vld [vmem:[#allocation19 + $0x90] sm:$0xff]
        %v5410 = vld [vmem:[#allocation19 + $0x98] sm:$0xff]
        %v5411 = vld [vmem:[#allocation19 + $0xa0] sm:$0xff]
        %v5412 = vld [vmem:[#allocation19 + $0xa8] sm:$0xff]
        %v5413 = vld [vmem:[#allocation19 + $0xb0] sm:$0xff]
        %v5414 = vld [vmem:[#allocation19 + $0xb8] sm:$0xff]
        %v5415 = vld [vmem:[#allocation19 + $0xc0] sm:$0xff]
        %v5416 = vld [vmem:[#allocation19 + $0xc8] sm:$0xff]
        %v5417 = vld [vmem:[#allocation19 + $0xd0] sm:$0xff]
        %v5418 = vld [vmem:[#allocation19 + $0xd8] sm:$0xff]
        %v5419 = vld [vmem:[#allocation19 + $0xe0] sm:$0xff]
        %v5420 = vld [vmem:[#allocation19 + $0xe8] sm:$0xff]
        %v5421 = vld [vmem:[#allocation19 + $0xf0] sm:$0xff]
        %v5422 = vld [vmem:[#allocation19 + $0xf8] sm:$0xff]
        %v5423 = vld [vmem:[#allocation21] sm:$0x3]
        %v5425 = vlaneseq
        %v5426 = vshrl.u32 %v5425, 7
        %v5427 = vsub.s32 0, %v5426
        %v5428 = vrot.slane %v5423, %v5427
        %v5429 = vlaneseq
        %v5430 = vshrl.u32 %v5429, 7
        %v5431 = vsub.s32 1, %v5430
        %v5432 = vrot.slane %v5423, %v5431
        %5435 = vmatprep.subr.mxu0 %v5422
        %5436 = vmatpush1.msra.mxu0 %v5421
        %5437 = vmatprep.subr.mxu0 %v5420
        %5438 = vmatpush1.msra.mxu0 %v5419
        %5439 = vmatprep.subr.mxu0 %v5418
        %5440 = vmatpush1.msra.mxu0 %v5417
        %5441 = vmatprep.subr.mxu0 %v5416
        %5442 = vmatpush1.msra.mxu0 %v5415
        %5443 = vmatprep.subr.mxu0 %v5414
        %5444 = vmatpush1.msra.mxu0 %v5413
        %5445 = vmatprep.subr.mxu0 %v5412
        %5446 = vmatpush1.msra.mxu0 %v5411
        %5447 = vmatprep.subr.mxu0 %v5410
        %5448 = vmatpush1.msra.mxu0 %v5409
        %5449 = vmatprep.subr.mxu0 %v5408
        %5450 = vmatpush1.msra.mxu0 %v5407
        %5451 = vmatprep.subr.mxu0 %v5406
        %5452 = vmatpush1.msra.mxu0 %v5405
        %5453 = vmatprep.subr.mxu0 %v5404
        %5454 = vmatpush1.msra.mxu0 %v5403
        %5455 = vmatprep.subr.mxu0 %v5402
        %5456 = vmatpush1.msra.mxu0 %v5401
        %5457 = vmatprep.subr.mxu0 %v5400
        %5458 = vmatpush1.msra.mxu0 %v5399
        %5459 = vmatprep.subr.mxu0 %v5398
        %5460 = vmatpush1.msra.mxu0 %v5397
        %5461 = vmatprep.subr.mxu0 %v5396
        %5462 = vmatpush1.msra.mxu0 %v5395
        %5463 = vmatprep.subr.mxu0 %v5394
        %5464 = vmatpush1.msra.mxu0 %v5393
        %5465 = vmatprep.subr.mxu0 %v5392
        %5466 = vmatpush1.msra.mxu0 %v5391
        %5467 = vmatprep.subr.mxu0 0.0
        %5468 = vmatpush2.msra.mxu0 0.0
        %5469 = vmatprep.subr.mxu0 0.0
        %5470 = vmatpush2.msra.mxu0 0.0
        %5471 = vmatprep.subr.mxu0 0.0
        %5472 = vmatpush2.msra.mxu0 0.0
        %5473 = vmatprep.subr.mxu0 0.0
        %5474 = vmatpush2.msra.mxu0 0.0
        %5475 = vmatprep.subr.mxu0 0.0
        %5476 = vmatpush2.msra.mxu0 0.0
        %5477 = vmatprep.subr.mxu0 0.0
        %5478 = vmatpush2.msra.mxu0 0.0
        %5479 = vmatprep.subr.mxu0 0.0
        %5480 = vmatpush2.msra.mxu0 0.0
        %5481 = vmatprep.subr.mxu0 0.0
        %5482 = vmatpush2.msra.mxu0 0.0
        %5483 = vmatprep.subr.mxu0 0.0
        %5484 = vmatpush2.msra.mxu0 0.0
        %5485 = vmatprep.subr.mxu0 0.0
        %5486 = vmatpush2.msra.mxu0 0.0
        %5487 = vmatprep.subr.mxu0 0.0
        %5488 = vmatpush2.msra.mxu0 0.0
        %5489 = vmatprep.subr.mxu0 0.0
        %5490 = vmatpush2.msra.mxu0 0.0
        %5491 = vmatprep.subr.mxu0 0.0
        %5492 = vmatpush2.msra.mxu0 0.0
        %5493 = vmatprep.subr.mxu0 0.0
        %5494 = vmatpush2.msra.mxu0 0.0
        %5495 = vmatprep.subr.mxu0 0.0
        %5496 = vmatpush2.msra.mxu0 0.0
        %5497 = vmatprep.subr.mxu0 0.0
        %5498 = vmatpush2.msra.mxu0 0.0
        %5499 = vmatprep.mubr.f32.mxu0 0.0
        %5500 = vmatmul.mubr.f32.gmra.mxu0 %v4586
        %v5501 = vpop.f32.mrf.mxu0
        %v5502 = vadd.f32 %v5428, %v5501
        %v5503 = vpop.f32.mrf.mxu0
        %v5504 = vadd.f32 %v5432, %v5503
        %5505 = vdwg.mxu0
        %v5506 = vmax.f32 %v5502, 0.0
        %v5507 = vmax.f32 %v5504, 0.0
        %v5508 = vld [vmem:[#allocation22] sm:$0xff]
        %v5509 = vld [vmem:[#allocation22 + $0x8] sm:$0xff]
        %v5510 = vld [vmem:[#allocation22 + $0x10] sm:$0xff]
        %v5511 = vld [vmem:[#allocation22 + $0x18] sm:$0xff]
        %v5512 = vld [vmem:[#allocation22 + $0x20] sm:$0xff]
        %v5513 = vld [vmem:[#allocation22 + $0x28] sm:$0xff]
        %v5514 = vld [vmem:[#allocation22 + $0x30] sm:$0xff]
        %v5515 = vld [vmem:[#allocation22 + $0x38] sm:$0xff]
        %v5516 = vld [vmem:[#allocation22 + $0x40] sm:$0xff]
        %v5517 = vld [vmem:[#allocation22 + $0x48] sm:$0xff]
        %v5518 = vld [vmem:[#allocation22 + $0x50] sm:$0xff]
        %v5519 = vld [vmem:[#allocation22 + $0x58] sm:$0xff]
        %v5520 = vld [vmem:[#allocation22 + $0x60] sm:$0xff]
        %v5521 = vld [vmem:[#allocation22 + $0x68] sm:$0xff]
        %v5522 = vld [vmem:[#allocation22 + $0x70] sm:$0xff]
        %v5523 = vld [vmem:[#allocation22 + $0x78] sm:$0xff]
        %v5524 = vld [vmem:[#allocation22 + $0x80] sm:$0xff]
        %v5525 = vld [vmem:[#allocation22 + $0x88] sm:$0xff]
        %v5526 = vld [vmem:[#allocation22 + $0x90] sm:$0xff]
        %v5527 = vld [vmem:[#allocation22 + $0x98] sm:$0xff]
        %v5528 = vld [vmem:[#allocation22 + $0xa0] sm:$0xff]
        %v5529 = vld [vmem:[#allocation22 + $0xa8] sm:$0xff]
        %v5530 = vld [vmem:[#allocation22 + $0xb0] sm:$0xff]
        %v5531 = vld [vmem:[#allocation22 + $0xb8] sm:$0xff]
        %v5532 = vld [vmem:[#allocation22 + $0xc0] sm:$0xff]
        %v5533 = vld [vmem:[#allocation22 + $0xc8] sm:$0xff]
        %v5534 = vld [vmem:[#allocation22 + $0xd0] sm:$0xff]
        %v5535 = vld [vmem:[#allocation22 + $0xd8] sm:$0xff]
        %v5536 = vld [vmem:[#allocation22 + $0xe0] sm:$0xff]
        %v5537 = vld [vmem:[#allocation22 + $0xe8] sm:$0xff]
        %v5538 = vld [vmem:[#allocation22 + $0xf0] sm:$0xff]
        %v5539 = vld [vmem:[#allocation22 + $0xf8] sm:$0xff]
        %v5540 = vld [vmem:[#allocation22 + $0x100] sm:$0xff]
        %v5541 = vld [vmem:[#allocation22 + $0x108] sm:$0xff]
        %v5542 = vld [vmem:[#allocation22 + $0x110] sm:$0xff]
        %v5543 = vld [vmem:[#allocation22 + $0x118] sm:$0xff]
        %v5544 = vld [vmem:[#allocation22 + $0x120] sm:$0xff]
        %v5545 = vld [vmem:[#allocation22 + $0x128] sm:$0xff]
        %v5546 = vld [vmem:[#allocation22 + $0x130] sm:$0xff]
        %v5547 = vld [vmem:[#allocation22 + $0x138] sm:$0xff]
        %v5548 = vld [vmem:[#allocation22 + $0x140] sm:$0xff]
        %v5549 = vld [vmem:[#allocation22 + $0x148] sm:$0xff]
        %v5550 = vld [vmem:[#allocation22 + $0x150] sm:$0xff]
        %v5551 = vld [vmem:[#allocation22 + $0x158] sm:$0xff]
        %v5552 = vld [vmem:[#allocation22 + $0x160] sm:$0xff]
        %v5553 = vld [vmem:[#allocation22 + $0x168] sm:$0xff]
        %v5554 = vld [vmem:[#allocation22 + $0x170] sm:$0xff]
        %v5555 = vld [vmem:[#allocation22 + $0x178] sm:$0xff]
        %v5556 = vld [vmem:[#allocation22 + $0x180] sm:$0xff]
        %v5557 = vld [vmem:[#allocation22 + $0x188] sm:$0xff]
        %v5558 = vld [vmem:[#allocation22 + $0x190] sm:$0xff]
        %v5559 = vld [vmem:[#allocation22 + $0x198] sm:$0xff]
        %v5560 = vld [vmem:[#allocation22 + $0x1a0] sm:$0xff]
        %v5561 = vld [vmem:[#allocation22 + $0x1a8] sm:$0xff]
        %v5562 = vld [vmem:[#allocation22 + $0x1b0] sm:$0xff]
        %v5563 = vld [vmem:[#allocation22 + $0x1b8] sm:$0xff]
        %v5564 = vld [vmem:[#allocation22 + $0x1c0] sm:$0xff]
        %v5565 = vld [vmem:[#allocation22 + $0x1c8] sm:$0xff]
        %v5566 = vld [vmem:[#allocation22 + $0x1d0] sm:$0xff]
        %v5567 = vld [vmem:[#allocation22 + $0x1d8] sm:$0xff]
        %v5568 = vld [vmem:[#allocation22 + $0x1e0] sm:$0xff]
        %v5569 = vld [vmem:[#allocation22 + $0x1e8] sm:$0xff]
        %v5570 = vld [vmem:[#allocation22 + $0x1f0] sm:$0xff]
        %v5571 = vld [vmem:[#allocation22 + $0x1f8] sm:$0xff]
        %v5572 = vld [vmem:[#allocation24] sm:$0x3]
        %v5574 = vlaneseq
        %v5575 = vshrl.u32 %v5574, 7
        %v5576 = vsub.s32 0, %v5575
        %v5577 = vrot.slane %v5572, %v5576
        %v5578 = vlaneseq
        %v5579 = vshrl.u32 %v5578, 7
        %v5580 = vsub.s32 1, %v5579
        %v5581 = vrot.slane %v5572, %v5580
        %5584 = vmatprep.subr.mxu0 %v5539
        %5585 = vmatpush1.msra.mxu0 %v5538
        %5586 = vmatprep.subr.mxu0 %v5537
        %5587 = vmatpush1.msra.mxu0 %v5536
        %5588 = vmatprep.subr.mxu0 %v5535
        %5589 = vmatpush1.msra.mxu0 %v5534
        %5590 = vmatprep.subr.mxu0 %v5533
        %5591 = vmatpush1.msra.mxu0 %v5532
        %5592 = vmatprep.subr.mxu0 %v5531
        %5593 = vmatpush1.msra.mxu0 %v5530
        %5594 = vmatprep.subr.mxu0 %v5529
        %5595 = vmatpush1.msra.mxu0 %v5528
        %5596 = vmatprep.subr.mxu0 %v5527
        %5597 = vmatpush1.msra.mxu0 %v5526
        %5598 = vmatprep.subr.mxu0 %v5525
        %5599 = vmatpush1.msra.mxu0 %v5524
        %5600 = vmatprep.subr.mxu0 %v5523
        %5601 = vmatpush1.msra.mxu0 %v5522
        %5602 = vmatprep.subr.mxu0 %v5521
        %5603 = vmatpush1.msra.mxu0 %v5520
        %5604 = vmatprep.subr.mxu0 %v5519
        %5605 = vmatpush1.msra.mxu0 %v5518
        %5606 = vmatprep.subr.mxu0 %v5517
        %5607 = vmatpush1.msra.mxu0 %v5516
        %5608 = vmatprep.subr.mxu0 %v5515
        %5609 = vmatpush1.msra.mxu0 %v5514
        %5610 = vmatprep.subr.mxu0 %v5513
        %5611 = vmatpush1.msra.mxu0 %v5512
        %5612 = vmatprep.subr.mxu0 %v5511
        %5613 = vmatpush1.msra.mxu0 %v5510
        %5614 = vmatprep.subr.mxu0 %v5509
        %5615 = vmatpush1.msra.mxu0 %v5508
        %5616 = vmatprep.subr.mxu0 %v5571
        %5617 = vmatpush2.msra.mxu0 %v5570
        %5618 = vmatprep.subr.mxu0 %v5569
        %5619 = vmatpush2.msra.mxu0 %v5568
        %5620 = vmatprep.subr.mxu0 %v5567
        %5621 = vmatpush2.msra.mxu0 %v5566
        %5622 = vmatprep.subr.mxu0 %v5565
        %5623 = vmatpush2.msra.mxu0 %v5564
        %5624 = vmatprep.subr.mxu0 %v5563
        %5625 = vmatpush2.msra.mxu0 %v5562
        %5626 = vmatprep.subr.mxu0 %v5561
        %5627 = vmatpush2.msra.mxu0 %v5560
        %5628 = vmatprep.subr.mxu0 %v5559
        %5629 = vmatpush2.msra.mxu0 %v5558
        %5630 = vmatprep.subr.mxu0 %v5557
        %5631 = vmatpush2.msra.mxu0 %v5556
        %5632 = vmatprep.subr.mxu0 %v5555
        %5633 = vmatpush2.msra.mxu0 %v5554
        %5634 = vmatprep.subr.mxu0 %v5553
        %5635 = vmatpush2.msra.mxu0 %v5552
        %5636 = vmatprep.subr.mxu0 %v5551
        %5637 = vmatpush2.msra.mxu0 %v5550
        %5638 = vmatprep.subr.mxu0 %v5549
        %5639 = vmatpush2.msra.mxu0 %v5548
        %5640 = vmatprep.subr.mxu0 %v5547
        %5641 = vmatpush2.msra.mxu0 %v5546
        %5642 = vmatprep.subr.mxu0 %v5545
        %5643 = vmatpush2.msra.mxu0 %v5544
        %5644 = vmatprep.subr.mxu0 %v5543
        %5645 = vmatpush2.msra.mxu0 %v5542
        %5646 = vmatprep.subr.mxu0 %v5541
        %5647 = vmatpush2.msra.mxu0 %v5540
        %5648 = vmatprep.mubr.f32.mxu0 %v5507
        %5649 = vmatmul.mubr.f32.gmra.mxu0 %v5506
        %v5650 = vpop.f32.mrf.mxu0
        %v5651 = vadd.f32 %v5577, %v5650
        %v5652 = vpop.f32.mrf.mxu0
        %v5653 = vadd.f32 %v5581, %v5652
        %5654 = vdwg.mxu0
        %v5655 = vmax.f32 %v5651, 0.0
        %v5656 = vmax.f32 %v5653, 0.0
        %5657 = vst [vmem:[%s700 + $0xb0] sm:$0xff] %v5655
        %5658 = vst [vmem:[%s700 + $0xb8] sm:$0xff] %v5656
        %v5659 = vld [vmem:[#allocation13] sm:$0xff]
        %v5660 = vld [vmem:[#allocation13 + $0x8] sm:$0xff]
        %v5661 = vld [vmem:[#allocation13 + $0x10] sm:$0xff]
        %v5662 = vld [vmem:[#allocation13 + $0x18] sm:$0xff]
        %v5663 = vld [vmem:[#allocation13 + $0x20] sm:$0xff]
        %v5664 = vld [vmem:[#allocation13 + $0x28] sm:$0xff]
        %v5665 = vld [vmem:[#allocation13 + $0x30] sm:$0xff]
        %v5666 = vld [vmem:[#allocation13 + $0x38] sm:$0xff]
        %v5667 = vld [vmem:[#allocation13 + $0x40] sm:$0xff]
        %v5668 = vld [vmem:[#allocation13 + $0x48] sm:$0xff]
        %v5669 = vld [vmem:[#allocation13 + $0x50] sm:$0xff]
        %v5670 = vld [vmem:[#allocation13 + $0x58] sm:$0xff]
        %v5671 = vld [vmem:[#allocation13 + $0x60] sm:$0xff]
        %v5672 = vld [vmem:[#allocation13 + $0x68] sm:$0xff]
        %v5673 = vld [vmem:[#allocation13 + $0x70] sm:$0xff]
        %v5674 = vld [vmem:[#allocation13 + $0x78] sm:$0xff]
        %v5675 = vld [vmem:[#allocation13 + $0x80] sm:$0xff]
        %v5676 = vld [vmem:[#allocation13 + $0x88] sm:$0xff]
        %v5677 = vld [vmem:[#allocation13 + $0x90] sm:$0xff]
        %v5678 = vld [vmem:[#allocation13 + $0x98] sm:$0xff]
        %v5679 = vld [vmem:[#allocation13 + $0xa0] sm:$0xff]
        %v5680 = vld [vmem:[#allocation13 + $0xa8] sm:$0xff]
        %v5681 = vld [vmem:[#allocation13 + $0xb0] sm:$0xff]
        %v5682 = vld [vmem:[#allocation13 + $0xb8] sm:$0xff]
        %v5683 = vld [vmem:[#allocation13 + $0xc0] sm:$0xff]
        %v5684 = vld [vmem:[#allocation13 + $0xc8] sm:$0xff]
        %v5685 = vld [vmem:[#allocation13 + $0xd0] sm:$0xff]
        %v5686 = vld [vmem:[#allocation13 + $0xd8] sm:$0xff]
        %v5687 = vld [vmem:[#allocation13 + $0xe0] sm:$0xff]
        %v5688 = vld [vmem:[#allocation13 + $0xe8] sm:$0xff]
        %v5689 = vld [vmem:[#allocation13 + $0xf0] sm:$0xff]
        %v5690 = vld [vmem:[#allocation13 + $0xf8] sm:$0xff]
        %v5691 = vld [vmem:[#allocation15] sm:$0x3]
        %v5693 = vlaneseq
        %v5694 = vshrl.u32 %v5693, 7
        %v5695 = vsub.s32 0, %v5694
        %v5696 = vrot.slane %v5691, %v5695
        %v5697 = vlaneseq
        %v5698 = vshrl.u32 %v5697, 7
        %v5699 = vsub.s32 1, %v5698
        %v5700 = vrot.slane %v5691, %v5699
        %5703 = vmatprep.subr.mxu0 %v5690
        %5704 = vmatpush1.msra.mxu0 %v5689
        %5705 = vmatprep.subr.mxu0 %v5688
        %5706 = vmatpush1.msra.mxu0 %v5687
        %5707 = vmatprep.subr.mxu0 %v5686
        %5708 = vmatpush1.msra.mxu0 %v5685
        %5709 = vmatprep.subr.mxu0 %v5684
        %5710 = vmatpush1.msra.mxu0 %v5683
        %5711 = vmatprep.subr.mxu0 %v5682
        %5712 = vmatpush1.msra.mxu0 %v5681
        %5713 = vmatprep.subr.mxu0 %v5680
        %5714 = vmatpush1.msra.mxu0 %v5679
        %5715 = vmatprep.subr.mxu0 %v5678
        %5716 = vmatpush1.msra.mxu0 %v5677
        %5717 = vmatprep.subr.mxu0 %v5676
        %5718 = vmatpush1.msra.mxu0 %v5675
        %5719 = vmatprep.subr.mxu0 %v5674
        %5720 = vmatpush1.msra.mxu0 %v5673
        %5721 = vmatprep.subr.mxu0 %v5672
        %5722 = vmatpush1.msra.mxu0 %v5671
        %5723 = vmatprep.subr.mxu0 %v5670
        %5724 = vmatpush1.msra.mxu0 %v5669
        %5725 = vmatprep.subr.mxu0 %v5668
        %5726 = vmatpush1.msra.mxu0 %v5667
        %5727 = vmatprep.subr.mxu0 %v5666
        %5728 = vmatpush1.msra.mxu0 %v5665
        %5729 = vmatprep.subr.mxu0 %v5664
        %5730 = vmatpush1.msra.mxu0 %v5663
        %5731 = vmatprep.subr.mxu0 %v5662
        %5732 = vmatpush1.msra.mxu0 %v5661
        %5733 = vmatprep.subr.mxu0 %v5660
        %5734 = vmatpush1.msra.mxu0 %v5659
        %5735 = vmatprep.subr.mxu0 0.0
        %5736 = vmatpush2.msra.mxu0 0.0
        %5737 = vmatprep.subr.mxu0 0.0
        %5738 = vmatpush2.msra.mxu0 0.0
        %5739 = vmatprep.subr.mxu0 0.0
        %5740 = vmatpush2.msra.mxu0 0.0
        %5741 = vmatprep.subr.mxu0 0.0
        %5742 = vmatpush2.msra.mxu0 0.0
        %5743 = vmatprep.subr.mxu0 0.0
        %5744 = vmatpush2.msra.mxu0 0.0
        %5745 = vmatprep.subr.mxu0 0.0
        %5746 = vmatpush2.msra.mxu0 0.0
        %5747 = vmatprep.subr.mxu0 0.0
        %5748 = vmatpush2.msra.mxu0 0.0
        %5749 = vmatprep.subr.mxu0 0.0
        %5750 = vmatpush2.msra.mxu0 0.0
        %5751 = vmatprep.subr.mxu0 0.0
        %5752 = vmatpush2.msra.mxu0 0.0
        %5753 = vmatprep.subr.mxu0 0.0
        %5754 = vmatpush2.msra.mxu0 0.0
        %5755 = vmatprep.subr.mxu0 0.0
        %5756 = vmatpush2.msra.mxu0 0.0
        %5757 = vmatprep.subr.mxu0 0.0
        %5758 = vmatpush2.msra.mxu0 0.0
        %5759 = vmatprep.subr.mxu0 0.0
        %5760 = vmatpush2.msra.mxu0 0.0
        %5761 = vmatprep.subr.mxu0 0.0
        %5762 = vmatpush2.msra.mxu0 0.0
        %5763 = vmatprep.subr.mxu0 0.0
        %5764 = vmatpush2.msra.mxu0 0.0
        %5765 = vmatprep.subr.mxu0 0.0
        %5766 = vmatpush2.msra.mxu0 0.0
        %5767 = vmatprep.mubr.f32.mxu0 0.0
        %5768 = vmatmul.mubr.f32.gmra.mxu0 %v1203
        %v5769 = vpop.f32.mrf.mxu0
        %v5770 = vadd.f32 %v5696, %v5769
        %v5771 = vpop.f32.mrf.mxu0
        %v5772 = vadd.f32 %v5700, %v5771
        %5773 = vdwg.mxu0
        %v5774 = vmax.f32 %v5770, 0.0
        %v5775 = vmax.f32 %v5772, 0.0
        %v5776 = vld [vmem:[#allocation16] sm:$0xff]
        %v5777 = vld [vmem:[#allocation16 + $0x8] sm:$0xff]
        %v5778 = vld [vmem:[#allocation16 + $0x10] sm:$0xff]
        %v5779 = vld [vmem:[#allocation16 + $0x18] sm:$0xff]
        %v5780 = vld [vmem:[#allocation16 + $0x20] sm:$0xff]
        %v5781 = vld [vmem:[#allocation16 + $0x28] sm:$0xff]
        %v5782 = vld [vmem:[#allocation16 + $0x30] sm:$0xff]
        %v5783 = vld [vmem:[#allocation16 + $0x38] sm:$0xff]
        %v5784 = vld [vmem:[#allocation16 + $0x40] sm:$0xff]
        %v5785 = vld [vmem:[#allocation16 + $0x48] sm:$0xff]
        %v5786 = vld [vmem:[#allocation16 + $0x50] sm:$0xff]
        %v5787 = vld [vmem:[#allocation16 + $0x58] sm:$0xff]
        %v5788 = vld [vmem:[#allocation16 + $0x60] sm:$0xff]
        %v5789 = vld [vmem:[#allocation16 + $0x68] sm:$0xff]
        %v5790 = vld [vmem:[#allocation16 + $0x70] sm:$0xff]
        %v5791 = vld [vmem:[#allocation16 + $0x78] sm:$0xff]
        %v5792 = vld [vmem:[#allocation16 + $0x80] sm:$0xff]
        %v5793 = vld [vmem:[#allocation16 + $0x88] sm:$0xff]
        %v5794 = vld [vmem:[#allocation16 + $0x90] sm:$0xff]
        %v5795 = vld [vmem:[#allocation16 + $0x98] sm:$0xff]
        %v5796 = vld [vmem:[#allocation16 + $0xa0] sm:$0xff]
        %v5797 = vld [vmem:[#allocation16 + $0xa8] sm:$0xff]
        %v5798 = vld [vmem:[#allocation16 + $0xb0] sm:$0xff]
        %v5799 = vld [vmem:[#allocation16 + $0xb8] sm:$0xff]
        %v5800 = vld [vmem:[#allocation16 + $0xc0] sm:$0xff]
        %v5801 = vld [vmem:[#allocation16 + $0xc8] sm:$0xff]
        %v5802 = vld [vmem:[#allocation16 + $0xd0] sm:$0xff]
        %v5803 = vld [vmem:[#allocation16 + $0xd8] sm:$0xff]
        %v5804 = vld [vmem:[#allocation16 + $0xe0] sm:$0xff]
        %v5805 = vld [vmem:[#allocation16 + $0xe8] sm:$0xff]
        %v5806 = vld [vmem:[#allocation16 + $0xf0] sm:$0xff]
        %v5807 = vld [vmem:[#allocation16 + $0xf8] sm:$0xff]
        %v5808 = vld [vmem:[#allocation16 + $0x100] sm:$0xff]
        %v5809 = vld [vmem:[#allocation16 + $0x108] sm:$0xff]
        %v5810 = vld [vmem:[#allocation16 + $0x110] sm:$0xff]
        %v5811 = vld [vmem:[#allocation16 + $0x118] sm:$0xff]
        %v5812 = vld [vmem:[#allocation16 + $0x120] sm:$0xff]
        %v5813 = vld [vmem:[#allocation16 + $0x128] sm:$0xff]
        %v5814 = vld [vmem:[#allocation16 + $0x130] sm:$0xff]
        %v5815 = vld [vmem:[#allocation16 + $0x138] sm:$0xff]
        %v5816 = vld [vmem:[#allocation16 + $0x140] sm:$0xff]
        %v5817 = vld [vmem:[#allocation16 + $0x148] sm:$0xff]
        %v5818 = vld [vmem:[#allocation16 + $0x150] sm:$0xff]
        %v5819 = vld [vmem:[#allocation16 + $0x158] sm:$0xff]
        %v5820 = vld [vmem:[#allocation16 + $0x160] sm:$0xff]
        %v5821 = vld [vmem:[#allocation16 + $0x168] sm:$0xff]
        %v5822 = vld [vmem:[#allocation16 + $0x170] sm:$0xff]
        %v5823 = vld [vmem:[#allocation16 + $0x178] sm:$0xff]
        %v5824 = vld [vmem:[#allocation16 + $0x180] sm:$0xff]
        %v5825 = vld [vmem:[#allocation16 + $0x188] sm:$0xff]
        %v5826 = vld [vmem:[#allocation16 + $0x190] sm:$0xff]
        %v5827 = vld [vmem:[#allocation16 + $0x198] sm:$0xff]
        %v5828 = vld [vmem:[#allocation16 + $0x1a0] sm:$0xff]
        %v5829 = vld [vmem:[#allocation16 + $0x1a8] sm:$0xff]
        %v5830 = vld [vmem:[#allocation16 + $0x1b0] sm:$0xff]
        %v5831 = vld [vmem:[#allocation16 + $0x1b8] sm:$0xff]
        %v5832 = vld [vmem:[#allocation16 + $0x1c0] sm:$0xff]
        %v5833 = vld [vmem:[#allocation16 + $0x1c8] sm:$0xff]
        %v5834 = vld [vmem:[#allocation16 + $0x1d0] sm:$0xff]
        %v5835 = vld [vmem:[#allocation16 + $0x1d8] sm:$0xff]
        %v5836 = vld [vmem:[#allocation16 + $0x1e0] sm:$0xff]
        %v5837 = vld [vmem:[#allocation16 + $0x1e8] sm:$0xff]
        %v5838 = vld [vmem:[#allocation16 + $0x1f0] sm:$0xff]
        %v5839 = vld [vmem:[#allocation16 + $0x1f8] sm:$0xff]
        %v5840 = vld [vmem:[#allocation16 + $0x200] sm:$0xff]
        %v5841 = vld [vmem:[#allocation16 + $0x208] sm:$0xff]
        %v5842 = vld [vmem:[#allocation16 + $0x210] sm:$0xff]
        %v5843 = vld [vmem:[#allocation16 + $0x218] sm:$0xff]
        %v5844 = vld [vmem:[#allocation16 + $0x220] sm:$0xff]
        %v5845 = vld [vmem:[#allocation16 + $0x228] sm:$0xff]
        %v5846 = vld [vmem:[#allocation16 + $0x230] sm:$0xff]
        %v5847 = vld [vmem:[#allocation16 + $0x238] sm:$0xff]
        %v5848 = vld [vmem:[#allocation16 + $0x240] sm:$0xff]
        %v5849 = vld [vmem:[#allocation16 + $0x248] sm:$0xff]
        %v5850 = vld [vmem:[#allocation16 + $0x250] sm:$0xff]
        %v5851 = vld [vmem:[#allocation16 + $0x258] sm:$0xff]
        %v5852 = vld [vmem:[#allocation16 + $0x260] sm:$0xff]
        %v5853 = vld [vmem:[#allocation16 + $0x268] sm:$0xff]
        %v5854 = vld [vmem:[#allocation16 + $0x270] sm:$0xff]
        %v5855 = vld [vmem:[#allocation16 + $0x278] sm:$0xff]
        %v5856 = vld [vmem:[#allocation16 + $0x280] sm:$0xff]
        %v5857 = vld [vmem:[#allocation16 + $0x288] sm:$0xff]
        %v5858 = vld [vmem:[#allocation16 + $0x290] sm:$0xff]
        %v5859 = vld [vmem:[#allocation16 + $0x298] sm:$0xff]
        %v5860 = vld [vmem:[#allocation16 + $0x2a0] sm:$0xff]
        %v5861 = vld [vmem:[#allocation16 + $0x2a8] sm:$0xff]
        %v5862 = vld [vmem:[#allocation16 + $0x2b0] sm:$0xff]
        %v5863 = vld [vmem:[#allocation16 + $0x2b8] sm:$0xff]
        %v5864 = vld [vmem:[#allocation16 + $0x2c0] sm:$0xff]
        %v5865 = vld [vmem:[#allocation16 + $0x2c8] sm:$0xff]
        %v5866 = vld [vmem:[#allocation16 + $0x2d0] sm:$0xff]
        %v5867 = vld [vmem:[#allocation16 + $0x2d8] sm:$0xff]
        %v5868 = vld [vmem:[#allocation16 + $0x2e0] sm:$0xff]
        %v5869 = vld [vmem:[#allocation16 + $0x2e8] sm:$0xff]
        %v5870 = vld [vmem:[#allocation16 + $0x2f0] sm:$0xff]
        %v5871 = vld [vmem:[#allocation16 + $0x2f8] sm:$0xff]
        %v5872 = vld [vmem:[#allocation16 + $0x300] sm:$0xff]
        %v5873 = vld [vmem:[#allocation16 + $0x308] sm:$0xff]
        %v5874 = vld [vmem:[#allocation16 + $0x310] sm:$0xff]
        %v5875 = vld [vmem:[#allocation16 + $0x318] sm:$0xff]
        %v5876 = vld [vmem:[#allocation16 + $0x320] sm:$0xff]
        %v5877 = vld [vmem:[#allocation16 + $0x328] sm:$0xff]
        %v5878 = vld [vmem:[#allocation16 + $0x330] sm:$0xff]
        %v5879 = vld [vmem:[#allocation16 + $0x338] sm:$0xff]
        %v5880 = vld [vmem:[#allocation16 + $0x340] sm:$0xff]
        %v5881 = vld [vmem:[#allocation16 + $0x348] sm:$0xff]
        %v5882 = vld [vmem:[#allocation16 + $0x350] sm:$0xff]
        %v5883 = vld [vmem:[#allocation16 + $0x358] sm:$0xff]
        %v5884 = vld [vmem:[#allocation16 + $0x360] sm:$0xff]
        %v5885 = vld [vmem:[#allocation16 + $0x368] sm:$0xff]
        %v5886 = vld [vmem:[#allocation16 + $0x370] sm:$0xff]
        %v5887 = vld [vmem:[#allocation16 + $0x378] sm:$0xff]
        %v5888 = vld [vmem:[#allocation16 + $0x380] sm:$0xff]
        %v5889 = vld [vmem:[#allocation16 + $0x388] sm:$0xff]
        %v5890 = vld [vmem:[#allocation16 + $0x390] sm:$0xff]
        %v5891 = vld [vmem:[#allocation16 + $0x398] sm:$0xff]
        %v5892 = vld [vmem:[#allocation16 + $0x3a0] sm:$0xff]
        %v5893 = vld [vmem:[#allocation16 + $0x3a8] sm:$0xff]
        %v5894 = vld [vmem:[#allocation16 + $0x3b0] sm:$0xff]
        %v5895 = vld [vmem:[#allocation16 + $0x3b8] sm:$0xff]
        %v5896 = vld [vmem:[#allocation16 + $0x3c0] sm:$0xff]
        %v5897 = vld [vmem:[#allocation16 + $0x3c8] sm:$0xff]
        %v5898 = vld [vmem:[#allocation16 + $0x3d0] sm:$0xff]
        %v5899 = vld [vmem:[#allocation16 + $0x3d8] sm:$0xff]
        %v5900 = vld [vmem:[#allocation16 + $0x3e0] sm:$0xff]
        %v5901 = vld [vmem:[#allocation16 + $0x3e8] sm:$0xff]
        %v5902 = vld [vmem:[#allocation16 + $0x3f0] sm:$0xff]
        %v5903 = vld [vmem:[#allocation16 + $0x3f8] sm:$0xff]
        %v5904 = vld [vmem:[#allocation18] sm:$0xf]
        %v5906 = vlaneseq
        %v5907 = vshrl.u32 %v5906, 7
        %v5908 = vsub.s32 0, %v5907
        %v5909 = vrot.slane %v5904, %v5908
        %v5910 = vlaneseq
        %v5911 = vshrl.u32 %v5910, 7
        %v5912 = vsub.s32 1, %v5911
        %v5913 = vrot.slane %v5904, %v5912
        %v5914 = vlaneseq
        %v5915 = vshrl.u32 %v5914, 7
        %v5916 = vsub.s32 2, %v5915
        %v5917 = vrot.slane %v5904, %v5916
        %v5918 = vlaneseq
        %v5919 = vshrl.u32 %v5918, 7
        %v5920 = vsub.s32 3, %v5919
        %v5921 = vrot.slane %v5904, %v5920
        %5926 = vmatprep.subr.mxu0 %v5837
        %5927 = vmatpush1.msra.mxu0 %v5836
        %5928 = vmatprep.subr.mxu0 %v5833
        %5929 = vmatpush1.msra.mxu0 %v5832
        %5930 = vmatprep.subr.mxu0 %v5829
        %5931 = vmatpush1.msra.mxu0 %v5828
        %5932 = vmatprep.subr.mxu0 %v5825
        %5933 = vmatpush1.msra.mxu0 %v5824
        %5934 = vmatprep.subr.mxu0 %v5821
        %5935 = vmatpush1.msra.mxu0 %v5820
        %5936 = vmatprep.subr.mxu0 %v5817
        %5937 = vmatpush1.msra.mxu0 %v5816
        %5938 = vmatprep.subr.mxu0 %v5813
        %5939 = vmatpush1.msra.mxu0 %v5812
        %5940 = vmatprep.subr.mxu0 %v5809
        %5941 = vmatpush1.msra.mxu0 %v5808
        %5942 = vmatprep.subr.mxu0 %v5805
        %5943 = vmatpush1.msra.mxu0 %v5804
        %5944 = vmatprep.subr.mxu0 %v5801
        %5945 = vmatpush1.msra.mxu0 %v5800
        %5946 = vmatprep.subr.mxu0 %v5797
        %5947 = vmatpush1.msra.mxu0 %v5796
        %5948 = vmatprep.subr.mxu0 %v5793
        %5949 = vmatpush1.msra.mxu0 %v5792
        %5950 = vmatprep.subr.mxu0 %v5789
        %5951 = vmatpush1.msra.mxu0 %v5788
        %5952 = vmatprep.subr.mxu0 %v5785
        %5953 = vmatpush1.msra.mxu0 %v5784
        %5954 = vmatprep.subr.mxu0 %v5781
        %5955 = vmatpush1.msra.mxu0 %v5780
        %5956 = vmatprep.subr.mxu0 %v5777
        %5957 = vmatpush1.msra.mxu0 %v5776
        %5958 = vmatprep.subr.mxu0 %v5901
        %5959 = vmatpush2.msra.mxu0 %v5900
        %5960 = vmatprep.subr.mxu0 %v5897
        %5961 = vmatpush2.msra.mxu0 %v5896
        %5962 = vmatprep.subr.mxu0 %v5893
        %5963 = vmatpush2.msra.mxu0 %v5892
        %5964 = vmatprep.subr.mxu0 %v5889
        %5965 = vmatpush2.msra.mxu0 %v5888
        %5966 = vmatprep.subr.mxu0 %v5885
        %5967 = vmatpush2.msra.mxu0 %v5884
        %5968 = vmatprep.subr.mxu0 %v5881
        %5969 = vmatpush2.msra.mxu0 %v5880
        %5970 = vmatprep.subr.mxu0 %v5877
        %5971 = vmatpush2.msra.mxu0 %v5876
        %5972 = vmatprep.subr.mxu0 %v5873
        %5973 = vmatpush2.msra.mxu0 %v5872
        %5974 = vmatprep.subr.mxu0 %v5869
        %5975 = vmatpush2.msra.mxu0 %v5868
        %5976 = vmatprep.subr.mxu0 %v5865
        %5977 = vmatpush2.msra.mxu0 %v5864
        %5978 = vmatprep.subr.mxu0 %v5861
        %5979 = vmatpush2.msra.mxu0 %v5860
        %5980 = vmatprep.subr.mxu0 %v5857
        %5981 = vmatpush2.msra.mxu0 %v5856
        %5982 = vmatprep.subr.mxu0 %v5853
        %5983 = vmatpush2.msra.mxu0 %v5852
        %5984 = vmatprep.subr.mxu0 %v5849
        %5985 = vmatpush2.msra.mxu0 %v5848
        %5986 = vmatprep.subr.mxu0 %v5845
        %5987 = vmatpush2.msra.mxu0 %v5844
        %5988 = vmatprep.subr.mxu0 %v5841
        %5989 = vmatpush2.msra.mxu0 %v5840
        %5990 = vmatprep.mubr.f32.mxu0 %v5775
        %5991 = vmatmul.mubr.f32.gmra.mxu0 %v5774
        %v5992 = vpop.f32.mrf.mxu0
        %v5993 = vadd.f32 %v5909, %v5992
        %v5994 = vpop.f32.mrf.mxu0
        %v5995 = vadd.f32 %v5913, %v5994
        %5996 = vdwg.mxu0
        %5997 = vmatprep.subr.mxu0 %v5839
        %5998 = vmatpush1.msra.mxu0 %v5838
        %5999 = vmatprep.subr.mxu0 %v5835
        %6000 = vmatpush1.msra.mxu0 %v5834
        %6001 = vmatprep.subr.mxu0 %v5831
        %6002 = vmatpush1.msra.mxu0 %v5830
        %6003 = vmatprep.subr.mxu0 %v5827
        %6004 = vmatpush1.msra.mxu0 %v5826
        %6005 = vmatprep.subr.mxu0 %v5823
        %6006 = vmatpush1.msra.mxu0 %v5822
        %6007 = vmatprep.subr.mxu0 %v5819
        %6008 = vmatpush1.msra.mxu0 %v5818
        %6009 = vmatprep.subr.mxu0 %v5815
        %6010 = vmatpush1.msra.mxu0 %v5814
        %6011 = vmatprep.subr.mxu0 %v5811
        %6012 = vmatpush1.msra.mxu0 %v5810
        %6013 = vmatprep.subr.mxu0 %v5807
        %6014 = vmatpush1.msra.mxu0 %v5806
        %6015 = vmatprep.subr.mxu0 %v5803
        %6016 = vmatpush1.msra.mxu0 %v5802
        %6017 = vmatprep.subr.mxu0 %v5799
        %6018 = vmatpush1.msra.mxu0 %v5798
        %6019 = vmatprep.subr.mxu0 %v5795
        %6020 = vmatpush1.msra.mxu0 %v5794
        %6021 = vmatprep.subr.mxu0 %v5791
        %6022 = vmatpush1.msra.mxu0 %v5790
        %6023 = vmatprep.subr.mxu0 %v5787
        %6024 = vmatpush1.msra.mxu0 %v5786
        %6025 = vmatprep.subr.mxu0 %v5783
        %6026 = vmatpush1.msra.mxu0 %v5782
        %6027 = vmatprep.subr.mxu0 %v5779
        %6028 = vmatpush1.msra.mxu0 %v5778
        %6029 = vmatprep.subr.mxu0 %v5903
        %6030 = vmatpush2.msra.mxu0 %v5902
        %6031 = vmatprep.subr.mxu0 %v5899
        %6032 = vmatpush2.msra.mxu0 %v5898
        %6033 = vmatprep.subr.mxu0 %v5895
        %6034 = vmatpush2.msra.mxu0 %v5894
        %6035 = vmatprep.subr.mxu0 %v5891
        %6036 = vmatpush2.msra.mxu0 %v5890
        %6037 = vmatprep.subr.mxu0 %v5887
        %6038 = vmatpush2.msra.mxu0 %v5886
        %6039 = vmatprep.subr.mxu0 %v5883
        %6040 = vmatpush2.msra.mxu0 %v5882
        %6041 = vmatprep.subr.mxu0 %v5879
        %6042 = vmatpush2.msra.mxu0 %v5878
        %6043 = vmatprep.subr.mxu0 %v5875
        %6044 = vmatpush2.msra.mxu0 %v5874
        %6045 = vmatprep.subr.mxu0 %v5871
        %6046 = vmatpush2.msra.mxu0 %v5870
        %6047 = vmatprep.subr.mxu0 %v5867
        %6048 = vmatpush2.msra.mxu0 %v5866
        %6049 = vmatprep.subr.mxu0 %v5863
        %6050 = vmatpush2.msra.mxu0 %v5862
        %6051 = vmatprep.subr.mxu0 %v5859
        %6052 = vmatpush2.msra.mxu0 %v5858
        %6053 = vmatprep.subr.mxu0 %v5855
        %6054 = vmatpush2.msra.mxu0 %v5854
        %6055 = vmatprep.subr.mxu0 %v5851
        %6056 = vmatpush2.msra.mxu0 %v5850
        %6057 = vmatprep.subr.mxu0 %v5847
        %6058 = vmatpush2.msra.mxu0 %v5846
        %6059 = vmatprep.subr.mxu0 %v5843
        %6060 = vmatpush2.msra.mxu0 %v5842
        %6061 = vmatprep.mubr.f32.mxu0 %v5775
        %6062 = vmatmul.mubr.f32.gmra.mxu0 %v5774
        %v6063 = vpop.f32.mrf.mxu0
        %v6064 = vadd.f32 %v5917, %v6063
        %v6065 = vpop.f32.mrf.mxu0
        %v6066 = vadd.f32 %v5921, %v6065
        %6067 = vdwg.mxu0
        %v6068 = vmax.f32 %v5993, 0.0
        %v6069 = vmax.f32 %v5995, 0.0
        %v6070 = vmax.f32 %v6064, 0.0
        %v6071 = vmax.f32 %v6066, 0.0
        %v6072 = vld [vmem:[#allocation19] sm:$0xff]
        %v6073 = vld [vmem:[#allocation19 + $0x8] sm:$0xff]
        %v6074 = vld [vmem:[#allocation19 + $0x10] sm:$0xff]
        %v6075 = vld [vmem:[#allocation19 + $0x18] sm:$0xff]
        %v6076 = vld [vmem:[#allocation19 + $0x20] sm:$0xff]
        %v6077 = vld [vmem:[#allocation19 + $0x28] sm:$0xff]
        %v6078 = vld [vmem:[#allocation19 + $0x30] sm:$0xff]
        %v6079 = vld [vmem:[#allocation19 + $0x38] sm:$0xff]
        %v6080 = vld [vmem:[#allocation19 + $0x40] sm:$0xff]
        %v6081 = vld [vmem:[#allocation19 + $0x48] sm:$0xff]
        %v6082 = vld [vmem:[#allocation19 + $0x50] sm:$0xff]
        %v6083 = vld [vmem:[#allocation19 + $0x58] sm:$0xff]
        %v6084 = vld [vmem:[#allocation19 + $0x60] sm:$0xff]
        %v6085 = vld [vmem:[#allocation19 + $0x68] sm:$0xff]
        %v6086 = vld [vmem:[#allocation19 + $0x70] sm:$0xff]
        %v6087 = vld [vmem:[#allocation19 + $0x78] sm:$0xff]
        %v6088 = vld [vmem:[#allocation19 + $0x80] sm:$0xff]
        %v6089 = vld [vmem:[#allocation19 + $0x88] sm:$0xff]
        %v6090 = vld [vmem:[#allocation19 + $0x90] sm:$0xff]
        %v6091 = vld [vmem:[#allocation19 + $0x98] sm:$0xff]
        %v6092 = vld [vmem:[#allocation19 + $0xa0] sm:$0xff]
        %v6093 = vld [vmem:[#allocation19 + $0xa8] sm:$0xff]
        %v6094 = vld [vmem:[#allocation19 + $0xb0] sm:$0xff]
        %v6095 = vld [vmem:[#allocation19 + $0xb8] sm:$0xff]
        %v6096 = vld [vmem:[#allocation19 + $0xc0] sm:$0xff]
        %v6097 = vld [vmem:[#allocation19 + $0xc8] sm:$0xff]
        %v6098 = vld [vmem:[#allocation19 + $0xd0] sm:$0xff]
        %v6099 = vld [vmem:[#allocation19 + $0xd8] sm:$0xff]
        %v6100 = vld [vmem:[#allocation19 + $0xe0] sm:$0xff]
        %v6101 = vld [vmem:[#allocation19 + $0xe8] sm:$0xff]
        %v6102 = vld [vmem:[#allocation19 + $0xf0] sm:$0xff]
        %v6103 = vld [vmem:[#allocation19 + $0xf8] sm:$0xff]
        %v6104 = vld [vmem:[#allocation21] sm:$0x3]
        %v6106 = vlaneseq
        %v6107 = vshrl.u32 %v6106, 7
        %v6108 = vsub.s32 0, %v6107
        %v6109 = vrot.slane %v6104, %v6108
        %v6110 = vlaneseq
        %v6111 = vshrl.u32 %v6110, 7
        %v6112 = vsub.s32 1, %v6111
        %v6113 = vrot.slane %v6104, %v6112
        %6116 = vmatprep.subr.mxu0 %v6103
        %6117 = vmatpush1.msra.mxu0 %v6102
        %6118 = vmatprep.subr.mxu0 %v6101
        %6119 = vmatpush1.msra.mxu0 %v6100
        %6120 = vmatprep.subr.mxu0 %v6099
        %6121 = vmatpush1.msra.mxu0 %v6098
        %6122 = vmatprep.subr.mxu0 %v6097
        %6123 = vmatpush1.msra.mxu0 %v6096
        %6124 = vmatprep.subr.mxu0 %v6095
        %6125 = vmatpush1.msra.mxu0 %v6094
        %6126 = vmatprep.subr.mxu0 %v6093
        %6127 = vmatpush1.msra.mxu0 %v6092
        %6128 = vmatprep.subr.mxu0 %v6091
        %6129 = vmatpush1.msra.mxu0 %v6090
        %6130 = vmatprep.subr.mxu0 %v6089
        %6131 = vmatpush1.msra.mxu0 %v6088
        %6132 = vmatprep.subr.mxu0 %v6087
        %6133 = vmatpush1.msra.mxu0 %v6086
        %6134 = vmatprep.subr.mxu0 %v6085
        %6135 = vmatpush1.msra.mxu0 %v6084
        %6136 = vmatprep.subr.mxu0 %v6083
        %6137 = vmatpush1.msra.mxu0 %v6082
        %6138 = vmatprep.subr.mxu0 %v6081
        %6139 = vmatpush1.msra.mxu0 %v6080
        %6140 = vmatprep.subr.mxu0 %v6079
        %6141 = vmatpush1.msra.mxu0 %v6078
        %6142 = vmatprep.subr.mxu0 %v6077
        %6143 = vmatpush1.msra.mxu0 %v6076
        %6144 = vmatprep.subr.mxu0 %v6075
        %6145 = vmatpush1.msra.mxu0 %v6074
        %6146 = vmatprep.subr.mxu0 %v6073
        %6147 = vmatpush1.msra.mxu0 %v6072
        %6148 = vmatprep.subr.mxu0 0.0
        %6149 = vmatpush2.msra.mxu0 0.0
        %6150 = vmatprep.subr.mxu0 0.0
        %6151 = vmatpush2.msra.mxu0 0.0
        %6152 = vmatprep.subr.mxu0 0.0
        %6153 = vmatpush2.msra.mxu0 0.0
        %6154 = vmatprep.subr.mxu0 0.0
        %6155 = vmatpush2.msra.mxu0 0.0
        %6156 = vmatprep.subr.mxu0 0.0
        %6157 = vmatpush2.msra.mxu0 0.0
        %6158 = vmatprep.subr.mxu0 0.0
        %6159 = vmatpush2.msra.mxu0 0.0
        %6160 = vmatprep.subr.mxu0 0.0
        %6161 = vmatpush2.msra.mxu0 0.0
        %6162 = vmatprep.subr.mxu0 0.0
        %6163 = vmatpush2.msra.mxu0 0.0
        %6164 = vmatprep.subr.mxu0 0.0
        %6165 = vmatpush2.msra.mxu0 0.0
        %6166 = vmatprep.subr.mxu0 0.0
        %6167 = vmatpush2.msra.mxu0 0.0
        %6168 = vmatprep.subr.mxu0 0.0
        %6169 = vmatpush2.msra.mxu0 0.0
        %6170 = vmatprep.subr.mxu0 0.0
        %6171 = vmatpush2.msra.mxu0 0.0
        %6172 = vmatprep.subr.mxu0 0.0
        %6173 = vmatpush2.msra.mxu0 0.0
        %6174 = vmatprep.subr.mxu0 0.0
        %6175 = vmatpush2.msra.mxu0 0.0
        %6176 = vmatprep.subr.mxu0 0.0
        %6177 = vmatpush2.msra.mxu0 0.0
        %6178 = vmatprep.subr.mxu0 0.0
        %6179 = vmatpush2.msra.mxu0 0.0
        %6180 = vmatprep.mubr.f32.mxu0 0.0
        %6181 = vmatmul.mubr.f32.gmra.mxu0 %v6068
        %v6182 = vpop.f32.mrf.mxu0
        %v6183 = vadd.f32 %v6109, %v6182
        %v6184 = vpop.f32.mrf.mxu0
        %v6185 = vadd.f32 %v6113, %v6184
        %6186 = vdwg.mxu0
        %v6187 = vmax.f32 %v6183, 0.0
        %v6188 = vmax.f32 %v6185, 0.0
        %v6189 = vld [vmem:[#allocation22] sm:$0xff]
        %v6190 = vld [vmem:[#allocation22 + $0x8] sm:$0xff]
        %v6191 = vld [vmem:[#allocation22 + $0x10] sm:$0xff]
        %v6192 = vld [vmem:[#allocation22 + $0x18] sm:$0xff]
        %v6193 = vld [vmem:[#allocation22 + $0x20] sm:$0xff]
        %v6194 = vld [vmem:[#allocation22 + $0x28] sm:$0xff]
        %v6195 = vld [vmem:[#allocation22 + $0x30] sm:$0xff]
        %v6196 = vld [vmem:[#allocation22 + $0x38] sm:$0xff]
        %v6197 = vld [vmem:[#allocation22 + $0x40] sm:$0xff]
        %v6198 = vld [vmem:[#allocation22 + $0x48] sm:$0xff]
        %v6199 = vld [vmem:[#allocation22 + $0x50] sm:$0xff]
        %v6200 = vld [vmem:[#allocation22 + $0x58] sm:$0xff]
        %v6201 = vld [vmem:[#allocation22 + $0x60] sm:$0xff]
        %v6202 = vld [vmem:[#allocation22 + $0x68] sm:$0xff]
        %v6203 = vld [vmem:[#allocation22 + $0x70] sm:$0xff]
        %v6204 = vld [vmem:[#allocation22 + $0x78] sm:$0xff]
        %v6205 = vld [vmem:[#allocation22 + $0x80] sm:$0xff]
        %v6206 = vld [vmem:[#allocation22 + $0x88] sm:$0xff]
        %v6207 = vld [vmem:[#allocation22 + $0x90] sm:$0xff]
        %v6208 = vld [vmem:[#allocation22 + $0x98] sm:$0xff]
        %v6209 = vld [vmem:[#allocation22 + $0xa0] sm:$0xff]
        %v6210 = vld [vmem:[#allocation22 + $0xa8] sm:$0xff]
        %v6211 = vld [vmem:[#allocation22 + $0xb0] sm:$0xff]
        %v6212 = vld [vmem:[#allocation22 + $0xb8] sm:$0xff]
        %v6213 = vld [vmem:[#allocation22 + $0xc0] sm:$0xff]
        %v6214 = vld [vmem:[#allocation22 + $0xc8] sm:$0xff]
        %v6215 = vld [vmem:[#allocation22 + $0xd0] sm:$0xff]
        %v6216 = vld [vmem:[#allocation22 + $0xd8] sm:$0xff]
        %v6217 = vld [vmem:[#allocation22 + $0xe0] sm:$0xff]
        %v6218 = vld [vmem:[#allocation22 + $0xe8] sm:$0xff]
        %v6219 = vld [vmem:[#allocation22 + $0xf0] sm:$0xff]
        %v6220 = vld [vmem:[#allocation22 + $0xf8] sm:$0xff]
        %v6221 = vld [vmem:[#allocation22 + $0x100] sm:$0xff]
        %v6222 = vld [vmem:[#allocation22 + $0x108] sm:$0xff]
        %v6223 = vld [vmem:[#allocation22 + $0x110] sm:$0xff]
        %v6224 = vld [vmem:[#allocation22 + $0x118] sm:$0xff]
        %v6225 = vld [vmem:[#allocation22 + $0x120] sm:$0xff]
        %v6226 = vld [vmem:[#allocation22 + $0x128] sm:$0xff]
        %v6227 = vld [vmem:[#allocation22 + $0x130] sm:$0xff]
        %v6228 = vld [vmem:[#allocation22 + $0x138] sm:$0xff]
        %v6229 = vld [vmem:[#allocation22 + $0x140] sm:$0xff]
        %v6230 = vld [vmem:[#allocation22 + $0x148] sm:$0xff]
        %v6231 = vld [vmem:[#allocation22 + $0x150] sm:$0xff]
        %v6232 = vld [vmem:[#allocation22 + $0x158] sm:$0xff]
        %v6233 = vld [vmem:[#allocation22 + $0x160] sm:$0xff]
        %v6234 = vld [vmem:[#allocation22 + $0x168] sm:$0xff]
        %v6235 = vld [vmem:[#allocation22 + $0x170] sm:$0xff]
        %v6236 = vld [vmem:[#allocation22 + $0x178] sm:$0xff]
        %v6237 = vld [vmem:[#allocation22 + $0x180] sm:$0xff]
        %v6238 = vld [vmem:[#allocation22 + $0x188] sm:$0xff]
        %v6239 = vld [vmem:[#allocation22 + $0x190] sm:$0xff]
        %v6240 = vld [vmem:[#allocation22 + $0x198] sm:$0xff]
        %v6241 = vld [vmem:[#allocation22 + $0x1a0] sm:$0xff]
        %v6242 = vld [vmem:[#allocation22 + $0x1a8] sm:$0xff]
        %v6243 = vld [vmem:[#allocation22 + $0x1b0] sm:$0xff]
        %v6244 = vld [vmem:[#allocation22 + $0x1b8] sm:$0xff]
        %v6245 = vld [vmem:[#allocation22 + $0x1c0] sm:$0xff]
        %v6246 = vld [vmem:[#allocation22 + $0x1c8] sm:$0xff]
        %v6247 = vld [vmem:[#allocation22 + $0x1d0] sm:$0xff]
        %v6248 = vld [vmem:[#allocation22 + $0x1d8] sm:$0xff]
        %v6249 = vld [vmem:[#allocation22 + $0x1e0] sm:$0xff]
        %v6250 = vld [vmem:[#allocation22 + $0x1e8] sm:$0xff]
        %v6251 = vld [vmem:[#allocation22 + $0x1f0] sm:$0xff]
        %v6252 = vld [vmem:[#allocation22 + $0x1f8] sm:$0xff]
        %v6253 = vld [vmem:[#allocation24] sm:$0x3]
        %v6255 = vlaneseq
        %v6256 = vshrl.u32 %v6255, 7
        %v6257 = vsub.s32 0, %v6256
        %v6258 = vrot.slane %v6253, %v6257
        %v6259 = vlaneseq
        %v6260 = vshrl.u32 %v6259, 7
        %v6261 = vsub.s32 1, %v6260
        %v6262 = vrot.slane %v6253, %v6261
        %6265 = vmatprep.subr.mxu0 %v6220
        %6266 = vmatpush1.msra.mxu0 %v6219
        %6267 = vmatprep.subr.mxu0 %v6218
        %6268 = vmatpush1.msra.mxu0 %v6217
        %6269 = vmatprep.subr.mxu0 %v6216
        %6270 = vmatpush1.msra.mxu0 %v6215
        %6271 = vmatprep.subr.mxu0 %v6214
        %6272 = vmatpush1.msra.mxu0 %v6213
        %6273 = vmatprep.subr.mxu0 %v6212
        %6274 = vmatpush1.msra.mxu0 %v6211
        %6275 = vmatprep.subr.mxu0 %v6210
        %6276 = vmatpush1.msra.mxu0 %v6209
        %6277 = vmatprep.subr.mxu0 %v6208
        %6278 = vmatpush1.msra.mxu0 %v6207
        %6279 = vmatprep.subr.mxu0 %v6206
        %6280 = vmatpush1.msra.mxu0 %v6205
        %6281 = vmatprep.subr.mxu0 %v6204
        %6282 = vmatpush1.msra.mxu0 %v6203
        %6283 = vmatprep.subr.mxu0 %v6202
        %6284 = vmatpush1.msra.mxu0 %v6201
        %6285 = vmatprep.subr.mxu0 %v6200
        %6286 = vmatpush1.msra.mxu0 %v6199
        %6287 = vmatprep.subr.mxu0 %v6198
        %6288 = vmatpush1.msra.mxu0 %v6197
        %6289 = vmatprep.subr.mxu0 %v6196
        %6290 = vmatpush1.msra.mxu0 %v6195
        %6291 = vmatprep.subr.mxu0 %v6194
        %6292 = vmatpush1.msra.mxu0 %v6193
        %6293 = vmatprep.subr.mxu0 %v6192
        %6294 = vmatpush1.msra.mxu0 %v6191
        %6295 = vmatprep.subr.mxu0 %v6190
        %6296 = vmatpush1.msra.mxu0 %v6189
        %6297 = vmatprep.subr.mxu0 %v6252
        %6298 = vmatpush2.msra.mxu0 %v6251
        %6299 = vmatprep.subr.mxu0 %v6250
        %6300 = vmatpush2.msra.mxu0 %v6249
        %6301 = vmatprep.subr.mxu0 %v6248
        %6302 = vmatpush2.msra.mxu0 %v6247
        %6303 = vmatprep.subr.mxu0 %v6246
        %6304 = vmatpush2.msra.mxu0 %v6245
        %6305 = vmatprep.subr.mxu0 %v6244
        %6306 = vmatpush2.msra.mxu0 %v6243
        %6307 = vmatprep.subr.mxu0 %v6242
        %6308 = vmatpush2.msra.mxu0 %v6241
        %6309 = vmatprep.subr.mxu0 %v6240
        %6310 = vmatpush2.msra.mxu0 %v6239
        %6311 = vmatprep.subr.mxu0 %v6238
        %6312 = vmatpush2.msra.mxu0 %v6237
        %6313 = vmatprep.subr.mxu0 %v6236
        %6314 = vmatpush2.msra.mxu0 %v6235
        %6315 = vmatprep.subr.mxu0 %v6234
        %6316 = vmatpush2.msra.mxu0 %v6233
        %6317 = vmatprep.subr.mxu0 %v6232
        %6318 = vmatpush2.msra.mxu0 %v6231
        %6319 = vmatprep.subr.mxu0 %v6230
        %6320 = vmatpush2.msra.mxu0 %v6229
        %6321 = vmatprep.subr.mxu0 %v6228
        %6322 = vmatpush2.msra.mxu0 %v6227
        %6323 = vmatprep.subr.mxu0 %v6226
        %6324 = vmatpush2.msra.mxu0 %v6225
        %6325 = vmatprep.subr.mxu0 %v6224
        %6326 = vmatpush2.msra.mxu0 %v6223
        %6327 = vmatprep.subr.mxu0 %v6222
        %6328 = vmatpush2.msra.mxu0 %v6221
        %6329 = vmatprep.mubr.f32.mxu0 %v6188
        %6330 = vmatmul.mubr.f32.gmra.mxu0 %v6187
        %v6331 = vpop.f32.mrf.mxu0
        %v6332 = vadd.f32 %v6258, %v6331
        %v6333 = vpop.f32.mrf.mxu0
        %v6334 = vadd.f32 %v6262, %v6333
        %6335 = vdwg.mxu0
        %v6336 = vmax.f32 %v6332, 0.0
        %v6337 = vmax.f32 %v6334, 0.0
        %6338 = vst [vmem:[%s700 + $0xc0] sm:$0xff] %v6336
        %6339 = vst [vmem:[%s700 + $0xc8] sm:$0xff] %v6337
        %v6340 = vld [vmem:[#allocation19] sm:$0xff]
        %v6341 = vld [vmem:[#allocation19 + $0x8] sm:$0xff]
        %v6342 = vld [vmem:[#allocation19 + $0x10] sm:$0xff]
        %v6343 = vld [vmem:[#allocation19 + $0x18] sm:$0xff]
        %v6344 = vld [vmem:[#allocation19 + $0x20] sm:$0xff]
        %v6345 = vld [vmem:[#allocation19 + $0x28] sm:$0xff]
        %v6346 = vld [vmem:[#allocation19 + $0x30] sm:$0xff]
        %v6347 = vld [vmem:[#allocation19 + $0x38] sm:$0xff]
        %v6348 = vld [vmem:[#allocation19 + $0x40] sm:$0xff]
        %v6349 = vld [vmem:[#allocation19 + $0x48] sm:$0xff]
        %v6350 = vld [vmem:[#allocation19 + $0x50] sm:$0xff]
        %v6351 = vld [vmem:[#allocation19 + $0x58] sm:$0xff]
        %v6352 = vld [vmem:[#allocation19 + $0x60] sm:$0xff]
        %v6353 = vld [vmem:[#allocation19 + $0x68] sm:$0xff]
        %v6354 = vld [vmem:[#allocation19 + $0x70] sm:$0xff]
        %v6355 = vld [vmem:[#allocation19 + $0x78] sm:$0xff]
        %v6356 = vld [vmem:[#allocation19 + $0x80] sm:$0xff]
        %v6357 = vld [vmem:[#allocation19 + $0x88] sm:$0xff]
        %v6358 = vld [vmem:[#allocation19 + $0x90] sm:$0xff]
        %v6359 = vld [vmem:[#allocation19 + $0x98] sm:$0xff]
        %v6360 = vld [vmem:[#allocation19 + $0xa0] sm:$0xff]
        %v6361 = vld [vmem:[#allocation19 + $0xa8] sm:$0xff]
        %v6362 = vld [vmem:[#allocation19 + $0xb0] sm:$0xff]
        %v6363 = vld [vmem:[#allocation19 + $0xb8] sm:$0xff]
        %v6364 = vld [vmem:[#allocation19 + $0xc0] sm:$0xff]
        %v6365 = vld [vmem:[#allocation19 + $0xc8] sm:$0xff]
        %v6366 = vld [vmem:[#allocation19 + $0xd0] sm:$0xff]
        %v6367 = vld [vmem:[#allocation19 + $0xd8] sm:$0xff]
        %v6368 = vld [vmem:[#allocation19 + $0xe0] sm:$0xff]
        %v6369 = vld [vmem:[#allocation19 + $0xe8] sm:$0xff]
        %v6370 = vld [vmem:[#allocation19 + $0xf0] sm:$0xff]
        %v6371 = vld [vmem:[#allocation19 + $0xf8] sm:$0xff]
        %v6372 = vld [vmem:[#allocation21] sm:$0x3]
        %v6374 = vlaneseq
        %v6375 = vshrl.u32 %v6374, 7
        %v6376 = vsub.s32 0, %v6375
        %v6377 = vrot.slane %v6372, %v6376
        %v6378 = vlaneseq
        %v6379 = vshrl.u32 %v6378, 7
        %v6380 = vsub.s32 1, %v6379
        %v6381 = vrot.slane %v6372, %v6380
        %6384 = vmatprep.subr.mxu0 %v6371
        %6385 = vmatpush1.msra.mxu0 %v6370
        %6386 = vmatprep.subr.mxu0 %v6369
        %6387 = vmatpush1.msra.mxu0 %v6368
        %6388 = vmatprep.subr.mxu0 %v6367
        %6389 = vmatpush1.msra.mxu0 %v6366
        %6390 = vmatprep.subr.mxu0 %v6365
        %6391 = vmatpush1.msra.mxu0 %v6364
        %6392 = vmatprep.subr.mxu0 %v6363
        %6393 = vmatpush1.msra.mxu0 %v6362
        %6394 = vmatprep.subr.mxu0 %v6361
        %6395 = vmatpush1.msra.mxu0 %v6360
        %6396 = vmatprep.subr.mxu0 %v6359
        %6397 = vmatpush1.msra.mxu0 %v6358
        %6398 = vmatprep.subr.mxu0 %v6357
        %6399 = vmatpush1.msra.mxu0 %v6356
        %6400 = vmatprep.subr.mxu0 %v6355
        %6401 = vmatpush1.msra.mxu0 %v6354
        %6402 = vmatprep.subr.mxu0 %v6353
        %6403 = vmatpush1.msra.mxu0 %v6352
        %6404 = vmatprep.subr.mxu0 %v6351
        %6405 = vmatpush1.msra.mxu0 %v6350
        %6406 = vmatprep.subr.mxu0 %v6349
        %6407 = vmatpush1.msra.mxu0 %v6348
        %6408 = vmatprep.subr.mxu0 %v6347
        %6409 = vmatpush1.msra.mxu0 %v6346
        %6410 = vmatprep.subr.mxu0 %v6345
        %6411 = vmatpush1.msra.mxu0 %v6344
        %6412 = vmatprep.subr.mxu0 %v6343
        %6413 = vmatpush1.msra.mxu0 %v6342
        %6414 = vmatprep.subr.mxu0 %v6341
        %6415 = vmatpush1.msra.mxu0 %v6340
        %6416 = vmatprep.subr.mxu0 0.0
        %6417 = vmatpush2.msra.mxu0 0.0
        %6418 = vmatprep.subr.mxu0 0.0
        %6419 = vmatpush2.msra.mxu0 0.0
        %6420 = vmatprep.subr.mxu0 0.0
        %6421 = vmatpush2.msra.mxu0 0.0
        %6422 = vmatprep.subr.mxu0 0.0
        %6423 = vmatpush2.msra.mxu0 0.0
        %6424 = vmatprep.subr.mxu0 0.0
        %6425 = vmatpush2.msra.mxu0 0.0
        %6426 = vmatprep.subr.mxu0 0.0
        %6427 = vmatpush2.msra.mxu0 0.0
        %6428 = vmatprep.subr.mxu0 0.0
        %6429 = vmatpush2.msra.mxu0 0.0
        %6430 = vmatprep.subr.mxu0 0.0
        %6431 = vmatpush2.msra.mxu0 0.0
        %6432 = vmatprep.subr.mxu0 0.0
        %6433 = vmatpush2.msra.mxu0 0.0
        %6434 = vmatprep.subr.mxu0 0.0
        %6435 = vmatpush2.msra.mxu0 0.0
        %6436 = vmatprep.subr.mxu0 0.0
        %6437 = vmatpush2.msra.mxu0 0.0
        %6438 = vmatprep.subr.mxu0 0.0
        %6439 = vmatpush2.msra.mxu0 0.0
        %6440 = vmatprep.subr.mxu0 0.0
        %6441 = vmatpush2.msra.mxu0 0.0
        %6442 = vmatprep.subr.mxu0 0.0
        %6443 = vmatpush2.msra.mxu0 0.0
        %6444 = vmatprep.subr.mxu0 0.0
        %6445 = vmatpush2.msra.mxu0 0.0
        %6446 = vmatprep.subr.mxu0 0.0
        %6447 = vmatpush2.msra.mxu0 0.0
        %6448 = vmatprep.mubr.f32.mxu0 0.0
        %6449 = vmatmul.mubr.f32.gmra.mxu0 %v6069
        %v6450 = vpop.f32.mrf.mxu0
        %v6451 = vadd.f32 %v6377, %v6450
        %v6452 = vpop.f32.mrf.mxu0
        %v6453 = vadd.f32 %v6381, %v6452
        %6454 = vdwg.mxu0
        %v6455 = vmax.f32 %v6451, 0.0
        %v6456 = vmax.f32 %v6453, 0.0
        %v6457 = vld [vmem:[#allocation22] sm:$0xff]
        %v6458 = vld [vmem:[#allocation22 + $0x8] sm:$0xff]
        %v6459 = vld [vmem:[#allocation22 + $0x10] sm:$0xff]
        %v6460 = vld [vmem:[#allocation22 + $0x18] sm:$0xff]
        %v6461 = vld [vmem:[#allocation22 + $0x20] sm:$0xff]
        %v6462 = vld [vmem:[#allocation22 + $0x28] sm:$0xff]
        %v6463 = vld [vmem:[#allocation22 + $0x30] sm:$0xff]
        %v6464 = vld [vmem:[#allocation22 + $0x38] sm:$0xff]
        %v6465 = vld [vmem:[#allocation22 + $0x40] sm:$0xff]
        %v6466 = vld [vmem:[#allocation22 + $0x48] sm:$0xff]
        %v6467 = vld [vmem:[#allocation22 + $0x50] sm:$0xff]
        %v6468 = vld [vmem:[#allocation22 + $0x58] sm:$0xff]
        %v6469 = vld [vmem:[#allocation22 + $0x60] sm:$0xff]
        %v6470 = vld [vmem:[#allocation22 + $0x68] sm:$0xff]
        %v6471 = vld [vmem:[#allocation22 + $0x70] sm:$0xff]
        %v6472 = vld [vmem:[#allocation22 + $0x78] sm:$0xff]
        %v6473 = vld [vmem:[#allocation22 + $0x80] sm:$0xff]
        %v6474 = vld [vmem:[#allocation22 + $0x88] sm:$0xff]
        %v6475 = vld [vmem:[#allocation22 + $0x90] sm:$0xff]
        %v6476 = vld [vmem:[#allocation22 + $0x98] sm:$0xff]
        %v6477 = vld [vmem:[#allocation22 + $0xa0] sm:$0xff]
        %v6478 = vld [vmem:[#allocation22 + $0xa8] sm:$0xff]
        %v6479 = vld [vmem:[#allocation22 + $0xb0] sm:$0xff]
        %v6480 = vld [vmem:[#allocation22 + $0xb8] sm:$0xff]
        %v6481 = vld [vmem:[#allocation22 + $0xc0] sm:$0xff]
        %v6482 = vld [vmem:[#allocation22 + $0xc8] sm:$0xff]
        %v6483 = vld [vmem:[#allocation22 + $0xd0] sm:$0xff]
        %v6484 = vld [vmem:[#allocation22 + $0xd8] sm:$0xff]
        %v6485 = vld [vmem:[#allocation22 + $0xe0] sm:$0xff]
        %v6486 = vld [vmem:[#allocation22 + $0xe8] sm:$0xff]
        %v6487 = vld [vmem:[#allocation22 + $0xf0] sm:$0xff]
        %v6488 = vld [vmem:[#allocation22 + $0xf8] sm:$0xff]
        %v6489 = vld [vmem:[#allocation22 + $0x100] sm:$0xff]
        %v6490 = vld [vmem:[#allocation22 + $0x108] sm:$0xff]
        %v6491 = vld [vmem:[#allocation22 + $0x110] sm:$0xff]
        %v6492 = vld [vmem:[#allocation22 + $0x118] sm:$0xff]
        %v6493 = vld [vmem:[#allocation22 + $0x120] sm:$0xff]
        %v6494 = vld [vmem:[#allocation22 + $0x128] sm:$0xff]
        %v6495 = vld [vmem:[#allocation22 + $0x130] sm:$0xff]
        %v6496 = vld [vmem:[#allocation22 + $0x138] sm:$0xff]
        %v6497 = vld [vmem:[#allocation22 + $0x140] sm:$0xff]
        %v6498 = vld [vmem:[#allocation22 + $0x148] sm:$0xff]
        %v6499 = vld [vmem:[#allocation22 + $0x150] sm:$0xff]
        %v6500 = vld [vmem:[#allocation22 + $0x158] sm:$0xff]
        %v6501 = vld [vmem:[#allocation22 + $0x160] sm:$0xff]
        %v6502 = vld [vmem:[#allocation22 + $0x168] sm:$0xff]
        %v6503 = vld [vmem:[#allocation22 + $0x170] sm:$0xff]
        %v6504 = vld [vmem:[#allocation22 + $0x178] sm:$0xff]
        %v6505 = vld [vmem:[#allocation22 + $0x180] sm:$0xff]
        %v6506 = vld [vmem:[#allocation22 + $0x188] sm:$0xff]
        %v6507 = vld [vmem:[#allocation22 + $0x190] sm:$0xff]
        %v6508 = vld [vmem:[#allocation22 + $0x198] sm:$0xff]
        %v6509 = vld [vmem:[#allocation22 + $0x1a0] sm:$0xff]
        %v6510 = vld [vmem:[#allocation22 + $0x1a8] sm:$0xff]
        %v6511 = vld [vmem:[#allocation22 + $0x1b0] sm:$0xff]
        %v6512 = vld [vmem:[#allocation22 + $0x1b8] sm:$0xff]
        %v6513 = vld [vmem:[#allocation22 + $0x1c0] sm:$0xff]
        %v6514 = vld [vmem:[#allocation22 + $0x1c8] sm:$0xff]
        %v6515 = vld [vmem:[#allocation22 + $0x1d0] sm:$0xff]
        %v6516 = vld [vmem:[#allocation22 + $0x1d8] sm:$0xff]
        %v6517 = vld [vmem:[#allocation22 + $0x1e0] sm:$0xff]
        %v6518 = vld [vmem:[#allocation22 + $0x1e8] sm:$0xff]
        %v6519 = vld [vmem:[#allocation22 + $0x1f0] sm:$0xff]
        %v6520 = vld [vmem:[#allocation22 + $0x1f8] sm:$0xff]
        %v6521 = vld [vmem:[#allocation24] sm:$0x3]
        %v6523 = vlaneseq
        %v6524 = vshrl.u32 %v6523, 7
        %v6525 = vsub.s32 0, %v6524
        %v6526 = vrot.slane %v6521, %v6525
        %v6527 = vlaneseq
        %v6528 = vshrl.u32 %v6527, 7
        %v6529 = vsub.s32 1, %v6528
        %v6530 = vrot.slane %v6521, %v6529
        %6533 = vmatprep.subr.mxu0 %v6488
        %6534 = vmatpush1.msra.mxu0 %v6487
        %6535 = vmatprep.subr.mxu0 %v6486
        %6536 = vmatpush1.msra.mxu0 %v6485
        %6537 = vmatprep.subr.mxu0 %v6484
        %6538 = vmatpush1.msra.mxu0 %v6483
        %6539 = vmatprep.subr.mxu0 %v6482
        %6540 = vmatpush1.msra.mxu0 %v6481
        %6541 = vmatprep.subr.mxu0 %v6480
        %6542 = vmatpush1.msra.mxu0 %v6479
        %6543 = vmatprep.subr.mxu0 %v6478
        %6544 = vmatpush1.msra.mxu0 %v6477
        %6545 = vmatprep.subr.mxu0 %v6476
        %6546 = vmatpush1.msra.mxu0 %v6475
        %6547 = vmatprep.subr.mxu0 %v6474
        %6548 = vmatpush1.msra.mxu0 %v6473
        %6549 = vmatprep.subr.mxu0 %v6472
        %6550 = vmatpush1.msra.mxu0 %v6471
        %6551 = vmatprep.subr.mxu0 %v6470
        %6552 = vmatpush1.msra.mxu0 %v6469
        %6553 = vmatprep.subr.mxu0 %v6468
        %6554 = vmatpush1.msra.mxu0 %v6467
        %6555 = vmatprep.subr.mxu0 %v6466
        %6556 = vmatpush1.msra.mxu0 %v6465
        %6557 = vmatprep.subr.mxu0 %v6464
        %6558 = vmatpush1.msra.mxu0 %v6463
        %6559 = vmatprep.subr.mxu0 %v6462
        %6560 = vmatpush1.msra.mxu0 %v6461
        %6561 = vmatprep.subr.mxu0 %v6460
        %6562 = vmatpush1.msra.mxu0 %v6459
        %6563 = vmatprep.subr.mxu0 %v6458
        %6564 = vmatpush1.msra.mxu0 %v6457
        %6565 = vmatprep.subr.mxu0 %v6520
        %6566 = vmatpush2.msra.mxu0 %v6519
        %6567 = vmatprep.subr.mxu0 %v6518
        %6568 = vmatpush2.msra.mxu0 %v6517
        %6569 = vmatprep.subr.mxu0 %v6516
        %6570 = vmatpush2.msra.mxu0 %v6515
        %6571 = vmatprep.subr.mxu0 %v6514
        %6572 = vmatpush2.msra.mxu0 %v6513
        %6573 = vmatprep.subr.mxu0 %v6512
        %6574 = vmatpush2.msra.mxu0 %v6511
        %6575 = vmatprep.subr.mxu0 %v6510
        %6576 = vmatpush2.msra.mxu0 %v6509
        %6577 = vmatprep.subr.mxu0 %v6508
        %6578 = vmatpush2.msra.mxu0 %v6507
        %6579 = vmatprep.subr.mxu0 %v6506
        %6580 = vmatpush2.msra.mxu0 %v6505
        %6581 = vmatprep.subr.mxu0 %v6504
        %6582 = vmatpush2.msra.mxu0 %v6503
        %6583 = vmatprep.subr.mxu0 %v6502
        %6584 = vmatpush2.msra.mxu0 %v6501
        %6585 = vmatprep.subr.mxu0 %v6500
        %6586 = vmatpush2.msra.mxu0 %v6499
        %6587 = vmatprep.subr.mxu0 %v6498
        %6588 = vmatpush2.msra.mxu0 %v6497
        %6589 = vmatprep.subr.mxu0 %v6496
        %6590 = vmatpush2.msra.mxu0 %v6495
        %6591 = vmatprep.subr.mxu0 %v6494
        %6592 = vmatpush2.msra.mxu0 %v6493
        %6593 = vmatprep.subr.mxu0 %v6492
        %6594 = vmatpush2.msra.mxu0 %v6491
        %6595 = vmatprep.subr.mxu0 %v6490
        %6596 = vmatpush2.msra.mxu0 %v6489
        %6597 = vmatprep.mubr.f32.mxu0 %v6456
        %6598 = vmatmul.mubr.f32.gmra.mxu0 %v6455
        %v6599 = vpop.f32.mrf.mxu0
        %v6600 = vadd.f32 %v6526, %v6599
        %v6601 = vpop.f32.mrf.mxu0
        %v6602 = vadd.f32 %v6530, %v6601
        %6603 = vdwg.mxu0
        %v6604 = vmax.f32 %v6600, 0.0
        %v6605 = vmax.f32 %v6602, 0.0
        %6606 = vst [vmem:[%s700 + $0xd0] sm:$0xff] %v6604
        %6607 = vst [vmem:[%s700 + $0xd8] sm:$0xff] %v6605
        %v6608 = vld [vmem:[#allocation19] sm:$0xff]
        %v6609 = vld [vmem:[#allocation19 + $0x8] sm:$0xff]
        %v6610 = vld [vmem:[#allocation19 + $0x10] sm:$0xff]
        %v6611 = vld [vmem:[#allocation19 + $0x18] sm:$0xff]
        %v6612 = vld [vmem:[#allocation19 + $0x20] sm:$0xff]
        %v6613 = vld [vmem:[#allocation19 + $0x28] sm:$0xff]
        %v6614 = vld [vmem:[#allocation19 + $0x30] sm:$0xff]
        %v6615 = vld [vmem:[#allocation19 + $0x38] sm:$0xff]
        %v6616 = vld [vmem:[#allocation19 + $0x40] sm:$0xff]
        %v6617 = vld [vmem:[#allocation19 + $0x48] sm:$0xff]
        %v6618 = vld [vmem:[#allocation19 + $0x50] sm:$0xff]
        %v6619 = vld [vmem:[#allocation19 + $0x58] sm:$0xff]
        %v6620 = vld [vmem:[#allocation19 + $0x60] sm:$0xff]
        %v6621 = vld [vmem:[#allocation19 + $0x68] sm:$0xff]
        %v6622 = vld [vmem:[#allocation19 + $0x70] sm:$0xff]
        %v6623 = vld [vmem:[#allocation19 + $0x78] sm:$0xff]
        %v6624 = vld [vmem:[#allocation19 + $0x80] sm:$0xff]
        %v6625 = vld [vmem:[#allocation19 + $0x88] sm:$0xff]
        %v6626 = vld [vmem:[#allocation19 + $0x90] sm:$0xff]
        %v6627 = vld [vmem:[#allocation19 + $0x98] sm:$0xff]
        %v6628 = vld [vmem:[#allocation19 + $0xa0] sm:$0xff]
        %v6629 = vld [vmem:[#allocation19 + $0xa8] sm:$0xff]
        %v6630 = vld [vmem:[#allocation19 + $0xb0] sm:$0xff]
        %v6631 = vld [vmem:[#allocation19 + $0xb8] sm:$0xff]
        %v6632 = vld [vmem:[#allocation19 + $0xc0] sm:$0xff]
        %v6633 = vld [vmem:[#allocation19 + $0xc8] sm:$0xff]
        %v6634 = vld [vmem:[#allocation19 + $0xd0] sm:$0xff]
        %v6635 = vld [vmem:[#allocation19 + $0xd8] sm:$0xff]
        %v6636 = vld [vmem:[#allocation19 + $0xe0] sm:$0xff]
        %v6637 = vld [vmem:[#allocation19 + $0xe8] sm:$0xff]
        %v6638 = vld [vmem:[#allocation19 + $0xf0] sm:$0xff]
        %v6639 = vld [vmem:[#allocation19 + $0xf8] sm:$0xff]
        %v6640 = vld [vmem:[#allocation21] sm:$0x3]
        %v6642 = vlaneseq
        %v6643 = vshrl.u32 %v6642, 7
        %v6644 = vsub.s32 0, %v6643
        %v6645 = vrot.slane %v6640, %v6644
        %v6646 = vlaneseq
        %v6647 = vshrl.u32 %v6646, 7
        %v6648 = vsub.s32 1, %v6647
        %v6649 = vrot.slane %v6640, %v6648
        %6652 = vmatprep.subr.mxu0 %v6639
        %6653 = vmatpush1.msra.mxu0 %v6638
        %6654 = vmatprep.subr.mxu0 %v6637
        %6655 = vmatpush1.msra.mxu0 %v6636
        %6656 = vmatprep.subr.mxu0 %v6635
        %6657 = vmatpush1.msra.mxu0 %v6634
        %6658 = vmatprep.subr.mxu0 %v6633
        %6659 = vmatpush1.msra.mxu0 %v6632
        %6660 = vmatprep.subr.mxu0 %v6631
        %6661 = vmatpush1.msra.mxu0 %v6630
        %6662 = vmatprep.subr.mxu0 %v6629
        %6663 = vmatpush1.msra.mxu0 %v6628
        %6664 = vmatprep.subr.mxu0 %v6627
        %6665 = vmatpush1.msra.mxu0 %v6626
        %6666 = vmatprep.subr.mxu0 %v6625
        %6667 = vmatpush1.msra.mxu0 %v6624
        %6668 = vmatprep.subr.mxu0 %v6623
        %6669 = vmatpush1.msra.mxu0 %v6622
        %6670 = vmatprep.subr.mxu0 %v6621
        %6671 = vmatpush1.msra.mxu0 %v6620
        %6672 = vmatprep.subr.mxu0 %v6619
        %6673 = vmatpush1.msra.mxu0 %v6618
        %6674 = vmatprep.subr.mxu0 %v6617
        %6675 = vmatpush1.msra.mxu0 %v6616
        %6676 = vmatprep.subr.mxu0 %v6615
        %6677 = vmatpush1.msra.mxu0 %v6614
        %6678 = vmatprep.subr.mxu0 %v6613
        %6679 = vmatpush1.msra.mxu0 %v6612
        %6680 = vmatprep.subr.mxu0 %v6611
        %6681 = vmatpush1.msra.mxu0 %v6610
        %6682 = vmatprep.subr.mxu0 %v6609
        %6683 = vmatpush1.msra.mxu0 %v6608
        %6684 = vmatprep.subr.mxu0 0.0
        %6685 = vmatpush2.msra.mxu0 0.0
        %6686 = vmatprep.subr.mxu0 0.0
        %6687 = vmatpush2.msra.mxu0 0.0
        %6688 = vmatprep.subr.mxu0 0.0
        %6689 = vmatpush2.msra.mxu0 0.0
        %6690 = vmatprep.subr.mxu0 0.0
        %6691 = vmatpush2.msra.mxu0 0.0
        %6692 = vmatprep.subr.mxu0 0.0
        %6693 = vmatpush2.msra.mxu0 0.0
        %6694 = vmatprep.subr.mxu0 0.0
        %6695 = vmatpush2.msra.mxu0 0.0
        %6696 = vmatprep.subr.mxu0 0.0
        %6697 = vmatpush2.msra.mxu0 0.0
        %6698 = vmatprep.subr.mxu0 0.0
        %6699 = vmatpush2.msra.mxu0 0.0
        %6700 = vmatprep.subr.mxu0 0.0
        %6701 = vmatpush2.msra.mxu0 0.0
        %6702 = vmatprep.subr.mxu0 0.0
        %6703 = vmatpush2.msra.mxu0 0.0
        %6704 = vmatprep.subr.mxu0 0.0
        %6705 = vmatpush2.msra.mxu0 0.0
        %6706 = vmatprep.subr.mxu0 0.0
        %6707 = vmatpush2.msra.mxu0 0.0
        %6708 = vmatprep.subr.mxu0 0.0
        %6709 = vmatpush2.msra.mxu0 0.0
        %6710 = vmatprep.subr.mxu0 0.0
        %6711 = vmatpush2.msra.mxu0 0.0
        %6712 = vmatprep.subr.mxu0 0.0
        %6713 = vmatpush2.msra.mxu0 0.0
        %6714 = vmatprep.subr.mxu0 0.0
        %6715 = vmatpush2.msra.mxu0 0.0
        %6716 = vmatprep.mubr.f32.mxu0 0.0
        %6717 = vmatmul.mubr.f32.gmra.mxu0 %v6070
        %v6718 = vpop.f32.mrf.mxu0
        %v6719 = vadd.f32 %v6645, %v6718
        %v6720 = vpop.f32.mrf.mxu0
        %v6721 = vadd.f32 %v6649, %v6720
        %6722 = vdwg.mxu0
        %v6723 = vmax.f32 %v6719, 0.0
        %v6724 = vmax.f32 %v6721, 0.0
        %v6725 = vld [vmem:[#allocation22] sm:$0xff]
        %v6726 = vld [vmem:[#allocation22 + $0x8] sm:$0xff]
        %v6727 = vld [vmem:[#allocation22 + $0x10] sm:$0xff]
        %v6728 = vld [vmem:[#allocation22 + $0x18] sm:$0xff]
        %v6729 = vld [vmem:[#allocation22 + $0x20] sm:$0xff]
        %v6730 = vld [vmem:[#allocation22 + $0x28] sm:$0xff]
        %v6731 = vld [vmem:[#allocation22 + $0x30] sm:$0xff]
        %v6732 = vld [vmem:[#allocation22 + $0x38] sm:$0xff]
        %v6733 = vld [vmem:[#allocation22 + $0x40] sm:$0xff]
        %v6734 = vld [vmem:[#allocation22 + $0x48] sm:$0xff]
        %v6735 = vld [vmem:[#allocation22 + $0x50] sm:$0xff]
        %v6736 = vld [vmem:[#allocation22 + $0x58] sm:$0xff]
        %v6737 = vld [vmem:[#allocation22 + $0x60] sm:$0xff]
        %v6738 = vld [vmem:[#allocation22 + $0x68] sm:$0xff]
        %v6739 = vld [vmem:[#allocation22 + $0x70] sm:$0xff]
        %v6740 = vld [vmem:[#allocation22 + $0x78] sm:$0xff]
        %v6741 = vld [vmem:[#allocation22 + $0x80] sm:$0xff]
        %v6742 = vld [vmem:[#allocation22 + $0x88] sm:$0xff]
        %v6743 = vld [vmem:[#allocation22 + $0x90] sm:$0xff]
        %v6744 = vld [vmem:[#allocation22 + $0x98] sm:$0xff]
        %v6745 = vld [vmem:[#allocation22 + $0xa0] sm:$0xff]
        %v6746 = vld [vmem:[#allocation22 + $0xa8] sm:$0xff]
        %v6747 = vld [vmem:[#allocation22 + $0xb0] sm:$0xff]
        %v6748 = vld [vmem:[#allocation22 + $0xb8] sm:$0xff]
        %v6749 = vld [vmem:[#allocation22 + $0xc0] sm:$0xff]
        %v6750 = vld [vmem:[#allocation22 + $0xc8] sm:$0xff]
        %v6751 = vld [vmem:[#allocation22 + $0xd0] sm:$0xff]
        %v6752 = vld [vmem:[#allocation22 + $0xd8] sm:$0xff]
        %v6753 = vld [vmem:[#allocation22 + $0xe0] sm:$0xff]
        %v6754 = vld [vmem:[#allocation22 + $0xe8] sm:$0xff]
        %v6755 = vld [vmem:[#allocation22 + $0xf0] sm:$0xff]
        %v6756 = vld [vmem:[#allocation22 + $0xf8] sm:$0xff]
        %v6757 = vld [vmem:[#allocation22 + $0x100] sm:$0xff]
        %v6758 = vld [vmem:[#allocation22 + $0x108] sm:$0xff]
        %v6759 = vld [vmem:[#allocation22 + $0x110] sm:$0xff]
        %v6760 = vld [vmem:[#allocation22 + $0x118] sm:$0xff]
        %v6761 = vld [vmem:[#allocation22 + $0x120] sm:$0xff]
        %v6762 = vld [vmem:[#allocation22 + $0x128] sm:$0xff]
        %v6763 = vld [vmem:[#allocation22 + $0x130] sm:$0xff]
        %v6764 = vld [vmem:[#allocation22 + $0x138] sm:$0xff]
        %v6765 = vld [vmem:[#allocation22 + $0x140] sm:$0xff]
        %v6766 = vld [vmem:[#allocation22 + $0x148] sm:$0xff]
        %v6767 = vld [vmem:[#allocation22 + $0x150] sm:$0xff]
        %v6768 = vld [vmem:[#allocation22 + $0x158] sm:$0xff]
        %v6769 = vld [vmem:[#allocation22 + $0x160] sm:$0xff]
        %v6770 = vld [vmem:[#allocation22 + $0x168] sm:$0xff]
        %v6771 = vld [vmem:[#allocation22 + $0x170] sm:$0xff]
        %v6772 = vld [vmem:[#allocation22 + $0x178] sm:$0xff]
        %v6773 = vld [vmem:[#allocation22 + $0x180] sm:$0xff]
        %v6774 = vld [vmem:[#allocation22 + $0x188] sm:$0xff]
        %v6775 = vld [vmem:[#allocation22 + $0x190] sm:$0xff]
        %v6776 = vld [vmem:[#allocation22 + $0x198] sm:$0xff]
        %v6777 = vld [vmem:[#allocation22 + $0x1a0] sm:$0xff]
        %v6778 = vld [vmem:[#allocation22 + $0x1a8] sm:$0xff]
        %v6779 = vld [vmem:[#allocation22 + $0x1b0] sm:$0xff]
        %v6780 = vld [vmem:[#allocation22 + $0x1b8] sm:$0xff]
        %v6781 = vld [vmem:[#allocation22 + $0x1c0] sm:$0xff]
        %v6782 = vld [vmem:[#allocation22 + $0x1c8] sm:$0xff]
        %v6783 = vld [vmem:[#allocation22 + $0x1d0] sm:$0xff]
        %v6784 = vld [vmem:[#allocation22 + $0x1d8] sm:$0xff]
        %v6785 = vld [vmem:[#allocation22 + $0x1e0] sm:$0xff]
        %v6786 = vld [vmem:[#allocation22 + $0x1e8] sm:$0xff]
        %v6787 = vld [vmem:[#allocation22 + $0x1f0] sm:$0xff]
        %v6788 = vld [vmem:[#allocation22 + $0x1f8] sm:$0xff]
        %v6789 = vld [vmem:[#allocation24] sm:$0x3]
        %v6791 = vlaneseq
        %v6792 = vshrl.u32 %v6791, 7
        %v6793 = vsub.s32 0, %v6792
        %v6794 = vrot.slane %v6789, %v6793
        %v6795 = vlaneseq
        %v6796 = vshrl.u32 %v6795, 7
        %v6797 = vsub.s32 1, %v6796
        %v6798 = vrot.slane %v6789, %v6797
        %6801 = vmatprep.subr.mxu0 %v6756
        %6802 = vmatpush1.msra.mxu0 %v6755
        %6803 = vmatprep.subr.mxu0 %v6754
        %6804 = vmatpush1.msra.mxu0 %v6753
        %6805 = vmatprep.subr.mxu0 %v6752
        %6806 = vmatpush1.msra.mxu0 %v6751
        %6807 = vmatprep.subr.mxu0 %v6750
        %6808 = vmatpush1.msra.mxu0 %v6749
        %6809 = vmatprep.subr.mxu0 %v6748
        %6810 = vmatpush1.msra.mxu0 %v6747
        %6811 = vmatprep.subr.mxu0 %v6746
        %6812 = vmatpush1.msra.mxu0 %v6745
        %6813 = vmatprep.subr.mxu0 %v6744
        %6814 = vmatpush1.msra.mxu0 %v6743
        %6815 = vmatprep.subr.mxu0 %v6742
        %6816 = vmatpush1.msra.mxu0 %v6741
        %6817 = vmatprep.subr.mxu0 %v6740
        %6818 = vmatpush1.msra.mxu0 %v6739
        %6819 = vmatprep.subr.mxu0 %v6738
        %6820 = vmatpush1.msra.mxu0 %v6737
        %6821 = vmatprep.subr.mxu0 %v6736
        %6822 = vmatpush1.msra.mxu0 %v6735
        %6823 = vmatprep.subr.mxu0 %v6734
        %6824 = vmatpush1.msra.mxu0 %v6733
        %6825 = vmatprep.subr.mxu0 %v6732
        %6826 = vmatpush1.msra.mxu0 %v6731
        %6827 = vmatprep.subr.mxu0 %v6730
        %6828 = vmatpush1.msra.mxu0 %v6729
        %6829 = vmatprep.subr.mxu0 %v6728
        %6830 = vmatpush1.msra.mxu0 %v6727
        %6831 = vmatprep.subr.mxu0 %v6726
        %6832 = vmatpush1.msra.mxu0 %v6725
        %6833 = vmatprep.subr.mxu0 %v6788
        %6834 = vmatpush2.msra.mxu0 %v6787
        %6835 = vmatprep.subr.mxu0 %v6786
        %6836 = vmatpush2.msra.mxu0 %v6785
        %6837 = vmatprep.subr.mxu0 %v6784
        %6838 = vmatpush2.msra.mxu0 %v6783
        %6839 = vmatprep.subr.mxu0 %v6782
        %6840 = vmatpush2.msra.mxu0 %v6781
        %6841 = vmatprep.subr.mxu0 %v6780
        %6842 = vmatpush2.msra.mxu0 %v6779
        %6843 = vmatprep.subr.mxu0 %v6778
        %6844 = vmatpush2.msra.mxu0 %v6777
        %6845 = vmatprep.subr.mxu0 %v6776
        %6846 = vmatpush2.msra.mxu0 %v6775
        %6847 = vmatprep.subr.mxu0 %v6774
        %6848 = vmatpush2.msra.mxu0 %v6773
        %6849 = vmatprep.subr.mxu0 %v6772
        %6850 = vmatpush2.msra.mxu0 %v6771
        %6851 = vmatprep.subr.mxu0 %v6770
        %6852 = vmatpush2.msra.mxu0 %v6769
        %6853 = vmatprep.subr.mxu0 %v6768
        %6854 = vmatpush2.msra.mxu0 %v6767
        %6855 = vmatprep.subr.mxu0 %v6766
        %6856 = vmatpush2.msra.mxu0 %v6765
        %6857 = vmatprep.subr.mxu0 %v6764
        %6858 = vmatpush2.msra.mxu0 %v6763
        %6859 = vmatprep.subr.mxu0 %v6762
        %6860 = vmatpush2.msra.mxu0 %v6761
        %6861 = vmatprep.subr.mxu0 %v6760
        %6862 = vmatpush2.msra.mxu0 %v6759
        %6863 = vmatprep.subr.mxu0 %v6758
        %6864 = vmatpush2.msra.mxu0 %v6757
        %6865 = vmatprep.mubr.f32.mxu0 %v6724
        %6866 = vmatmul.mubr.f32.gmra.mxu0 %v6723
        %v6867 = vpop.f32.mrf.mxu0
        %v6868 = vadd.f32 %v6794, %v6867
        %v6869 = vpop.f32.mrf.mxu0
        %v6870 = vadd.f32 %v6798, %v6869
        %6871 = vdwg.mxu0
        %v6872 = vmax.f32 %v6868, 0.0
        %v6873 = vmax.f32 %v6870, 0.0
        %6874 = vst [vmem:[%s700 + $0xe0] sm:$0xff] %v6872
        %6875 = vst [vmem:[%s700 + $0xe8] sm:$0xff] %v6873
        %v6876 = vld [vmem:[#allocation19] sm:$0xff]
        %v6877 = vld [vmem:[#allocation19 + $0x8] sm:$0xff]
        %v6878 = vld [vmem:[#allocation19 + $0x10] sm:$0xff]
        %v6879 = vld [vmem:[#allocation19 + $0x18] sm:$0xff]
        %v6880 = vld [vmem:[#allocation19 + $0x20] sm:$0xff]
        %v6881 = vld [vmem:[#allocation19 + $0x28] sm:$0xff]
        %v6882 = vld [vmem:[#allocation19 + $0x30] sm:$0xff]
        %v6883 = vld [vmem:[#allocation19 + $0x38] sm:$0xff]
        %v6884 = vld [vmem:[#allocation19 + $0x40] sm:$0xff]
        %v6885 = vld [vmem:[#allocation19 + $0x48] sm:$0xff]
        %v6886 = vld [vmem:[#allocation19 + $0x50] sm:$0xff]
        %v6887 = vld [vmem:[#allocation19 + $0x58] sm:$0xff]
        %v6888 = vld [vmem:[#allocation19 + $0x60] sm:$0xff]
        %v6889 = vld [vmem:[#allocation19 + $0x68] sm:$0xff]
        %v6890 = vld [vmem:[#allocation19 + $0x70] sm:$0xff]
        %v6891 = vld [vmem:[#allocation19 + $0x78] sm:$0xff]
        %v6892 = vld [vmem:[#allocation19 + $0x80] sm:$0xff]
        %v6893 = vld [vmem:[#allocation19 + $0x88] sm:$0xff]
        %v6894 = vld [vmem:[#allocation19 + $0x90] sm:$0xff]
        %v6895 = vld [vmem:[#allocation19 + $0x98] sm:$0xff]
        %v6896 = vld [vmem:[#allocation19 + $0xa0] sm:$0xff]
        %v6897 = vld [vmem:[#allocation19 + $0xa8] sm:$0xff]
        %v6898 = vld [vmem:[#allocation19 + $0xb0] sm:$0xff]
        %v6899 = vld [vmem:[#allocation19 + $0xb8] sm:$0xff]
        %v6900 = vld [vmem:[#allocation19 + $0xc0] sm:$0xff]
        %v6901 = vld [vmem:[#allocation19 + $0xc8] sm:$0xff]
        %v6902 = vld [vmem:[#allocation19 + $0xd0] sm:$0xff]
        %v6903 = vld [vmem:[#allocation19 + $0xd8] sm:$0xff]
        %v6904 = vld [vmem:[#allocation19 + $0xe0] sm:$0xff]
        %v6905 = vld [vmem:[#allocation19 + $0xe8] sm:$0xff]
        %v6906 = vld [vmem:[#allocation19 + $0xf0] sm:$0xff]
        %v6907 = vld [vmem:[#allocation19 + $0xf8] sm:$0xff]
        %v6908 = vld [vmem:[#allocation21] sm:$0x3]
        %v6910 = vlaneseq
        %v6911 = vshrl.u32 %v6910, 7
        %v6912 = vsub.s32 0, %v6911
        %v6913 = vrot.slane %v6908, %v6912
        %v6914 = vlaneseq
        %v6915 = vshrl.u32 %v6914, 7
        %v6916 = vsub.s32 1, %v6915
        %v6917 = vrot.slane %v6908, %v6916
        %6920 = vmatprep.subr.mxu0 %v6907
        %6921 = vmatpush1.msra.mxu0 %v6906
        %6922 = vmatprep.subr.mxu0 %v6905
        %6923 = vmatpush1.msra.mxu0 %v6904
        %6924 = vmatprep.subr.mxu0 %v6903
        %6925 = vmatpush1.msra.mxu0 %v6902
        %6926 = vmatprep.subr.mxu0 %v6901
        %6927 = vmatpush1.msra.mxu0 %v6900
        %6928 = vmatprep.subr.mxu0 %v6899
        %6929 = vmatpush1.msra.mxu0 %v6898
        %6930 = vmatprep.subr.mxu0 %v6897
        %6931 = vmatpush1.msra.mxu0 %v6896
        %6932 = vmatprep.subr.mxu0 %v6895
        %6933 = vmatpush1.msra.mxu0 %v6894
        %6934 = vmatprep.subr.mxu0 %v6893
        %6935 = vmatpush1.msra.mxu0 %v6892
        %6936 = vmatprep.subr.mxu0 %v6891
        %6937 = vmatpush1.msra.mxu0 %v6890
        %6938 = vmatprep.subr.mxu0 %v6889
        %6939 = vmatpush1.msra.mxu0 %v6888
        %6940 = vmatprep.subr.mxu0 %v6887
        %6941 = vmatpush1.msra.mxu0 %v6886
        %6942 = vmatprep.subr.mxu0 %v6885
        %6943 = vmatpush1.msra.mxu0 %v6884
        %6944 = vmatprep.subr.mxu0 %v6883
        %6945 = vmatpush1.msra.mxu0 %v6882
        %6946 = vmatprep.subr.mxu0 %v6881
        %6947 = vmatpush1.msra.mxu0 %v6880
        %6948 = vmatprep.subr.mxu0 %v6879
        %6949 = vmatpush1.msra.mxu0 %v6878
        %6950 = vmatprep.subr.mxu0 %v6877
        %6951 = vmatpush1.msra.mxu0 %v6876
        %6952 = vmatprep.subr.mxu0 0.0
        %6953 = vmatpush2.msra.mxu0 0.0
        %6954 = vmatprep.subr.mxu0 0.0
        %6955 = vmatpush2.msra.mxu0 0.0
        %6956 = vmatprep.subr.mxu0 0.0
        %6957 = vmatpush2.msra.mxu0 0.0
        %6958 = vmatprep.subr.mxu0 0.0
        %6959 = vmatpush2.msra.mxu0 0.0
        %6960 = vmatprep.subr.mxu0 0.0
        %6961 = vmatpush2.msra.mxu0 0.0
        %6962 = vmatprep.subr.mxu0 0.0
        %6963 = vmatpush2.msra.mxu0 0.0
        %6964 = vmatprep.subr.mxu0 0.0
        %6965 = vmatpush2.msra.mxu0 0.0
        %6966 = vmatprep.subr.mxu0 0.0
        %6967 = vmatpush2.msra.mxu0 0.0
        %6968 = vmatprep.subr.mxu0 0.0
        %6969 = vmatpush2.msra.mxu0 0.0
        %6970 = vmatprep.subr.mxu0 0.0
        %6971 = vmatpush2.msra.mxu0 0.0
        %6972 = vmatprep.subr.mxu0 0.0
        %6973 = vmatpush2.msra.mxu0 0.0
        %6974 = vmatprep.subr.mxu0 0.0
        %6975 = vmatpush2.msra.mxu0 0.0
        %6976 = vmatprep.subr.mxu0 0.0
        %6977 = vmatpush2.msra.mxu0 0.0
        %6978 = vmatprep.subr.mxu0 0.0
        %6979 = vmatpush2.msra.mxu0 0.0
        %6980 = vmatprep.subr.mxu0 0.0
        %6981 = vmatpush2.msra.mxu0 0.0
        %6982 = vmatprep.subr.mxu0 0.0
        %6983 = vmatpush2.msra.mxu0 0.0
        %6984 = vmatprep.mubr.f32.mxu0 0.0
        %6985 = vmatmul.mubr.f32.gmra.mxu0 %v6071
        %v6986 = vpop.f32.mrf.mxu0
        %v6987 = vadd.f32 %v6913, %v6986
        %v6988 = vpop.f32.mrf.mxu0
        %v6989 = vadd.f32 %v6917, %v6988
        %6990 = vdwg.mxu0
        %v6991 = vmax.f32 %v6987, 0.0
        %v6992 = vmax.f32 %v6989, 0.0
        %v6993 = vld [vmem:[#allocation22] sm:$0xff]
        %v6994 = vld [vmem:[#allocation22 + $0x8] sm:$0xff]
        %v6995 = vld [vmem:[#allocation22 + $0x10] sm:$0xff]
        %v6996 = vld [vmem:[#allocation22 + $0x18] sm:$0xff]
        %v6997 = vld [vmem:[#allocation22 + $0x20] sm:$0xff]
        %v6998 = vld [vmem:[#allocation22 + $0x28] sm:$0xff]
        %v6999 = vld [vmem:[#allocation22 + $0x30] sm:$0xff]
        %v7000 = vld [vmem:[#allocation22 + $0x38] sm:$0xff]
        %v7001 = vld [vmem:[#allocation22 + $0x40] sm:$0xff]
        %v7002 = vld [vmem:[#allocation22 + $0x48] sm:$0xff]
        %v7003 = vld [vmem:[#allocation22 + $0x50] sm:$0xff]
        %v7004 = vld [vmem:[#allocation22 + $0x58] sm:$0xff]
        %v7005 = vld [vmem:[#allocation22 + $0x60] sm:$0xff]
        %v7006 = vld [vmem:[#allocation22 + $0x68] sm:$0xff]
        %v7007 = vld [vmem:[#allocation22 + $0x70] sm:$0xff]
        %v7008 = vld [vmem:[#allocation22 + $0x78] sm:$0xff]
        %v7009 = vld [vmem:[#allocation22 + $0x80] sm:$0xff]
        %v7010 = vld [vmem:[#allocation22 + $0x88] sm:$0xff]
        %v7011 = vld [vmem:[#allocation22 + $0x90] sm:$0xff]
        %v7012 = vld [vmem:[#allocation22 + $0x98] sm:$0xff]
        %v7013 = vld [vmem:[#allocation22 + $0xa0] sm:$0xff]
        %v7014 = vld [vmem:[#allocation22 + $0xa8] sm:$0xff]
        %v7015 = vld [vmem:[#allocation22 + $0xb0] sm:$0xff]
        %v7016 = vld [vmem:[#allocation22 + $0xb8] sm:$0xff]
        %v7017 = vld [vmem:[#allocation22 + $0xc0] sm:$0xff]
        %v7018 = vld [vmem:[#allocation22 + $0xc8] sm:$0xff]
        %v7019 = vld [vmem:[#allocation22 + $0xd0] sm:$0xff]
        %v7020 = vld [vmem:[#allocation22 + $0xd8] sm:$0xff]
        %v7021 = vld [vmem:[#allocation22 + $0xe0] sm:$0xff]
        %v7022 = vld [vmem:[#allocation22 + $0xe8] sm:$0xff]
        %v7023 = vld [vmem:[#allocation22 + $0xf0] sm:$0xff]
        %v7024 = vld [vmem:[#allocation22 + $0xf8] sm:$0xff]
        %v7025 = vld [vmem:[#allocation22 + $0x100] sm:$0xff]
        %v7026 = vld [vmem:[#allocation22 + $0x108] sm:$0xff]
        %v7027 = vld [vmem:[#allocation22 + $0x110] sm:$0xff]
        %v7028 = vld [vmem:[#allocation22 + $0x118] sm:$0xff]
        %v7029 = vld [vmem:[#allocation22 + $0x120] sm:$0xff]
        %v7030 = vld [vmem:[#allocation22 + $0x128] sm:$0xff]
        %v7031 = vld [vmem:[#allocation22 + $0x130] sm:$0xff]
        %v7032 = vld [vmem:[#allocation22 + $0x138] sm:$0xff]
        %v7033 = vld [vmem:[#allocation22 + $0x140] sm:$0xff]
        %v7034 = vld [vmem:[#allocation22 + $0x148] sm:$0xff]
        %v7035 = vld [vmem:[#allocation22 + $0x150] sm:$0xff]
        %v7036 = vld [vmem:[#allocation22 + $0x158] sm:$0xff]
        %v7037 = vld [vmem:[#allocation22 + $0x160] sm:$0xff]
        %v7038 = vld [vmem:[#allocation22 + $0x168] sm:$0xff]
        %v7039 = vld [vmem:[#allocation22 + $0x170] sm:$0xff]
        %v7040 = vld [vmem:[#allocation22 + $0x178] sm:$0xff]
        %v7041 = vld [vmem:[#allocation22 + $0x180] sm:$0xff]
        %v7042 = vld [vmem:[#allocation22 + $0x188] sm:$0xff]
        %v7043 = vld [vmem:[#allocation22 + $0x190] sm:$0xff]
        %v7044 = vld [vmem:[#allocation22 + $0x198] sm:$0xff]
        %v7045 = vld [vmem:[#allocation22 + $0x1a0] sm:$0xff]
        %v7046 = vld [vmem:[#allocation22 + $0x1a8] sm:$0xff]
        %v7047 = vld [vmem:[#allocation22 + $0x1b0] sm:$0xff]
        %v7048 = vld [vmem:[#allocation22 + $0x1b8] sm:$0xff]
        %v7049 = vld [vmem:[#allocation22 + $0x1c0] sm:$0xff]
        %v7050 = vld [vmem:[#allocation22 + $0x1c8] sm:$0xff]
        %v7051 = vld [vmem:[#allocation22 + $0x1d0] sm:$0xff]
        %v7052 = vld [vmem:[#allocation22 + $0x1d8] sm:$0xff]
        %v7053 = vld [vmem:[#allocation22 + $0x1e0] sm:$0xff]
        %v7054 = vld [vmem:[#allocation22 + $0x1e8] sm:$0xff]
        %v7055 = vld [vmem:[#allocation22 + $0x1f0] sm:$0xff]
        %v7056 = vld [vmem:[#allocation22 + $0x1f8] sm:$0xff]
        %v7057 = vld [vmem:[#allocation24] sm:$0x3]
        %v7059 = vlaneseq
        %v7060 = vshrl.u32 %v7059, 7
        %v7061 = vsub.s32 0, %v7060
        %v7062 = vrot.slane %v7057, %v7061
        %v7063 = vlaneseq
        %v7064 = vshrl.u32 %v7063, 7
        %v7065 = vsub.s32 1, %v7064
        %v7066 = vrot.slane %v7057, %v7065
        %7069 = vmatprep.subr.mxu0 %v7024
        %7070 = vmatpush1.msra.mxu0 %v7023
        %7071 = vmatprep.subr.mxu0 %v7022
        %7072 = vmatpush1.msra.mxu0 %v7021
        %7073 = vmatprep.subr.mxu0 %v7020
        %7074 = vmatpush1.msra.mxu0 %v7019
        %7075 = vmatprep.subr.mxu0 %v7018
        %7076 = vmatpush1.msra.mxu0 %v7017
        %7077 = vmatprep.subr.mxu0 %v7016
        %7078 = vmatpush1.msra.mxu0 %v7015
        %7079 = vmatprep.subr.mxu0 %v7014
        %7080 = vmatpush1.msra.mxu0 %v7013
        %7081 = vmatprep.subr.mxu0 %v7012
        %7082 = vmatpush1.msra.mxu0 %v7011
        %7083 = vmatprep.subr.mxu0 %v7010
        %7084 = vmatpush1.msra.mxu0 %v7009
        %7085 = vmatprep.subr.mxu0 %v7008
        %7086 = vmatpush1.msra.mxu0 %v7007
        %7087 = vmatprep.subr.mxu0 %v7006
        %7088 = vmatpush1.msra.mxu0 %v7005
        %7089 = vmatprep.subr.mxu0 %v7004
        %7090 = vmatpush1.msra.mxu0 %v7003
        %7091 = vmatprep.subr.mxu0 %v7002
        %7092 = vmatpush1.msra.mxu0 %v7001
        %7093 = vmatprep.subr.mxu0 %v7000
        %7094 = vmatpush1.msra.mxu0 %v6999
        %7095 = vmatprep.subr.mxu0 %v6998
        %7096 = vmatpush1.msra.mxu0 %v6997
        %7097 = vmatprep.subr.mxu0 %v6996
        %7098 = vmatpush1.msra.mxu0 %v6995
        %7099 = vmatprep.subr.mxu0 %v6994
        %7100 = vmatpush1.msra.mxu0 %v6993
        %7101 = vmatprep.subr.mxu0 %v7056
        %7102 = vmatpush2.msra.mxu0 %v7055
        %7103 = vmatprep.subr.mxu0 %v7054
        %7104 = vmatpush2.msra.mxu0 %v7053
        %7105 = vmatprep.subr.mxu0 %v7052
        %7106 = vmatpush2.msra.mxu0 %v7051
        %7107 = vmatprep.subr.mxu0 %v7050
        %7108 = vmatpush2.msra.mxu0 %v7049
        %7109 = vmatprep.subr.mxu0 %v7048
        %7110 = vmatpush2.msra.mxu0 %v7047
        %7111 = vmatprep.subr.mxu0 %v7046
        %7112 = vmatpush2.msra.mxu0 %v7045
        %7113 = vmatprep.subr.mxu0 %v7044
        %7114 = vmatpush2.msra.mxu0 %v7043
        %7115 = vmatprep.subr.mxu0 %v7042
        %7116 = vmatpush2.msra.mxu0 %v7041
        %7117 = vmatprep.subr.mxu0 %v7040
        %7118 = vmatpush2.msra.mxu0 %v7039
        %7119 = vmatprep.subr.mxu0 %v7038
        %7120 = vmatpush2.msra.mxu0 %v7037
        %7121 = vmatprep.subr.mxu0 %v7036
        %7122 = vmatpush2.msra.mxu0 %v7035
        %7123 = vmatprep.subr.mxu0 %v7034
        %7124 = vmatpush2.msra.mxu0 %v7033
        %7125 = vmatprep.subr.mxu0 %v7032
        %7126 = vmatpush2.msra.mxu0 %v7031
        %7127 = vmatprep.subr.mxu0 %v7030
        %7128 = vmatpush2.msra.mxu0 %v7029
        %7129 = vmatprep.subr.mxu0 %v7028
        %7130 = vmatpush2.msra.mxu0 %v7027
        %7131 = vmatprep.subr.mxu0 %v7026
        %7132 = vmatpush2.msra.mxu0 %v7025
        %7133 = vmatprep.mubr.f32.mxu0 %v6992
        %7134 = vmatmul.mubr.f32.gmra.mxu0 %v6991
        %v7135 = vpop.f32.mrf.mxu0
        %v7136 = vadd.f32 %v7062, %v7135
        %v7137 = vpop.f32.mrf.mxu0
        %v7138 = vadd.f32 %v7066, %v7137
        %7139 = vdwg.mxu0
        %v7140 = vmax.f32 %v7136, 0.0
        %v7141 = vmax.f32 %v7138, 0.0
        %7142 = vst [vmem:[%s700 + $0xf0] sm:$0xff] %v7140
        %7143 = vst [vmem:[%s700 + $0xf8] sm:$0xff] %v7141
        %p7144 = scmp.lt.s32.totalorder %s36, 1
        %s7145 = scalar_select %p7144, %s36, 1
        %s7146 = smul.addr %s7145, 32
        %s7147 = smul.addr %s7146, 8
        %s7148 = scalar_lea.vmem %s15, %s7147
        // Predicated region
        $region141: #{test_forward.1} parent=79 // pred_check
          %p7149 = pneg %p374
        $region142: #{test_forward.1} parent=79 // pred_check_branch
          %7151 = sbr.rel (%p7149) target = $region144
        $region143: #{test_forward.1} parent=79 // pred_region
          _
        $region144: #{test_forward.1} parent=79 // pred_fallthru
          _
      $region80: #{test_forward.1} parent=5 // pred_fallthru
        _
      %p7152 = scmp.le.s32.totalorder 2, %s31
      // Predicated region
      $region145: #{test_forward.1} parent=5 // pred_check
        %p7153 = pneg %p7152
      $region146: #{test_forward.1} parent=5 // pred_check_branch
        %7155 = sbr.rel (%p7153) target = $region148
      $region147: #{test_forward.1} parent=5 // pred_region
        %s7156 = ssub.s32 %s31, 2
        // Predicated region
        $region149: #{test_forward.1} parent=147 // pred_check
          %p7157 = pneg %p380
        $region150: #{test_forward.1} parent=147 // pred_check_branch
          %7159 = sbr.rel (%p7157) target = $region152
        $region151: #{test_forward.1} parent=147 // pred_region
          %p7160 = scmp.lt.s32.totalorder %s37, 1
          %s7161 = scalar_select %p7160, %s37, 1
          %s7162 = smul.addr %s7161, 32
          %s7163 = smul.addr %s7162, 8
          %s7164 = scalar_lea.vmem %s15, %s7163
        $region152: #{test_forward.1} parent=147 // pred_fallthru
          _
      $region148: #{test_forward.1} parent=5 // pred_fallthru
        _
    $region6: #{test_forward.1} parent=1 // loop_footer
      %s35 = sadd.s32 1, %s31
    $region7: #{test_forward.1} parent=1 // loop_footer_branch
      %30 = sbr.rel target = $region3
    $region8: #{test_forward.1} parent=1 // loop_exit
      _
    %7165 = vsyncpa [#allocation3], 1
    %s7166 = scalar_lea.sflag [#allocation3], 1
    %7167 = vsyncpa %s7166, 1
    %7168 = vsyncpa [#allocation5], 1
    %7169 = vsyncpa [#allocation8], 1
    %7170 = vsyncpa [#allocation11], 1
    %7171 = vsyncpa [#allocation14], 1
    %7172 = vsyncpa [#allocation17], 1
    %7173 = vsyncpa [#allocation20], 1
    %7174 = vsyncpa [#allocation23], 1

</llo_original>
